<compile_context>
chip_gen: v7x
topology: tpu7x:2x2x1
jax: 0.10.0
libtpu: 0.0.40
codegen_flags: <defaults>
</compile_context>

<pallas_src>
import functools
import math

import jax
import jax.numpy as jnp
from jax.experimental import pallas as pl
from jax.experimental.pallas import tpu as pltpu


# ------------------------------ in-kernel helpers ------------------------------

def _f32(ref):
    return ref[...].astype(jnp.float32)


def _layernorm(x, g, b, eps=1e-5):
    mu = jnp.mean(x, axis=-1, keepdims=True)
    var = jnp.mean(jnp.square(x - mu), axis=-1, keepdims=True)
    return (x - mu) * jax.lax.rsqrt(var + eps) * g + b


def _transformer_blocks(h, layer_refs, num_layers, num_heads):
    """Pre-LN transformer blocks, fully VMEM/vreg resident.

    h: (G, T, E) float32 -- attention runs independently within each of the G
    groups (G=1 for the encoder; G=num_frequencies for the decoder).
    TODO(synk): TransformerEncoder class not provided; standard pre-LN
    self-attention blocks are used as a shape-compatible stand-in.
    """
    G, T, E = h.shape
    dh = E // num_heads
    scale = 1.0 / math.sqrt(dh)
    for l in range(num_layers):
        (ln1g, ln1b, qkvw, qkvb, outw, outb,
         ln2g, ln2b, fc1w, fc1b, fc2w, fc2b) = layer_refs[12 * l:12 * (l + 1)]

        # ---------------- attention ----------------
        x1 = _layernorm(h, _f32(ln1g), _f32(ln1b))
        qkv = (jnp.dot(x1.reshape(G * T, E), _f32(qkvw),
                       preferred_element_type=jnp.float32) + _f32(qkvb))
        qkv = qkv.reshape(G, T, 3 * E)
        outw_f = _f32(outw)
        attn = _f32(outb)                                       # (1, E), broadcasts
        for hh in range(num_heads):
            q = qkv[:, :, hh * dh:(hh + 1) * dh]                # (G, T, dh)
            k = qkv[:, :, E + hh * dh:E + (hh + 1) * dh]
            v = qkv[:, :, 2 * E + hh * dh:2 * E + (hh + 1) * dh]
            # q @ k^T via contraction over the last dims (no materialized transpose)
            s = jax.lax.dot_general(q, k, (((2,), (2,)), ((0,), (0,))),
                                    preferred_element_type=jnp.float32) * scale
            s = s - jnp.max(s, axis=-1, keepdims=True)
            p = jnp.exp(s)
            p = p * pl.reciprocal(jnp.sum(p, axis=-1, keepdims=True), approx=True)
            o_h = jax.lax.dot_general(p, v, (((2,), (1,)), ((0,), (0,))),
                                      preferred_element_type=jnp.float32)
            # accumulate the output projection per head (avoids a lane concat)
            attn = attn + jnp.dot(o_h.reshape(G * T, dh),
                                  outw_f[hh * dh:(hh + 1) * dh, :],
                                  preferred_element_type=jnp.float32)
        h = h + attn.reshape(G, T, E)

        # ---------------- MLP ----------------
        x2 = _layernorm(h, _f32(ln2g), _f32(ln2b))
        m = jnp.dot(x2.reshape(G * T, E), _f32(fc1w),
                    preferred_element_type=jnp.float32) + _f32(fc1b)
        # TODO(synk): PyTorch nn.GELU default is the exact erf form; tanh approx used.
        m = jax.nn.gelu(m, approximate=True)
        m = jnp.dot(m, _f32(fc2w), preferred_element_type=jnp.float32) + _f32(fc2b)
        h = h + m.reshape(G, T, E)
    return h


# ----------------------------- fused Pallas kernels -----------------------------

def _encoder_kernel(*refs, num_layers, num_heads, num_masses):
    pars_ref, pos_ref, wtok_ref, btok_ref = refs[:4]
    rest = refs[4:]
    layer_refs = rest[:12 * num_layers]
    epw_ref, epb_ref, out_ref = rest[12 * num_layers:]

    # GroupwiseProjection with encoding_dim == 1 folds into a per-token table:
    # emb[t, :] = pars[t] * W_group(t) + b_group(t)
    pars = _f32(pars_ref)[0]                                    # (T, 1)
    emb = pars * _f32(wtok_ref) + _f32(btok_ref)                # (T, E_enc)
    h = (emb + _f32(pos_ref)[0])[None]                          # (1, T, E_enc)
    h = _transformer_blocks(h, layer_refs, num_layers, num_heads)
    amp = h[0] + emb                                            # transformer(x,pos) + x
    amp = amp[:num_masses]                                      # (M, E_enc)
    # embedding_projection fused here (same result as projecting after repeat).
    out = jnp.dot(amp, _f32(epw_ref),
                  preferred_element_type=jnp.float32) + _f32(epb_ref)
    out_ref[0] = out.astype(out_ref.dtype)


def _decoder_kernel(*refs, num_layers, num_heads):
    amp_ref, freq_ref, fpw_ref, fpb_ref = refs[:4]
    rest = refs[4:]
    layer_refs = rest[:12 * num_layers]
    w2t_ref, b2_ref, out_ref = rest[12 * num_layers:]

    # frequency_projection fused (Linear(1 -> E_dec) == scalar * row + bias)
    freq = _f32(freq_ref)[0]                                    # (F, 1)
    fe = freq * _f32(fpw_ref) + _f32(fpb_ref)                   # (F, E_dec)
    # amp block re-used for every frequency (no repeat_interleave materialized)
    x = _f32(amp_ref)[0]                                        # (M, E_dec)
    h = x[None, :, :] + fe[:, None, :]                          # (F, M, E_dec)
    h = _transformer_blocks(h, layer_refs, num_layers, num_heads)
    amps = h + fe[:, None, :]                                   # freq_emb + decoder(...)
    # final Linear(E_dec -> 1), emitted lane-dense as (F, M)
    res = jnp.sum(amps * _f32(w2t_ref)[None], axis=-1) + _f32(b2_ref)
    out_ref[0] = res.astype(out_ref.dtype)


# ------------------------------- wrapper / model -------------------------------

def positional_encoding(x, dim, base=10000.0):
    # TODO(synk): PositionalEncoding class not provided; value-based sinusoidal
    # encoding of the parameter values is used (shape-compatible stand-in).
    half = dim // 2
    freqs = base ** (-(jnp.arange(half, dtype=jnp.float32) * 2.0) / dim)
    ang = x[..., None] * freqs                                   # (B, T, half)
    pe = jnp.stack([jnp.sin(ang), jnp.cos(ang)], axis=-1)        # (B, T, half, 2)
    return pe.reshape(*x.shape, dim)


def _full_spec(arr):
    nd = arr.ndim
    return pl.BlockSpec(arr.shape, lambda *g, _n=nd: (0,) * _n)


def _flatten_layer_weights(blocks):
    flat = []
    for blk in blocks:
        flat += [blk["ln1"]["g"][None, :], blk["ln1"]["b"][None, :],
                 blk["qkv"]["w"], blk["qkv"]["b"][None, :],
                 blk["out"]["w"], blk["out"]["b"][None, :],
                 blk["ln2"]["g"][None, :], blk["ln2"]["b"][None, :],
                 blk["fc1"]["w"], blk["fc1"]["b"][None, :],
                 blk["fc2"]["w"], blk["fc2"]["b"][None, :]]
    return flat


def implicit_transformer_forward(params, config, frequency, parameters):
    num_masses = parameters[0].shape[1]
    len_groups = [g.shape[1] for g in parameters]
    B, num_freq = frequency.shape
    e_enc = config["encoder"]["embed_dim"]
    e_dec = config["decoder"]["embed_dim"]
    T = int(sum(len_groups))
    M = num_masses

    all_pars = jnp.concatenate(parameters, axis=1)               # (B, T)
    pos = positional_encoding(all_pars, e_enc)                   # (B, T, E_enc)

    # GroupwiseProjection (encoding_dim == 1) as per-token weight/bias tables.
    wtok = jnp.concatenate(
        [jnp.tile(params["groupwise"][i]["w"].reshape(1, e_enc), (L, 1))
         for i, L in enumerate(len_groups)], axis=0)             # (T, E_enc)
    btok = jnp.concatenate(
        [jnp.tile(params["groupwise"][i]["b"].reshape(1, e_enc), (L, 1))
         for i, L in enumerate(len_groups)], axis=0)             # (T, E_enc)

    enc_w = _flatten_layer_weights(params["transformer"]["blocks"])
    dec_w = _flatten_layer_weights(params["decoder"]["blocks"])
    n_enc = len(params["transformer"]["blocks"])
    n_dec = len(params["decoder"]["blocks"])

    epw = params["embedding_projection"]["w"]                    # (E_enc, E_dec)
    epb = params["embedding_projection"]["b"][None, :]           # (1, E_dec)

    # ----- fused encoder: groupwise proj + transformer + residual + embed proj -----
    enc_inputs = [all_pars[..., None], pos, wtok, btok] + enc_w + [epw, epb]
    enc_specs = ([pl.BlockSpec((1, T, 1), lambda b: (b, 0, 0)),
                  pl.BlockSpec((1, T, e_enc), lambda b: (b, 0, 0)),
                  _full_spec(wtok), _full_spec(btok)]
                 + [_full_spec(a) for a in enc_w]
                 + [_full_spec(epw), _full_spec(epb)])
    amp_proj = pl.pallas_call(
        functools.partial(_encoder_kernel, num_layers=n_enc,
                          num_heads=config["encoder"]["num_heads"], num_masses=M),
        out_shape=jax.ShapeDtypeStruct((B, M, e_dec), jnp.float32),
        grid=(B,),
        in_specs=enc_specs,
        out_specs=pl.BlockSpec((1, M, e_dec), lambda b: (b, 0, 0)),
        compiler_params=pltpu.CompilerParams(dimension_semantics=("parallel",)),
    )(*enc_inputs)

    # ----- fused decoder: freq proj + broadcast + transformer + residual + Linear(->1) -----
    fpw = params["frequency_projection"]["w"].reshape(1, e_dec)
    fpb = params["frequency_projection"]["b"][None, :]
    w2t = params["linear_projection2"]["w"].reshape(1, e_dec)    # (E_dec,1) -> row
    b2 = params["linear_projection2"]["b"].reshape(1, 1)

    dec_inputs = [amp_proj, frequency[..., None], fpw, fpb] + dec_w + [w2t, b2]
    dec_specs = ([pl.BlockSpec((1, M, e_dec), lambda b: (b, 0, 0)),
                  pl.BlockSpec((1, num_freq, 1), lambda b: (b, 0, 0)),
                  _full_spec(fpw), _full_spec(fpb)]
                 + [_full_spec(a) for a in dec_w]
                 + [_full_spec(w2t), _full_spec(b2)])
    out = pl.pallas_call(
        functools.partial(_decoder_kernel, num_layers=n_dec,
                          num_heads=config["decoder"]["num_heads"]),
        out_shape=jax.ShapeDtypeStruct((B, num_freq, M), jnp.float32),
        grid=(B,),
        in_specs=dec_specs,
        out_specs=pl.BlockSpec((1, num_freq, M), lambda b: (b, 0, 0)),
        compiler_params=pltpu.CompilerParams(dimension_semantics=("parallel",)),
    )(*dec_inputs)
    return out                                                   # (B, F, M)


# ------------------------------ init (synthetic) ------------------------------

def _xavier_uniform(key, din, dout):
    bound = math.sqrt(6.0 / (din + dout))
    return jax.random.uniform(key, (din, dout), jnp.float32, -bound, bound)


def init_linear(key, din, dout):
    return {"w": _xavier_uniform(key, din, dout),
            "b": jnp.zeros((dout,), jnp.float32)}


def init_layernorm(key, dim):
    return {"g": 1.0 + 0.02 * jax.random.normal(key, (dim,), jnp.float32),
            "b": jnp.zeros((dim,), jnp.float32)}


def init_block(key, embed_dim, mlp_dim):
    k = jax.random.split(key, 6)
    return {
        "ln1": init_layernorm(k[0], embed_dim),
        "qkv": init_linear(k[1], embed_dim, 3 * embed_dim),
        "out": init_linear(k[2], embed_dim, embed_dim),
        "ln2": init_layernorm(k[3], embed_dim),
        "fc1": init_linear(k[4], embed_dim, mlp_dim),
        "fc2": init_linear(k[5], mlp_dim, embed_dim),
    }


def init_params(key, config, num_groups):
    enc, dec = config["encoder"], config["decoder"]
    encoding_dim = 1  # input_encoding == 'none'
    keys = jax.random.split(key, 6)
    return {
        "groupwise": [init_linear(k, encoding_dim, enc["embed_dim"])
                      for k in jax.random.split(keys[0], num_groups)],
        "transformer": {"blocks": [init_block(k, enc["embed_dim"], enc["mlp_dim"])
                                   for k in jax.random.split(keys[1], enc["num_layers"])]},
        "decoder": {"blocks": [init_block(k, dec["embed_dim"], dec["mlp_dim"])
                               for k in jax.random.split(keys[2], dec["num_layers"])]},
        "frequency_projection": init_linear(keys[3], encoding_dim, dec["embed_dim"]),
        "embedding_projection": init_linear(keys[4], enc["embed_dim"], dec["embed_dim"]),
        "linear_projection2": init_linear(keys[5], dec["embed_dim"], 1),
    }


# ----------------------------------- main -----------------------------------

if __name__ == "__main__":
    config = {
        "input_encoding": "none",
        "encoding_dim": 1,
        "encoder": {"embed_dim": 32, "num_heads": 4, "num_layers": 1, "mlp_dim": 64},
        "decoder": {"embed_dim": 32, "num_heads": 4, "num_layers": 1, "mlp_dim": 64},
    }

    key = jax.random.PRNGKey(0)
    k_p0, k_p1, k_f, k_init = jax.random.split(key, 4)

    B, num_frequencies, num_masses, extra_pars = 2, 8, 8, 4
    parameters = (
        jax.random.normal(k_p0, (B, num_masses), jnp.float32),   # group 0 (masses)
        jax.random.normal(k_p1, (B, extra_pars), jnp.float32),   # group 1 (other pars)
    )
    frequency = jax.random.uniform(k_f, (B, num_frequencies), jnp.float32)

    params = init_params(k_init, config, num_groups=len(parameters))

    fwd = jax.jit(lambda f, p: implicit_transformer_forward(params, config, f, p))
    out = fwd(frequency, parameters)
    jax.block_until_ready(out)
    assert out.shape == (B, num_frequencies, num_masses), out.shape
    assert jnp.all(jnp.isfinite(out))
    print("KERNEL_OK")
</pallas_src>

<mosaic_0001>
module attributes {stable_mosaic.version = 11 : i64} {
  func.func @_encoder_kernel(%arg0: i32, %arg1: memref<1x12x1xf32, #tpu.memory_space<vmem>>, %arg2: memref<1x12x32xf32, #tpu.memory_space<vmem>>, %arg3: memref<12x32xf32, #tpu.memory_space<vmem>>, %arg4: memref<12x32xf32, #tpu.memory_space<vmem>>, %arg5: memref<1x32xf32, #tpu.memory_space<vmem>>, %arg6: memref<1x32xf32, #tpu.memory_space<vmem>>, %arg7: memref<32x96xf32, #tpu.memory_space<vmem>>, %arg8: memref<1x96xf32, #tpu.memory_space<vmem>>, %arg9: memref<32x32xf32, #tpu.memory_space<vmem>>, %arg10: memref<1x32xf32, #tpu.memory_space<vmem>>, %arg11: memref<1x32xf32, #tpu.memory_space<vmem>>, %arg12: memref<1x32xf32, #tpu.memory_space<vmem>>, %arg13: memref<32x64xf32, #tpu.memory_space<vmem>>, %arg14: memref<1x64xf32, #tpu.memory_space<vmem>>, %arg15: memref<64x32xf32, #tpu.memory_space<vmem>>, %arg16: memref<1x32xf32, #tpu.memory_space<vmem>>, %arg17: memref<32x32xf32, #tpu.memory_space<vmem>>, %arg18: memref<1x32xf32, #tpu.memory_space<vmem>>, %arg19: memref<1x8x32xf32, #tpu.memory_space<vmem>>) attributes {dimension_semantics = [#tpu.dimension_semantics<parallel>], iteration_bounds = array<i64: 2>, scalar_prefetch = 0 : i64, scratch_operands = 0 : i64, tpu.core_type = #tpu.core_type<tc>, window_params = [{transform_indices = @transform_0, window_bounds = array<i64: 1, 12, 1>}, {transform_indices = @transform_1, window_bounds = array<i64: 1, 12, 32>}, {pipeline_mode = #tpu.pipeline_mode<synchronous>, transform_indices = @transform_2, window_bounds = array<i64: 12, 32>}, {pipeline_mode = #tpu.pipeline_mode<synchronous>, transform_indices = @transform_3, window_bounds = array<i64: 12, 32>}, {pipeline_mode = #tpu.pipeline_mode<synchronous>, transform_indices = @transform_4, window_bounds = array<i64: 1, 32>}, {pipeline_mode = #tpu.pipeline_mode<synchronous>, transform_indices = @transform_5, window_bounds = array<i64: 1, 32>}, {pipeline_mode = #tpu.pipeline_mode<synchronous>, transform_indices = @transform_6, window_bounds = array<i64: 32, 96>}, {pipeline_mode = #tpu.pipeline_mode<synchronous>, transform_indices = @transform_7, window_bounds = array<i64: 1, 96>}, {pipeline_mode = #tpu.pipeline_mode<synchronous>, transform_indices = @transform_8, window_bounds = array<i64: 32, 32>}, {pipeline_mode = #tpu.pipeline_mode<synchronous>, transform_indices = @transform_9, window_bounds = array<i64: 1, 32>}, {pipeline_mode = #tpu.pipeline_mode<synchronous>, transform_indices = @transform_10, window_bounds = array<i64: 1, 32>}, {pipeline_mode = #tpu.pipeline_mode<synchronous>, transform_indices = @transform_11, window_bounds = array<i64: 1, 32>}, {pipeline_mode = #tpu.pipeline_mode<synchronous>, transform_indices = @transform_12, window_bounds = array<i64: 32, 64>}, {pipeline_mode = #tpu.pipeline_mode<synchronous>, transform_indices = @transform_13, window_bounds = array<i64: 1, 64>}, {pipeline_mode = #tpu.pipeline_mode<synchronous>, transform_indices = @transform_14, window_bounds = array<i64: 64, 32>}, {pipeline_mode = #tpu.pipeline_mode<synchronous>, transform_indices = @transform_15, window_bounds = array<i64: 1, 32>}, {pipeline_mode = #tpu.pipeline_mode<synchronous>, transform_indices = @transform_16, window_bounds = array<i64: 32, 32>}, {pipeline_mode = #tpu.pipeline_mode<synchronous>, transform_indices = @transform_17, window_bounds = array<i64: 1, 32>}, {transform_indices = @transform_18, window_bounds = array<i64: 1, 8, 32>}]} {
    %c0 = arith.constant 0 : index
    %c0_0 = arith.constant 0 : index
    %c0_1 = arith.constant 0 : index
    %0 = vector.load %arg1[%c0, %c0_0, %c0_1] : memref<1x12x1xf32, #tpu.memory_space<vmem>>, vector<1x12x1xf32>
    %1 = vector.shape_cast %0 : vector<1x12x1xf32> to vector<12x1xf32>
    %c0_2 = arith.constant 0 : index
    %c0_3 = arith.constant 0 : index
    %2 = vector.load %arg3[%c0_2, %c0_3] : memref<12x32xf32, #tpu.memory_space<vmem>>, vector<12x32xf32>
    %3 = vector.broadcast %1 : vector<12x1xf32> to vector<12x32xf32>
    %4 = arith.mulf %3, %2 : vector<12x32xf32>
    %c0_4 = arith.constant 0 : index
    %c0_5 = arith.constant 0 : index
    %5 = vector.load %arg4[%c0_4, %c0_5] : memref<12x32xf32, #tpu.memory_space<vmem>>, vector<12x32xf32>
    %6 = arith.addf %4, %5 : vector<12x32xf32>
    %c0_6 = arith.constant 0 : index
    %c0_7 = arith.constant 0 : index
    %c0_8 = arith.constant 0 : index
    %7 = vector.load %arg2[%c0_6, %c0_7, %c0_8] : memref<1x12x32xf32, #tpu.memory_space<vmem>>, vector<1x12x32xf32>
    %8 = vector.shape_cast %7 : vector<1x12x32xf32> to vector<12x32xf32>
    %9 = arith.addf %6, %8 : vector<12x32xf32>
    %10 = vector.shape_cast %9 : vector<12x32xf32> to vector<1x12x32xf32>
    %c0_9 = arith.constant 0 : index
    %c0_10 = arith.constant 0 : index
    %11 = vector.load %arg5[%c0_9, %c0_10] : memref<1x32xf32, #tpu.memory_space<vmem>>, vector<1x32xf32>
    %c0_11 = arith.constant 0 : index
    %c0_12 = arith.constant 0 : index
    %12 = vector.load %arg6[%c0_11, %c0_12] : memref<1x32xf32, #tpu.memory_space<vmem>>, vector<1x32xf32>
    %cst = arith.constant dense<0.000000e+00> : vector<1x12xf32>
    %13 = vector.multi_reduction <add>, %10, %cst [2] : vector<1x12x32xf32> to vector<1x12xf32>
    %14 = vector.shape_cast %13 : vector<1x12xf32> to vector<1x12x1xf32>
    %cst_13 = arith.constant 3.200000e+01 : f32
    %15 = vector.broadcast %cst_13 : f32 to vector<1x12x1xf32>
    %16 = arith.divf %14, %15 : vector<1x12x1xf32>
    %17 = vector.broadcast %16 : vector<1x12x1xf32> to vector<1x12x32xf32>
    %18 = arith.subf %10, %17 : vector<1x12x32xf32>
    %19 = arith.mulf %18, %18 : vector<1x12x32xf32>
    %cst_14 = arith.constant dense<0.000000e+00> : vector<1x12xf32>
    %20 = vector.multi_reduction <add>, %19, %cst_14 [2] : vector<1x12x32xf32> to vector<1x12xf32>
    %21 = vector.shape_cast %20 : vector<1x12xf32> to vector<1x12x1xf32>
    %cst_15 = arith.constant 3.200000e+01 : f32
    %22 = vector.broadcast %cst_15 : f32 to vector<1x12x1xf32>
    %23 = arith.divf %21, %22 : vector<1x12x1xf32>
    %24 = vector.broadcast %16 : vector<1x12x1xf32> to vector<1x12x32xf32>
    %25 = arith.subf %10, %24 : vector<1x12x32xf32>
    %cst_16 = arith.constant 9.99999974E-6 : f32
    %26 = vector.broadcast %cst_16 : f32 to vector<1x12x1xf32>
    %27 = arith.addf %23, %26 : vector<1x12x1xf32>
    %28 = math.rsqrt %27 : vector<1x12x1xf32>
    %29 = vector.broadcast %28 : vector<1x12x1xf32> to vector<1x12x32xf32>
    %30 = arith.mulf %25, %29 : vector<1x12x32xf32>
    %31 = vector.shape_cast %11 : vector<1x32xf32> to vector<1x1x32xf32>
    %32 = vector.broadcast %31 : vector<1x1x32xf32> to vector<1x12x32xf32>
    %33 = arith.mulf %30, %32 : vector<1x12x32xf32>
    %34 = vector.shape_cast %12 : vector<1x32xf32> to vector<1x1x32xf32>
    %35 = vector.broadcast %34 : vector<1x1x32xf32> to vector<1x12x32xf32>
    %36 = arith.addf %33, %35 : vector<1x12x32xf32>
    %37 = vector.shape_cast %36 : vector<1x12x32xf32> to vector<12x32xf32>
    %c0_17 = arith.constant 0 : index
    %c0_18 = arith.constant 0 : index
    %38 = vector.load %arg7[%c0_17, %c0_18] : memref<32x96xf32, #tpu.memory_space<vmem>>, vector<32x96xf32>
    %cst_19 = arith.constant dense<0.000000e+00> : vector<12x96xf32>
    %39 = tpu.matmul %37, %38, %cst_19 {dimension_numbers = #tpu.dot_dimension_numbers<[1], [0], [0], [1], [0, 0, 1, 1], [], []>} : vector<12x32xf32>, vector<32x96xf32>, vector<12x96xf32> -> vector<12x96xf32>
    %c0_20 = arith.constant 0 : index
    %c0_21 = arith.constant 0 : index
    %40 = vector.load %arg8[%c0_20, %c0_21] : memref<1x96xf32, #tpu.memory_space<vmem>>, vector<1x96xf32>
    %41 = vector.broadcast %40 : vector<1x96xf32> to vector<12x96xf32>
    %42 = arith.addf %39, %41 : vector<12x96xf32>
    %43 = vector.shape_cast %42 : vector<12x96xf32> to vector<1x12x96xf32>
    %c0_22 = arith.constant 0 : index
    %c0_23 = arith.constant 0 : index
    %44 = vector.load %arg9[%c0_22, %c0_23] : memref<32x32xf32, #tpu.memory_space<vmem>>, vector<32x32xf32>
    %c0_24 = arith.constant 0 : index
    %c0_25 = arith.constant 0 : index
    %45 = vector.load %arg10[%c0_24, %c0_25] : memref<1x32xf32, #tpu.memory_space<vmem>>, vector<1x32xf32>
    %46 = vector.extract_strided_slice %43 {offsets = [0, 0, 0], sizes = [1, 12, 8], strides = [1, 1, 1]} : vector<1x12x96xf32> to vector<1x12x8xf32>
    %47 = vector.extract_strided_slice %43 {offsets = [0, 0, 32], sizes = [1, 12, 8], strides = [1, 1, 1]} : vector<1x12x96xf32> to vector<1x12x8xf32>
    %48 = vector.extract_strided_slice %43 {offsets = [0, 0, 64], sizes = [1, 12, 8], strides = [1, 1, 1]} : vector<1x12x96xf32> to vector<1x12x8xf32>
    %cst_26 = arith.constant dense<0.000000e+00> : vector<1x12x12xf32>
    %49 = tpu.matmul %46, %47, %cst_26 {dimension_numbers = #tpu.dot_dimension_numbers<[2], [2], [1], [1], [0, 0, 0, 1, 1, 1], [0], [0]>} : vector<1x12x8xf32>, vector<1x12x8xf32>, vector<1x12x12xf32> -> vector<1x12x12xf32>
    %cst_27 = arith.constant 0.353553385 : f32
    %50 = vector.broadcast %cst_27 : f32 to vector<1x12x12xf32>
    %51 = arith.mulf %49, %50 : vector<1x12x12xf32>
    %cst_28 = arith.constant dense<0xFF800000> : vector<1x12xf32>
    %52 = vector.multi_reduction <maximumf>, %51, %cst_28 [2] : vector<1x12x12xf32> to vector<1x12xf32>
    %53 = vector.shape_cast %52 : vector<1x12xf32> to vector<1x12x1xf32>
    %54 = vector.broadcast %53 : vector<1x12x1xf32> to vector<1x12x12xf32>
    %55 = arith.subf %51, %54 : vector<1x12x12xf32>
    %56 = math.exp %55 : vector<1x12x12xf32>
    %cst_29 = arith.constant dense<0.000000e+00> : vector<1x12xf32>
    %57 = vector.multi_reduction <add>, %56, %cst_29 [2] : vector<1x12x12xf32> to vector<1x12xf32>
    %58 = vector.shape_cast %57 : vector<1x12xf32> to vector<1x12x1xf32>
    %59 = tpu.reciprocal %58 {approx = true} : vector<1x12x1xf32> -> vector<1x12x1xf32>
    %60 = vector.broadcast %59 : vector<1x12x1xf32> to vector<1x12x12xf32>
    %61 = arith.mulf %56, %60 : vector<1x12x12xf32>
    %cst_30 = arith.constant dense<0.000000e+00> : vector<1x12x8xf32>
    %62 = tpu.matmul %61, %48, %cst_30 {dimension_numbers = #tpu.dot_dimension_numbers<[2], [1], [1], [2], [0, 0, 0, 1, 1, 2], [0], [0]>} : vector<1x12x12xf32>, vector<1x12x8xf32>, vector<1x12x8xf32> -> vector<1x12x8xf32>
    %63 = vector.shape_cast %62 : vector<1x12x8xf32> to vector<12x8xf32>
    %64 = vector.extract_strided_slice %44 {offsets = [0, 0], sizes = [8, 32], strides = [1, 1]} : vector<32x32xf32> to vector<8x32xf32>
    %cst_31 = arith.constant dense<0.000000e+00> : vector<12x32xf32>
    %65 = tpu.matmul %63, %64, %cst_31 {dimension_numbers = #tpu.dot_dimension_numbers<[1], [0], [0], [1], [0, 0, 1, 1], [], []>} : vector<12x8xf32>, vector<8x32xf32>, vector<12x32xf32> -> vector<12x32xf32>
    %66 = vector.broadcast %45 : vector<1x32xf32> to vector<12x32xf32>
    %67 = arith.addf %66, %65 : vector<12x32xf32>
    %68 = vector.extract_strided_slice %43 {offsets = [0, 0, 8], sizes = [1, 12, 8], strides = [1, 1, 1]} : vector<1x12x96xf32> to vector<1x12x8xf32>
    %69 = vector.extract_strided_slice %43 {offsets = [0, 0, 40], sizes = [1, 12, 8], strides = [1, 1, 1]} : vector<1x12x96xf32> to vector<1x12x8xf32>
    %70 = vector.extract_strided_slice %43 {offsets = [0, 0, 72], sizes = [1, 12, 8], strides = [1, 1, 1]} : vector<1x12x96xf32> to vector<1x12x8xf32>
    %cst_32 = arith.constant dense<0.000000e+00> : vector<1x12x12xf32>
    %71 = tpu.matmul %68, %69, %cst_32 {dimension_numbers = #tpu.dot_dimension_numbers<[2], [2], [1], [1], [0, 0, 0, 1, 1, 1], [0], [0]>} : vector<1x12x8xf32>, vector<1x12x8xf32>, vector<1x12x12xf32> -> vector<1x12x12xf32>
    %cst_33 = arith.constant 0.353553385 : f32
    %72 = vector.broadcast %cst_33 : f32 to vector<1x12x12xf32>
    %73 = arith.mulf %71, %72 : vector<1x12x12xf32>
    %cst_34 = arith.constant dense<0xFF800000> : vector<1x12xf32>
    %74 = vector.multi_reduction <maximumf>, %73, %cst_34 [2] : vector<1x12x12xf32> to vector<1x12xf32>
    %75 = vector.shape_cast %74 : vector<1x12xf32> to vector<1x12x1xf32>
    %76 = vector.broadcast %75 : vector<1x12x1xf32> to vector<1x12x12xf32>
    %77 = arith.subf %73, %76 : vector<1x12x12xf32>
    %78 = math.exp %77 : vector<1x12x12xf32>
    %cst_35 = arith.constant dense<0.000000e+00> : vector<1x12xf32>
    %79 = vector.multi_reduction <add>, %78, %cst_35 [2] : vector<1x12x12xf32> to vector<1x12xf32>
    %80 = vector.shape_cast %79 : vector<1x12xf32> to vector<1x12x1xf32>
    %81 = tpu.reciprocal %80 {approx = true} : vector<1x12x1xf32> -> vector<1x12x1xf32>
    %82 = vector.broadcast %81 : vector<1x12x1xf32> to vector<1x12x12xf32>
    %83 = arith.mulf %78, %82 : vector<1x12x12xf32>
    %cst_36 = arith.constant dense<0.000000e+00> : vector<1x12x8xf32>
    %84 = tpu.matmul %83, %70, %cst_36 {dimension_numbers = #tpu.dot_dimension_numbers<[2], [1], [1], [2], [0, 0, 0, 1, 1, 2], [0], [0]>} : vector<1x12x12xf32>, vector<1x12x8xf32>, vector<1x12x8xf32> -> vector<1x12x8xf32>
    %85 = vector.shape_cast %84 : vector<1x12x8xf32> to vector<12x8xf32>
    %86 = vector.extract_strided_slice %44 {offsets = [8, 0], sizes = [8, 32], strides = [1, 1]} : vector<32x32xf32> to vector<8x32xf32>
    %cst_37 = arith.constant dense<0.000000e+00> : vector<12x32xf32>
    %87 = tpu.matmul %85, %86, %cst_37 {dimension_numbers = #tpu.dot_dimension_numbers<[1], [0], [0], [1], [0, 0, 1, 1], [], []>} : vector<12x8xf32>, vector<8x32xf32>, vector<12x32xf32> -> vector<12x32xf32>
    %88 = arith.addf %67, %87 : vector<12x32xf32>
    %89 = vector.extract_strided_slice %43 {offsets = [0, 0, 16], sizes = [1, 12, 8], strides = [1, 1, 1]} : vector<1x12x96xf32> to vector<1x12x8xf32>
    %90 = vector.extract_strided_slice %43 {offsets = [0, 0, 48], sizes = [1, 12, 8], strides = [1, 1, 1]} : vector<1x12x96xf32> to vector<1x12x8xf32>
    %91 = vector.extract_strided_slice %43 {offsets = [0, 0, 80], sizes = [1, 12, 8], strides = [1, 1, 1]} : vector<1x12x96xf32> to vector<1x12x8xf32>
    %cst_38 = arith.constant dense<0.000000e+00> : vector<1x12x12xf32>
    %92 = tpu.matmul %89, %90, %cst_38 {dimension_numbers = #tpu.dot_dimension_numbers<[2], [2], [1], [1], [0, 0, 0, 1, 1, 1], [0], [0]>} : vector<1x12x8xf32>, vector<1x12x8xf32>, vector<1x12x12xf32> -> vector<1x12x12xf32>
    %cst_39 = arith.constant 0.353553385 : f32
    %93 = vector.broadcast %cst_39 : f32 to vector<1x12x12xf32>
    %94 = arith.mulf %92, %93 : vector<1x12x12xf32>
    %cst_40 = arith.constant dense<0xFF800000> : vector<1x12xf32>
    %95 = vector.multi_reduction <maximumf>, %94, %cst_40 [2] : vector<1x12x12xf32> to vector<1x12xf32>
    %96 = vector.shape_cast %95 : vector<1x12xf32> to vector<1x12x1xf32>
    %97 = vector.broadcast %96 : vector<1x12x1xf32> to vector<1x12x12xf32>
    %98 = arith.subf %94, %97 : vector<1x12x12xf32>
    %99 = math.exp %98 : vector<1x12x12xf32>
    %cst_41 = arith.constant dense<0.000000e+00> : vector<1x12xf32>
    %100 = vector.multi_reduction <add>, %99, %cst_41 [2] : vector<1x12x12xf32> to vector<1x12xf32>
    %101 = vector.shape_cast %100 : vector<1x12xf32> to vector<1x12x1xf32>
    %102 = tpu.reciprocal %101 {approx = true} : vector<1x12x1xf32> -> vector<1x12x1xf32>
    %103 = vector.broadcast %102 : vector<1x12x1xf32> to vector<1x12x12xf32>
    %104 = arith.mulf %99, %103 : vector<1x12x12xf32>
    %cst_42 = arith.constant dense<0.000000e+00> : vector<1x12x8xf32>
    %105 = tpu.matmul %104, %91, %cst_42 {dimension_numbers = #tpu.dot_dimension_numbers<[2], [1], [1], [2], [0, 0, 0, 1, 1, 2], [0], [0]>} : vector<1x12x12xf32>, vector<1x12x8xf32>, vector<1x12x8xf32> -> vector<1x12x8xf32>
    %106 = vector.shape_cast %105 : vector<1x12x8xf32> to vector<12x8xf32>
    %107 = vector.extract_strided_slice %44 {offsets = [16, 0], sizes = [8, 32], strides = [1, 1]} : vector<32x32xf32> to vector<8x32xf32>
    %cst_43 = arith.constant dense<0.000000e+00> : vector<12x32xf32>
    %108 = tpu.matmul %106, %107, %cst_43 {dimension_numbers = #tpu.dot_dimension_numbers<[1], [0], [0], [1], [0, 0, 1, 1], [], []>} : vector<12x8xf32>, vector<8x32xf32>, vector<12x32xf32> -> vector<12x32xf32>
    %109 = arith.addf %88, %108 : vector<12x32xf32>
    %110 = vector.extract_strided_slice %43 {offsets = [0, 0, 24], sizes = [1, 12, 8], strides = [1, 1, 1]} : vector<1x12x96xf32> to vector<1x12x8xf32>
    %111 = vector.extract_strided_slice %43 {offsets = [0, 0, 56], sizes = [1, 12, 8], strides = [1, 1, 1]} : vector<1x12x96xf32> to vector<1x12x8xf32>
    %112 = vector.extract_strided_slice %43 {offsets = [0, 0, 88], sizes = [1, 12, 8], strides = [1, 1, 1]} : vector<1x12x96xf32> to vector<1x12x8xf32>
    %cst_44 = arith.constant dense<0.000000e+00> : vector<1x12x12xf32>
    %113 = tpu.matmul %110, %111, %cst_44 {dimension_numbers = #tpu.dot_dimension_numbers<[2], [2], [1], [1], [0, 0, 0, 1, 1, 1], [0], [0]>} : vector<1x12x8xf32>, vector<1x12x8xf32>, vector<1x12x12xf32> -> vector<1x12x12xf32>
    %cst_45 = arith.constant 0.353553385 : f32
    %114 = vector.broadcast %cst_45 : f32 to vector<1x12x12xf32>
    %115 = arith.mulf %113, %114 : vector<1x12x12xf32>
    %cst_46 = arith.constant dense<0xFF800000> : vector<1x12xf32>
    %116 = vector.multi_reduction <maximumf>, %115, %cst_46 [2] : vector<1x12x12xf32> to vector<1x12xf32>
    %117 = vector.shape_cast %116 : vector<1x12xf32> to vector<1x12x1xf32>
    %118 = vector.broadcast %117 : vector<1x12x1xf32> to vector<1x12x12xf32>
    %119 = arith.subf %115, %118 : vector<1x12x12xf32>
    %120 = math.exp %119 : vector<1x12x12xf32>
    %cst_47 = arith.constant dense<0.000000e+00> : vector<1x12xf32>
    %121 = vector.multi_reduction <add>, %120, %cst_47 [2] : vector<1x12x12xf32> to vector<1x12xf32>
    %122 = vector.shape_cast %121 : vector<1x12xf32> to vector<1x12x1xf32>
    %123 = tpu.reciprocal %122 {approx = true} : vector<1x12x1xf32> -> vector<1x12x1xf32>
    %124 = vector.broadcast %123 : vector<1x12x1xf32> to vector<1x12x12xf32>
    %125 = arith.mulf %120, %124 : vector<1x12x12xf32>
    %cst_48 = arith.constant dense<0.000000e+00> : vector<1x12x8xf32>
    %126 = tpu.matmul %125, %112, %cst_48 {dimension_numbers = #tpu.dot_dimension_numbers<[2], [1], [1], [2], [0, 0, 0, 1, 1, 2], [0], [0]>} : vector<1x12x12xf32>, vector<1x12x8xf32>, vector<1x12x8xf32> -> vector<1x12x8xf32>
    %127 = vector.shape_cast %126 : vector<1x12x8xf32> to vector<12x8xf32>
    %128 = vector.extract_strided_slice %44 {offsets = [24, 0], sizes = [8, 32], strides = [1, 1]} : vector<32x32xf32> to vector<8x32xf32>
    %cst_49 = arith.constant dense<0.000000e+00> : vector<12x32xf32>
    %129 = tpu.matmul %127, %128, %cst_49 {dimension_numbers = #tpu.dot_dimension_numbers<[1], [0], [0], [1], [0, 0, 1, 1], [], []>} : vector<12x8xf32>, vector<8x32xf32>, vector<12x32xf32> -> vector<12x32xf32>
    %130 = arith.addf %109, %129 : vector<12x32xf32>
    %131 = vector.shape_cast %130 : vector<12x32xf32> to vector<1x12x32xf32>
    %132 = arith.addf %10, %131 : vector<1x12x32xf32>
    %c0_50 = arith.constant 0 : index
    %c0_51 = arith.constant 0 : index
    %133 = vector.load %arg11[%c0_50, %c0_51] : memref<1x32xf32, #tpu.memory_space<vmem>>, vector<1x32xf32>
    %c0_52 = arith.constant 0 : index
    %c0_53 = arith.constant 0 : index
    %134 = vector.load %arg12[%c0_52, %c0_53] : memref<1x32xf32, #tpu.memory_space<vmem>>, vector<1x32xf32>
    %cst_54 = arith.constant dense<0.000000e+00> : vector<1x12xf32>
    %135 = vector.multi_reduction <add>, %132, %cst_54 [2] : vector<1x12x32xf32> to vector<1x12xf32>
    %136 = vector.shape_cast %135 : vector<1x12xf32> to vector<1x12x1xf32>
    %cst_55 = arith.constant 3.200000e+01 : f32
    %137 = vector.broadcast %cst_55 : f32 to vector<1x12x1xf32>
    %138 = arith.divf %136, %137 : vector<1x12x1xf32>
    %139 = vector.broadcast %138 : vector<1x12x1xf32> to vector<1x12x32xf32>
    %140 = arith.subf %132, %139 : vector<1x12x32xf32>
    %141 = arith.mulf %140, %140 : vector<1x12x32xf32>
    %cst_56 = arith.constant dense<0.000000e+00> : vector<1x12xf32>
    %142 = vector.multi_reduction <add>, %141, %cst_56 [2] : vector<1x12x32xf32> to vector<1x12xf32>
    %143 = vector.shape_cast %142 : vector<1x12xf32> to vector<1x12x1xf32>
    %cst_57 = arith.constant 3.200000e+01 : f32
    %144 = vector.broadcast %cst_57 : f32 to vector<1x12x1xf32>
    %145 = arith.divf %143, %144 : vector<1x12x1xf32>
    %146 = vector.broadcast %138 : vector<1x12x1xf32> to vector<1x12x32xf32>
    %147 = arith.subf %132, %146 : vector<1x12x32xf32>
    %cst_58 = arith.constant 9.99999974E-6 : f32
    %148 = vector.broadcast %cst_58 : f32 to vector<1x12x1xf32>
    %149 = arith.addf %145, %148 : vector<1x12x1xf32>
    %150 = math.rsqrt %149 : vector<1x12x1xf32>
    %151 = vector.broadcast %150 : vector<1x12x1xf32> to vector<1x12x32xf32>
    %152 = arith.mulf %147, %151 : vector<1x12x32xf32>
    %153 = vector.shape_cast %133 : vector<1x32xf32> to vector<1x1x32xf32>
    %154 = vector.broadcast %153 : vector<1x1x32xf32> to vector<1x12x32xf32>
    %155 = arith.mulf %152, %154 : vector<1x12x32xf32>
    %156 = vector.shape_cast %134 : vector<1x32xf32> to vector<1x1x32xf32>
    %157 = vector.broadcast %156 : vector<1x1x32xf32> to vector<1x12x32xf32>
    %158 = arith.addf %155, %157 : vector<1x12x32xf32>
    %159 = vector.shape_cast %158 : vector<1x12x32xf32> to vector<12x32xf32>
    %c0_59 = arith.constant 0 : index
    %c0_60 = arith.constant 0 : index
    %160 = vector.load %arg13[%c0_59, %c0_60] : memref<32x64xf32, #tpu.memory_space<vmem>>, vector<32x64xf32>
    %cst_61 = arith.constant dense<0.000000e+00> : vector<12x64xf32>
    %161 = tpu.matmul %159, %160, %cst_61 {dimension_numbers = #tpu.dot_dimension_numbers<[1], [0], [0], [1], [0, 0, 1, 1], [], []>} : vector<12x32xf32>, vector<32x64xf32>, vector<12x64xf32> -> vector<12x64xf32>
    %c0_62 = arith.constant 0 : index
    %c0_63 = arith.constant 0 : index
    %162 = vector.load %arg14[%c0_62, %c0_63] : memref<1x64xf32, #tpu.memory_space<vmem>>, vector<1x64xf32>
    %163 = vector.broadcast %162 : vector<1x64xf32> to vector<12x64xf32>
    %164 = arith.addf %161, %163 : vector<12x64xf32>
    %165 = arith.mulf %164, %164 : vector<12x64xf32>
    %166 = arith.mulf %164, %165 : vector<12x64xf32>
    %cst_64 = arith.constant 4.471500e-02 : f32
    %167 = vector.broadcast %cst_64 : f32 to vector<12x64xf32>
    %168 = arith.mulf %167, %166 : vector<12x64xf32>
    %169 = arith.addf %164, %168 : vector<12x64xf32>
    %cst_65 = arith.constant 0.797884583 : f32
    %170 = vector.broadcast %cst_65 : f32 to vector<12x64xf32>
    %171 = arith.mulf %170, %169 : vector<12x64xf32>
    %172 = math.tanh %171 : vector<12x64xf32>
    %cst_66 = arith.constant 1.000000e+00 : f32
    %173 = vector.broadcast %cst_66 : f32 to vector<12x64xf32>
    %174 = arith.addf %173, %172 : vector<12x64xf32>
    %cst_67 = arith.constant 5.000000e-01 : f32
    %175 = vector.broadcast %cst_67 : f32 to vector<12x64xf32>
    %176 = arith.mulf %175, %174 : vector<12x64xf32>
    %177 = arith.mulf %164, %176 : vector<12x64xf32>
    %c0_68 = arith.constant 0 : index
    %c0_69 = arith.constant 0 : index
    %178 = vector.load %arg15[%c0_68, %c0_69] : memref<64x32xf32, #tpu.memory_space<vmem>>, vector<64x32xf32>
    %cst_70 = arith.constant dense<0.000000e+00> : vector<12x32xf32>
    %179 = tpu.matmul %177, %178, %cst_70 {dimension_numbers = #tpu.dot_dimension_numbers<[1], [0], [0], [1], [0, 0, 1, 1], [], []>} : vector<12x64xf32>, vector<64x32xf32>, vector<12x32xf32> -> vector<12x32xf32>
    %c0_71 = arith.constant 0 : index
    %c0_72 = arith.constant 0 : index
    %180 = vector.load %arg16[%c0_71, %c0_72] : memref<1x32xf32, #tpu.memory_space<vmem>>, vector<1x32xf32>
    %181 = vector.broadcast %180 : vector<1x32xf32> to vector<12x32xf32>
    %182 = arith.addf %179, %181 : vector<12x32xf32>
    %183 = vector.shape_cast %182 : vector<12x32xf32> to vector<1x12x32xf32>
    %184 = arith.addf %132, %183 : vector<1x12x32xf32>
    %185 = vector.shape_cast %184 : vector<1x12x32xf32> to vector<12x32xf32>
    %186 = arith.addf %185, %6 : vector<12x32xf32>
    %187 = vector.extract_strided_slice %186 {offsets = [0, 0], sizes = [8, 32], strides = [1, 1]} : vector<12x32xf32> to vector<8x32xf32>
    %c0_73 = arith.constant 0 : index
    %c0_74 = arith.constant 0 : index
    %188 = vector.load %arg17[%c0_73, %c0_74] : memref<32x32xf32, #tpu.memory_space<vmem>>, vector<32x32xf32>
    %cst_75 = arith.constant dense<0.000000e+00> : vector<8x32xf32>
    %189 = tpu.matmul %187, %188, %cst_75 {dimension_numbers = #tpu.dot_dimension_numbers<[1], [0], [0], [1], [0, 0, 1, 1], [], []>} : vector<8x32xf32>, vector<32x32xf32>, vector<8x32xf32> -> vector<8x32xf32>
    %c0_76 = arith.constant 0 : index
    %c0_77 = arith.constant 0 : index
    %190 = vector.load %arg18[%c0_76, %c0_77] : memref<1x32xf32, #tpu.memory_space<vmem>>, vector<1x32xf32>
    %191 = vector.broadcast %190 : vector<1x32xf32> to vector<8x32xf32>
    %192 = arith.addf %189, %191 : vector<8x32xf32>
    %c0_78 = arith.constant 0 : index
    %c0_79 = arith.constant 0 : index
    %c0_80 = arith.constant 0 : index
    %193 = vector.load %arg19[%c0_78, %c0_79, %c0_80] : memref<1x8x32xf32, #tpu.memory_space<vmem>>, vector<1x8x32xf32>
    %194 = vector.shape_cast %193 : vector<1x8x32xf32> to vector<8x32xf32>
    %195 = vector.shape_cast %192 : vector<8x32xf32> to vector<1x8x32xf32>
    tpu.vector_store %arg19[%c0_78, %c0_79, %c0_80], %195 {strides = array<i32>} : memref<1x8x32xf32, #tpu.memory_space<vmem>>, vector<1x8x32xf32>,
    return
  }
  func.func @transform_0(%arg0: i32) -> (i32, i32, i32) {
    %c0_i32 = arith.constant 0 : i32
    %c0_i32_0 = arith.constant 0 : i32
    %c0_i32_1 = arith.constant 0 : i32
    return %arg0, %c0_i32, %c0_i32_0 : i32, i32, i32
  }
  func.func @transform_1(%arg0: i32) -> (i32, i32, i32) {
    %c0_i32 = arith.constant 0 : i32
    %c0_i32_0 = arith.constant 0 : i32
    %c0_i32_1 = arith.constant 0 : i32
    return %arg0, %c0_i32, %c0_i32_0 : i32, i32, i32
  }
  func.func @transform_2(%arg0: i32) -> (i32, i32) {
    %c0_i32 = arith.constant 0 : i32
    %c0_i32_0 = arith.constant 0 : i32
    %c0_i32_1 = arith.constant 0 : i32
    return %c0_i32, %c0_i32_0 : i32, i32
  }
  func.func @transform_3(%arg0: i32) -> (i32, i32) {
    %c0_i32 = arith.constant 0 : i32
    %c0_i32_0 = arith.constant 0 : i32
    %c0_i32_1 = arith.constant 0 : i32
    return %c0_i32, %c0_i32_0 : i32, i32
  }
  func.func @transform_4(%arg0: i32) -> (i32, i32) {
    %c0_i32 = arith.constant 0 : i32
    %c0_i32_0 = arith.constant 0 : i32
    %c0_i32_1 = arith.constant 0 : i32
    return %c0_i32, %c0_i32_0 : i32, i32
  }
  func.func @transform_5(%arg0: i32) -> (i32, i32) {
    %c0_i32 = arith.constant 0 : i32
    %c0_i32_0 = arith.constant 0 : i32
    %c0_i32_1 = arith.constant 0 : i32
    return %c0_i32, %c0_i32_0 : i32, i32
  }
  func.func @transform_6(%arg0: i32) -> (i32, i32) {
    %c0_i32 = arith.constant 0 : i32
    %c0_i32_0 = arith.constant 0 : i32
    %c0_i32_1 = arith.constant 0 : i32
    return %c0_i32, %c0_i32_0 : i32, i32
  }
  func.func @transform_7(%arg0: i32) -> (i32, i32) {
    %c0_i32 = arith.constant 0 : i32
    %c0_i32_0 = arith.constant 0 : i32
    %c0_i32_1 = arith.constant 0 : i32
    return %c0_i32, %c0_i32_0 : i32, i32
  }
  func.func @transform_8(%arg0: i32) -> (i32, i32) {
    %c0_i32 = arith.constant 0 : i32
    %c0_i32_0 = arith.constant 0 : i32
    %c0_i32_1 = arith.constant 0 : i32
    return %c0_i32, %c0_i32_0 : i32, i32
  }
  func.func @transform_9(%arg0: i32) -> (i32, i32) {
    %c0_i32 = arith.constant 0 : i32
    %c0_i32_0 = arith.constant 0 : i32
    %c0_i32_1 = arith.constant 0 : i32
    return %c0_i32, %c0_i32_0 : i32, i32
  }
  func.func @transform_10(%arg0: i32) -> (i32, i32) {
    %c0_i32 = arith.constant 0 : i32
    %c0_i32_0 = arith.constant 0 : i32
    %c0_i32_1 = arith.constant 0 : i32
    return %c0_i32, %c0_i32_0 : i32, i32
  }
  func.func @transform_11(%arg0: i32) -> (i32, i32) {
    %c0_i32 = arith.constant 0 : i32
    %c0_i32_0 = arith.constant 0 : i32
    %c0_i32_1 = arith.constant 0 : i32
    return %c0_i32, %c0_i32_0 : i32, i32
  }
  func.func @transform_12(%arg0: i32) -> (i32, i32) {
    %c0_i32 = arith.constant 0 : i32
    %c0_i32_0 = arith.constant 0 : i32
    %c0_i32_1 = arith.constant 0 : i32
    return %c0_i32, %c0_i32_0 : i32, i32
  }
  func.func @transform_13(%arg0: i32) -> (i32, i32) {
    %c0_i32 = arith.constant 0 : i32
    %c0_i32_0 = arith.constant 0 : i32
    %c0_i32_1 = arith.constant 0 : i32
    return %c0_i32, %c0_i32_0 : i32, i32
  }
  func.func @transform_14(%arg0: i32) -> (i32, i32) {
    %c0_i32 = arith.constant 0 : i32
    %c0_i32_0 = arith.constant 0 : i32
    %c0_i32_1 = arith.constant 0 : i32
    return %c0_i32, %c0_i32_0 : i32, i32
  }
  func.func @transform_15(%arg0: i32) -> (i32, i32) {
    %c0_i32 = arith.constant 0 : i32
    %c0_i32_0 = arith.constant 0 : i32
    %c0_i32_1 = arith.constant 0 : i32
    return %c0_i32, %c0_i32_0 : i32, i32
  }
  func.func @transform_16(%arg0: i32) -> (i32, i32) {
    %c0_i32 = arith.constant 0 : i32
    %c0_i32_0 = arith.constant 0 : i32
    %c0_i32_1 = arith.constant 0 : i32
    return %c0_i32, %c0_i32_0 : i32, i32
  }
  func.func @transform_17(%arg0: i32) -> (i32, i32) {
    %c0_i32 = arith.constant 0 : i32
    %c0_i32_0 = arith.constant 0 : i32
    %c0_i32_1 = arith.constant 0 : i32
    return %c0_i32, %c0_i32_0 : i32, i32
  }
  func.func @transform_18(%arg0: i32) -> (i32, i32, i32) {
    %c0_i32 = arith.constant 0 : i32
    %c0_i32_0 = arith.constant 0 : i32
    %c0_i32_1 = arith.constant 0 : i32
    return %arg0, %c0_i32, %c0_i32_0 : i32, i32, i32
  }
}

module attributes {stable_mosaic.version = 11 : i64} {
  func.func @_decoder_kernel(%arg0: i32, %arg1: memref<1x8x32xf32, #tpu.memory_space<vmem>>, %arg2: memref<1x8x1xf32, #tpu.memory_space<vmem>>, %arg3: memref<1x32xf32, #tpu.memory_space<vmem>>, %arg4: memref<1x32xf32, #tpu.memory_space<vmem>>, %arg5: memref<1x32xf32, #tpu.memory_space<vmem>>, %arg6: memref<1x32xf32, #tpu.memory_space<vmem>>, %arg7: memref<32x96xf32, #tpu.memory_space<vmem>>, %arg8: memref<1x96xf32, #tpu.memory_space<vmem>>, %arg9: memref<32x32xf32, #tpu.memory_space<vmem>>, %arg10: memref<1x32xf32, #tpu.memory_space<vmem>>, %arg11: memref<1x32xf32, #tpu.memory_space<vmem>>, %arg12: memref<1x32xf32, #tpu.memory_space<vmem>>, %arg13: memref<32x64xf32, #tpu.memory_space<vmem>>, %arg14: memref<1x64xf32, #tpu.memory_space<vmem>>, %arg15: memref<64x32xf32, #tpu.memory_space<vmem>>, %arg16: memref<1x32xf32, #tpu.memory_space<vmem>>, %arg17: memref<1x32xf32, #tpu.memory_space<vmem>>, %arg18: memref<1x1xf32, #tpu.memory_space<vmem>>, %arg19: memref<1x8x8xf32, #tpu.memory_space<vmem>>) attributes {dimension_semantics = [#tpu.dimension_semantics<parallel>], iteration_bounds = array<i64: 2>, scalar_prefetch = 0 : i64, scratch_operands = 0 : i64, tpu.core_type = #tpu.core_type<tc>, window_params = [{transform_indices = @transform_0, window_bounds = array<i64: 1, 8, 32>}, {transform_indices = @transform_1, window_bounds = array<i64: 1, 8, 1>}, {pipeline_mode = #tpu.pipeline_mode<synchronous>, transform_indices = @transform_2, window_bounds = array<i64: 1, 32>}, {pipeline_mode = #tpu.pipeline_mode<synchronous>, transform_indices = @transform_3, window_bounds = array<i64: 1, 32>}, {pipeline_mode = #tpu.pipeline_mode<synchronous>, transform_indices = @transform_4, window_bounds = array<i64: 1, 32>}, {pipeline_mode = #tpu.pipeline_mode<synchronous>, transform_indices = @transform_5, window_bounds = array<i64: 1, 32>}, {pipeline_mode = #tpu.pipeline_mode<synchronous>, transform_indices = @transform_6, window_bounds = array<i64: 32, 96>}, {pipeline_mode = #tpu.pipeline_mode<synchronous>, transform_indices = @transform_7, window_bounds = array<i64: 1, 96>}, {pipeline_mode = #tpu.pipeline_mode<synchronous>, transform_indices = @transform_8, window_bounds = array<i64: 32, 32>}, {pipeline_mode = #tpu.pipeline_mode<synchronous>, transform_indices = @transform_9, window_bounds = array<i64: 1, 32>}, {pipeline_mode = #tpu.pipeline_mode<synchronous>, transform_indices = @transform_10, window_bounds = array<i64: 1, 32>}, {pipeline_mode = #tpu.pipeline_mode<synchronous>, transform_indices = @transform_11, window_bounds = array<i64: 1, 32>}, {pipeline_mode = #tpu.pipeline_mode<synchronous>, transform_indices = @transform_12, window_bounds = array<i64: 32, 64>}, {pipeline_mode = #tpu.pipeline_mode<synchronous>, transform_indices = @transform_13, window_bounds = array<i64: 1, 64>}, {pipeline_mode = #tpu.pipeline_mode<synchronous>, transform_indices = @transform_14, window_bounds = array<i64: 64, 32>}, {pipeline_mode = #tpu.pipeline_mode<synchronous>, transform_indices = @transform_15, window_bounds = array<i64: 1, 32>}, {pipeline_mode = #tpu.pipeline_mode<synchronous>, transform_indices = @transform_16, window_bounds = array<i64: 1, 32>}, {pipeline_mode = #tpu.pipeline_mode<synchronous>, transform_indices = @transform_17, window_bounds = array<i64: 1, 1>}, {transform_indices = @transform_18, window_bounds = array<i64: 1, 8, 8>}]} {
    %c0 = arith.constant 0 : index
    %c0_0 = arith.constant 0 : index
    %c0_1 = arith.constant 0 : index
    %0 = vector.load %arg2[%c0, %c0_0, %c0_1] : memref<1x8x1xf32, #tpu.memory_space<vmem>>, vector<1x8x1xf32>
    %1 = vector.shape_cast %0 : vector<1x8x1xf32> to vector<8x1xf32>
    %c0_2 = arith.constant 0 : index
    %c0_3 = arith.constant 0 : index
    %2 = vector.load %arg3[%c0_2, %c0_3] : memref<1x32xf32, #tpu.memory_space<vmem>>, vector<1x32xf32>
    %3 = vector.broadcast %1 : vector<8x1xf32> to vector<8x32xf32>
    %4 = vector.broadcast %2 : vector<1x32xf32> to vector<8x32xf32>
    %5 = arith.mulf %3, %4 : vector<8x32xf32>
    %c0_4 = arith.constant 0 : index
    %c0_5 = arith.constant 0 : index
    %6 = vector.load %arg4[%c0_4, %c0_5] : memref<1x32xf32, #tpu.memory_space<vmem>>, vector<1x32xf32>
    %7 = vector.broadcast %6 : vector<1x32xf32> to vector<8x32xf32>
    %8 = arith.addf %5, %7 : vector<8x32xf32>
    %c0_6 = arith.constant 0 : index
    %c0_7 = arith.constant 0 : index
    %c0_8 = arith.constant 0 : index
    %9 = vector.load %arg1[%c0_6, %c0_7, %c0_8] : memref<1x8x32xf32, #tpu.memory_space<vmem>>, vector<1x8x32xf32>
    %10 = vector.shape_cast %9 : vector<1x8x32xf32> to vector<8x32xf32>
    %11 = vector.shape_cast %10 : vector<8x32xf32> to vector<1x8x32xf32>
    %12 = vector.shape_cast %8 : vector<8x32xf32> to vector<8x1x32xf32>
    %13 = vector.broadcast %11 : vector<1x8x32xf32> to vector<8x8x32xf32>
    %14 = vector.broadcast %12 : vector<8x1x32xf32> to vector<8x8x32xf32>
    %15 = arith.addf %13, %14 : vector<8x8x32xf32>
    %c0_9 = arith.constant 0 : index
    %c0_10 = arith.constant 0 : index
    %16 = vector.load %arg5[%c0_9, %c0_10] : memref<1x32xf32, #tpu.memory_space<vmem>>, vector<1x32xf32>
    %c0_11 = arith.constant 0 : index
    %c0_12 = arith.constant 0 : index
    %17 = vector.load %arg6[%c0_11, %c0_12] : memref<1x32xf32, #tpu.memory_space<vmem>>, vector<1x32xf32>
    %cst = arith.constant dense<0.000000e+00> : vector<8x8xf32>
    %18 = vector.multi_reduction <add>, %15, %cst [2] : vector<8x8x32xf32> to vector<8x8xf32>
    %19 = vector.shape_cast %18 : vector<8x8xf32> to vector<8x8x1xf32>
    %cst_13 = arith.constant 3.200000e+01 : f32
    %20 = vector.broadcast %cst_13 : f32 to vector<8x8x1xf32>
    %21 = arith.divf %19, %20 : vector<8x8x1xf32>
    %22 = vector.broadcast %21 : vector<8x8x1xf32> to vector<8x8x32xf32>
    %23 = arith.subf %15, %22 : vector<8x8x32xf32>
    %24 = arith.mulf %23, %23 : vector<8x8x32xf32>
    %cst_14 = arith.constant dense<0.000000e+00> : vector<8x8xf32>
    %25 = vector.multi_reduction <add>, %24, %cst_14 [2] : vector<8x8x32xf32> to vector<8x8xf32>
    %26 = vector.shape_cast %25 : vector<8x8xf32> to vector<8x8x1xf32>
    %cst_15 = arith.constant 3.200000e+01 : f32
    %27 = vector.broadcast %cst_15 : f32 to vector<8x8x1xf32>
    %28 = arith.divf %26, %27 : vector<8x8x1xf32>
    %29 = vector.broadcast %21 : vector<8x8x1xf32> to vector<8x8x32xf32>
    %30 = arith.subf %15, %29 : vector<8x8x32xf32>
    %cst_16 = arith.constant 9.99999974E-6 : f32
    %31 = vector.broadcast %cst_16 : f32 to vector<8x8x1xf32>
    %32 = arith.addf %28, %31 : vector<8x8x1xf32>
    %33 = math.rsqrt %32 : vector<8x8x1xf32>
    %34 = vector.broadcast %33 : vector<8x8x1xf32> to vector<8x8x32xf32>
    %35 = arith.mulf %30, %34 : vector<8x8x32xf32>
    %36 = vector.shape_cast %16 : vector<1x32xf32> to vector<1x1x32xf32>
    %37 = vector.broadcast %36 : vector<1x1x32xf32> to vector<8x8x32xf32>
    %38 = arith.mulf %35, %37 : vector<8x8x32xf32>
    %39 = vector.shape_cast %17 : vector<1x32xf32> to vector<1x1x32xf32>
    %40 = vector.broadcast %39 : vector<1x1x32xf32> to vector<8x8x32xf32>
    %41 = arith.addf %38, %40 : vector<8x8x32xf32>
    %42 = vector.shape_cast %41 : vector<8x8x32xf32> to vector<64x32xf32>
    %c0_17 = arith.constant 0 : index
    %c0_18 = arith.constant 0 : index
    %43 = vector.load %arg7[%c0_17, %c0_18] : memref<32x96xf32, #tpu.memory_space<vmem>>, vector<32x96xf32>
    %cst_19 = arith.constant dense<0.000000e+00> : vector<64x96xf32>
    %44 = tpu.matmul %42, %43, %cst_19 {dimension_numbers = #tpu.dot_dimension_numbers<[1], [0], [0], [1], [0, 0, 1, 1], [], []>} : vector<64x32xf32>, vector<32x96xf32>, vector<64x96xf32> -> vector<64x96xf32>
    %c0_20 = arith.constant 0 : index
    %c0_21 = arith.constant 0 : index
    %45 = vector.load %arg8[%c0_20, %c0_21] : memref<1x96xf32, #tpu.memory_space<vmem>>, vector<1x96xf32>
    %46 = vector.broadcast %45 : vector<1x96xf32> to vector<64x96xf32>
    %47 = arith.addf %44, %46 : vector<64x96xf32>
    %48 = vector.shape_cast %47 : vector<64x96xf32> to vector<8x8x96xf32>
    %c0_22 = arith.constant 0 : index
    %c0_23 = arith.constant 0 : index
    %49 = vector.load %arg9[%c0_22, %c0_23] : memref<32x32xf32, #tpu.memory_space<vmem>>, vector<32x32xf32>
    %c0_24 = arith.constant 0 : index
    %c0_25 = arith.constant 0 : index
    %50 = vector.load %arg10[%c0_24, %c0_25] : memref<1x32xf32, #tpu.memory_space<vmem>>, vector<1x32xf32>
    %51 = vector.extract_strided_slice %48 {offsets = [0, 0, 0], sizes = [8, 8, 8], strides = [1, 1, 1]} : vector<8x8x96xf32> to vector<8x8x8xf32>
    %52 = vector.extract_strided_slice %48 {offsets = [0, 0, 32], sizes = [8, 8, 8], strides = [1, 1, 1]} : vector<8x8x96xf32> to vector<8x8x8xf32>
    %53 = vector.extract_strided_slice %48 {offsets = [0, 0, 64], sizes = [8, 8, 8], strides = [1, 1, 1]} : vector<8x8x96xf32> to vector<8x8x8xf32>
    %cst_26 = arith.constant dense<0.000000e+00> : vector<8x8x8xf32>
    %54 = tpu.matmul %51, %52, %cst_26 {dimension_numbers = #tpu.dot_dimension_numbers<[2], [2], [1], [1], [0, 0, 0, 1, 1, 1], [0], [0]>} : vector<8x8x8xf32>, vector<8x8x8xf32>, vector<8x8x8xf32> -> vector<8x8x8xf32>
    %cst_27 = arith.constant 0.353553385 : f32
    %55 = vector.broadcast %cst_27 : f32 to vector<8x8x8xf32>
    %56 = arith.mulf %54, %55 : vector<8x8x8xf32>
    %cst_28 = arith.constant dense<0xFF800000> : vector<8x8xf32>
    %57 = vector.multi_reduction <maximumf>, %56, %cst_28 [2] : vector<8x8x8xf32> to vector<8x8xf32>
    %58 = vector.shape_cast %57 : vector<8x8xf32> to vector<8x8x1xf32>
    %59 = vector.broadcast %58 : vector<8x8x1xf32> to vector<8x8x8xf32>
    %60 = arith.subf %56, %59 : vector<8x8x8xf32>
    %61 = math.exp %60 : vector<8x8x8xf32>
    %cst_29 = arith.constant dense<0.000000e+00> : vector<8x8xf32>
    %62 = vector.multi_reduction <add>, %61, %cst_29 [2] : vector<8x8x8xf32> to vector<8x8xf32>
    %63 = vector.shape_cast %62 : vector<8x8xf32> to vector<8x8x1xf32>
    %64 = tpu.reciprocal %63 {approx = true} : vector<8x8x1xf32> -> vector<8x8x1xf32>
    %65 = vector.broadcast %64 : vector<8x8x1xf32> to vector<8x8x8xf32>
    %66 = arith.mulf %61, %65 : vector<8x8x8xf32>
    %cst_30 = arith.constant dense<0.000000e+00> : vector<8x8x8xf32>
    %67 = tpu.matmul %66, %53, %cst_30 {dimension_numbers = #tpu.dot_dimension_numbers<[2], [1], [1], [2], [0, 0, 0, 1, 1, 2], [0], [0]>} : vector<8x8x8xf32>, vector<8x8x8xf32>, vector<8x8x8xf32> -> vector<8x8x8xf32>
    %68 = vector.shape_cast %67 : vector<8x8x8xf32> to vector<64x8xf32>
    %69 = vector.extract_strided_slice %49 {offsets = [0, 0], sizes = [8, 32], strides = [1, 1]} : vector<32x32xf32> to vector<8x32xf32>
    %cst_31 = arith.constant dense<0.000000e+00> : vector<64x32xf32>
    %70 = tpu.matmul %68, %69, %cst_31 {dimension_numbers = #tpu.dot_dimension_numbers<[1], [0], [0], [1], [0, 0, 1, 1], [], []>} : vector<64x8xf32>, vector<8x32xf32>, vector<64x32xf32> -> vector<64x32xf32>
    %71 = vector.broadcast %50 : vector<1x32xf32> to vector<64x32xf32>
    %72 = arith.addf %71, %70 : vector<64x32xf32>
    %73 = vector.extract_strided_slice %48 {offsets = [0, 0, 8], sizes = [8, 8, 8], strides = [1, 1, 1]} : vector<8x8x96xf32> to vector<8x8x8xf32>
    %74 = vector.extract_strided_slice %48 {offsets = [0, 0, 40], sizes = [8, 8, 8], strides = [1, 1, 1]} : vector<8x8x96xf32> to vector<8x8x8xf32>
    %75 = vector.extract_strided_slice %48 {offsets = [0, 0, 72], sizes = [8, 8, 8], strides = [1, 1, 1]} : vector<8x8x96xf32> to vector<8x8x8xf32>
    %cst_32 = arith.constant dense<0.000000e+00> : vector<8x8x8xf32>
    %76 = tpu.matmul %73, %74, %cst_32 {dimension_numbers = #tpu.dot_dimension_numbers<[2], [2], [1], [1], [0, 0, 0, 1, 1, 1], [0], [0]>} : vector<8x8x8xf32>, vector<8x8x8xf32>, vector<8x8x8xf32> -> vector<8x8x8xf32>
    %cst_33 = arith.constant 0.353553385 : f32
    %77 = vector.broadcast %cst_33 : f32 to vector<8x8x8xf32>
    %78 = arith.mulf %76, %77 : vector<8x8x8xf32>
    %cst_34 = arith.constant dense<0xFF800000> : vector<8x8xf32>
    %79 = vector.multi_reduction <maximumf>, %78, %cst_34 [2] : vector<8x8x8xf32> to vector<8x8xf32>
    %80 = vector.shape_cast %79 : vector<8x8xf32> to vector<8x8x1xf32>
    %81 = vector.broadcast %80 : vector<8x8x1xf32> to vector<8x8x8xf32>
    %82 = arith.subf %78, %81 : vector<8x8x8xf32>
    %83 = math.exp %82 : vector<8x8x8xf32>
    %cst_35 = arith.constant dense<0.000000e+00> : vector<8x8xf32>
    %84 = vector.multi_reduction <add>, %83, %cst_35 [2] : vector<8x8x8xf32> to vector<8x8xf32>
    %85 = vector.shape_cast %84 : vector<8x8xf32> to vector<8x8x1xf32>
    %86 = tpu.reciprocal %85 {approx = true} : vector<8x8x1xf32> -> vector<8x8x1xf32>
    %87 = vector.broadcast %86 : vector<8x8x1xf32> to vector<8x8x8xf32>
    %88 = arith.mulf %83, %87 : vector<8x8x8xf32>
    %cst_36 = arith.constant dense<0.000000e+00> : vector<8x8x8xf32>
    %89 = tpu.matmul %88, %75, %cst_36 {dimension_numbers = #tpu.dot_dimension_numbers<[2], [1], [1], [2], [0, 0, 0, 1, 1, 2], [0], [0]>} : vector<8x8x8xf32>, vector<8x8x8xf32>, vector<8x8x8xf32> -> vector<8x8x8xf32>
    %90 = vector.shape_cast %89 : vector<8x8x8xf32> to vector<64x8xf32>
    %91 = vector.extract_strided_slice %49 {offsets = [8, 0], sizes = [8, 32], strides = [1, 1]} : vector<32x32xf32> to vector<8x32xf32>
    %cst_37 = arith.constant dense<0.000000e+00> : vector<64x32xf32>
    %92 = tpu.matmul %90, %91, %cst_37 {dimension_numbers = #tpu.dot_dimension_numbers<[1], [0], [0], [1], [0, 0, 1, 1], [], []>} : vector<64x8xf32>, vector<8x32xf32>, vector<64x32xf32> -> vector<64x32xf32>
    %93 = arith.addf %72, %92 : vector<64x32xf32>
    %94 = vector.extract_strided_slice %48 {offsets = [0, 0, 16], sizes = [8, 8, 8], strides = [1, 1, 1]} : vector<8x8x96xf32> to vector<8x8x8xf32>
    %95 = vector.extract_strided_slice %48 {offsets = [0, 0, 48], sizes = [8, 8, 8], strides = [1, 1, 1]} : vector<8x8x96xf32> to vector<8x8x8xf32>
    %96 = vector.extract_strided_slice %48 {offsets = [0, 0, 80], sizes = [8, 8, 8], strides = [1, 1, 1]} : vector<8x8x96xf32> to vector<8x8x8xf32>
    %cst_38 = arith.constant dense<0.000000e+00> : vector<8x8x8xf32>
    %97 = tpu.matmul %94, %95, %cst_38 {dimension_numbers = #tpu.dot_dimension_numbers<[2], [2], [1], [1], [0, 0, 0, 1, 1, 1], [0], [0]>} : vector<8x8x8xf32>, vector<8x8x8xf32>, vector<8x8x8xf32> -> vector<8x8x8xf32>
    %cst_39 = arith.constant 0.353553385 : f32
    %98 = vector.broadcast %cst_39 : f32 to vector<8x8x8xf32>
    %99 = arith.mulf %97, %98 : vector<8x8x8xf32>
    %cst_40 = arith.constant dense<0xFF800000> : vector<8x8xf32>
    %100 = vector.multi_reduction <maximumf>, %99, %cst_40 [2] : vector<8x8x8xf32> to vector<8x8xf32>
    %101 = vector.shape_cast %100 : vector<8x8xf32> to vector<8x8x1xf32>
    %102 = vector.broadcast %101 : vector<8x8x1xf32> to vector<8x8x8xf32>
    %103 = arith.subf %99, %102 : vector<8x8x8xf32>
    %104 = math.exp %103 : vector<8x8x8xf32>
    %cst_41 = arith.constant dense<0.000000e+00> : vector<8x8xf32>
    %105 = vector.multi_reduction <add>, %104, %cst_41 [2] : vector<8x8x8xf32> to vector<8x8xf32>
    %106 = vector.shape_cast %105 : vector<8x8xf32> to vector<8x8x1xf32>
    %107 = tpu.reciprocal %106 {approx = true} : vector<8x8x1xf32> -> vector<8x8x1xf32>
    %108 = vector.broadcast %107 : vector<8x8x1xf32> to vector<8x8x8xf32>
    %109 = arith.mulf %104, %108 : vector<8x8x8xf32>
    %cst_42 = arith.constant dense<0.000000e+00> : vector<8x8x8xf32>
    %110 = tpu.matmul %109, %96, %cst_42 {dimension_numbers = #tpu.dot_dimension_numbers<[2], [1], [1], [2], [0, 0, 0, 1, 1, 2], [0], [0]>} : vector<8x8x8xf32>, vector<8x8x8xf32>, vector<8x8x8xf32> -> vector<8x8x8xf32>
    %111 = vector.shape_cast %110 : vector<8x8x8xf32> to vector<64x8xf32>
    %112 = vector.extract_strided_slice %49 {offsets = [16, 0], sizes = [8, 32], strides = [1, 1]} : vector<32x32xf32> to vector<8x32xf32>
    %cst_43 = arith.constant dense<0.000000e+00> : vector<64x32xf32>
    %113 = tpu.matmul %111, %112, %cst_43 {dimension_numbers = #tpu.dot_dimension_numbers<[1], [0], [0], [1], [0, 0, 1, 1], [], []>} : vector<64x8xf32>, vector<8x32xf32>, vector<64x32xf32> -> vector<64x32xf32>
    %114 = arith.addf %93, %113 : vector<64x32xf32>
    %115 = vector.extract_strided_slice %48 {offsets = [0, 0, 24], sizes = [8, 8, 8], strides = [1, 1, 1]} : vector<8x8x96xf32> to vector<8x8x8xf32>
    %116 = vector.extract_strided_slice %48 {offsets = [0, 0, 56], sizes = [8, 8, 8], strides = [1, 1, 1]} : vector<8x8x96xf32> to vector<8x8x8xf32>
    %117 = vector.extract_strided_slice %48 {offsets = [0, 0, 88], sizes = [8, 8, 8], strides = [1, 1, 1]} : vector<8x8x96xf32> to vector<8x8x8xf32>
    %cst_44 = arith.constant dense<0.000000e+00> : vector<8x8x8xf32>
    %118 = tpu.matmul %115, %116, %cst_44 {dimension_numbers = #tpu.dot_dimension_numbers<[2], [2], [1], [1], [0, 0, 0, 1, 1, 1], [0], [0]>} : vector<8x8x8xf32>, vector<8x8x8xf32>, vector<8x8x8xf32> -> vector<8x8x8xf32>
    %cst_45 = arith.constant 0.353553385 : f32
    %119 = vector.broadcast %cst_45 : f32 to vector<8x8x8xf32>
    %120 = arith.mulf %118, %119 : vector<8x8x8xf32>
    %cst_46 = arith.constant dense<0xFF800000> : vector<8x8xf32>
    %121 = vector.multi_reduction <maximumf>, %120, %cst_46 [2] : vector<8x8x8xf32> to vector<8x8xf32>
    %122 = vector.shape_cast %121 : vector<8x8xf32> to vector<8x8x1xf32>
    %123 = vector.broadcast %122 : vector<8x8x1xf32> to vector<8x8x8xf32>
    %124 = arith.subf %120, %123 : vector<8x8x8xf32>
    %125 = math.exp %124 : vector<8x8x8xf32>
    %cst_47 = arith.constant dense<0.000000e+00> : vector<8x8xf32>
    %126 = vector.multi_reduction <add>, %125, %cst_47 [2] : vector<8x8x8xf32> to vector<8x8xf32>
    %127 = vector.shape_cast %126 : vector<8x8xf32> to vector<8x8x1xf32>
    %128 = tpu.reciprocal %127 {approx = true} : vector<8x8x1xf32> -> vector<8x8x1xf32>
    %129 = vector.broadcast %128 : vector<8x8x1xf32> to vector<8x8x8xf32>
    %130 = arith.mulf %125, %129 : vector<8x8x8xf32>
    %cst_48 = arith.constant dense<0.000000e+00> : vector<8x8x8xf32>
    %131 = tpu.matmul %130, %117, %cst_48 {dimension_numbers = #tpu.dot_dimension_numbers<[2], [1], [1], [2], [0, 0, 0, 1, 1, 2], [0], [0]>} : vector<8x8x8xf32>, vector<8x8x8xf32>, vector<8x8x8xf32> -> vector<8x8x8xf32>
    %132 = vector.shape_cast %131 : vector<8x8x8xf32> to vector<64x8xf32>
    %133 = vector.extract_strided_slice %49 {offsets = [24, 0], sizes = [8, 32], strides = [1, 1]} : vector<32x32xf32> to vector<8x32xf32>
    %cst_49 = arith.constant dense<0.000000e+00> : vector<64x32xf32>
    %134 = tpu.matmul %132, %133, %cst_49 {dimension_numbers = #tpu.dot_dimension_numbers<[1], [0], [0], [1], [0, 0, 1, 1], [], []>} : vector<64x8xf32>, vector<8x32xf32>, vector<64x32xf32> -> vector<64x32xf32>
    %135 = arith.addf %114, %134 : vector<64x32xf32>
    %136 = vector.shape_cast %135 : vector<64x32xf32> to vector<8x8x32xf32>
    %137 = arith.addf %15, %136 : vector<8x8x32xf32>
    %c0_50 = arith.constant 0 : index
    %c0_51 = arith.constant 0 : index
    %138 = vector.load %arg11[%c0_50, %c0_51] : memref<1x32xf32, #tpu.memory_space<vmem>>, vector<1x32xf32>
    %c0_52 = arith.constant 0 : index
    %c0_53 = arith.constant 0 : index
    %139 = vector.load %arg12[%c0_52, %c0_53] : memref<1x32xf32, #tpu.memory_space<vmem>>, vector<1x32xf32>
    %cst_54 = arith.constant dense<0.000000e+00> : vector<8x8xf32>
    %140 = vector.multi_reduction <add>, %137, %cst_54 [2] : vector<8x8x32xf32> to vector<8x8xf32>
    %141 = vector.shape_cast %140 : vector<8x8xf32> to vector<8x8x1xf32>
    %cst_55 = arith.constant 3.200000e+01 : f32
    %142 = vector.broadcast %cst_55 : f32 to vector<8x8x1xf32>
    %143 = arith.divf %141, %142 : vector<8x8x1xf32>
    %144 = vector.broadcast %143 : vector<8x8x1xf32> to vector<8x8x32xf32>
    %145 = arith.subf %137, %144 : vector<8x8x32xf32>
    %146 = arith.mulf %145, %145 : vector<8x8x32xf32>
    %cst_56 = arith.constant dense<0.000000e+00> : vector<8x8xf32>
    %147 = vector.multi_reduction <add>, %146, %cst_56 [2] : vector<8x8x32xf32> to vector<8x8xf32>
    %148 = vector.shape_cast %147 : vector<8x8xf32> to vector<8x8x1xf32>
    %cst_57 = arith.constant 3.200000e+01 : f32
    %149 = vector.broadcast %cst_57 : f32 to vector<8x8x1xf32>
    %150 = arith.divf %148, %149 : vector<8x8x1xf32>
    %151 = vector.broadcast %143 : vector<8x8x1xf32> to vector<8x8x32xf32>
    %152 = arith.subf %137, %151 : vector<8x8x32xf32>
    %cst_58 = arith.constant 9.99999974E-6 : f32
    %153 = vector.broadcast %cst_58 : f32 to vector<8x8x1xf32>
    %154 = arith.addf %150, %153 : vector<8x8x1xf32>
    %155 = math.rsqrt %154 : vector<8x8x1xf32>
    %156 = vector.broadcast %155 : vector<8x8x1xf32> to vector<8x8x32xf32>
    %157 = arith.mulf %152, %156 : vector<8x8x32xf32>
    %158 = vector.shape_cast %138 : vector<1x32xf32> to vector<1x1x32xf32>
    %159 = vector.broadcast %158 : vector<1x1x32xf32> to vector<8x8x32xf32>
    %160 = arith.mulf %157, %159 : vector<8x8x32xf32>
    %161 = vector.shape_cast %139 : vector<1x32xf32> to vector<1x1x32xf32>
    %162 = vector.broadcast %161 : vector<1x1x32xf32> to vector<8x8x32xf32>
    %163 = arith.addf %160, %162 : vector<8x8x32xf32>
    %164 = vector.shape_cast %163 : vector<8x8x32xf32> to vector<64x32xf32>
    %c0_59 = arith.constant 0 : index
    %c0_60 = arith.constant 0 : index
    %165 = vector.load %arg13[%c0_59, %c0_60] : memref<32x64xf32, #tpu.memory_space<vmem>>, vector<32x64xf32>
    %cst_61 = arith.constant dense<0.000000e+00> : vector<64x64xf32>
    %166 = tpu.matmul %164, %165, %cst_61 {dimension_numbers = #tpu.dot_dimension_numbers<[1], [0], [0], [1], [0, 0, 1, 1], [], []>} : vector<64x32xf32>, vector<32x64xf32>, vector<64x64xf32> -> vector<64x64xf32>
    %c0_62 = arith.constant 0 : index
    %c0_63 = arith.constant 0 : index
    %167 = vector.load %arg14[%c0_62, %c0_63] : memref<1x64xf32, #tpu.memory_space<vmem>>, vector<1x64xf32>
    %168 = vector.broadcast %167 : vector<1x64xf32> to vector<64x64xf32>
    %169 = arith.addf %166, %168 : vector<64x64xf32>
    %170 = arith.mulf %169, %169 : vector<64x64xf32>
    %171 = arith.mulf %169, %170 : vector<64x64xf32>
    %cst_64 = arith.constant 4.471500e-02 : f32
    %172 = vector.broadcast %cst_64 : f32 to vector<64x64xf32>
    %173 = arith.mulf %172, %171 : vector<64x64xf32>
    %174 = arith.addf %169, %173 : vector<64x64xf32>
    %cst_65 = arith.constant 0.797884583 : f32
    %175 = vector.broadcast %cst_65 : f32 to vector<64x64xf32>
    %176 = arith.mulf %175, %174 : vector<64x64xf32>
    %177 = math.tanh %176 : vector<64x64xf32>
    %cst_66 = arith.constant 1.000000e+00 : f32
    %178 = vector.broadcast %cst_66 : f32 to vector<64x64xf32>
    %179 = arith.addf %178, %177 : vector<64x64xf32>
    %cst_67 = arith.constant 5.000000e-01 : f32
    %180 = vector.broadcast %cst_67 : f32 to vector<64x64xf32>
    %181 = arith.mulf %180, %179 : vector<64x64xf32>
    %182 = arith.mulf %169, %181 : vector<64x64xf32>
    %c0_68 = arith.constant 0 : index
    %c0_69 = arith.constant 0 : index
    %183 = vector.load %arg15[%c0_68, %c0_69] : memref<64x32xf32, #tpu.memory_space<vmem>>, vector<64x32xf32>
    %cst_70 = arith.constant dense<0.000000e+00> : vector<64x32xf32>
    %184 = tpu.matmul %182, %183, %cst_70 {dimension_numbers = #tpu.dot_dimension_numbers<[1], [0], [0], [1], [0, 0, 1, 1], [], []>} : vector<64x64xf32>, vector<64x32xf32>, vector<64x32xf32> -> vector<64x32xf32>
    %c0_71 = arith.constant 0 : index
    %c0_72 = arith.constant 0 : index
    %185 = vector.load %arg16[%c0_71, %c0_72] : memref<1x32xf32, #tpu.memory_space<vmem>>, vector<1x32xf32>
    %186 = vector.broadcast %185 : vector<1x32xf32> to vector<64x32xf32>
    %187 = arith.addf %184, %186 : vector<64x32xf32>
    %188 = vector.shape_cast %187 : vector<64x32xf32> to vector<8x8x32xf32>
    %189 = arith.addf %137, %188 : vector<8x8x32xf32>
    %190 = vector.shape_cast %8 : vector<8x32xf32> to vector<8x1x32xf32>
    %191 = vector.broadcast %190 : vector<8x1x32xf32> to vector<8x8x32xf32>
    %192 = arith.addf %189, %191 : vector<8x8x32xf32>
    %c0_73 = arith.constant 0 : index
    %c0_74 = arith.constant 0 : index
    %193 = vector.load %arg17[%c0_73, %c0_74] : memref<1x32xf32, #tpu.memory_space<vmem>>, vector<1x32xf32>
    %194 = vector.shape_cast %193 : vector<1x32xf32> to vector<1x1x32xf32>
    %195 = vector.broadcast %194 : vector<1x1x32xf32> to vector<8x8x32xf32>
    %196 = arith.mulf %192, %195 : vector<8x8x32xf32>
    %cst_75 = arith.constant dense<0.000000e+00> : vector<8x8xf32>
    %197 = vector.multi_reduction <add>, %196, %cst_75 [2] : vector<8x8x32xf32> to vector<8x8xf32>
    %c0_76 = arith.constant 0 : index
    %c0_77 = arith.constant 0 : index
    %198 = vector.load %arg18[%c0_76, %c0_77] : memref<1x1xf32, #tpu.memory_space<vmem>>, vector<1x1xf32>
    %199 = vector.broadcast %198 : vector<1x1xf32> to vector<8x8xf32>
    %200 = arith.addf %197, %199 : vector<8x8xf32>
    %c0_78 = arith.constant 0 : index
    %c0_79 = arith.constant 0 : index
    %c0_80 = arith.constant 0 : index
    %201 = vector.load %arg19[%c0_78, %c0_79, %c0_80] : memref<1x8x8xf32, #tpu.memory_space<vmem>>, vector<1x8x8xf32>
    %202 = vector.shape_cast %201 : vector<1x8x8xf32> to vector<8x8xf32>
    %203 = vector.shape_cast %200 : vector<8x8xf32> to vector<1x8x8xf32>
    tpu.vector_store %arg19[%c0_78, %c0_79, %c0_80], %203 {strides = array<i32>} : memref<1x8x8xf32, #tpu.memory_space<vmem>>, vector<1x8x8xf32>,
    return
  }
  func.func @transform_0(%arg0: i32) -> (i32, i32, i32) {
    %c0_i32 = arith.constant 0 : i32
    %c0_i32_0 = arith.constant 0 : i32
    %c0_i32_1 = arith.constant 0 : i32
    return %arg0, %c0_i32, %c0_i32_0 : i32, i32, i32
  }
  func.func @transform_1(%arg0: i32) -> (i32, i32, i32) {
    %c0_i32 = arith.constant 0 : i32
    %c0_i32_0 = arith.constant 0 : i32
    %c0_i32_1 = arith.constant 0 : i32
    return %arg0, %c0_i32, %c0_i32_0 : i32, i32, i32
  }
  func.func @transform_2(%arg0: i32) -> (i32, i32) {
    %c0_i32 = arith.constant 0 : i32
    %c0_i32_0 = arith.constant 0 : i32
    %c0_i32_1 = arith.constant 0 : i32
    return %c0_i32, %c0_i32_0 : i32, i32
  }
  func.func @transform_3(%arg0: i32) -> (i32, i32) {
    %c0_i32 = arith.constant 0 : i32
    %c0_i32_0 = arith.constant 0 : i32
    %c0_i32_1 = arith.constant 0 : i32
    return %c0_i32, %c0_i32_0 : i32, i32
  }
  func.func @transform_4(%arg0: i32) -> (i32, i32) {
    %c0_i32 = arith.constant 0 : i32
    %c0_i32_0 = arith.constant 0 : i32
    %c0_i32_1 = arith.constant 0 : i32
    return %c0_i32, %c0_i32_0 : i32, i32
  }
  func.func @transform_5(%arg0: i32) -> (i32, i32) {
    %c0_i32 = arith.constant 0 : i32
    %c0_i32_0 = arith.constant 0 : i32
    %c0_i32_1 = arith.constant 0 : i32
    return %c0_i32, %c0_i32_0 : i32, i32
  }
  func.func @transform_6(%arg0: i32) -> (i32, i32) {
    %c0_i32 = arith.constant 0 : i32
    %c0_i32_0 = arith.constant 0 : i32
    %c0_i32_1 = arith.constant 0 : i32
    return %c0_i32, %c0_i32_0 : i32, i32
  }
  func.func @transform_7(%arg0: i32) -> (i32, i32) {
    %c0_i32 = arith.constant 0 : i32
    %c0_i32_0 = arith.constant 0 : i32
    %c0_i32_1 = arith.constant 0 : i32
    return %c0_i32, %c0_i32_0 : i32, i32
  }
  func.func @transform_8(%arg0: i32) -> (i32, i32) {
    %c0_i32 = arith.constant 0 : i32
    %c0_i32_0 = arith.constant 0 : i32
    %c0_i32_1 = arith.constant 0 : i32
    return %c0_i32, %c0_i32_0 : i32, i32
  }
  func.func @transform_9(%arg0: i32) -> (i32, i32) {
    %c0_i32 = arith.constant 0 : i32
    %c0_i32_0 = arith.constant 0 : i32
    %c0_i32_1 = arith.constant 0 : i32
    return %c0_i32, %c0_i32_0 : i32, i32
  }
  func.func @transform_10(%arg0: i32) -> (i32, i32) {
    %c0_i32 = arith.constant 0 : i32
    %c0_i32_0 = arith.constant 0 : i32
    %c0_i32_1 = arith.constant 0 : i32
    return %c0_i32, %c0_i32_0 : i32, i32
  }
  func.func @transform_11(%arg0: i32) -> (i32, i32) {
    %c0_i32 = arith.constant 0 : i32
    %c0_i32_0 = arith.constant 0 : i32
    %c0_i32_1 = arith.constant 0 : i32
    return %c0_i32, %c0_i32_0 : i32, i32
  }
  func.func @transform_12(%arg0: i32) -> (i32, i32) {
    %c0_i32 = arith.constant 0 : i32
    %c0_i32_0 = arith.constant 0 : i32
    %c0_i32_1 = arith.constant 0 : i32
    return %c0_i32, %c0_i32_0 : i32, i32
  }
  func.func @transform_13(%arg0: i32) -> (i32, i32) {
    %c0_i32 = arith.constant 0 : i32
    %c0_i32_0 = arith.constant 0 : i32
    %c0_i32_1 = arith.constant 0 : i32
    return %c0_i32, %c0_i32_0 : i32, i32
  }
  func.func @transform_14(%arg0: i32) -> (i32, i32) {
    %c0_i32 = arith.constant 0 : i32
    %c0_i32_0 = arith.constant 0 : i32
    %c0_i32_1 = arith.constant 0 : i32
    return %c0_i32, %c0_i32_0 : i32, i32
  }
  func.func @transform_15(%arg0: i32) -> (i32, i32) {
    %c0_i32 = arith.constant 0 : i32
    %c0_i32_0 = arith.constant 0 : i32
    %c0_i32_1 = arith.constant 0 : i32
    return %c0_i32, %c0_i32_0 : i32, i32
  }
  func.func @transform_16(%arg0: i32) -> (i32, i32) {
    %c0_i32 = arith.constant 0 : i32
    %c0_i32_0 = arith.constant 0 : i32
    %c0_i32_1 = arith.constant 0 : i32
    return %c0_i32, %c0_i32_0 : i32, i32
  }
  func.func @transform_17(%arg0: i32) -> (i32, i32) {
    %c0_i32 = arith.constant 0 : i32
    %c0_i32_0 = arith.constant 0 : i32
    %c0_i32_1 = arith.constant 0 : i32
    return %c0_i32, %c0_i32_0 : i32, i32
  }
  func.func @transform_18(%arg0: i32) -> (i32, i32, i32) {
    %c0_i32 = arith.constant 0 : i32
    %c0_i32_0 = arith.constant 0 : i32
    %c0_i32_1 = arith.constant 0 : i32
    return %arg0, %c0_i32, %c0_i32_0 : i32, i32, i32
  }
}

</mosaic_0001>

<llo_original>
// kernel: _lambda_.2
$region0: #{_lambda_.2}
  #allocation0 [shape = 'u32[]', space=smem, size = 0x4, offset = 0x4, fixed_abs, tag = 'smem constant byte address 0x4 - core index']
  #allocation1 [shape = 'u32[144,128]{1,0:T(1,128)}', space=vmem, size = 0x12000, scoped, tag = 'internal scratch']
  %s0 = inlined_call_operand.vmem [shape: f32[2,12,1], index: 0, kind: input, shape index: {}]
  %s1 = inlined_call_operand.vmem [shape: f32[2,12,32], index: 1, kind: input, shape index: {}]
  %s2 = inlined_call_operand.vmem [shape: f32[12,32], index: 2, kind: input, shape index: {}]
  %s3 = inlined_call_operand.vmem [shape: f32[12,32], index: 3, kind: input, shape index: {}]
  %s4 = inlined_call_operand.vmem [shape: f32[1,32], index: 4, kind: input, shape index: {}]
  %s5 = inlined_call_operand.vmem [shape: f32[1,32], index: 5, kind: input, shape index: {}, may-alias: {5,9,11,15,17}]
  %s6 = inlined_call_operand.vmem [shape: f32[32,96], index: 6, kind: input, shape index: {}]
  %s7 = inlined_call_operand.vmem [shape: f32[1,96], index: 7, kind: input, shape index: {}]
  %s8 = inlined_call_operand.vmem [shape: f32[32,32], index: 8, kind: input, shape index: {}]
  %s9 = inlined_call_operand.vmem [shape: f32[1,32], index: 9, kind: input, shape index: {}, may-alias: {5,9,11,15,17}]
  %s10 = inlined_call_operand.vmem [shape: f32[1,32], index: 10, kind: input, shape index: {}]
  %s11 = inlined_call_operand.vmem [shape: f32[1,32], index: 11, kind: input, shape index: {}, may-alias: {5,9,11,15,17}]
  %s12 = inlined_call_operand.vmem [shape: f32[32,64], index: 12, kind: input, shape index: {}]
  %s13 = inlined_call_operand.vmem [shape: f32[1,64], index: 13, kind: input, shape index: {}]
  %s14 = inlined_call_operand.vmem [shape: f32[64,32], index: 14, kind: input, shape index: {}]
  %s15 = inlined_call_operand.vmem [shape: f32[1,32], index: 15, kind: input, shape index: {}, may-alias: {5,9,11,15,17}]
  %s16 = inlined_call_operand.vmem [shape: f32[32,32], index: 16, kind: input, shape index: {}]
  %s17 = inlined_call_operand.vmem [shape: f32[1,32], index: 17, kind: input, shape index: {}, may-alias: {5,9,11,15,17}]
  %s18 = inlined_call_operand.vmem [shape: f32[2,8,32], index: 18, kind: output, shape index: {}]
  %s19 = sld [smem:[#allocation0]]
  $region105: #{_lambda_.2} parent=0
    _
  %s21 = ssub.s32 1, %s19
  %s22 = scalar_select 0, %s21, %s19
  loop: start=0, step=1, limit=4
  $region2: #{_lambda_.2} parent=0 // loop_pre_header
    _
  $region3: #{_lambda_.2} parent=0 // loop_header
    %s24 = sphi 0, %s28
    %p25 = scmp.ge.s32.totalorder %s24, 4
    %s34 = sphi 0, %s36
    %s37 = sphi 0, %s34
    %s38 = sphi 0, %s37
    %s54 = sphi 0, %s38
    %s60 = sphi 0, %s62
    %s63 = sphi 0, %s60
    %s64 = sphi 0, %s63
    %s80 = sphi 0, %s64
    %s84 = sphi 0, %s84
    %s86 = sphi 0, %s84
    %s87 = sphi 0, %s86
    %s101 = sphi 0, %s87
    %s105 = sphi 0, %s105
    %s107 = sphi 0, %s105
    %s108 = sphi 0, %s107
    %s122 = sphi 0, %s108
    %s126 = sphi 0, %s126
    %s128 = sphi 0, %s126
    %s129 = sphi 0, %s128
    %s143 = sphi 0, %s129
    %s147 = sphi 0, %s147
    %s149 = sphi 0, %s147
    %s150 = sphi 0, %s149
    %s164 = sphi 0, %s150
    %s168 = sphi 0, %s168
    %s170 = sphi 0, %s168
    %s171 = sphi 0, %s170
    %s185 = sphi 0, %s171
    %s189 = sphi 0, %s189
    %s191 = sphi 0, %s189
    %s192 = sphi 0, %s191
    %s206 = sphi 0, %s192
    %s210 = sphi 0, %s210
    %s212 = sphi 0, %s210
    %s213 = sphi 0, %s212
    %s227 = sphi 0, %s213
    %s231 = sphi 0, %s231
    %s233 = sphi 0, %s231
    %s234 = sphi 0, %s233
    %s248 = sphi 0, %s234
    %s252 = sphi 0, %s252
    %s254 = sphi 0, %s252
    %s255 = sphi 0, %s254
    %s269 = sphi 0, %s255
    %s273 = sphi 0, %s273
    %s275 = sphi 0, %s273
    %s276 = sphi 0, %s275
    %s290 = sphi 0, %s276
    %s294 = sphi 0, %s294
    %s296 = sphi 0, %s294
    %s297 = sphi 0, %s296
    %s311 = sphi 0, %s297
    %s315 = sphi 0, %s315
    %s317 = sphi 0, %s315
    %s318 = sphi 0, %s317
    %s332 = sphi 0, %s318
    %s336 = sphi 0, %s336
    %s338 = sphi 0, %s336
    %s339 = sphi 0, %s338
    %s353 = sphi 0, %s339
    %s357 = sphi 0, %s357
    %s359 = sphi 0, %s357
    %s360 = sphi 0, %s359
    %s374 = sphi 0, %s360
    %s378 = sphi 0, %s378
    %s380 = sphi 0, %s378
    %s381 = sphi 0, %s380
    %s395 = sphi 0, %s381
    %s399 = sphi 0, %s399
    %s401 = sphi 0, %s399
    %s402 = sphi 0, %s401
    %s416 = sphi 0, %s402
    %s422 = sphi 0, %s424
    %s425 = sphi 0, %s422
    %s426 = sphi 0, %s425
    %s442 = sphi 0, %s426
  $region4: #{_lambda_.2} parent=0 // loop_header_branch
    %27 = sbr.rel (%p25) target = $region8
  $region5: #{_lambda_.2} parent=0 // loop_body
    %s29 = ssub.s32 %s24, 1
    %s30 = ssub.s32 %s24, 2
    %s31 = sadd.s32 %s24, 1
    %s32 = ssub.s32 %s24, %s31
    %p33 = scmp.eq.s32.totalorder %s32, 0
    %s35 = sadd.s32 %s34, 1
    %s36 = scalar_select %p33, %s34, %s35
    %p39 = pneg %p33
    %p40 = scmp.eq.s32.totalorder %s24, 1
    %p41 = por %p39, %p40
    %p42 = scmp.ne.s32.totalorder %s34, %s37
    %p43 = scmp.eq.s32.totalorder %s24, 0
    %p44 = por %p42, %p43
    %p45 = scmp.ne.s32.totalorder %s34, %s37
    %p46 = scmp.eq.s32.totalorder %s29, 1
    %p47 = por %p45, %p46
    %p48 = scmp.ne.s32.totalorder %s37, %s38
    %p49 = scmp.eq.s32.totalorder %s29, 0
    %p50 = por %p48, %p49
    %p51 = scmp.ne.s32.totalorder %s37, %s38
    %p52 = scmp.eq.s32.totalorder %s30, 1
    %p53 = por %p51, %p52
    %p55 = scmp.ne.s32.totalorder %s38, %s54
    %p56 = scmp.eq.s32.totalorder %s30, 0
    %p57 = por %p55, %p56
    %s58 = ssub.s32 %s24, %s31
    %p59 = scmp.eq.s32.totalorder %s58, 0
    %s61 = sadd.s32 %s60, 1
    %s62 = scalar_select %p59, %s60, %s61
    %p65 = pneg %p59
    %p66 = scmp.eq.s32.totalorder %s24, 1
    %p67 = por %p65, %p66
    %p68 = scmp.ne.s32.totalorder %s60, %s63
    %p69 = scmp.eq.s32.totalorder %s24, 0
    %p70 = por %p68, %p69
    %p71 = scmp.ne.s32.totalorder %s60, %s63
    %p72 = scmp.eq.s32.totalorder %s29, 1
    %p73 = por %p71, %p72
    %p74 = scmp.ne.s32.totalorder %s63, %s64
    %p75 = scmp.eq.s32.totalorder %s29, 0
    %p76 = por %p74, %p75
    %p77 = scmp.ne.s32.totalorder %s63, %s64
    %p78 = scmp.eq.s32.totalorder %s30, 1
    %p79 = por %p77, %p78
    %p81 = scmp.ne.s32.totalorder %s64, %s80
    %p82 = scmp.eq.s32.totalorder %s30, 0
    %p83 = por %p81, %p82
    %s85 = sadd.s32 %s84, 1
    %p88 = scmp.eq.s32.totalorder %s24, 1
    %p89 = scmp.ne.s32.totalorder %s84, %s86
    %p90 = scmp.eq.s32.totalorder %s24, 0
    %p91 = por %p89, %p90
    %p92 = scmp.ne.s32.totalorder %s84, %s86
    %p93 = scmp.eq.s32.totalorder %s29, 1
    %p94 = por %p92, %p93
    %p95 = scmp.ne.s32.totalorder %s86, %s87
    %p96 = scmp.eq.s32.totalorder %s29, 0
    %p97 = por %p95, %p96
    %p98 = scmp.ne.s32.totalorder %s86, %s87
    %p99 = scmp.eq.s32.totalorder %s30, 1
    %p100 = por %p98, %p99
    %p102 = scmp.ne.s32.totalorder %s87, %s101
    %p103 = scmp.eq.s32.totalorder %s30, 0
    %p104 = por %p102, %p103
    %s106 = sadd.s32 %s105, 1
    %p109 = scmp.eq.s32.totalorder %s24, 1
    %p110 = scmp.ne.s32.totalorder %s105, %s107
    %p111 = scmp.eq.s32.totalorder %s24, 0
    %p112 = por %p110, %p111
    %p113 = scmp.ne.s32.totalorder %s105, %s107
    %p114 = scmp.eq.s32.totalorder %s29, 1
    %p115 = por %p113, %p114
    %p116 = scmp.ne.s32.totalorder %s107, %s108
    %p117 = scmp.eq.s32.totalorder %s29, 0
    %p118 = por %p116, %p117
    %p119 = scmp.ne.s32.totalorder %s107, %s108
    %p120 = scmp.eq.s32.totalorder %s30, 1
    %p121 = por %p119, %p120
    %p123 = scmp.ne.s32.totalorder %s108, %s122
    %p124 = scmp.eq.s32.totalorder %s30, 0
    %p125 = por %p123, %p124
    %s127 = sadd.s32 %s126, 1
    %p130 = scmp.eq.s32.totalorder %s24, 1
    %p131 = scmp.ne.s32.totalorder %s126, %s128
    %p132 = scmp.eq.s32.totalorder %s24, 0
    %p133 = por %p131, %p132
    %p134 = scmp.ne.s32.totalorder %s126, %s128
    %p135 = scmp.eq.s32.totalorder %s29, 1
    %p136 = por %p134, %p135
    %p137 = scmp.ne.s32.totalorder %s128, %s129
    %p138 = scmp.eq.s32.totalorder %s29, 0
    %p139 = por %p137, %p138
    %p140 = scmp.ne.s32.totalorder %s128, %s129
    %p141 = scmp.eq.s32.totalorder %s30, 1
    %p142 = por %p140, %p141
    %p144 = scmp.ne.s32.totalorder %s129, %s143
    %p145 = scmp.eq.s32.totalorder %s30, 0
    %p146 = por %p144, %p145
    %s148 = sadd.s32 %s147, 1
    %p151 = scmp.eq.s32.totalorder %s24, 1
    %p152 = scmp.ne.s32.totalorder %s147, %s149
    %p153 = scmp.eq.s32.totalorder %s24, 0
    %p154 = por %p152, %p153
    %p155 = scmp.ne.s32.totalorder %s147, %s149
    %p156 = scmp.eq.s32.totalorder %s29, 1
    %p157 = por %p155, %p156
    %p158 = scmp.ne.s32.totalorder %s149, %s150
    %p159 = scmp.eq.s32.totalorder %s29, 0
    %p160 = por %p158, %p159
    %p161 = scmp.ne.s32.totalorder %s149, %s150
    %p162 = scmp.eq.s32.totalorder %s30, 1
    %p163 = por %p161, %p162
    %p165 = scmp.ne.s32.totalorder %s150, %s164
    %p166 = scmp.eq.s32.totalorder %s30, 0
    %p167 = por %p165, %p166
    %s169 = sadd.s32 %s168, 1
    %p172 = scmp.eq.s32.totalorder %s24, 1
    %p173 = scmp.ne.s32.totalorder %s168, %s170
    %p174 = scmp.eq.s32.totalorder %s24, 0
    %p175 = por %p173, %p174
    %p176 = scmp.ne.s32.totalorder %s168, %s170
    %p177 = scmp.eq.s32.totalorder %s29, 1
    %p178 = por %p176, %p177
    %p179 = scmp.ne.s32.totalorder %s170, %s171
    %p180 = scmp.eq.s32.totalorder %s29, 0
    %p181 = por %p179, %p180
    %p182 = scmp.ne.s32.totalorder %s170, %s171
    %p183 = scmp.eq.s32.totalorder %s30, 1
    %p184 = por %p182, %p183
    %p186 = scmp.ne.s32.totalorder %s171, %s185
    %p187 = scmp.eq.s32.totalorder %s30, 0
    %p188 = por %p186, %p187
    %s190 = sadd.s32 %s189, 1
    %p193 = scmp.eq.s32.totalorder %s24, 1
    %p194 = scmp.ne.s32.totalorder %s189, %s191
    %p195 = scmp.eq.s32.totalorder %s24, 0
    %p196 = por %p194, %p195
    %p197 = scmp.ne.s32.totalorder %s189, %s191
    %p198 = scmp.eq.s32.totalorder %s29, 1
    %p199 = por %p197, %p198
    %p200 = scmp.ne.s32.totalorder %s191, %s192
    %p201 = scmp.eq.s32.totalorder %s29, 0
    %p202 = por %p200, %p201
    %p203 = scmp.ne.s32.totalorder %s191, %s192
    %p204 = scmp.eq.s32.totalorder %s30, 1
    %p205 = por %p203, %p204
    %p207 = scmp.ne.s32.totalorder %s192, %s206
    %p208 = scmp.eq.s32.totalorder %s30, 0
    %p209 = por %p207, %p208
    %s211 = sadd.s32 %s210, 1
    %p214 = scmp.eq.s32.totalorder %s24, 1
    %p215 = scmp.ne.s32.totalorder %s210, %s212
    %p216 = scmp.eq.s32.totalorder %s24, 0
    %p217 = por %p215, %p216
    %p218 = scmp.ne.s32.totalorder %s210, %s212
    %p219 = scmp.eq.s32.totalorder %s29, 1
    %p220 = por %p218, %p219
    %p221 = scmp.ne.s32.totalorder %s212, %s213
    %p222 = scmp.eq.s32.totalorder %s29, 0
    %p223 = por %p221, %p222
    %p224 = scmp.ne.s32.totalorder %s212, %s213
    %p225 = scmp.eq.s32.totalorder %s30, 1
    %p226 = por %p224, %p225
    %p228 = scmp.ne.s32.totalorder %s213, %s227
    %p229 = scmp.eq.s32.totalorder %s30, 0
    %p230 = por %p228, %p229
    %s232 = sadd.s32 %s231, 1
    %p235 = scmp.eq.s32.totalorder %s24, 1
    %p236 = scmp.ne.s32.totalorder %s231, %s233
    %p237 = scmp.eq.s32.totalorder %s24, 0
    %p238 = por %p236, %p237
    %p239 = scmp.ne.s32.totalorder %s231, %s233
    %p240 = scmp.eq.s32.totalorder %s29, 1
    %p241 = por %p239, %p240
    %p242 = scmp.ne.s32.totalorder %s233, %s234
    %p243 = scmp.eq.s32.totalorder %s29, 0
    %p244 = por %p242, %p243
    %p245 = scmp.ne.s32.totalorder %s233, %s234
    %p246 = scmp.eq.s32.totalorder %s30, 1
    %p247 = por %p245, %p246
    %p249 = scmp.ne.s32.totalorder %s234, %s248
    %p250 = scmp.eq.s32.totalorder %s30, 0
    %p251 = por %p249, %p250
    %s253 = sadd.s32 %s252, 1
    %p256 = scmp.eq.s32.totalorder %s24, 1
    %p257 = scmp.ne.s32.totalorder %s252, %s254
    %p258 = scmp.eq.s32.totalorder %s24, 0
    %p259 = por %p257, %p258
    %p260 = scmp.ne.s32.totalorder %s252, %s254
    %p261 = scmp.eq.s32.totalorder %s29, 1
    %p262 = por %p260, %p261
    %p263 = scmp.ne.s32.totalorder %s254, %s255
    %p264 = scmp.eq.s32.totalorder %s29, 0
    %p265 = por %p263, %p264
    %p266 = scmp.ne.s32.totalorder %s254, %s255
    %p267 = scmp.eq.s32.totalorder %s30, 1
    %p268 = por %p266, %p267
    %p270 = scmp.ne.s32.totalorder %s255, %s269
    %p271 = scmp.eq.s32.totalorder %s30, 0
    %p272 = por %p270, %p271
    %s274 = sadd.s32 %s273, 1
    %p277 = scmp.eq.s32.totalorder %s24, 1
    %p278 = scmp.ne.s32.totalorder %s273, %s275
    %p279 = scmp.eq.s32.totalorder %s24, 0
    %p280 = por %p278, %p279
    %p281 = scmp.ne.s32.totalorder %s273, %s275
    %p282 = scmp.eq.s32.totalorder %s29, 1
    %p283 = por %p281, %p282
    %p284 = scmp.ne.s32.totalorder %s275, %s276
    %p285 = scmp.eq.s32.totalorder %s29, 0
    %p286 = por %p284, %p285
    %p287 = scmp.ne.s32.totalorder %s275, %s276
    %p288 = scmp.eq.s32.totalorder %s30, 1
    %p289 = por %p287, %p288
    %p291 = scmp.ne.s32.totalorder %s276, %s290
    %p292 = scmp.eq.s32.totalorder %s30, 0
    %p293 = por %p291, %p292
    %s295 = sadd.s32 %s294, 1
    %p298 = scmp.eq.s32.totalorder %s24, 1
    %p299 = scmp.ne.s32.totalorder %s294, %s296
    %p300 = scmp.eq.s32.totalorder %s24, 0
    %p301 = por %p299, %p300
    %p302 = scmp.ne.s32.totalorder %s294, %s296
    %p303 = scmp.eq.s32.totalorder %s29, 1
    %p304 = por %p302, %p303
    %p305 = scmp.ne.s32.totalorder %s296, %s297
    %p306 = scmp.eq.s32.totalorder %s29, 0
    %p307 = por %p305, %p306
    %p308 = scmp.ne.s32.totalorder %s296, %s297
    %p309 = scmp.eq.s32.totalorder %s30, 1
    %p310 = por %p308, %p309
    %p312 = scmp.ne.s32.totalorder %s297, %s311
    %p313 = scmp.eq.s32.totalorder %s30, 0
    %p314 = por %p312, %p313
    %s316 = sadd.s32 %s315, 1
    %p319 = scmp.eq.s32.totalorder %s24, 1
    %p320 = scmp.ne.s32.totalorder %s315, %s317
    %p321 = scmp.eq.s32.totalorder %s24, 0
    %p322 = por %p320, %p321
    %p323 = scmp.ne.s32.totalorder %s315, %s317
    %p324 = scmp.eq.s32.totalorder %s29, 1
    %p325 = por %p323, %p324
    %p326 = scmp.ne.s32.totalorder %s317, %s318
    %p327 = scmp.eq.s32.totalorder %s29, 0
    %p328 = por %p326, %p327
    %p329 = scmp.ne.s32.totalorder %s317, %s318
    %p330 = scmp.eq.s32.totalorder %s30, 1
    %p331 = por %p329, %p330
    %p333 = scmp.ne.s32.totalorder %s318, %s332
    %p334 = scmp.eq.s32.totalorder %s30, 0
    %p335 = por %p333, %p334
    %s337 = sadd.s32 %s336, 1
    %p340 = scmp.eq.s32.totalorder %s24, 1
    %p341 = scmp.ne.s32.totalorder %s336, %s338
    %p342 = scmp.eq.s32.totalorder %s24, 0
    %p343 = por %p341, %p342
    %p344 = scmp.ne.s32.totalorder %s336, %s338
    %p345 = scmp.eq.s32.totalorder %s29, 1
    %p346 = por %p344, %p345
    %p347 = scmp.ne.s32.totalorder %s338, %s339
    %p348 = scmp.eq.s32.totalorder %s29, 0
    %p349 = por %p347, %p348
    %p350 = scmp.ne.s32.totalorder %s338, %s339
    %p351 = scmp.eq.s32.totalorder %s30, 1
    %p352 = por %p350, %p351
    %p354 = scmp.ne.s32.totalorder %s339, %s353
    %p355 = scmp.eq.s32.totalorder %s30, 0
    %p356 = por %p354, %p355
    %s358 = sadd.s32 %s357, 1
    %p361 = scmp.eq.s32.totalorder %s24, 1
    %p362 = scmp.ne.s32.totalorder %s357, %s359
    %p363 = scmp.eq.s32.totalorder %s24, 0
    %p364 = por %p362, %p363
    %p365 = scmp.ne.s32.totalorder %s357, %s359
    %p366 = scmp.eq.s32.totalorder %s29, 1
    %p367 = por %p365, %p366
    %p368 = scmp.ne.s32.totalorder %s359, %s360
    %p369 = scmp.eq.s32.totalorder %s29, 0
    %p370 = por %p368, %p369
    %p371 = scmp.ne.s32.totalorder %s359, %s360
    %p372 = scmp.eq.s32.totalorder %s30, 1
    %p373 = por %p371, %p372
    %p375 = scmp.ne.s32.totalorder %s360, %s374
    %p376 = scmp.eq.s32.totalorder %s30, 0
    %p377 = por %p375, %p376
    %s379 = sadd.s32 %s378, 1
    %p382 = scmp.eq.s32.totalorder %s24, 1
    %p383 = scmp.ne.s32.totalorder %s378, %s380
    %p384 = scmp.eq.s32.totalorder %s24, 0
    %p385 = por %p383, %p384
    %p386 = scmp.ne.s32.totalorder %s378, %s380
    %p387 = scmp.eq.s32.totalorder %s29, 1
    %p388 = por %p386, %p387
    %p389 = scmp.ne.s32.totalorder %s380, %s381
    %p390 = scmp.eq.s32.totalorder %s29, 0
    %p391 = por %p389, %p390
    %p392 = scmp.ne.s32.totalorder %s380, %s381
    %p393 = scmp.eq.s32.totalorder %s30, 1
    %p394 = por %p392, %p393
    %p396 = scmp.ne.s32.totalorder %s381, %s395
    %p397 = scmp.eq.s32.totalorder %s30, 0
    %p398 = por %p396, %p397
    %s400 = sadd.s32 %s399, 1
    %p403 = scmp.eq.s32.totalorder %s24, 1
    %p404 = scmp.ne.s32.totalorder %s399, %s401
    %p405 = scmp.eq.s32.totalorder %s24, 0
    %p406 = por %p404, %p405
    %p407 = scmp.ne.s32.totalorder %s399, %s401
    %p408 = scmp.eq.s32.totalorder %s29, 1
    %p409 = por %p407, %p408
    %p410 = scmp.ne.s32.totalorder %s401, %s402
    %p411 = scmp.eq.s32.totalorder %s29, 0
    %p412 = por %p410, %p411
    %p413 = scmp.ne.s32.totalorder %s401, %s402
    %p414 = scmp.eq.s32.totalorder %s30, 1
    %p415 = por %p413, %p414
    %p417 = scmp.ne.s32.totalorder %s402, %s416
    %p418 = scmp.eq.s32.totalorder %s30, 0
    %p419 = por %p417, %p418
    %s420 = ssub.s32 %s24, %s31
    %p421 = scmp.eq.s32.totalorder %s420, 0
    %s423 = sadd.s32 %s422, 1
    %s424 = scalar_select %p421, %s422, %s423
    %p427 = pneg %p421
    %p428 = scmp.eq.s32.totalorder %s24, 1
    %p429 = por %p427, %p428
    %p430 = scmp.ne.s32.totalorder %s422, %s425
    %p431 = scmp.eq.s32.totalorder %s24, 0
    %p432 = por %p430, %p431
    %p433 = scmp.ne.s32.totalorder %s422, %s425
    %p434 = scmp.eq.s32.totalorder %s29, 1
    %p435 = por %p433, %p434
    %p436 = scmp.ne.s32.totalorder %s425, %s426
    %p437 = scmp.eq.s32.totalorder %s29, 0
    %p438 = por %p436, %p437
    %p439 = scmp.ne.s32.totalorder %s425, %s426
    %p440 = scmp.eq.s32.totalorder %s30, 1
    %p441 = por %p439, %p440
    %p443 = scmp.ne.s32.totalorder %s426, %s442
    %p444 = scmp.eq.s32.totalorder %s30, 0
    %p445 = por %p443, %p444
    %p446 = scmp.le.s32.totalorder 1, %s24
    %p447 = scmp.lt.s32.totalorder %s24, 3
    %p448 = pnand %p446, %p447
    %p449 = pneg %p448
    // Predicated region
    $region9: #{_lambda_.2} parent=5 // pred_check
      _
    $region10: #{_lambda_.2} parent=5 // pred_check_branch
      %451 = sbr.rel (%p448) target = $region12
    $region11: #{_lambda_.2} parent=5 // pred_region
      %s452 = ssub.s32 %s24, 1
      // Predicated region
      $region13: #{_lambda_.2} parent=11 // pred_check
        %p453 = pneg %p97
      $region14: #{_lambda_.2} parent=11 // pred_check_branch
        %455 = sbr.rel (%p453) target = $region16
      $region15: #{_lambda_.2} parent=11 // pred_region
        _
      $region16: #{_lambda_.2} parent=11 // pred_fallthru
        _
      // Predicated region
      $region17: #{_lambda_.2} parent=11 // pred_check
        %p456 = pneg %p118
      $region18: #{_lambda_.2} parent=11 // pred_check_branch
        %458 = sbr.rel (%p456) target = $region20
      $region19: #{_lambda_.2} parent=11 // pred_region
        _
      $region20: #{_lambda_.2} parent=11 // pred_fallthru
        _
      // Predicated region
      $region21: #{_lambda_.2} parent=11 // pred_check
        %p459 = pneg %p139
      $region22: #{_lambda_.2} parent=11 // pred_check_branch
        %461 = sbr.rel (%p459) target = $region24
      $region23: #{_lambda_.2} parent=11 // pred_region
        _
      $region24: #{_lambda_.2} parent=11 // pred_fallthru
        _
      // Predicated region
      $region25: #{_lambda_.2} parent=11 // pred_check
        %p462 = pneg %p160
      $region26: #{_lambda_.2} parent=11 // pred_check_branch
        %464 = sbr.rel (%p462) target = $region28
      $region27: #{_lambda_.2} parent=11 // pred_region
        _
      $region28: #{_lambda_.2} parent=11 // pred_fallthru
        _
      // Predicated region
      $region29: #{_lambda_.2} parent=11 // pred_check
        %p465 = pneg %p181
      $region30: #{_lambda_.2} parent=11 // pred_check_branch
        %467 = sbr.rel (%p465) target = $region32
      $region31: #{_lambda_.2} parent=11 // pred_region
        _
      $region32: #{_lambda_.2} parent=11 // pred_fallthru
        _
      // Predicated region
      $region33: #{_lambda_.2} parent=11 // pred_check
        %p468 = pneg %p202
      $region34: #{_lambda_.2} parent=11 // pred_check_branch
        %470 = sbr.rel (%p468) target = $region36
      $region35: #{_lambda_.2} parent=11 // pred_region
        _
      $region36: #{_lambda_.2} parent=11 // pred_fallthru
        _
      // Predicated region
      $region37: #{_lambda_.2} parent=11 // pred_check
        %p471 = pneg %p223
      $region38: #{_lambda_.2} parent=11 // pred_check_branch
        %473 = sbr.rel (%p471) target = $region40
      $region39: #{_lambda_.2} parent=11 // pred_region
        _
      $region40: #{_lambda_.2} parent=11 // pred_fallthru
        _
      // Predicated region
      $region41: #{_lambda_.2} parent=11 // pred_check
        %p474 = pneg %p244
      $region42: #{_lambda_.2} parent=11 // pred_check_branch
        %476 = sbr.rel (%p474) target = $region44
      $region43: #{_lambda_.2} parent=11 // pred_region
        _
      $region44: #{_lambda_.2} parent=11 // pred_fallthru
        _
      // Predicated region
      $region45: #{_lambda_.2} parent=11 // pred_check
        %p477 = pneg %p265
      $region46: #{_lambda_.2} parent=11 // pred_check_branch
        %479 = sbr.rel (%p477) target = $region48
      $region47: #{_lambda_.2} parent=11 // pred_region
        _
      $region48: #{_lambda_.2} parent=11 // pred_fallthru
        _
      // Predicated region
      $region49: #{_lambda_.2} parent=11 // pred_check
        %p480 = pneg %p286
      $region50: #{_lambda_.2} parent=11 // pred_check_branch
        %482 = sbr.rel (%p480) target = $region52
      $region51: #{_lambda_.2} parent=11 // pred_region
        _
      $region52: #{_lambda_.2} parent=11 // pred_fallthru
        _
      // Predicated region
      $region53: #{_lambda_.2} parent=11 // pred_check
        %p483 = pneg %p307
      $region54: #{_lambda_.2} parent=11 // pred_check_branch
        %485 = sbr.rel (%p483) target = $region56
      $region55: #{_lambda_.2} parent=11 // pred_region
        _
      $region56: #{_lambda_.2} parent=11 // pred_fallthru
        _
      // Predicated region
      $region57: #{_lambda_.2} parent=11 // pred_check
        %p486 = pneg %p328
      $region58: #{_lambda_.2} parent=11 // pred_check_branch
        %488 = sbr.rel (%p486) target = $region60
      $region59: #{_lambda_.2} parent=11 // pred_region
        _
      $region60: #{_lambda_.2} parent=11 // pred_fallthru
        _
      // Predicated region
      $region61: #{_lambda_.2} parent=11 // pred_check
        %p489 = pneg %p349
      $region62: #{_lambda_.2} parent=11 // pred_check_branch
        %491 = sbr.rel (%p489) target = $region64
      $region63: #{_lambda_.2} parent=11 // pred_region
        _
      $region64: #{_lambda_.2} parent=11 // pred_fallthru
        _
      // Predicated region
      $region65: #{_lambda_.2} parent=11 // pred_check
        %p492 = pneg %p370
      $region66: #{_lambda_.2} parent=11 // pred_check_branch
        %494 = sbr.rel (%p492) target = $region68
      $region67: #{_lambda_.2} parent=11 // pred_region
        _
      $region68: #{_lambda_.2} parent=11 // pred_fallthru
        _
      // Predicated region
      $region69: #{_lambda_.2} parent=11 // pred_check
        %p495 = pneg %p391
      $region70: #{_lambda_.2} parent=11 // pred_check_branch
        %497 = sbr.rel (%p495) target = $region72
      $region71: #{_lambda_.2} parent=11 // pred_region
        _
      $region72: #{_lambda_.2} parent=11 // pred_fallthru
        _
      // Predicated region
      $region73: #{_lambda_.2} parent=11 // pred_check
        %p498 = pneg %p412
      $region74: #{_lambda_.2} parent=11 // pred_check_branch
        %500 = sbr.rel (%p498) target = $region76
      $region75: #{_lambda_.2} parent=11 // pred_region
        _
      $region76: #{_lambda_.2} parent=11 // pred_fallthru
        _
    $region12: #{_lambda_.2} parent=5 // pred_fallthru
      _
    %p501 = scmp.lt.s32.totalorder %s24, 2
    // Predicated region
    $region77: #{_lambda_.2} parent=5 // pred_check
      %p502 = pneg %p501
    $region78: #{_lambda_.2} parent=5 // pred_check_branch
      %504 = sbr.rel (%p502) target = $region80
    $region79: #{_lambda_.2} parent=5 // pred_region
      // Predicated region
      $region81: #{_lambda_.2} parent=79 // pred_check
        %p505 = pneg %p44
      $region82: #{_lambda_.2} parent=79 // pred_check_branch
        %507 = sbr.rel (%p505) target = $region84
      $region83: #{_lambda_.2} parent=79 // pred_region
        %p508 = scmp.lt.s32.totalorder %s24, 1
        %s509 = scalar_select %p508, %s24, 1
        %s510 = smul.addr %s509, 2
        %s511 = smul.addr %s510, 8
        %s512 = scalar_lea.vmem %s0, %s511
      $region84: #{_lambda_.2} parent=79 // pred_fallthru
        _
      // Predicated region
      $region85: #{_lambda_.2} parent=79 // pred_check
        %p513 = pneg %p70
      $region86: #{_lambda_.2} parent=79 // pred_check_branch
        %515 = sbr.rel (%p513) target = $region88
      $region87: #{_lambda_.2} parent=79 // pred_region
        %p516 = scmp.lt.s32.totalorder %s24, 1
        %s517 = scalar_select %p516, %s24, 1
        %s518 = smul.addr %s517, 2
        %s519 = smul.addr %s518, 8
        %s520 = scalar_lea.vmem %s1, %s519
      $region88: #{_lambda_.2} parent=79 // pred_fallthru
        _
    $region80: #{_lambda_.2} parent=5 // pred_fallthru
      _
    %p521 = scmp.le.s32.totalorder 1, %s24
    %p522 = scmp.lt.s32.totalorder %s24, 3
    %p523 = pnand %p521, %p522
    %p524 = pneg %p523
    // Predicated region
    $region89: #{_lambda_.2} parent=5 // pred_check
      _
    $region90: #{_lambda_.2} parent=5 // pred_check_branch
      %526 = sbr.rel (%p523) target = $region92
    $region91: #{_lambda_.2} parent=5 // pred_region
      %s527 = ssub.s32 %s24, 1
      %p528 = scmp.lt.s32.totalorder %s29, 1
      %s529 = scalar_select %p528, %s29, 1
      %s530 = smul.addr %s529, 2
      %s531 = smul.addr %s530, 8
      %s532 = scalar_lea.vmem %s0, %s531
      %p533 = pneg %p50
      %p534 = pneg %p47
      %p535 = scmp.lt.s32.totalorder %s29, 1
      %s536 = scalar_select %p535, %s29, 1
      %s537 = smul.addr %s536, 2
      %s538 = smul.addr %s537, 8
      %s539 = scalar_lea.vmem %s1, %s538
      %p540 = pneg %p76
      %p541 = pneg %p73
      %p542 = pneg %p97
      %p543 = pneg %p94
      %p544 = pneg %p118
      %p545 = pneg %p115
      %p546 = pneg %p139
      %p547 = pneg %p136
      %p548 = pneg %p160
      %p549 = pneg %p157
      %p550 = pneg %p181
      %p551 = pneg %p178
      %p552 = pneg %p202
      %p553 = pneg %p199
      %p554 = pneg %p223
      %p555 = pneg %p220
      %p556 = pneg %p244
      %p557 = pneg %p241
      %p558 = pneg %p265
      %p559 = pneg %p262
      %p560 = pneg %p286
      %p561 = pneg %p283
      %p562 = pneg %p307
      %p563 = pneg %p304
      %p564 = pneg %p328
      %p565 = pneg %p325
      %p566 = pneg %p349
      %p567 = pneg %p346
      %p568 = pneg %p370
      %p569 = pneg %p367
      %p570 = pneg %p391
      %p571 = pneg %p388
      %p572 = pneg %p412
      %p573 = pneg %p409
      %p574 = pneg %p438
      %p575 = pneg %p435
      %p576 = scmp.lt.s32.totalorder %s29, 1
      %s577 = scalar_select %p576, %s29, 1
      %s578 = smul.addr %s577, 8
      %s579 = scalar_lea.vmem %s18, %s578
      %p580 = scmp.lt.s32.totalorder %s29, 1
      %s581 = scalar_select %p580, %s29, 1
      %s582 = smul.addr %s581, 2
      %s583 = smul.addr %s582, 8
      %s584 = scalar_lea.vmem %s0, %s583
      %p585 = scmp.lt.s32.totalorder %s29, 1
      %s586 = scalar_select %p585, %s29, 1
      %s587 = smul.addr %s586, 2
      %s588 = smul.addr %s587, 8
      %s589 = scalar_lea.vmem %s1, %s588
      %p590 = scmp.lt.s32.totalorder %s29, 1
      %s591 = scalar_select %p590, %s29, 1
      %s592 = smul.addr %s591, 8
      %s593 = scalar_lea.vmem %s18, %s592
      %v594 = vld [vmem:[%s584] sm:$0xff]
      %v595 = vld [vmem:[%s584 + $0x8] sm:$0xf]
      %v596 = vld [vmem:[%s2] sm:$0xff]
      %v597 = vld [vmem:[%s2 + $0x8] sm:$0xf]
      %599 = vset.pattern.permute.xlu0 0
      %600 = vperm.xlu0 %599, %v594
      %v601 = vpop.permute.xlu0 %600
      %604 = vset.pattern.permute.xlu0 0
      %605 = vperm.xlu0 %604, %v595
      %v606 = vpop.permute.xlu0 %605
      %v608 = vmul.f32 %v601, %v596
      %v609 = vmul.f32 %v606, %v597
      %v610 = vld [vmem:[%s3] sm:$0xff]
      %v611 = vld [vmem:[%s3 + $0x8] sm:$0xf]
      %v612 = vadd.f32 %v608, %v610
      %v613 = vadd.f32 %v609, %v611
      %v614 = vld [vmem:[%s589] sm:$0xff]
      %v615 = vld [vmem:[%s589 + $0x8] sm:$0xf]
      %v616 = vadd.f32 %v612, %v614
      %v617 = vadd.f32 %v613, %v615
      %v618 = vld [vmem:[%s4] sm:$0x1]
      %v619 = vld [vmem:[%s5] sm:$0x1]
      %vm620 = vcmask 261120
      %v621 = vsel %vm620, %v616, 0.0
      %622 = vadd.xlane.f32.xlu0 %v621
      %v623 = vpop.xlane.xlu0 %622
      %vm624 = vcmask 257024
      %v625 = vsel %vm624, %v617, 0.0
      %626 = vadd.xlane.f32.xlu0 %v625
      %v627 = vpop.xlane.xlu0 %626
      %v628 = vrcp.pop 32.0
      %v629 = vmul.f32 %v623, %v628
      %v630 = vmul.f32 %v627, %v628
      %v631 = vsub.f32 %v616, %v629
      %v632 = vsub.f32 %v617, %v630
      %v633 = vmul.f32 %v631, %v631
      %v634 = vmul.f32 %v632, %v632
      %v635 = vsel %vm620, %v633, 0.0
      %636 = vadd.xlane.f32.xlu0 %v635
      %v637 = vpop.xlane.xlu0 %636
      %v638 = vsel %vm624, %v634, 0.0
      %639 = vadd.xlane.f32.xlu0 %v638
      %v640 = vpop.xlane.xlu0 %639
      %v641 = vmul.f32 %v637, %v628
      %v642 = vmul.f32 %v640, %v628
      %v643 = vadd.f32 %v641, 1e-05
      %v644 = vadd.f32 %v642, 1e-05
      %v645 = vrsqrt.pop %v643
      %v646 = vrsqrt.pop %v644
      %v647 = vmul.f32 %v631, %v645
      %v648 = vmul.f32 %v632, %v646
      %v650 = vlaneseq
      %v651 = vshrl.u32 %v650, 7
      %v652 = vsub.s32 0, %v651
      %v653 = vrot.slane %v618, %v652
      %v655 = vmul.f32 %v647, %v653
      %v656 = vmul.f32 %v648, %v653
      %v658 = vlaneseq
      %v659 = vshrl.u32 %v658, 7
      %v660 = vsub.s32 0, %v659
      %v661 = vrot.slane %v619, %v660
      %v663 = vadd.f32 %v655, %v661
      %v664 = vadd.f32 %v656, %v661
      %v665 = vld [vmem:[%s6] sm:$0xff]
      %v666 = vld [vmem:[%s6 + $0x8] sm:$0xff]
      %v667 = vld [vmem:[%s6 + $0x10] sm:$0xff]
      %v668 = vld [vmem:[%s6 + $0x18] sm:$0xff]
      %v669 = vld [vmem:[%s7] sm:$0x1]
      %v671 = vlaneseq
      %v672 = vshrl.u32 %v671, 7
      %v673 = vsub.s32 0, %v672
      %v674 = vrot.slane %v669, %v673
      %v677 = vsel %vm620, %v663, 0
      %v680 = vsel %vm620, %v664, 0
      %682 = vmatprep.subr.mxu0 0.0
      %683 = vmatpush1.msra.mxu0 %v665
      %684 = vmatprep.subr.mxu0 0.0
      %685 = vmatpush1.msra.mxu0 %v666
      %686 = vmatprep.subr.mxu0 0.0
      %687 = vmatpush1.msra.mxu0 %v667
      %688 = vmatprep.subr.mxu0 0.0
      %689 = vmatpush1.msra.mxu0 %v668
      %690 = vmatprep.subr.mxu0 0.0
      %691 = vmatpush1.msra.mxu0 0.0
      %692 = vmatprep.subr.mxu0 0.0
      %693 = vmatpush1.msra.mxu0 0.0
      %694 = vmatprep.subr.mxu0 0.0
      %695 = vmatpush1.msra.mxu0 0.0
      %696 = vmatprep.subr.mxu0 0.0
      %697 = vmatpush1.msra.mxu0 0.0
      %698 = vmatprep.subr.mxu0 0.0
      %699 = vmatpush1.msra.mxu0 0.0
      %700 = vmatprep.subr.mxu0 0.0
      %701 = vmatpush1.msra.mxu0 0.0
      %702 = vmatprep.subr.mxu0 0.0
      %703 = vmatpush1.msra.mxu0 0.0
      %704 = vmatprep.subr.mxu0 0.0
      %705 = vmatpush1.msra.mxu0 0.0
      %706 = vmatprep.subr.mxu0 0.0
      %707 = vmatpush1.msra.mxu0 0.0
      %708 = vmatprep.subr.mxu0 0.0
      %709 = vmatpush1.msra.mxu0 0.0
      %710 = vmatprep.subr.mxu0 0.0
      %711 = vmatpush1.msra.mxu0 0.0
      %712 = vmatprep.subr.mxu0 0.0
      %713 = vmatpush1.msra.mxu0 0.0
      %714 = vmatprep.subr.mxu0 0.0
      %715 = vmatpush1.msra.mxu0 0.0
      %716 = vmatprep.subr.mxu0 0.0
      %717 = vmatpush1.msra.mxu0 0.0
      %718 = vmatprep.subr.mxu0 0.0
      %719 = vmatpush1.msra.mxu0 0.0
      %720 = vmatprep.subr.mxu0 0.0
      %721 = vmatpush1.msra.mxu0 0.0
      %722 = vmatprep.subr.mxu0 0.0
      %723 = vmatpush1.msra.mxu0 0.0
      %724 = vmatprep.subr.mxu0 0.0
      %725 = vmatpush1.msra.mxu0 0.0
      %726 = vmatprep.subr.mxu0 0.0
      %727 = vmatpush1.msra.mxu0 0.0
      %728 = vmatprep.subr.mxu0 0.0
      %729 = vmatpush1.msra.mxu0 0.0
      %730 = vmatprep.subr.mxu0 0.0
      %731 = vmatpush1.msra.mxu0 0.0
      %732 = vmatprep.subr.mxu0 0.0
      %733 = vmatpush1.msra.mxu0 0.0
      %734 = vmatprep.subr.mxu0 0.0
      %735 = vmatpush1.msra.mxu0 0.0
      %736 = vmatprep.subr.mxu0 0.0
      %737 = vmatpush1.msra.mxu0 0.0
      %738 = vmatprep.subr.mxu0 0.0
      %739 = vmatpush1.msra.mxu0 0.0
      %740 = vmatprep.subr.mxu0 0.0
      %741 = vmatpush1.msra.mxu0 0.0
      %742 = vmatprep.subr.mxu0 0.0
      %743 = vmatpush1.msra.mxu0 0.0
      %744 = vmatprep.subr.mxu0 0.0
      %745 = vmatpush1.msra.mxu0 0.0
      %746 = vmatprep.mubr.f32.mxu0 0.0
      %747 = vmatmul.mubr.f32.gmra.mrb[0].mxu0 %v677
      %v748 = vpop.f32.mrb[0].mxu0
      %v749 = vadd.f32 %v674, %v748
      %v750 = vpop.f32.mrb[0].mxu0
      %751 = vmatprep.mubr.f32.mxu0 0.0
      %752 = vmatmul.mubr.f32.gmra.mrb[0].mxu0 %v680
      %v753 = vpop.f32.mrb[0].mxu0
      %v754 = vadd.f32 %v674, %v753
      %v755 = vpop.f32.mrb[0].mxu0
      %756 = vdwg.mxu0
      %v757 = vld [vmem:[%s8] sm:$0xff]
      %v758 = vld [vmem:[%s8 + $0x8] sm:$0xff]
      %v759 = vld [vmem:[%s8 + $0x10] sm:$0xff]
      %v760 = vld [vmem:[%s8 + $0x18] sm:$0xff]
      %v761 = vld [vmem:[%s9] sm:$0x1]
      %764 = vrot.lane.b32.xlu0 %v749, 96
      %v765 = vpop.permute.xlu0 %764
      %766 = vrot.lane.b32.xlu0 %v754, 96
      %v767 = vpop.permute.xlu0 %766
      %vm768 = vcmask 64512
      %v769 = vsel %vm768, %v749, 0
      %v771 = vsel %vm768, %v754, 0
      %v773 = vsel %vm768, %v765, 0
      %v775 = vsel %vm768, %v767, 0
      %777 = vmatprep.subr.mxu0 0.0
      %778 = vmatpush1.xpose.msra.mxu0 %v773
      %779 = vmatprep.subr.mxu0 0.0
      %780 = vmatpush1.xpose.msra.mxu0 %v775
      %781 = vmatprep.subr.mxu0 0.0
      %782 = vmatpush1.xpose.msra.mxu0 0.0
      %783 = vmatprep.subr.mxu0 0.0
      %784 = vmatpush1.xpose.msra.mxu0 0.0
      %785 = vmatprep.subr.mxu0 0.0
      %786 = vmatpush1.xpose.msra.mxu0 0.0
      %787 = vmatprep.subr.mxu0 0.0
      %788 = vmatpush1.xpose.msra.mxu0 0.0
      %789 = vmatprep.subr.mxu0 0.0
      %790 = vmatpush1.xpose.msra.mxu0 0.0
      %791 = vmatprep.subr.mxu0 0.0
      %792 = vmatpush1.xpose.msra.mxu0 0.0
      %793 = vmatprep.subr.mxu0 0.0
      %794 = vmatpush1.xpose.msra.mxu0 0.0
      %795 = vmatprep.subr.mxu0 0.0
      %796 = vmatpush1.xpose.msra.mxu0 0.0
      %797 = vmatprep.subr.mxu0 0.0
      %798 = vmatpush1.xpose.msra.mxu0 0.0
      %799 = vmatprep.subr.mxu0 0.0
      %800 = vmatpush1.xpose.msra.mxu0 0.0
      %801 = vmatprep.subr.mxu0 0.0
      %802 = vmatpush1.xpose.msra.mxu0 0.0
      %803 = vmatprep.subr.mxu0 0.0
      %804 = vmatpush1.xpose.msra.mxu0 0.0
      %805 = vmatprep.subr.mxu0 0.0
      %806 = vmatpush1.xpose.msra.mxu0 0.0
      %807 = vmatprep.subr.mxu0 0.0
      %808 = vmatpush1.xpose.msra.mxu0 0.0
      %809 = vmatprep.subr.mxu0 0.0
      %810 = vmatpush1.xpose.msra.mxu0 0.0
      %811 = vmatprep.subr.mxu0 0.0
      %812 = vmatpush1.xpose.msra.mxu0 0.0
      %813 = vmatprep.subr.mxu0 0.0
      %814 = vmatpush1.xpose.msra.mxu0 0.0
      %815 = vmatprep.subr.mxu0 0.0
      %816 = vmatpush1.xpose.msra.mxu0 0.0
      %817 = vmatprep.subr.mxu0 0.0
      %818 = vmatpush1.xpose.msra.mxu0 0.0
      %819 = vmatprep.subr.mxu0 0.0
      %820 = vmatpush1.xpose.msra.mxu0 0.0
      %821 = vmatprep.subr.mxu0 0.0
      %822 = vmatpush1.xpose.msra.mxu0 0.0
      %823 = vmatprep.subr.mxu0 0.0
      %824 = vmatpush1.xpose.msra.mxu0 0.0
      %825 = vmatprep.subr.mxu0 0.0
      %826 = vmatpush1.xpose.msra.mxu0 0.0
      %827 = vmatprep.subr.mxu0 0.0
      %828 = vmatpush1.xpose.msra.mxu0 0.0
      %829 = vmatprep.subr.mxu0 0.0
      %830 = vmatpush1.xpose.msra.mxu0 0.0
      %831 = vmatprep.subr.mxu0 0.0
      %832 = vmatpush1.xpose.msra.mxu0 0.0
      %833 = vmatprep.subr.mxu0 0.0
      %834 = vmatpush1.xpose.msra.mxu0 0.0
      %835 = vmatprep.subr.mxu0 0.0
      %836 = vmatpush1.xpose.msra.mxu0 0.0
      %837 = vmatprep.subr.mxu0 0.0
      %838 = vmatpush1.xpose.msra.mxu0 0.0
      %839 = vmatprep.subr.mxu0 0.0
      %840 = vmatpush1.xpose.msra.mxu0 0.0
      %841 = vmatprep.mubr.f32.mxu0 0.0
      %842 = vmatmul.mubr.f32.gmra.mrb[0].mxu0 %v769
      %v843 = vpop.f32.mrb[0].mxu0
      %v844 = vadd.f32 0.0, %v843
      %v845 = vpop.f32.mrb[0].mxu0
      %846 = vmatprep.mubr.f32.mxu0 0.0
      %847 = vmatmul.mubr.f32.gmra.mrb[0].mxu0 %v771
      %v848 = vpop.f32.mrb[0].mxu0
      %v849 = vadd.f32 0.0, %v848
      %v850 = vpop.f32.mrb[0].mxu0
      %851 = vdwg.mxu0
      %v852 = vmul.f32 %v844, 0.35355338
      %v853 = vmul.f32 %v849, 0.35355338
      %vm854 = vcmask 97280
      %v855 = vsel %vm854, %v852, -inf
      %856 = vmax.xlane.f32.xlu0 %v855
      %v857 = vpop.xlane.xlu0 %856
      %vm858 = vcmask 93184
      %v859 = vsel %vm858, %v853, -inf
      %860 = vmax.xlane.f32.xlu0 %v859
      %v861 = vpop.xlane.xlu0 %860
      %v862 = vsub.f32 %v852, %v857
      %v863 = vsub.f32 %v853, %v861
      %v864 = vmul.f32 %v862, 1.442695
      %v865 = vpow.pop %v864
      %v866 = vmul.f32 %v863, 1.442695
      %v867 = vpow.pop %v866
      %v868 = vsel %vm854, %v865, 0.0
      %869 = vadd.xlane.f32.xlu0 %v868
      %v870 = vpop.xlane.xlu0 %869
      %v871 = vsel %vm858, %v867, 0.0
      %872 = vadd.xlane.f32.xlu0 %v871
      %v873 = vpop.xlane.xlu0 %872
      %v874 = vrcp.pop %v870
      %v875 = vrcp.pop %v873
      %v876 = vmul.f32 %v865, %v874
      %v877 = vmul.f32 %v867, %v875
      %878 = vrot.lane.b32.xlu0 %v749, 64
      %v879 = vpop.permute.xlu0 %878
      %880 = vrot.lane.b32.xlu0 %v754, 64
      %v881 = vpop.permute.xlu0 %880
      %v884 = vsel %vm854, %v876, 0
      %v887 = vsel %vm854, %v877, 0
      %vm889 = vcmask 1043456
      %v890 = vsel %vm889, %v881, 0
      %892 = vmatprep.subr.mxu0 0.0
      %893 = vmatpush1.msra.mxu0 %v879
      %894 = vmatprep.subr.mxu0 0.0
      %895 = vmatpush1.msra.mxu0 %v890
      %896 = vmatprep.subr.mxu0 0.0
      %897 = vmatpush1.msra.mxu0 0.0
      %898 = vmatprep.subr.mxu0 0.0
      %899 = vmatpush1.msra.mxu0 0.0
      %900 = vmatprep.subr.mxu0 0.0
      %901 = vmatpush1.msra.mxu0 0.0
      %902 = vmatprep.subr.mxu0 0.0
      %903 = vmatpush1.msra.mxu0 0.0
      %904 = vmatprep.subr.mxu0 0.0
      %905 = vmatpush1.msra.mxu0 0.0
      %906 = vmatprep.subr.mxu0 0.0
      %907 = vmatpush1.msra.mxu0 0.0
      %908 = vmatprep.subr.mxu0 0.0
      %909 = vmatpush1.msra.mxu0 0.0
      %910 = vmatprep.subr.mxu0 0.0
      %911 = vmatpush1.msra.mxu0 0.0
      %912 = vmatprep.subr.mxu0 0.0
      %913 = vmatpush1.msra.mxu0 0.0
      %914 = vmatprep.subr.mxu0 0.0
      %915 = vmatpush1.msra.mxu0 0.0
      %916 = vmatprep.subr.mxu0 0.0
      %917 = vmatpush1.msra.mxu0 0.0
      %918 = vmatprep.subr.mxu0 0.0
      %919 = vmatpush1.msra.mxu0 0.0
      %920 = vmatprep.subr.mxu0 0.0
      %921 = vmatpush1.msra.mxu0 0.0
      %922 = vmatprep.subr.mxu0 0.0
      %923 = vmatpush1.msra.mxu0 0.0
      %924 = vmatprep.subr.mxu0 0.0
      %925 = vmatpush1.msra.mxu0 0.0
      %926 = vmatprep.subr.mxu0 0.0
      %927 = vmatpush1.msra.mxu0 0.0
      %928 = vmatprep.subr.mxu0 0.0
      %929 = vmatpush1.msra.mxu0 0.0
      %930 = vmatprep.subr.mxu0 0.0
      %931 = vmatpush1.msra.mxu0 0.0
      %932 = vmatprep.subr.mxu0 0.0
      %933 = vmatpush1.msra.mxu0 0.0
      %934 = vmatprep.subr.mxu0 0.0
      %935 = vmatpush1.msra.mxu0 0.0
      %936 = vmatprep.subr.mxu0 0.0
      %937 = vmatpush1.msra.mxu0 0.0
      %938 = vmatprep.subr.mxu0 0.0
      %939 = vmatpush1.msra.mxu0 0.0
      %940 = vmatprep.subr.mxu0 0.0
      %941 = vmatpush1.msra.mxu0 0.0
      %942 = vmatprep.subr.mxu0 0.0
      %943 = vmatpush1.msra.mxu0 0.0
      %944 = vmatprep.subr.mxu0 0.0
      %945 = vmatpush1.msra.mxu0 0.0
      %946 = vmatprep.subr.mxu0 0.0
      %947 = vmatpush1.msra.mxu0 0.0
      %948 = vmatprep.subr.mxu0 0.0
      %949 = vmatpush1.msra.mxu0 0.0
      %950 = vmatprep.subr.mxu0 0.0
      %951 = vmatpush1.msra.mxu0 0.0
      %952 = vmatprep.subr.mxu0 0.0
      %953 = vmatpush1.msra.mxu0 0.0
      %954 = vmatprep.subr.mxu0 0.0
      %955 = vmatpush1.msra.mxu0 0.0
      %956 = vmatprep.mubr.f32.mxu0 0.0
      %957 = vmatmul.mubr.f32.gmra.mrb[0].mxu0 %v884
      %v958 = vpop.f32.mrb[0].mxu0
      %v959 = vadd.f32 0.0, %v958
      %v960 = vpop.f32.mrb[0].mxu0
      %961 = vmatprep.mubr.f32.mxu0 0.0
      %962 = vmatmul.mubr.f32.gmra.mrb[0].mxu0 %v887
      %v963 = vpop.f32.mrb[0].mxu0
      %v964 = vadd.f32 0.0, %v963
      %v965 = vpop.f32.mrb[0].mxu0
      %966 = vdwg.mxu0
      %v968 = vsel %vm768, %v959, 0
      %v971 = vsel %vm768, %v964, 0
      %973 = vmatprep.subr.mxu0 0.0
      %974 = vmatpush1.msra.mxu0 %v757
      %975 = vmatprep.subr.mxu0 0.0
      %976 = vmatpush1.msra.mxu0 0.0
      %977 = vmatprep.subr.mxu0 0.0
      %978 = vmatpush1.msra.mxu0 0.0
      %979 = vmatprep.subr.mxu0 0.0
      %980 = vmatpush1.msra.mxu0 0.0
      %981 = vmatprep.subr.mxu0 0.0
      %982 = vmatpush1.msra.mxu0 0.0
      %983 = vmatprep.subr.mxu0 0.0
      %984 = vmatpush1.msra.mxu0 0.0
      %985 = vmatprep.subr.mxu0 0.0
      %986 = vmatpush1.msra.mxu0 0.0
      %987 = vmatprep.subr.mxu0 0.0
      %988 = vmatpush1.msra.mxu0 0.0
      %989 = vmatprep.subr.mxu0 0.0
      %990 = vmatpush1.msra.mxu0 0.0
      %991 = vmatprep.subr.mxu0 0.0
      %992 = vmatpush1.msra.mxu0 0.0
      %993 = vmatprep.subr.mxu0 0.0
      %994 = vmatpush1.msra.mxu0 0.0
      %995 = vmatprep.subr.mxu0 0.0
      %996 = vmatpush1.msra.mxu0 0.0
      %997 = vmatprep.subr.mxu0 0.0
      %998 = vmatpush1.msra.mxu0 0.0
      %999 = vmatprep.subr.mxu0 0.0
      %1000 = vmatpush1.msra.mxu0 0.0
      %1001 = vmatprep.subr.mxu0 0.0
      %1002 = vmatpush1.msra.mxu0 0.0
      %1003 = vmatprep.subr.mxu0 0.0
      %1004 = vmatpush1.msra.mxu0 0.0
      %1005 = vmatprep.subr.mxu0 0.0
      %1006 = vmatpush1.msra.mxu0 0.0
      %1007 = vmatprep.subr.mxu0 0.0
      %1008 = vmatpush1.msra.mxu0 0.0
      %1009 = vmatprep.subr.mxu0 0.0
      %1010 = vmatpush1.msra.mxu0 0.0
      %1011 = vmatprep.subr.mxu0 0.0
      %1012 = vmatpush1.msra.mxu0 0.0
      %1013 = vmatprep.subr.mxu0 0.0
      %1014 = vmatpush1.msra.mxu0 0.0
      %1015 = vmatprep.subr.mxu0 0.0
      %1016 = vmatpush1.msra.mxu0 0.0
      %1017 = vmatprep.subr.mxu0 0.0
      %1018 = vmatpush1.msra.mxu0 0.0
      %1019 = vmatprep.subr.mxu0 0.0
      %1020 = vmatpush1.msra.mxu0 0.0
      %1021 = vmatprep.subr.mxu0 0.0
      %1022 = vmatpush1.msra.mxu0 0.0
      %1023 = vmatprep.subr.mxu0 0.0
      %1024 = vmatpush1.msra.mxu0 0.0
      %1025 = vmatprep.subr.mxu0 0.0
      %1026 = vmatpush1.msra.mxu0 0.0
      %1027 = vmatprep.subr.mxu0 0.0
      %1028 = vmatpush1.msra.mxu0 0.0
      %1029 = vmatprep.subr.mxu0 0.0
      %1030 = vmatpush1.msra.mxu0 0.0
      %1031 = vmatprep.subr.mxu0 0.0
      %1032 = vmatpush1.msra.mxu0 0.0
      %1033 = vmatprep.subr.mxu0 0.0
      %1034 = vmatpush1.msra.mxu0 0.0
      %1035 = vmatprep.subr.mxu0 0.0
      %1036 = vmatpush1.msra.mxu0 0.0
      %1037 = vmatprep.mubr.f32.mxu0 0.0
      %1038 = vmatmul.mubr.f32.gmra.mrb[0].mxu0 %v968
      %v1039 = vpop.f32.mrb[0].mxu0
      %v1040 = vadd.f32 0.0, %v1039
      %v1041 = vpop.f32.mrb[0].mxu0
      %1042 = vmatprep.mubr.f32.mxu0 0.0
      %1043 = vmatmul.mubr.f32.gmra.mrb[0].mxu0 %v971
      %v1044 = vpop.f32.mrb[0].mxu0
      %v1045 = vadd.f32 0.0, %v1044
      %v1046 = vpop.f32.mrb[0].mxu0
      %1047 = vdwg.mxu0
      %v1049 = vlaneseq
      %v1050 = vshrl.u32 %v1049, 7
      %v1051 = vsub.s32 0, %v1050
      %v1052 = vrot.slane %v761, %v1051
      %v1054 = vadd.f32 %v1052, %v1040
      %v1055 = vadd.f32 %v1052, %v1045
      %1056 = vrot.lane.b32.xlu0 %v749, 120
      %v1057 = vpop.permute.xlu0 %1056
      %1058 = vrot.lane.b32.xlu0 %v754, 120
      %v1059 = vpop.permute.xlu0 %1058
      %1060 = vrot.lane.b32.xlu0 %v749, 88
      %v1061 = vpop.permute.xlu0 %1060
      %1062 = vrot.lane.b32.xlu0 %v754, 88
      %v1063 = vpop.permute.xlu0 %1062
      %v1064 = vsel %vm768, %v1057, 0
      %v1066 = vsel %vm768, %v1059, 0
      %v1068 = vsel %vm768, %v1061, 0
      %v1070 = vsel %vm768, %v1063, 0
      %1072 = vmatprep.subr.mxu0 0.0
      %1073 = vmatpush1.xpose.msra.mxu0 %v1068
      %1074 = vmatprep.subr.mxu0 0.0
      %1075 = vmatpush1.xpose.msra.mxu0 %v1070
      %1076 = vmatprep.subr.mxu0 0.0
      %1077 = vmatpush1.xpose.msra.mxu0 0.0
      %1078 = vmatprep.subr.mxu0 0.0
      %1079 = vmatpush1.xpose.msra.mxu0 0.0
      %1080 = vmatprep.subr.mxu0 0.0
      %1081 = vmatpush1.xpose.msra.mxu0 0.0
      %1082 = vmatprep.subr.mxu0 0.0
      %1083 = vmatpush1.xpose.msra.mxu0 0.0
      %1084 = vmatprep.subr.mxu0 0.0
      %1085 = vmatpush1.xpose.msra.mxu0 0.0
      %1086 = vmatprep.subr.mxu0 0.0
      %1087 = vmatpush1.xpose.msra.mxu0 0.0
      %1088 = vmatprep.subr.mxu0 0.0
      %1089 = vmatpush1.xpose.msra.mxu0 0.0
      %1090 = vmatprep.subr.mxu0 0.0
      %1091 = vmatpush1.xpose.msra.mxu0 0.0
      %1092 = vmatprep.subr.mxu0 0.0
      %1093 = vmatpush1.xpose.msra.mxu0 0.0
      %1094 = vmatprep.subr.mxu0 0.0
      %1095 = vmatpush1.xpose.msra.mxu0 0.0
      %1096 = vmatprep.subr.mxu0 0.0
      %1097 = vmatpush1.xpose.msra.mxu0 0.0
      %1098 = vmatprep.subr.mxu0 0.0
      %1099 = vmatpush1.xpose.msra.mxu0 0.0
      %1100 = vmatprep.subr.mxu0 0.0
      %1101 = vmatpush1.xpose.msra.mxu0 0.0
      %1102 = vmatprep.subr.mxu0 0.0
      %1103 = vmatpush1.xpose.msra.mxu0 0.0
      %1104 = vmatprep.subr.mxu0 0.0
      %1105 = vmatpush1.xpose.msra.mxu0 0.0
      %1106 = vmatprep.subr.mxu0 0.0
      %1107 = vmatpush1.xpose.msra.mxu0 0.0
      %1108 = vmatprep.subr.mxu0 0.0
      %1109 = vmatpush1.xpose.msra.mxu0 0.0
      %1110 = vmatprep.subr.mxu0 0.0
      %1111 = vmatpush1.xpose.msra.mxu0 0.0
      %1112 = vmatprep.subr.mxu0 0.0
      %1113 = vmatpush1.xpose.msra.mxu0 0.0
      %1114 = vmatprep.subr.mxu0 0.0
      %1115 = vmatpush1.xpose.msra.mxu0 0.0
      %1116 = vmatprep.subr.mxu0 0.0
      %1117 = vmatpush1.xpose.msra.mxu0 0.0
      %1118 = vmatprep.subr.mxu0 0.0
      %1119 = vmatpush1.xpose.msra.mxu0 0.0
      %1120 = vmatprep.subr.mxu0 0.0
      %1121 = vmatpush1.xpose.msra.mxu0 0.0
      %1122 = vmatprep.subr.mxu0 0.0
      %1123 = vmatpush1.xpose.msra.mxu0 0.0
      %1124 = vmatprep.subr.mxu0 0.0
      %1125 = vmatpush1.xpose.msra.mxu0 0.0
      %1126 = vmatprep.subr.mxu0 0.0
      %1127 = vmatpush1.xpose.msra.mxu0 0.0
      %1128 = vmatprep.subr.mxu0 0.0
      %1129 = vmatpush1.xpose.msra.mxu0 0.0
      %1130 = vmatprep.subr.mxu0 0.0
      %1131 = vmatpush1.xpose.msra.mxu0 0.0
      %1132 = vmatprep.subr.mxu0 0.0
      %1133 = vmatpush1.xpose.msra.mxu0 0.0
      %1134 = vmatprep.subr.mxu0 0.0
      %1135 = vmatpush1.xpose.msra.mxu0 0.0
      %1136 = vmatprep.mubr.f32.mxu0 0.0
      %1137 = vmatmul.mubr.f32.gmra.mrb[0].mxu0 %v1064
      %v1138 = vpop.f32.mrb[0].mxu0
      %v1139 = vadd.f32 0.0, %v1138
      %v1140 = vpop.f32.mrb[0].mxu0
      %1141 = vmatprep.mubr.f32.mxu0 0.0
      %1142 = vmatmul.mubr.f32.gmra.mrb[0].mxu0 %v1066
      %v1143 = vpop.f32.mrb[0].mxu0
      %v1144 = vadd.f32 0.0, %v1143
      %v1145 = vpop.f32.mrb[0].mxu0
      %1146 = vdwg.mxu0
      %v1147 = vmul.f32 %v1139, 0.35355338
      %v1148 = vmul.f32 %v1144, 0.35355338
      %v1149 = vsel %vm854, %v1147, -inf
      %1150 = vmax.xlane.f32.xlu0 %v1149
      %v1151 = vpop.xlane.xlu0 %1150
      %v1152 = vsel %vm858, %v1148, -inf
      %1153 = vmax.xlane.f32.xlu0 %v1152
      %v1154 = vpop.xlane.xlu0 %1153
      %v1155 = vsub.f32 %v1147, %v1151
      %v1156 = vsub.f32 %v1148, %v1154
      %v1157 = vmul.f32 %v1155, 1.442695
      %v1158 = vpow.pop %v1157
      %v1159 = vmul.f32 %v1156, 1.442695
      %v1160 = vpow.pop %v1159
      %v1161 = vsel %vm854, %v1158, 0.0
      %1162 = vadd.xlane.f32.xlu0 %v1161
      %v1163 = vpop.xlane.xlu0 %1162
      %v1164 = vsel %vm858, %v1160, 0.0
      %1165 = vadd.xlane.f32.xlu0 %v1164
      %v1166 = vpop.xlane.xlu0 %1165
      %v1167 = vrcp.pop %v1163
      %v1168 = vrcp.pop %v1166
      %v1169 = vmul.f32 %v1158, %v1167
      %v1170 = vmul.f32 %v1160, %v1168
      %1171 = vrot.lane.b32.xlu0 %v749, 56
      %v1172 = vpop.permute.xlu0 %1171
      %1173 = vrot.lane.b32.xlu0 %v754, 56
      %v1174 = vpop.permute.xlu0 %1173
      %v1177 = vsel %vm854, %v1169, 0
      %v1180 = vsel %vm854, %v1170, 0
      %v1182 = vsel %vm889, %v1174, 0
      %1184 = vmatprep.subr.mxu0 0.0
      %1185 = vmatpush1.msra.mxu0 %v1172
      %1186 = vmatprep.subr.mxu0 0.0
      %1187 = vmatpush1.msra.mxu0 %v1182
      %1188 = vmatprep.subr.mxu0 0.0
      %1189 = vmatpush1.msra.mxu0 0.0
      %1190 = vmatprep.subr.mxu0 0.0
      %1191 = vmatpush1.msra.mxu0 0.0
      %1192 = vmatprep.subr.mxu0 0.0
      %1193 = vmatpush1.msra.mxu0 0.0
      %1194 = vmatprep.subr.mxu0 0.0
      %1195 = vmatpush1.msra.mxu0 0.0
      %1196 = vmatprep.subr.mxu0 0.0
      %1197 = vmatpush1.msra.mxu0 0.0
      %1198 = vmatprep.subr.mxu0 0.0
      %1199 = vmatpush1.msra.mxu0 0.0
      %1200 = vmatprep.subr.mxu0 0.0
      %1201 = vmatpush1.msra.mxu0 0.0
      %1202 = vmatprep.subr.mxu0 0.0
      %1203 = vmatpush1.msra.mxu0 0.0
      %1204 = vmatprep.subr.mxu0 0.0
      %1205 = vmatpush1.msra.mxu0 0.0
      %1206 = vmatprep.subr.mxu0 0.0
      %1207 = vmatpush1.msra.mxu0 0.0
      %1208 = vmatprep.subr.mxu0 0.0
      %1209 = vmatpush1.msra.mxu0 0.0
      %1210 = vmatprep.subr.mxu0 0.0
      %1211 = vmatpush1.msra.mxu0 0.0
      %1212 = vmatprep.subr.mxu0 0.0
      %1213 = vmatpush1.msra.mxu0 0.0
      %1214 = vmatprep.subr.mxu0 0.0
      %1215 = vmatpush1.msra.mxu0 0.0
      %1216 = vmatprep.subr.mxu0 0.0
      %1217 = vmatpush1.msra.mxu0 0.0
      %1218 = vmatprep.subr.mxu0 0.0
      %1219 = vmatpush1.msra.mxu0 0.0
      %1220 = vmatprep.subr.mxu0 0.0
      %1221 = vmatpush1.msra.mxu0 0.0
      %1222 = vmatprep.subr.mxu0 0.0
      %1223 = vmatpush1.msra.mxu0 0.0
      %1224 = vmatprep.subr.mxu0 0.0
      %1225 = vmatpush1.msra.mxu0 0.0
      %1226 = vmatprep.subr.mxu0 0.0
      %1227 = vmatpush1.msra.mxu0 0.0
      %1228 = vmatprep.subr.mxu0 0.0
      %1229 = vmatpush1.msra.mxu0 0.0
      %1230 = vmatprep.subr.mxu0 0.0
      %1231 = vmatpush1.msra.mxu0 0.0
      %1232 = vmatprep.subr.mxu0 0.0
      %1233 = vmatpush1.msra.mxu0 0.0
      %1234 = vmatprep.subr.mxu0 0.0
      %1235 = vmatpush1.msra.mxu0 0.0
      %1236 = vmatprep.subr.mxu0 0.0
      %1237 = vmatpush1.msra.mxu0 0.0
      %1238 = vmatprep.subr.mxu0 0.0
      %1239 = vmatpush1.msra.mxu0 0.0
      %1240 = vmatprep.subr.mxu0 0.0
      %1241 = vmatpush1.msra.mxu0 0.0
      %1242 = vmatprep.subr.mxu0 0.0
      %1243 = vmatpush1.msra.mxu0 0.0
      %1244 = vmatprep.subr.mxu0 0.0
      %1245 = vmatpush1.msra.mxu0 0.0
      %1246 = vmatprep.subr.mxu0 0.0
      %1247 = vmatpush1.msra.mxu0 0.0
      %1248 = vmatprep.mubr.f32.mxu0 0.0
      %1249 = vmatmul.mubr.f32.gmra.mrb[0].mxu0 %v1177
      %v1250 = vpop.f32.mrb[0].mxu0
      %v1251 = vadd.f32 0.0, %v1250
      %v1252 = vpop.f32.mrb[0].mxu0
      %1253 = vmatprep.mubr.f32.mxu0 0.0
      %1254 = vmatmul.mubr.f32.gmra.mrb[0].mxu0 %v1180
      %v1255 = vpop.f32.mrb[0].mxu0
      %v1256 = vadd.f32 0.0, %v1255
      %v1257 = vpop.f32.mrb[0].mxu0
      %1258 = vdwg.mxu0
      %v1260 = vsel %vm768, %v1251, 0
      %v1263 = vsel %vm768, %v1256, 0
      %1265 = vmatprep.subr.mxu0 0.0
      %1266 = vmatpush1.msra.mxu0 %v758
      %1267 = vmatprep.subr.mxu0 0.0
      %1268 = vmatpush1.msra.mxu0 0.0
      %1269 = vmatprep.subr.mxu0 0.0
      %1270 = vmatpush1.msra.mxu0 0.0
      %1271 = vmatprep.subr.mxu0 0.0
      %1272 = vmatpush1.msra.mxu0 0.0
      %1273 = vmatprep.subr.mxu0 0.0
      %1274 = vmatpush1.msra.mxu0 0.0
      %1275 = vmatprep.subr.mxu0 0.0
      %1276 = vmatpush1.msra.mxu0 0.0
      %1277 = vmatprep.subr.mxu0 0.0
      %1278 = vmatpush1.msra.mxu0 0.0
      %1279 = vmatprep.subr.mxu0 0.0
      %1280 = vmatpush1.msra.mxu0 0.0
      %1281 = vmatprep.subr.mxu0 0.0
      %1282 = vmatpush1.msra.mxu0 0.0
      %1283 = vmatprep.subr.mxu0 0.0
      %1284 = vmatpush1.msra.mxu0 0.0
      %1285 = vmatprep.subr.mxu0 0.0
      %1286 = vmatpush1.msra.mxu0 0.0
      %1287 = vmatprep.subr.mxu0 0.0
      %1288 = vmatpush1.msra.mxu0 0.0
      %1289 = vmatprep.subr.mxu0 0.0
      %1290 = vmatpush1.msra.mxu0 0.0
      %1291 = vmatprep.subr.mxu0 0.0
      %1292 = vmatpush1.msra.mxu0 0.0
      %1293 = vmatprep.subr.mxu0 0.0
      %1294 = vmatpush1.msra.mxu0 0.0
      %1295 = vmatprep.subr.mxu0 0.0
      %1296 = vmatpush1.msra.mxu0 0.0
      %1297 = vmatprep.subr.mxu0 0.0
      %1298 = vmatpush1.msra.mxu0 0.0
      %1299 = vmatprep.subr.mxu0 0.0
      %1300 = vmatpush1.msra.mxu0 0.0
      %1301 = vmatprep.subr.mxu0 0.0
      %1302 = vmatpush1.msra.mxu0 0.0
      %1303 = vmatprep.subr.mxu0 0.0
      %1304 = vmatpush1.msra.mxu0 0.0
      %1305 = vmatprep.subr.mxu0 0.0
      %1306 = vmatpush1.msra.mxu0 0.0
      %1307 = vmatprep.subr.mxu0 0.0
      %1308 = vmatpush1.msra.mxu0 0.0
      %1309 = vmatprep.subr.mxu0 0.0
      %1310 = vmatpush1.msra.mxu0 0.0
      %1311 = vmatprep.subr.mxu0 0.0
      %1312 = vmatpush1.msra.mxu0 0.0
      %1313 = vmatprep.subr.mxu0 0.0
      %1314 = vmatpush1.msra.mxu0 0.0
      %1315 = vmatprep.subr.mxu0 0.0
      %1316 = vmatpush1.msra.mxu0 0.0
      %1317 = vmatprep.subr.mxu0 0.0
      %1318 = vmatpush1.msra.mxu0 0.0
      %1319 = vmatprep.subr.mxu0 0.0
      %1320 = vmatpush1.msra.mxu0 0.0
      %1321 = vmatprep.subr.mxu0 0.0
      %1322 = vmatpush1.msra.mxu0 0.0
      %1323 = vmatprep.subr.mxu0 0.0
      %1324 = vmatpush1.msra.mxu0 0.0
      %1325 = vmatprep.subr.mxu0 0.0
      %1326 = vmatpush1.msra.mxu0 0.0
      %1327 = vmatprep.subr.mxu0 0.0
      %1328 = vmatpush1.msra.mxu0 0.0
      %1329 = vmatprep.mubr.f32.mxu0 0.0
      %1330 = vmatmul.mubr.f32.gmra.mrb[0].mxu0 %v1260
      %v1331 = vpop.f32.mrb[0].mxu0
      %v1332 = vadd.f32 0.0, %v1331
      %v1333 = vpop.f32.mrb[0].mxu0
      %1334 = vmatprep.mubr.f32.mxu0 0.0
      %1335 = vmatmul.mubr.f32.gmra.mrb[0].mxu0 %v1263
      %v1336 = vpop.f32.mrb[0].mxu0
      %v1337 = vadd.f32 0.0, %v1336
      %v1338 = vpop.f32.mrb[0].mxu0
      %1339 = vdwg.mxu0
      %v1340 = vadd.f32 %v1054, %v1332
      %v1341 = vadd.f32 %v1055, %v1337
      %1342 = vrot.lane.b32.xlu0 %v749, 112
      %v1343 = vpop.permute.xlu0 %1342
      %1344 = vrot.lane.b32.xlu0 %v754, 112
      %v1345 = vpop.permute.xlu0 %1344
      %1346 = vrot.lane.b32.xlu0 %v749, 80
      %v1347 = vpop.permute.xlu0 %1346
      %1348 = vrot.lane.b32.xlu0 %v754, 80
      %v1349 = vpop.permute.xlu0 %1348
      %v1350 = vsel %vm768, %v1343, 0
      %v1352 = vsel %vm768, %v1345, 0
      %v1354 = vsel %vm768, %v1347, 0
      %v1356 = vsel %vm768, %v1349, 0
      %1358 = vmatprep.subr.mxu0 0.0
      %1359 = vmatpush1.xpose.msra.mxu0 %v1354
      %1360 = vmatprep.subr.mxu0 0.0
      %1361 = vmatpush1.xpose.msra.mxu0 %v1356
      %1362 = vmatprep.subr.mxu0 0.0
      %1363 = vmatpush1.xpose.msra.mxu0 0.0
      %1364 = vmatprep.subr.mxu0 0.0
      %1365 = vmatpush1.xpose.msra.mxu0 0.0
      %1366 = vmatprep.subr.mxu0 0.0
      %1367 = vmatpush1.xpose.msra.mxu0 0.0
      %1368 = vmatprep.subr.mxu0 0.0
      %1369 = vmatpush1.xpose.msra.mxu0 0.0
      %1370 = vmatprep.subr.mxu0 0.0
      %1371 = vmatpush1.xpose.msra.mxu0 0.0
      %1372 = vmatprep.subr.mxu0 0.0
      %1373 = vmatpush1.xpose.msra.mxu0 0.0
      %1374 = vmatprep.subr.mxu0 0.0
      %1375 = vmatpush1.xpose.msra.mxu0 0.0
      %1376 = vmatprep.subr.mxu0 0.0
      %1377 = vmatpush1.xpose.msra.mxu0 0.0
      %1378 = vmatprep.subr.mxu0 0.0
      %1379 = vmatpush1.xpose.msra.mxu0 0.0
      %1380 = vmatprep.subr.mxu0 0.0
      %1381 = vmatpush1.xpose.msra.mxu0 0.0
      %1382 = vmatprep.subr.mxu0 0.0
      %1383 = vmatpush1.xpose.msra.mxu0 0.0
      %1384 = vmatprep.subr.mxu0 0.0
      %1385 = vmatpush1.xpose.msra.mxu0 0.0
      %1386 = vmatprep.subr.mxu0 0.0
      %1387 = vmatpush1.xpose.msra.mxu0 0.0
      %1388 = vmatprep.subr.mxu0 0.0
      %1389 = vmatpush1.xpose.msra.mxu0 0.0
      %1390 = vmatprep.subr.mxu0 0.0
      %1391 = vmatpush1.xpose.msra.mxu0 0.0
      %1392 = vmatprep.subr.mxu0 0.0
      %1393 = vmatpush1.xpose.msra.mxu0 0.0
      %1394 = vmatprep.subr.mxu0 0.0
      %1395 = vmatpush1.xpose.msra.mxu0 0.0
      %1396 = vmatprep.subr.mxu0 0.0
      %1397 = vmatpush1.xpose.msra.mxu0 0.0
      %1398 = vmatprep.subr.mxu0 0.0
      %1399 = vmatpush1.xpose.msra.mxu0 0.0
      %1400 = vmatprep.subr.mxu0 0.0
      %1401 = vmatpush1.xpose.msra.mxu0 0.0
      %1402 = vmatprep.subr.mxu0 0.0
      %1403 = vmatpush1.xpose.msra.mxu0 0.0
      %1404 = vmatprep.subr.mxu0 0.0
      %1405 = vmatpush1.xpose.msra.mxu0 0.0
      %1406 = vmatprep.subr.mxu0 0.0
      %1407 = vmatpush1.xpose.msra.mxu0 0.0
      %1408 = vmatprep.subr.mxu0 0.0
      %1409 = vmatpush1.xpose.msra.mxu0 0.0
      %1410 = vmatprep.subr.mxu0 0.0
      %1411 = vmatpush1.xpose.msra.mxu0 0.0
      %1412 = vmatprep.subr.mxu0 0.0
      %1413 = vmatpush1.xpose.msra.mxu0 0.0
      %1414 = vmatprep.subr.mxu0 0.0
      %1415 = vmatpush1.xpose.msra.mxu0 0.0
      %1416 = vmatprep.subr.mxu0 0.0
      %1417 = vmatpush1.xpose.msra.mxu0 0.0
      %1418 = vmatprep.subr.mxu0 0.0
      %1419 = vmatpush1.xpose.msra.mxu0 0.0
      %1420 = vmatprep.subr.mxu0 0.0
      %1421 = vmatpush1.xpose.msra.mxu0 0.0
      %1422 = vmatprep.mubr.f32.mxu0 0.0
      %1423 = vmatmul.mubr.f32.gmra.mrb[0].mxu0 %v1350
      %v1424 = vpop.f32.mrb[0].mxu0
      %v1425 = vadd.f32 0.0, %v1424
      %v1426 = vpop.f32.mrb[0].mxu0
      %1427 = vmatprep.mubr.f32.mxu0 0.0
      %1428 = vmatmul.mubr.f32.gmra.mrb[0].mxu0 %v1352
      %v1429 = vpop.f32.mrb[0].mxu0
      %v1430 = vadd.f32 0.0, %v1429
      %v1431 = vpop.f32.mrb[0].mxu0
      %1432 = vdwg.mxu0
      %v1433 = vmul.f32 %v1425, 0.35355338
      %v1434 = vmul.f32 %v1430, 0.35355338
      %v1435 = vsel %vm854, %v1433, -inf
      %1436 = vmax.xlane.f32.xlu0 %v1435
      %v1437 = vpop.xlane.xlu0 %1436
      %v1438 = vsel %vm858, %v1434, -inf
      %1439 = vmax.xlane.f32.xlu0 %v1438
      %v1440 = vpop.xlane.xlu0 %1439
      %v1441 = vsub.f32 %v1433, %v1437
      %v1442 = vsub.f32 %v1434, %v1440
      %v1443 = vmul.f32 %v1441, 1.442695
      %v1444 = vpow.pop %v1443
      %v1445 = vmul.f32 %v1442, 1.442695
      %v1446 = vpow.pop %v1445
      %v1447 = vsel %vm854, %v1444, 0.0
      %1448 = vadd.xlane.f32.xlu0 %v1447
      %v1449 = vpop.xlane.xlu0 %1448
      %v1450 = vsel %vm858, %v1446, 0.0
      %1451 = vadd.xlane.f32.xlu0 %v1450
      %v1452 = vpop.xlane.xlu0 %1451
      %v1453 = vrcp.pop %v1449
      %v1454 = vrcp.pop %v1452
      %v1455 = vmul.f32 %v1444, %v1453
      %v1456 = vmul.f32 %v1446, %v1454
      %1457 = vrot.lane.b32.xlu0 %v749, 48
      %v1458 = vpop.permute.xlu0 %1457
      %1459 = vrot.lane.b32.xlu0 %v754, 48
      %v1460 = vpop.permute.xlu0 %1459
      %v1463 = vsel %vm854, %v1455, 0
      %v1466 = vsel %vm854, %v1456, 0
      %v1468 = vsel %vm889, %v1460, 0
      %1470 = vmatprep.subr.mxu0 0.0
      %1471 = vmatpush1.msra.mxu0 %v1458
      %1472 = vmatprep.subr.mxu0 0.0
      %1473 = vmatpush1.msra.mxu0 %v1468
      %1474 = vmatprep.subr.mxu0 0.0
      %1475 = vmatpush1.msra.mxu0 0.0
      %1476 = vmatprep.subr.mxu0 0.0
      %1477 = vmatpush1.msra.mxu0 0.0
      %1478 = vmatprep.subr.mxu0 0.0
      %1479 = vmatpush1.msra.mxu0 0.0
      %1480 = vmatprep.subr.mxu0 0.0
      %1481 = vmatpush1.msra.mxu0 0.0
      %1482 = vmatprep.subr.mxu0 0.0
      %1483 = vmatpush1.msra.mxu0 0.0
      %1484 = vmatprep.subr.mxu0 0.0
      %1485 = vmatpush1.msra.mxu0 0.0
      %1486 = vmatprep.subr.mxu0 0.0
      %1487 = vmatpush1.msra.mxu0 0.0
      %1488 = vmatprep.subr.mxu0 0.0
      %1489 = vmatpush1.msra.mxu0 0.0
      %1490 = vmatprep.subr.mxu0 0.0
      %1491 = vmatpush1.msra.mxu0 0.0
      %1492 = vmatprep.subr.mxu0 0.0
      %1493 = vmatpush1.msra.mxu0 0.0
      %1494 = vmatprep.subr.mxu0 0.0
      %1495 = vmatpush1.msra.mxu0 0.0
      %1496 = vmatprep.subr.mxu0 0.0
      %1497 = vmatpush1.msra.mxu0 0.0
      %1498 = vmatprep.subr.mxu0 0.0
      %1499 = vmatpush1.msra.mxu0 0.0
      %1500 = vmatprep.subr.mxu0 0.0
      %1501 = vmatpush1.msra.mxu0 0.0
      %1502 = vmatprep.subr.mxu0 0.0
      %1503 = vmatpush1.msra.mxu0 0.0
      %1504 = vmatprep.subr.mxu0 0.0
      %1505 = vmatpush1.msra.mxu0 0.0
      %1506 = vmatprep.subr.mxu0 0.0
      %1507 = vmatpush1.msra.mxu0 0.0
      %1508 = vmatprep.subr.mxu0 0.0
      %1509 = vmatpush1.msra.mxu0 0.0
      %1510 = vmatprep.subr.mxu0 0.0
      %1511 = vmatpush1.msra.mxu0 0.0
      %1512 = vmatprep.subr.mxu0 0.0
      %1513 = vmatpush1.msra.mxu0 0.0
      %1514 = vmatprep.subr.mxu0 0.0
      %1515 = vmatpush1.msra.mxu0 0.0
      %1516 = vmatprep.subr.mxu0 0.0
      %1517 = vmatpush1.msra.mxu0 0.0
      %1518 = vmatprep.subr.mxu0 0.0
      %1519 = vmatpush1.msra.mxu0 0.0
      %1520 = vmatprep.subr.mxu0 0.0
      %1521 = vmatpush1.msra.mxu0 0.0
      %1522 = vmatprep.subr.mxu0 0.0
      %1523 = vmatpush1.msra.mxu0 0.0
      %1524 = vmatprep.subr.mxu0 0.0
      %1525 = vmatpush1.msra.mxu0 0.0
      %1526 = vmatprep.subr.mxu0 0.0
      %1527 = vmatpush1.msra.mxu0 0.0
      %1528 = vmatprep.subr.mxu0 0.0
      %1529 = vmatpush1.msra.mxu0 0.0
      %1530 = vmatprep.subr.mxu0 0.0
      %1531 = vmatpush1.msra.mxu0 0.0
      %1532 = vmatprep.subr.mxu0 0.0
      %1533 = vmatpush1.msra.mxu0 0.0
      %1534 = vmatprep.mubr.f32.mxu0 0.0
      %1535 = vmatmul.mubr.f32.gmra.mrb[0].mxu0 %v1463
      %v1536 = vpop.f32.mrb[0].mxu0
      %v1537 = vadd.f32 0.0, %v1536
      %v1538 = vpop.f32.mrb[0].mxu0
      %1539 = vmatprep.mubr.f32.mxu0 0.0
      %1540 = vmatmul.mubr.f32.gmra.mrb[0].mxu0 %v1466
      %v1541 = vpop.f32.mrb[0].mxu0
      %v1542 = vadd.f32 0.0, %v1541
      %v1543 = vpop.f32.mrb[0].mxu0
      %1544 = vdwg.mxu0
      %v1546 = vsel %vm768, %v1537, 0
      %v1549 = vsel %vm768, %v1542, 0
      %1551 = vmatprep.subr.mxu0 0.0
      %1552 = vmatpush1.msra.mxu0 %v759
      %1553 = vmatprep.subr.mxu0 0.0
      %1554 = vmatpush1.msra.mxu0 0.0
      %1555 = vmatprep.subr.mxu0 0.0
      %1556 = vmatpush1.msra.mxu0 0.0
      %1557 = vmatprep.subr.mxu0 0.0
      %1558 = vmatpush1.msra.mxu0 0.0
      %1559 = vmatprep.subr.mxu0 0.0
      %1560 = vmatpush1.msra.mxu0 0.0
      %1561 = vmatprep.subr.mxu0 0.0
      %1562 = vmatpush1.msra.mxu0 0.0
      %1563 = vmatprep.subr.mxu0 0.0
      %1564 = vmatpush1.msra.mxu0 0.0
      %1565 = vmatprep.subr.mxu0 0.0
      %1566 = vmatpush1.msra.mxu0 0.0
      %1567 = vmatprep.subr.mxu0 0.0
      %1568 = vmatpush1.msra.mxu0 0.0
      %1569 = vmatprep.subr.mxu0 0.0
      %1570 = vmatpush1.msra.mxu0 0.0
      %1571 = vmatprep.subr.mxu0 0.0
      %1572 = vmatpush1.msra.mxu0 0.0
      %1573 = vmatprep.subr.mxu0 0.0
      %1574 = vmatpush1.msra.mxu0 0.0
      %1575 = vmatprep.subr.mxu0 0.0
      %1576 = vmatpush1.msra.mxu0 0.0
      %1577 = vmatprep.subr.mxu0 0.0
      %1578 = vmatpush1.msra.mxu0 0.0
      %1579 = vmatprep.subr.mxu0 0.0
      %1580 = vmatpush1.msra.mxu0 0.0
      %1581 = vmatprep.subr.mxu0 0.0
      %1582 = vmatpush1.msra.mxu0 0.0
      %1583 = vmatprep.subr.mxu0 0.0
      %1584 = vmatpush1.msra.mxu0 0.0
      %1585 = vmatprep.subr.mxu0 0.0
      %1586 = vmatpush1.msra.mxu0 0.0
      %1587 = vmatprep.subr.mxu0 0.0
      %1588 = vmatpush1.msra.mxu0 0.0
      %1589 = vmatprep.subr.mxu0 0.0
      %1590 = vmatpush1.msra.mxu0 0.0
      %1591 = vmatprep.subr.mxu0 0.0
      %1592 = vmatpush1.msra.mxu0 0.0
      %1593 = vmatprep.subr.mxu0 0.0
      %1594 = vmatpush1.msra.mxu0 0.0
      %1595 = vmatprep.subr.mxu0 0.0
      %1596 = vmatpush1.msra.mxu0 0.0
      %1597 = vmatprep.subr.mxu0 0.0
      %1598 = vmatpush1.msra.mxu0 0.0
      %1599 = vmatprep.subr.mxu0 0.0
      %1600 = vmatpush1.msra.mxu0 0.0
      %1601 = vmatprep.subr.mxu0 0.0
      %1602 = vmatpush1.msra.mxu0 0.0
      %1603 = vmatprep.subr.mxu0 0.0
      %1604 = vmatpush1.msra.mxu0 0.0
      %1605 = vmatprep.subr.mxu0 0.0
      %1606 = vmatpush1.msra.mxu0 0.0
      %1607 = vmatprep.subr.mxu0 0.0
      %1608 = vmatpush1.msra.mxu0 0.0
      %1609 = vmatprep.subr.mxu0 0.0
      %1610 = vmatpush1.msra.mxu0 0.0
      %1611 = vmatprep.subr.mxu0 0.0
      %1612 = vmatpush1.msra.mxu0 0.0
      %1613 = vmatprep.subr.mxu0 0.0
      %1614 = vmatpush1.msra.mxu0 0.0
      %1615 = vmatprep.mubr.f32.mxu0 0.0
      %1616 = vmatmul.mubr.f32.gmra.mrb[0].mxu0 %v1546
      %v1617 = vpop.f32.mrb[0].mxu0
      %v1618 = vadd.f32 0.0, %v1617
      %v1619 = vpop.f32.mrb[0].mxu0
      %1620 = vmatprep.mubr.f32.mxu0 0.0
      %1621 = vmatmul.mubr.f32.gmra.mrb[0].mxu0 %v1549
      %v1622 = vpop.f32.mrb[0].mxu0
      %v1623 = vadd.f32 0.0, %v1622
      %v1624 = vpop.f32.mrb[0].mxu0
      %1625 = vdwg.mxu0
      %v1626 = vadd.f32 %v1340, %v1618
      %v1627 = vadd.f32 %v1341, %v1623
      %1628 = vrot.lane.b32.xlu0 %v749, 104
      %v1629 = vpop.permute.xlu0 %1628
      %1630 = vrot.lane.b32.xlu0 %v754, 104
      %v1631 = vpop.permute.xlu0 %1630
      %1632 = vrot.lane.b32.xlu0 %v749, 72
      %v1633 = vpop.permute.xlu0 %1632
      %1634 = vrot.lane.b32.xlu0 %v754, 72
      %v1635 = vpop.permute.xlu0 %1634
      %v1636 = vsel %vm768, %v1629, 0
      %v1638 = vsel %vm768, %v1631, 0
      %v1640 = vsel %vm768, %v1633, 0
      %v1642 = vsel %vm768, %v1635, 0
      %1644 = vmatprep.subr.mxu0 0.0
      %1645 = vmatpush1.xpose.msra.mxu0 %v1640
      %1646 = vmatprep.subr.mxu0 0.0
      %1647 = vmatpush1.xpose.msra.mxu0 %v1642
      %1648 = vmatprep.subr.mxu0 0.0
      %1649 = vmatpush1.xpose.msra.mxu0 0.0
      %1650 = vmatprep.subr.mxu0 0.0
      %1651 = vmatpush1.xpose.msra.mxu0 0.0
      %1652 = vmatprep.subr.mxu0 0.0
      %1653 = vmatpush1.xpose.msra.mxu0 0.0
      %1654 = vmatprep.subr.mxu0 0.0
      %1655 = vmatpush1.xpose.msra.mxu0 0.0
      %1656 = vmatprep.subr.mxu0 0.0
      %1657 = vmatpush1.xpose.msra.mxu0 0.0
      %1658 = vmatprep.subr.mxu0 0.0
      %1659 = vmatpush1.xpose.msra.mxu0 0.0
      %1660 = vmatprep.subr.mxu0 0.0
      %1661 = vmatpush1.xpose.msra.mxu0 0.0
      %1662 = vmatprep.subr.mxu0 0.0
      %1663 = vmatpush1.xpose.msra.mxu0 0.0
      %1664 = vmatprep.subr.mxu0 0.0
      %1665 = vmatpush1.xpose.msra.mxu0 0.0
      %1666 = vmatprep.subr.mxu0 0.0
      %1667 = vmatpush1.xpose.msra.mxu0 0.0
      %1668 = vmatprep.subr.mxu0 0.0
      %1669 = vmatpush1.xpose.msra.mxu0 0.0
      %1670 = vmatprep.subr.mxu0 0.0
      %1671 = vmatpush1.xpose.msra.mxu0 0.0
      %1672 = vmatprep.subr.mxu0 0.0
      %1673 = vmatpush1.xpose.msra.mxu0 0.0
      %1674 = vmatprep.subr.mxu0 0.0
      %1675 = vmatpush1.xpose.msra.mxu0 0.0
      %1676 = vmatprep.subr.mxu0 0.0
      %1677 = vmatpush1.xpose.msra.mxu0 0.0
      %1678 = vmatprep.subr.mxu0 0.0
      %1679 = vmatpush1.xpose.msra.mxu0 0.0
      %1680 = vmatprep.subr.mxu0 0.0
      %1681 = vmatpush1.xpose.msra.mxu0 0.0
      %1682 = vmatprep.subr.mxu0 0.0
      %1683 = vmatpush1.xpose.msra.mxu0 0.0
      %1684 = vmatprep.subr.mxu0 0.0
      %1685 = vmatpush1.xpose.msra.mxu0 0.0
      %1686 = vmatprep.subr.mxu0 0.0
      %1687 = vmatpush1.xpose.msra.mxu0 0.0
      %1688 = vmatprep.subr.mxu0 0.0
      %1689 = vmatpush1.xpose.msra.mxu0 0.0
      %1690 = vmatprep.subr.mxu0 0.0
      %1691 = vmatpush1.xpose.msra.mxu0 0.0
      %1692 = vmatprep.subr.mxu0 0.0
      %1693 = vmatpush1.xpose.msra.mxu0 0.0
      %1694 = vmatprep.subr.mxu0 0.0
      %1695 = vmatpush1.xpose.msra.mxu0 0.0
      %1696 = vmatprep.subr.mxu0 0.0
      %1697 = vmatpush1.xpose.msra.mxu0 0.0
      %1698 = vmatprep.subr.mxu0 0.0
      %1699 = vmatpush1.xpose.msra.mxu0 0.0
      %1700 = vmatprep.subr.mxu0 0.0
      %1701 = vmatpush1.xpose.msra.mxu0 0.0
      %1702 = vmatprep.subr.mxu0 0.0
      %1703 = vmatpush1.xpose.msra.mxu0 0.0
      %1704 = vmatprep.subr.mxu0 0.0
      %1705 = vmatpush1.xpose.msra.mxu0 0.0
      %1706 = vmatprep.subr.mxu0 0.0
      %1707 = vmatpush1.xpose.msra.mxu0 0.0
      %1708 = vmatprep.mubr.f32.mxu0 0.0
      %1709 = vmatmul.mubr.f32.gmra.mrb[0].mxu0 %v1636
      %v1710 = vpop.f32.mrb[0].mxu0
      %v1711 = vadd.f32 0.0, %v1710
      %v1712 = vpop.f32.mrb[0].mxu0
      %1713 = vmatprep.mubr.f32.mxu0 0.0
      %1714 = vmatmul.mubr.f32.gmra.mrb[0].mxu0 %v1638
      %v1715 = vpop.f32.mrb[0].mxu0
      %v1716 = vadd.f32 0.0, %v1715
      %v1717 = vpop.f32.mrb[0].mxu0
      %1718 = vdwg.mxu0
      %v1719 = vmul.f32 %v1711, 0.35355338
      %v1720 = vmul.f32 %v1716, 0.35355338
      %v1721 = vsel %vm854, %v1719, -inf
      %1722 = vmax.xlane.f32.xlu0 %v1721
      %v1723 = vpop.xlane.xlu0 %1722
      %v1724 = vsel %vm858, %v1720, -inf
      %1725 = vmax.xlane.f32.xlu0 %v1724
      %v1726 = vpop.xlane.xlu0 %1725
      %v1727 = vsub.f32 %v1719, %v1723
      %v1728 = vsub.f32 %v1720, %v1726
      %v1729 = vmul.f32 %v1727, 1.442695
      %v1730 = vpow.pop %v1729
      %v1731 = vmul.f32 %v1728, 1.442695
      %v1732 = vpow.pop %v1731
      %v1733 = vsel %vm854, %v1730, 0.0
      %1734 = vadd.xlane.f32.xlu0 %v1733
      %v1735 = vpop.xlane.xlu0 %1734
      %v1736 = vsel %vm858, %v1732, 0.0
      %1737 = vadd.xlane.f32.xlu0 %v1736
      %v1738 = vpop.xlane.xlu0 %1737
      %v1739 = vrcp.pop %v1735
      %v1740 = vrcp.pop %v1738
      %v1741 = vmul.f32 %v1730, %v1739
      %v1742 = vmul.f32 %v1732, %v1740
      %1743 = vrot.lane.b32.xlu0 %v749, 40
      %v1744 = vpop.permute.xlu0 %1743
      %1745 = vrot.lane.b32.xlu0 %v754, 40
      %v1746 = vpop.permute.xlu0 %1745
      %v1749 = vsel %vm854, %v1741, 0
      %v1752 = vsel %vm854, %v1742, 0
      %v1754 = vsel %vm889, %v1746, 0
      %1756 = vmatprep.subr.mxu0 0.0
      %1757 = vmatpush1.msra.mxu0 %v1744
      %1758 = vmatprep.subr.mxu0 0.0
      %1759 = vmatpush1.msra.mxu0 %v1754
      %1760 = vmatprep.subr.mxu0 0.0
      %1761 = vmatpush1.msra.mxu0 0.0
      %1762 = vmatprep.subr.mxu0 0.0
      %1763 = vmatpush1.msra.mxu0 0.0
      %1764 = vmatprep.subr.mxu0 0.0
      %1765 = vmatpush1.msra.mxu0 0.0
      %1766 = vmatprep.subr.mxu0 0.0
      %1767 = vmatpush1.msra.mxu0 0.0
      %1768 = vmatprep.subr.mxu0 0.0
      %1769 = vmatpush1.msra.mxu0 0.0
      %1770 = vmatprep.subr.mxu0 0.0
      %1771 = vmatpush1.msra.mxu0 0.0
      %1772 = vmatprep.subr.mxu0 0.0
      %1773 = vmatpush1.msra.mxu0 0.0
      %1774 = vmatprep.subr.mxu0 0.0
      %1775 = vmatpush1.msra.mxu0 0.0
      %1776 = vmatprep.subr.mxu0 0.0
      %1777 = vmatpush1.msra.mxu0 0.0
      %1778 = vmatprep.subr.mxu0 0.0
      %1779 = vmatpush1.msra.mxu0 0.0
      %1780 = vmatprep.subr.mxu0 0.0
      %1781 = vmatpush1.msra.mxu0 0.0
      %1782 = vmatprep.subr.mxu0 0.0
      %1783 = vmatpush1.msra.mxu0 0.0
      %1784 = vmatprep.subr.mxu0 0.0
      %1785 = vmatpush1.msra.mxu0 0.0
      %1786 = vmatprep.subr.mxu0 0.0
      %1787 = vmatpush1.msra.mxu0 0.0
      %1788 = vmatprep.subr.mxu0 0.0
      %1789 = vmatpush1.msra.mxu0 0.0
      %1790 = vmatprep.subr.mxu0 0.0
      %1791 = vmatpush1.msra.mxu0 0.0
      %1792 = vmatprep.subr.mxu0 0.0
      %1793 = vmatpush1.msra.mxu0 0.0
      %1794 = vmatprep.subr.mxu0 0.0
      %1795 = vmatpush1.msra.mxu0 0.0
      %1796 = vmatprep.subr.mxu0 0.0
      %1797 = vmatpush1.msra.mxu0 0.0
      %1798 = vmatprep.subr.mxu0 0.0
      %1799 = vmatpush1.msra.mxu0 0.0
      %1800 = vmatprep.subr.mxu0 0.0
      %1801 = vmatpush1.msra.mxu0 0.0
      %1802 = vmatprep.subr.mxu0 0.0
      %1803 = vmatpush1.msra.mxu0 0.0
      %1804 = vmatprep.subr.mxu0 0.0
      %1805 = vmatpush1.msra.mxu0 0.0
      %1806 = vmatprep.subr.mxu0 0.0
      %1807 = vmatpush1.msra.mxu0 0.0
      %1808 = vmatprep.subr.mxu0 0.0
      %1809 = vmatpush1.msra.mxu0 0.0
      %1810 = vmatprep.subr.mxu0 0.0
      %1811 = vmatpush1.msra.mxu0 0.0
      %1812 = vmatprep.subr.mxu0 0.0
      %1813 = vmatpush1.msra.mxu0 0.0
      %1814 = vmatprep.subr.mxu0 0.0
      %1815 = vmatpush1.msra.mxu0 0.0
      %1816 = vmatprep.subr.mxu0 0.0
      %1817 = vmatpush1.msra.mxu0 0.0
      %1818 = vmatprep.subr.mxu0 0.0
      %1819 = vmatpush1.msra.mxu0 0.0
      %1820 = vmatprep.mubr.f32.mxu0 0.0
      %1821 = vmatmul.mubr.f32.gmra.mrb[0].mxu0 %v1749
      %v1822 = vpop.f32.mrb[0].mxu0
      %v1823 = vadd.f32 0.0, %v1822
      %v1824 = vpop.f32.mrb[0].mxu0
      %1825 = vmatprep.mubr.f32.mxu0 0.0
      %1826 = vmatmul.mubr.f32.gmra.mrb[0].mxu0 %v1752
      %v1827 = vpop.f32.mrb[0].mxu0
      %v1828 = vadd.f32 0.0, %v1827
      %v1829 = vpop.f32.mrb[0].mxu0
      %1830 = vdwg.mxu0
      %v1832 = vsel %vm768, %v1823, 0
      %v1835 = vsel %vm768, %v1828, 0
      %1837 = vmatprep.subr.mxu0 0.0
      %1838 = vmatpush1.msra.mxu0 %v760
      %1839 = vmatprep.subr.mxu0 0.0
      %1840 = vmatpush1.msra.mxu0 0.0
      %1841 = vmatprep.subr.mxu0 0.0
      %1842 = vmatpush1.msra.mxu0 0.0
      %1843 = vmatprep.subr.mxu0 0.0
      %1844 = vmatpush1.msra.mxu0 0.0
      %1845 = vmatprep.subr.mxu0 0.0
      %1846 = vmatpush1.msra.mxu0 0.0
      %1847 = vmatprep.subr.mxu0 0.0
      %1848 = vmatpush1.msra.mxu0 0.0
      %1849 = vmatprep.subr.mxu0 0.0
      %1850 = vmatpush1.msra.mxu0 0.0
      %1851 = vmatprep.subr.mxu0 0.0
      %1852 = vmatpush1.msra.mxu0 0.0
      %1853 = vmatprep.subr.mxu0 0.0
      %1854 = vmatpush1.msra.mxu0 0.0
      %1855 = vmatprep.subr.mxu0 0.0
      %1856 = vmatpush1.msra.mxu0 0.0
      %1857 = vmatprep.subr.mxu0 0.0
      %1858 = vmatpush1.msra.mxu0 0.0
      %1859 = vmatprep.subr.mxu0 0.0
      %1860 = vmatpush1.msra.mxu0 0.0
      %1861 = vmatprep.subr.mxu0 0.0
      %1862 = vmatpush1.msra.mxu0 0.0
      %1863 = vmatprep.subr.mxu0 0.0
      %1864 = vmatpush1.msra.mxu0 0.0
      %1865 = vmatprep.subr.mxu0 0.0
      %1866 = vmatpush1.msra.mxu0 0.0
      %1867 = vmatprep.subr.mxu0 0.0
      %1868 = vmatpush1.msra.mxu0 0.0
      %1869 = vmatprep.subr.mxu0 0.0
      %1870 = vmatpush1.msra.mxu0 0.0
      %1871 = vmatprep.subr.mxu0 0.0
      %1872 = vmatpush1.msra.mxu0 0.0
      %1873 = vmatprep.subr.mxu0 0.0
      %1874 = vmatpush1.msra.mxu0 0.0
      %1875 = vmatprep.subr.mxu0 0.0
      %1876 = vmatpush1.msra.mxu0 0.0
      %1877 = vmatprep.subr.mxu0 0.0
      %1878 = vmatpush1.msra.mxu0 0.0
      %1879 = vmatprep.subr.mxu0 0.0
      %1880 = vmatpush1.msra.mxu0 0.0
      %1881 = vmatprep.subr.mxu0 0.0
      %1882 = vmatpush1.msra.mxu0 0.0
      %1883 = vmatprep.subr.mxu0 0.0
      %1884 = vmatpush1.msra.mxu0 0.0
      %1885 = vmatprep.subr.mxu0 0.0
      %1886 = vmatpush1.msra.mxu0 0.0
      %1887 = vmatprep.subr.mxu0 0.0
      %1888 = vmatpush1.msra.mxu0 0.0
      %1889 = vmatprep.subr.mxu0 0.0
      %1890 = vmatpush1.msra.mxu0 0.0
      %1891 = vmatprep.subr.mxu0 0.0
      %1892 = vmatpush1.msra.mxu0 0.0
      %1893 = vmatprep.subr.mxu0 0.0
      %1894 = vmatpush1.msra.mxu0 0.0
      %1895 = vmatprep.subr.mxu0 0.0
      %1896 = vmatpush1.msra.mxu0 0.0
      %1897 = vmatprep.subr.mxu0 0.0
      %1898 = vmatpush1.msra.mxu0 0.0
      %1899 = vmatprep.subr.mxu0 0.0
      %1900 = vmatpush1.msra.mxu0 0.0
      %1901 = vmatprep.mubr.f32.mxu0 0.0
      %1902 = vmatmul.mubr.f32.gmra.mrb[0].mxu0 %v1832
      %v1903 = vpop.f32.mrb[0].mxu0
      %v1904 = vadd.f32 0.0, %v1903
      %v1905 = vpop.f32.mrb[0].mxu0
      %1906 = vmatprep.mubr.f32.mxu0 0.0
      %1907 = vmatmul.mubr.f32.gmra.mrb[0].mxu0 %v1835
      %v1908 = vpop.f32.mrb[0].mxu0
      %v1909 = vadd.f32 0.0, %v1908
      %v1910 = vpop.f32.mrb[0].mxu0
      %1911 = vdwg.mxu0
      %v1912 = vadd.f32 %v1626, %v1904
      %v1913 = vadd.f32 %v1627, %v1909
      %v1914 = vadd.f32 %v616, %v1912
      %v1915 = vadd.f32 %v617, %v1913
      %v1916 = vld [vmem:[%s10] sm:$0x1]
      %v1917 = vld [vmem:[%s11] sm:$0x1]
      %v1918 = vsel %vm620, %v1914, 0.0
      %1919 = vadd.xlane.f32.xlu0 %v1918
      %v1920 = vpop.xlane.xlu0 %1919
      %v1921 = vsel %vm624, %v1915, 0.0
      %1922 = vadd.xlane.f32.xlu0 %v1921
      %v1923 = vpop.xlane.xlu0 %1922
      %v1924 = vmul.f32 %v1920, %v628
      %v1925 = vmul.f32 %v1923, %v628
      %v1926 = vsub.f32 %v1914, %v1924
      %v1927 = vsub.f32 %v1915, %v1925
      %v1928 = vmul.f32 %v1926, %v1926
      %v1929 = vmul.f32 %v1927, %v1927
      %v1930 = vsel %vm620, %v1928, 0.0
      %1931 = vadd.xlane.f32.xlu0 %v1930
      %v1932 = vpop.xlane.xlu0 %1931
      %v1933 = vsel %vm624, %v1929, 0.0
      %1934 = vadd.xlane.f32.xlu0 %v1933
      %v1935 = vpop.xlane.xlu0 %1934
      %v1936 = vmul.f32 %v1932, %v628
      %v1937 = vmul.f32 %v1935, %v628
      %v1938 = vadd.f32 %v1936, 1e-05
      %v1939 = vadd.f32 %v1937, 1e-05
      %v1940 = vrsqrt.pop %v1938
      %v1941 = vrsqrt.pop %v1939
      %v1942 = vmul.f32 %v1926, %v1940
      %v1943 = vmul.f32 %v1927, %v1941
      %v1945 = vlaneseq
      %v1946 = vshrl.u32 %v1945, 7
      %v1947 = vsub.s32 0, %v1946
      %v1948 = vrot.slane %v1916, %v1947
      %v1950 = vmul.f32 %v1942, %v1948
      %v1951 = vmul.f32 %v1943, %v1948
      %v1953 = vlaneseq
      %v1954 = vshrl.u32 %v1953, 7
      %v1955 = vsub.s32 0, %v1954
      %v1956 = vrot.slane %v1917, %v1955
      %v1958 = vadd.f32 %v1950, %v1956
      %v1959 = vadd.f32 %v1951, %v1956
      %v1960 = vld [vmem:[%s12] sm:$0xff]
      %v1961 = vld [vmem:[%s12 + $0x8] sm:$0xff]
      %v1962 = vld [vmem:[%s12 + $0x10] sm:$0xff]
      %v1963 = vld [vmem:[%s12 + $0x18] sm:$0xff]
      %v1964 = vld [vmem:[%s13] sm:$0x1]
      %v1966 = vlaneseq
      %v1967 = vshrl.u32 %v1966, 7
      %v1968 = vsub.s32 0, %v1967
      %v1969 = vrot.slane %v1964, %v1968
      %v1972 = vsel %vm620, %v1958, 0
      %v1975 = vsel %vm620, %v1959, 0
      %1977 = vmatprep.subr.mxu0 0.0
      %1978 = vmatpush1.msra.mxu0 %v1960
      %1979 = vmatprep.subr.mxu0 0.0
      %1980 = vmatpush1.msra.mxu0 %v1961
      %1981 = vmatprep.subr.mxu0 0.0
      %1982 = vmatpush1.msra.mxu0 %v1962
      %1983 = vmatprep.subr.mxu0 0.0
      %1984 = vmatpush1.msra.mxu0 %v1963
      %1985 = vmatprep.subr.mxu0 0.0
      %1986 = vmatpush1.msra.mxu0 0.0
      %1987 = vmatprep.subr.mxu0 0.0
      %1988 = vmatpush1.msra.mxu0 0.0
      %1989 = vmatprep.subr.mxu0 0.0
      %1990 = vmatpush1.msra.mxu0 0.0
      %1991 = vmatprep.subr.mxu0 0.0
      %1992 = vmatpush1.msra.mxu0 0.0
      %1993 = vmatprep.subr.mxu0 0.0
      %1994 = vmatpush1.msra.mxu0 0.0
      %1995 = vmatprep.subr.mxu0 0.0
      %1996 = vmatpush1.msra.mxu0 0.0
      %1997 = vmatprep.subr.mxu0 0.0
      %1998 = vmatpush1.msra.mxu0 0.0
      %1999 = vmatprep.subr.mxu0 0.0
      %2000 = vmatpush1.msra.mxu0 0.0
      %2001 = vmatprep.subr.mxu0 0.0
      %2002 = vmatpush1.msra.mxu0 0.0
      %2003 = vmatprep.subr.mxu0 0.0
      %2004 = vmatpush1.msra.mxu0 0.0
      %2005 = vmatprep.subr.mxu0 0.0
      %2006 = vmatpush1.msra.mxu0 0.0
      %2007 = vmatprep.subr.mxu0 0.0
      %2008 = vmatpush1.msra.mxu0 0.0
      %2009 = vmatprep.subr.mxu0 0.0
      %2010 = vmatpush1.msra.mxu0 0.0
      %2011 = vmatprep.subr.mxu0 0.0
      %2012 = vmatpush1.msra.mxu0 0.0
      %2013 = vmatprep.subr.mxu0 0.0
      %2014 = vmatpush1.msra.mxu0 0.0
      %2015 = vmatprep.subr.mxu0 0.0
      %2016 = vmatpush1.msra.mxu0 0.0
      %2017 = vmatprep.subr.mxu0 0.0
      %2018 = vmatpush1.msra.mxu0 0.0
      %2019 = vmatprep.subr.mxu0 0.0
      %2020 = vmatpush1.msra.mxu0 0.0
      %2021 = vmatprep.subr.mxu0 0.0
      %2022 = vmatpush1.msra.mxu0 0.0
      %2023 = vmatprep.subr.mxu0 0.0
      %2024 = vmatpush1.msra.mxu0 0.0
      %2025 = vmatprep.subr.mxu0 0.0
      %2026 = vmatpush1.msra.mxu0 0.0
      %2027 = vmatprep.subr.mxu0 0.0
      %2028 = vmatpush1.msra.mxu0 0.0
      %2029 = vmatprep.subr.mxu0 0.0
      %2030 = vmatpush1.msra.mxu0 0.0
      %2031 = vmatprep.subr.mxu0 0.0
      %2032 = vmatpush1.msra.mxu0 0.0
      %2033 = vmatprep.subr.mxu0 0.0
      %2034 = vmatpush1.msra.mxu0 0.0
      %2035 = vmatprep.subr.mxu0 0.0
      %2036 = vmatpush1.msra.mxu0 0.0
      %2037 = vmatprep.subr.mxu0 0.0
      %2038 = vmatpush1.msra.mxu0 0.0
      %2039 = vmatprep.subr.mxu0 0.0
      %2040 = vmatpush1.msra.mxu0 0.0
      %2041 = vmatprep.mubr.f32.mxu0 0.0
      %2042 = vmatmul.mubr.f32.gmra.mrb[0].mxu0 %v1972
      %v2043 = vpop.f32.mrb[0].mxu0
      %v2044 = vadd.f32 %v1969, %v2043
      %v2045 = vpop.f32.mrb[0].mxu0
      %2046 = vmatprep.mubr.f32.mxu0 0.0
      %2047 = vmatmul.mubr.f32.gmra.mrb[0].mxu0 %v1975
      %v2048 = vpop.f32.mrb[0].mxu0
      %v2049 = vadd.f32 %v1969, %v2048
      %v2050 = vpop.f32.mrb[0].mxu0
      %2051 = vdwg.mxu0
      %v2052 = vmul.f32 %v2044, %v2044
      %v2053 = vmul.f32 %v2049, %v2049
      %v2054 = vmul.f32 %v2044, %v2052
      %v2055 = vmul.f32 %v2049, %v2053
      %v2056 = vmul.f32 %v2054, 0.044715
      %v2057 = vmul.f32 %v2055, 0.044715
      %v2058 = vadd.f32 %v2044, %v2056
      %v2059 = vadd.f32 %v2049, %v2057
      %v2060 = vmul.f32 %v2058, 0.7978846
      %v2061 = vmul.f32 %v2059, 0.7978846
      %v2062 = vtanh.pop %v2060
      %v2063 = vtanh.pop %v2061
      %v2064 = vadd.f32 %v2062, 1.0
      %v2065 = vadd.f32 %v2063, 1.0
      %v2066 = vmul.f32 %v2064, 0.5
      %v2067 = vmul.f32 %v2065, 0.5
      %v2068 = vmul.f32 %v2044, %v2066
      %v2069 = vmul.f32 %v2049, %v2067
      %v2070 = vld [vmem:[%s14] sm:$0xff]
      %v2071 = vld [vmem:[%s14 + $0x8] sm:$0xff]
      %v2072 = vld [vmem:[%s14 + $0x10] sm:$0xff]
      %v2073 = vld [vmem:[%s14 + $0x18] sm:$0xff]
      %v2074 = vld [vmem:[%s14 + $0x20] sm:$0xff]
      %v2075 = vld [vmem:[%s14 + $0x28] sm:$0xff]
      %v2076 = vld [vmem:[%s14 + $0x30] sm:$0xff]
      %v2077 = vld [vmem:[%s14 + $0x38] sm:$0xff]
      %v2078 = vld [vmem:[%s15] sm:$0x1]
      %v2080 = vlaneseq
      %v2081 = vshrl.u32 %v2080, 7
      %v2082 = vsub.s32 0, %v2081
      %v2083 = vrot.slane %v2078, %v2082
      %vm2085 = vcmask 523264
      %v2087 = vsel %vm2085, %v2068, 0
      %v2090 = vsel %vm2085, %v2069, 0
      %2092 = vmatprep.subr.mxu0 0.0
      %2093 = vmatpush1.msra.mxu0 %v2070
      %2094 = vmatprep.subr.mxu0 0.0
      %2095 = vmatpush1.msra.mxu0 %v2071
      %2096 = vmatprep.subr.mxu0 0.0
      %2097 = vmatpush1.msra.mxu0 %v2072
      %2098 = vmatprep.subr.mxu0 0.0
      %2099 = vmatpush1.msra.mxu0 %v2073
      %2100 = vmatprep.subr.mxu0 0.0
      %2101 = vmatpush1.msra.mxu0 %v2074
      %2102 = vmatprep.subr.mxu0 0.0
      %2103 = vmatpush1.msra.mxu0 %v2075
      %2104 = vmatprep.subr.mxu0 0.0
      %2105 = vmatpush1.msra.mxu0 %v2076
      %2106 = vmatprep.subr.mxu0 0.0
      %2107 = vmatpush1.msra.mxu0 %v2077
      %2108 = vmatprep.subr.mxu0 0.0
      %2109 = vmatpush1.msra.mxu0 0.0
      %2110 = vmatprep.subr.mxu0 0.0
      %2111 = vmatpush1.msra.mxu0 0.0
      %2112 = vmatprep.subr.mxu0 0.0
      %2113 = vmatpush1.msra.mxu0 0.0
      %2114 = vmatprep.subr.mxu0 0.0
      %2115 = vmatpush1.msra.mxu0 0.0
      %2116 = vmatprep.subr.mxu0 0.0
      %2117 = vmatpush1.msra.mxu0 0.0
      %2118 = vmatprep.subr.mxu0 0.0
      %2119 = vmatpush1.msra.mxu0 0.0
      %2120 = vmatprep.subr.mxu0 0.0
      %2121 = vmatpush1.msra.mxu0 0.0
      %2122 = vmatprep.subr.mxu0 0.0
      %2123 = vmatpush1.msra.mxu0 0.0
      %2124 = vmatprep.subr.mxu0 0.0
      %2125 = vmatpush1.msra.mxu0 0.0
      %2126 = vmatprep.subr.mxu0 0.0
      %2127 = vmatpush1.msra.mxu0 0.0
      %2128 = vmatprep.subr.mxu0 0.0
      %2129 = vmatpush1.msra.mxu0 0.0
      %2130 = vmatprep.subr.mxu0 0.0
      %2131 = vmatpush1.msra.mxu0 0.0
      %2132 = vmatprep.subr.mxu0 0.0
      %2133 = vmatpush1.msra.mxu0 0.0
      %2134 = vmatprep.subr.mxu0 0.0
      %2135 = vmatpush1.msra.mxu0 0.0
      %2136 = vmatprep.subr.mxu0 0.0
      %2137 = vmatpush1.msra.mxu0 0.0
      %2138 = vmatprep.subr.mxu0 0.0
      %2139 = vmatpush1.msra.mxu0 0.0
      %2140 = vmatprep.subr.mxu0 0.0
      %2141 = vmatpush1.msra.mxu0 0.0
      %2142 = vmatprep.subr.mxu0 0.0
      %2143 = vmatpush1.msra.mxu0 0.0
      %2144 = vmatprep.subr.mxu0 0.0
      %2145 = vmatpush1.msra.mxu0 0.0
      %2146 = vmatprep.subr.mxu0 0.0
      %2147 = vmatpush1.msra.mxu0 0.0
      %2148 = vmatprep.subr.mxu0 0.0
      %2149 = vmatpush1.msra.mxu0 0.0
      %2150 = vmatprep.subr.mxu0 0.0
      %2151 = vmatpush1.msra.mxu0 0.0
      %2152 = vmatprep.subr.mxu0 0.0
      %2153 = vmatpush1.msra.mxu0 0.0
      %2154 = vmatprep.subr.mxu0 0.0
      %2155 = vmatpush1.msra.mxu0 0.0
      %2156 = vmatprep.mubr.f32.mxu0 0.0
      %2157 = vmatmul.mubr.f32.gmra.mrb[0].mxu0 %v2087
      %v2158 = vpop.f32.mrb[0].mxu0
      %v2159 = vadd.f32 %v2083, %v2158
      %v2160 = vpop.f32.mrb[0].mxu0
      %2161 = vmatprep.mubr.f32.mxu0 0.0
      %2162 = vmatmul.mubr.f32.gmra.mrb[0].mxu0 %v2090
      %v2163 = vpop.f32.mrb[0].mxu0
      %v2164 = vpop.f32.mrb[0].mxu0
      %2165 = vdwg.mxu0
      %v2166 = vadd.f32 %v1914, %v2159
      %v2167 = vadd.f32 %v2166, %v612
      %v2168 = vld [vmem:[%s16] sm:$0xff]
      %v2169 = vld [vmem:[%s16 + $0x8] sm:$0xff]
      %v2170 = vld [vmem:[%s16 + $0x10] sm:$0xff]
      %v2171 = vld [vmem:[%s16 + $0x18] sm:$0xff]
      %v2172 = vld [vmem:[%s17] sm:$0x1]
      %v2174 = vlaneseq
      %v2175 = vshrl.u32 %v2174, 7
      %v2176 = vsub.s32 0, %v2175
      %v2177 = vrot.slane %v2172, %v2176
      %v2180 = vsel %vm620, %v2167, 0
      %2182 = vmatprep.subr.mxu0 0.0
      %2183 = vmatpush1.msra.mxu0 %v2168
      %2184 = vmatprep.subr.mxu0 0.0
      %2185 = vmatpush1.msra.mxu0 %v2169
      %2186 = vmatprep.subr.mxu0 0.0
      %2187 = vmatpush1.msra.mxu0 %v2170
      %2188 = vmatprep.subr.mxu0 0.0
      %2189 = vmatpush1.msra.mxu0 %v2171
      %2190 = vmatprep.subr.mxu0 0.0
      %2191 = vmatpush1.msra.mxu0 0.0
      %2192 = vmatprep.subr.mxu0 0.0
      %2193 = vmatpush1.msra.mxu0 0.0
      %2194 = vmatprep.subr.mxu0 0.0
      %2195 = vmatpush1.msra.mxu0 0.0
      %2196 = vmatprep.subr.mxu0 0.0
      %2197 = vmatpush1.msra.mxu0 0.0
      %2198 = vmatprep.subr.mxu0 0.0
      %2199 = vmatpush1.msra.mxu0 0.0
      %2200 = vmatprep.subr.mxu0 0.0
      %2201 = vmatpush1.msra.mxu0 0.0
      %2202 = vmatprep.subr.mxu0 0.0
      %2203 = vmatpush1.msra.mxu0 0.0
      %2204 = vmatprep.subr.mxu0 0.0
      %2205 = vmatpush1.msra.mxu0 0.0
      %2206 = vmatprep.subr.mxu0 0.0
      %2207 = vmatpush1.msra.mxu0 0.0
      %2208 = vmatprep.subr.mxu0 0.0
      %2209 = vmatpush1.msra.mxu0 0.0
      %2210 = vmatprep.subr.mxu0 0.0
      %2211 = vmatpush1.msra.mxu0 0.0
      %2212 = vmatprep.subr.mxu0 0.0
      %2213 = vmatpush1.msra.mxu0 0.0
      %2214 = vmatprep.subr.mxu0 0.0
      %2215 = vmatpush1.msra.mxu0 0.0
      %2216 = vmatprep.subr.mxu0 0.0
      %2217 = vmatpush1.msra.mxu0 0.0
      %2218 = vmatprep.subr.mxu0 0.0
      %2219 = vmatpush1.msra.mxu0 0.0
      %2220 = vmatprep.subr.mxu0 0.0
      %2221 = vmatpush1.msra.mxu0 0.0
      %2222 = vmatprep.subr.mxu0 0.0
      %2223 = vmatpush1.msra.mxu0 0.0
      %2224 = vmatprep.subr.mxu0 0.0
      %2225 = vmatpush1.msra.mxu0 0.0
      %2226 = vmatprep.subr.mxu0 0.0
      %2227 = vmatpush1.msra.mxu0 0.0
      %2228 = vmatprep.subr.mxu0 0.0
      %2229 = vmatpush1.msra.mxu0 0.0
      %2230 = vmatprep.subr.mxu0 0.0
      %2231 = vmatpush1.msra.mxu0 0.0
      %2232 = vmatprep.subr.mxu0 0.0
      %2233 = vmatpush1.msra.mxu0 0.0
      %2234 = vmatprep.subr.mxu0 0.0
      %2235 = vmatpush1.msra.mxu0 0.0
      %2236 = vmatprep.subr.mxu0 0.0
      %2237 = vmatpush1.msra.mxu0 0.0
      %2238 = vmatprep.subr.mxu0 0.0
      %2239 = vmatpush1.msra.mxu0 0.0
      %2240 = vmatprep.subr.mxu0 0.0
      %2241 = vmatpush1.msra.mxu0 0.0
      %2242 = vmatprep.subr.mxu0 0.0
      %2243 = vmatpush1.msra.mxu0 0.0
      %2244 = vmatprep.subr.mxu0 0.0
      %2245 = vmatpush1.msra.mxu0 0.0
      %2246 = vmatprep.mubr.f32.mxu0 0.0
      %2247 = vmatmul.mubr.f32.gmra.mrb[0].mxu0 %v2180
      %v2248 = vpop.f32.mrb[0].mxu0
      %v2249 = vadd.f32 %v2177, %v2248
      %v2250 = vpop.f32.mrb[0].mxu0
      %2251 = vdwg.mxu0
      %2252 = vst.msk [vmem:[%s593] sm:$0xff] %vm620, %v2249
      %p2253 = scmp.lt.s32.totalorder %s29, 1
      %s2254 = scalar_select %p2253, %s29, 1
      %s2255 = smul.addr %s2254, 8
      %s2256 = scalar_lea.vmem %s18, %s2255
      // Predicated region
      $region93: #{_lambda_.2} parent=91 // pred_check
        %p2257 = pneg %p435
      $region94: #{_lambda_.2} parent=91 // pred_check_branch
        %2259 = sbr.rel (%p2257) target = $region96
      $region95: #{_lambda_.2} parent=91 // pred_region
        _
      $region96: #{_lambda_.2} parent=91 // pred_fallthru
        _
    $region92: #{_lambda_.2} parent=5 // pred_fallthru
      _
    %p2260 = scmp.le.s32.totalorder 2, %s24
    // Predicated region
    $region97: #{_lambda_.2} parent=5 // pred_check
      %p2261 = pneg %p2260
    $region98: #{_lambda_.2} parent=5 // pred_check_branch
      %2263 = sbr.rel (%p2261) target = $region100
    $region99: #{_lambda_.2} parent=5 // pred_region
      %s2264 = ssub.s32 %s24, 2
      // Predicated region
      $region101: #{_lambda_.2} parent=99 // pred_check
        %p2265 = pneg %p441
      $region102: #{_lambda_.2} parent=99 // pred_check_branch
        %2267 = sbr.rel (%p2265) target = $region104
      $region103: #{_lambda_.2} parent=99 // pred_region
        %p2268 = scmp.lt.s32.totalorder %s30, 1
        %s2269 = scalar_select %p2268, %s30, 1
        %s2270 = smul.addr %s2269, 8
        %s2271 = scalar_lea.vmem %s18, %s2270
      $region104: #{_lambda_.2} parent=99 // pred_fallthru
        _
    $region100: #{_lambda_.2} parent=5 // pred_fallthru
      _
  $region6: #{_lambda_.2} parent=0 // loop_footer
    %s28 = sadd.s32 1, %s24
  $region7: #{_lambda_.2} parent=0 // loop_footer_branch
    %23 = sbr.rel target = $region3
  $region8: #{_lambda_.2} parent=0 // loop_exit
    _

// kernel: _lambda_.3
$region0: #{_lambda_.3}
  #allocation0 [shape = 'u32[]', space=smem, size = 0x4, offset = 0x4, fixed_abs, tag = 'smem constant byte address 0x4 - core index']
  #allocation1 [shape = 'u32[144,128]{1,0:T(1,128)}', space=vmem, size = 0x12000, scoped, tag = 'internal scratch']
  #allocation2 [shape = 'f32[1,1]{1,0:T(1,128)S(1)}', space=vmem, size = 0x200, scoped, tag = 'scoped memory for _lambda_.3']
  %s0 = inlined_call_operand.vmem [shape: f32[2,8,32], index: 0, kind: input, shape index: {}]
  %s1 = inlined_call_operand.vmem [shape: f32[2,8,1], index: 1, kind: input, shape index: {}]
  %s2 = inlined_call_operand.vmem [shape: f32[1,32], index: 2, kind: input, shape index: {}]
  %s3 = inlined_call_operand.vmem [shape: f32[1,32], index: 3, kind: input, shape index: {}, may-alias: {3,5,9,11,15}]
  %s4 = inlined_call_operand.vmem [shape: f32[1,32], index: 4, kind: input, shape index: {}]
  %s5 = inlined_call_operand.vmem [shape: f32[1,32], index: 5, kind: input, shape index: {}, may-alias: {3,5,9,11,15}]
  %s6 = inlined_call_operand.vmem [shape: f32[32,96], index: 6, kind: input, shape index: {}]
  %s7 = inlined_call_operand.vmem [shape: f32[1,96], index: 7, kind: input, shape index: {}]
  %s8 = inlined_call_operand.vmem [shape: f32[32,32], index: 8, kind: input, shape index: {}]
  %s9 = inlined_call_operand.vmem [shape: f32[1,32], index: 9, kind: input, shape index: {}, may-alias: {3,5,9,11,15}]
  %s10 = inlined_call_operand.vmem [shape: f32[1,32], index: 10, kind: input, shape index: {}]
  %s11 = inlined_call_operand.vmem [shape: f32[1,32], index: 11, kind: input, shape index: {}, may-alias: {3,5,9,11,15}]
  %s12 = inlined_call_operand.vmem [shape: f32[32,64], index: 12, kind: input, shape index: {}]
  %s13 = inlined_call_operand.vmem [shape: f32[1,64], index: 13, kind: input, shape index: {}]
  %s14 = inlined_call_operand.vmem [shape: f32[64,32], index: 14, kind: input, shape index: {}]
  %s15 = inlined_call_operand.vmem [shape: f32[1,32], index: 15, kind: input, shape index: {}, may-alias: {3,5,9,11,15}]
  %s16 = inlined_call_operand.vmem [shape: f32[1,32], index: 16, kind: input, shape index: {}]
  %s17 = inlined_call_operand.<no memory space> [shape: f32[1,1], index: 17, kind: input, shape index: {}]
  %s18 = inlined_call_operand.hbm [shape: f32[2,8,8], index: 18, kind: output, shape index: {}]
  %s19 = sld [smem:[#allocation0]]
  $region105: #{_lambda_.3} parent=0
    _
  %s21 = ssub.s32 1, %s19
  %s22 = scalar_select 0, %s21, %s19
  %v23 = vstv %s17
  %24 = vst [vmem:[#allocation2] sm:$0x1] %v23
  $region1: #{_lambda_.3} parent=0
    #allocation3 [shape = 'u8[8192]{0}', space=vmem, size = 0x2000, scoped, tag = 'output window, operand 0']
    #allocation4 [shape = 's32[2]{0}', space=sflag, size = 0x8, scoped, tag = 'scoped memory for _lambda_.3']
    %25 = vsyncpa [#allocation4], 0
    %s26 = scalar_lea.sflag [#allocation4], 1
    %27 = vsyncpa %s26, 0
    loop: start=0, step=1, limit=4
    $region2: #{_lambda_.3} parent=1 // loop_pre_header
      _
    $region3: #{_lambda_.3} parent=1 // loop_header
      %s29 = sphi 0, %s33
      %p30 = scmp.ge.s32.totalorder %s29, 4
      %s39 = sphi 0, %s41
      %s42 = sphi 0, %s39
      %s43 = sphi 0, %s42
      %s59 = sphi 0, %s43
      %s65 = sphi 0, %s67
      %s68 = sphi 0, %s65
      %s69 = sphi 0, %s68
      %s85 = sphi 0, %s69
      %s89 = sphi 0, %s89
      %s91 = sphi 0, %s89
      %s92 = sphi 0, %s91
      %s106 = sphi 0, %s92
      %s110 = sphi 0, %s110
      %s112 = sphi 0, %s110
      %s113 = sphi 0, %s112
      %s127 = sphi 0, %s113
      %s131 = sphi 0, %s131
      %s133 = sphi 0, %s131
      %s134 = sphi 0, %s133
      %s148 = sphi 0, %s134
      %s152 = sphi 0, %s152
      %s154 = sphi 0, %s152
      %s155 = sphi 0, %s154
      %s169 = sphi 0, %s155
      %s173 = sphi 0, %s173
      %s175 = sphi 0, %s173
      %s176 = sphi 0, %s175
      %s190 = sphi 0, %s176
      %s194 = sphi 0, %s194
      %s196 = sphi 0, %s194
      %s197 = sphi 0, %s196
      %s211 = sphi 0, %s197
      %s215 = sphi 0, %s215
      %s217 = sphi 0, %s215
      %s218 = sphi 0, %s217
      %s232 = sphi 0, %s218
      %s236 = sphi 0, %s236
      %s238 = sphi 0, %s236
      %s239 = sphi 0, %s238
      %s253 = sphi 0, %s239
      %s257 = sphi 0, %s257
      %s259 = sphi 0, %s257
      %s260 = sphi 0, %s259
      %s274 = sphi 0, %s260
      %s278 = sphi 0, %s278
      %s280 = sphi 0, %s278
      %s281 = sphi 0, %s280
      %s295 = sphi 0, %s281
      %s299 = sphi 0, %s299
      %s301 = sphi 0, %s299
      %s302 = sphi 0, %s301
      %s316 = sphi 0, %s302
      %s320 = sphi 0, %s320
      %s322 = sphi 0, %s320
      %s323 = sphi 0, %s322
      %s337 = sphi 0, %s323
      %s341 = sphi 0, %s341
      %s343 = sphi 0, %s341
      %s344 = sphi 0, %s343
      %s358 = sphi 0, %s344
      %s362 = sphi 0, %s362
      %s364 = sphi 0, %s362
      %s365 = sphi 0, %s364
      %s379 = sphi 0, %s365
      %s383 = sphi 0, %s383
      %s385 = sphi 0, %s383
      %s386 = sphi 0, %s385
      %s400 = sphi 0, %s386
      %s404 = sphi 0, %s404
      %s406 = sphi 0, %s404
      %s407 = sphi 0, %s406
      %s421 = sphi 0, %s407
      %s427 = sphi 0, %s429
      %s430 = sphi 0, %s427
      %s431 = sphi 0, %s430
      %s447 = sphi 0, %s431
    $region4: #{_lambda_.3} parent=1 // loop_header_branch
      %32 = sbr.rel (%p30) target = $region8
    $region5: #{_lambda_.3} parent=1 // loop_body
      %s34 = ssub.s32 %s29, 1
      %s35 = ssub.s32 %s29, 2
      %s36 = sadd.s32 %s29, 1
      %s37 = ssub.s32 %s29, %s36
      %p38 = scmp.eq.s32.totalorder %s37, 0
      %s40 = sadd.s32 %s39, 1
      %s41 = scalar_select %p38, %s39, %s40
      %p44 = pneg %p38
      %p45 = scmp.eq.s32.totalorder %s29, 1
      %p46 = por %p44, %p45
      %p47 = scmp.ne.s32.totalorder %s39, %s42
      %p48 = scmp.eq.s32.totalorder %s29, 0
      %p49 = por %p47, %p48
      %p50 = scmp.ne.s32.totalorder %s39, %s42
      %p51 = scmp.eq.s32.totalorder %s34, 1
      %p52 = por %p50, %p51
      %p53 = scmp.ne.s32.totalorder %s42, %s43
      %p54 = scmp.eq.s32.totalorder %s34, 0
      %p55 = por %p53, %p54
      %p56 = scmp.ne.s32.totalorder %s42, %s43
      %p57 = scmp.eq.s32.totalorder %s35, 1
      %p58 = por %p56, %p57
      %p60 = scmp.ne.s32.totalorder %s43, %s59
      %p61 = scmp.eq.s32.totalorder %s35, 0
      %p62 = por %p60, %p61
      %s63 = ssub.s32 %s29, %s36
      %p64 = scmp.eq.s32.totalorder %s63, 0
      %s66 = sadd.s32 %s65, 1
      %s67 = scalar_select %p64, %s65, %s66
      %p70 = pneg %p64
      %p71 = scmp.eq.s32.totalorder %s29, 1
      %p72 = por %p70, %p71
      %p73 = scmp.ne.s32.totalorder %s65, %s68
      %p74 = scmp.eq.s32.totalorder %s29, 0
      %p75 = por %p73, %p74
      %p76 = scmp.ne.s32.totalorder %s65, %s68
      %p77 = scmp.eq.s32.totalorder %s34, 1
      %p78 = por %p76, %p77
      %p79 = scmp.ne.s32.totalorder %s68, %s69
      %p80 = scmp.eq.s32.totalorder %s34, 0
      %p81 = por %p79, %p80
      %p82 = scmp.ne.s32.totalorder %s68, %s69
      %p83 = scmp.eq.s32.totalorder %s35, 1
      %p84 = por %p82, %p83
      %p86 = scmp.ne.s32.totalorder %s69, %s85
      %p87 = scmp.eq.s32.totalorder %s35, 0
      %p88 = por %p86, %p87
      %s90 = sadd.s32 %s89, 1
      %p93 = scmp.eq.s32.totalorder %s29, 1
      %p94 = scmp.ne.s32.totalorder %s89, %s91
      %p95 = scmp.eq.s32.totalorder %s29, 0
      %p96 = por %p94, %p95
      %p97 = scmp.ne.s32.totalorder %s89, %s91
      %p98 = scmp.eq.s32.totalorder %s34, 1
      %p99 = por %p97, %p98
      %p100 = scmp.ne.s32.totalorder %s91, %s92
      %p101 = scmp.eq.s32.totalorder %s34, 0
      %p102 = por %p100, %p101
      %p103 = scmp.ne.s32.totalorder %s91, %s92
      %p104 = scmp.eq.s32.totalorder %s35, 1
      %p105 = por %p103, %p104
      %p107 = scmp.ne.s32.totalorder %s92, %s106
      %p108 = scmp.eq.s32.totalorder %s35, 0
      %p109 = por %p107, %p108
      %s111 = sadd.s32 %s110, 1
      %p114 = scmp.eq.s32.totalorder %s29, 1
      %p115 = scmp.ne.s32.totalorder %s110, %s112
      %p116 = scmp.eq.s32.totalorder %s29, 0
      %p117 = por %p115, %p116
      %p118 = scmp.ne.s32.totalorder %s110, %s112
      %p119 = scmp.eq.s32.totalorder %s34, 1
      %p120 = por %p118, %p119
      %p121 = scmp.ne.s32.totalorder %s112, %s113
      %p122 = scmp.eq.s32.totalorder %s34, 0
      %p123 = por %p121, %p122
      %p124 = scmp.ne.s32.totalorder %s112, %s113
      %p125 = scmp.eq.s32.totalorder %s35, 1
      %p126 = por %p124, %p125
      %p128 = scmp.ne.s32.totalorder %s113, %s127
      %p129 = scmp.eq.s32.totalorder %s35, 0
      %p130 = por %p128, %p129
      %s132 = sadd.s32 %s131, 1
      %p135 = scmp.eq.s32.totalorder %s29, 1
      %p136 = scmp.ne.s32.totalorder %s131, %s133
      %p137 = scmp.eq.s32.totalorder %s29, 0
      %p138 = por %p136, %p137
      %p139 = scmp.ne.s32.totalorder %s131, %s133
      %p140 = scmp.eq.s32.totalorder %s34, 1
      %p141 = por %p139, %p140
      %p142 = scmp.ne.s32.totalorder %s133, %s134
      %p143 = scmp.eq.s32.totalorder %s34, 0
      %p144 = por %p142, %p143
      %p145 = scmp.ne.s32.totalorder %s133, %s134
      %p146 = scmp.eq.s32.totalorder %s35, 1
      %p147 = por %p145, %p146
      %p149 = scmp.ne.s32.totalorder %s134, %s148
      %p150 = scmp.eq.s32.totalorder %s35, 0
      %p151 = por %p149, %p150
      %s153 = sadd.s32 %s152, 1
      %p156 = scmp.eq.s32.totalorder %s29, 1
      %p157 = scmp.ne.s32.totalorder %s152, %s154
      %p158 = scmp.eq.s32.totalorder %s29, 0
      %p159 = por %p157, %p158
      %p160 = scmp.ne.s32.totalorder %s152, %s154
      %p161 = scmp.eq.s32.totalorder %s34, 1
      %p162 = por %p160, %p161
      %p163 = scmp.ne.s32.totalorder %s154, %s155
      %p164 = scmp.eq.s32.totalorder %s34, 0
      %p165 = por %p163, %p164
      %p166 = scmp.ne.s32.totalorder %s154, %s155
      %p167 = scmp.eq.s32.totalorder %s35, 1
      %p168 = por %p166, %p167
      %p170 = scmp.ne.s32.totalorder %s155, %s169
      %p171 = scmp.eq.s32.totalorder %s35, 0
      %p172 = por %p170, %p171
      %s174 = sadd.s32 %s173, 1
      %p177 = scmp.eq.s32.totalorder %s29, 1
      %p178 = scmp.ne.s32.totalorder %s173, %s175
      %p179 = scmp.eq.s32.totalorder %s29, 0
      %p180 = por %p178, %p179
      %p181 = scmp.ne.s32.totalorder %s173, %s175
      %p182 = scmp.eq.s32.totalorder %s34, 1
      %p183 = por %p181, %p182
      %p184 = scmp.ne.s32.totalorder %s175, %s176
      %p185 = scmp.eq.s32.totalorder %s34, 0
      %p186 = por %p184, %p185
      %p187 = scmp.ne.s32.totalorder %s175, %s176
      %p188 = scmp.eq.s32.totalorder %s35, 1
      %p189 = por %p187, %p188
      %p191 = scmp.ne.s32.totalorder %s176, %s190
      %p192 = scmp.eq.s32.totalorder %s35, 0
      %p193 = por %p191, %p192
      %s195 = sadd.s32 %s194, 1
      %p198 = scmp.eq.s32.totalorder %s29, 1
      %p199 = scmp.ne.s32.totalorder %s194, %s196
      %p200 = scmp.eq.s32.totalorder %s29, 0
      %p201 = por %p199, %p200
      %p202 = scmp.ne.s32.totalorder %s194, %s196
      %p203 = scmp.eq.s32.totalorder %s34, 1
      %p204 = por %p202, %p203
      %p205 = scmp.ne.s32.totalorder %s196, %s197
      %p206 = scmp.eq.s32.totalorder %s34, 0
      %p207 = por %p205, %p206
      %p208 = scmp.ne.s32.totalorder %s196, %s197
      %p209 = scmp.eq.s32.totalorder %s35, 1
      %p210 = por %p208, %p209
      %p212 = scmp.ne.s32.totalorder %s197, %s211
      %p213 = scmp.eq.s32.totalorder %s35, 0
      %p214 = por %p212, %p213
      %s216 = sadd.s32 %s215, 1
      %p219 = scmp.eq.s32.totalorder %s29, 1
      %p220 = scmp.ne.s32.totalorder %s215, %s217
      %p221 = scmp.eq.s32.totalorder %s29, 0
      %p222 = por %p220, %p221
      %p223 = scmp.ne.s32.totalorder %s215, %s217
      %p224 = scmp.eq.s32.totalorder %s34, 1
      %p225 = por %p223, %p224
      %p226 = scmp.ne.s32.totalorder %s217, %s218
      %p227 = scmp.eq.s32.totalorder %s34, 0
      %p228 = por %p226, %p227
      %p229 = scmp.ne.s32.totalorder %s217, %s218
      %p230 = scmp.eq.s32.totalorder %s35, 1
      %p231 = por %p229, %p230
      %p233 = scmp.ne.s32.totalorder %s218, %s232
      %p234 = scmp.eq.s32.totalorder %s35, 0
      %p235 = por %p233, %p234
      %s237 = sadd.s32 %s236, 1
      %p240 = scmp.eq.s32.totalorder %s29, 1
      %p241 = scmp.ne.s32.totalorder %s236, %s238
      %p242 = scmp.eq.s32.totalorder %s29, 0
      %p243 = por %p241, %p242
      %p244 = scmp.ne.s32.totalorder %s236, %s238
      %p245 = scmp.eq.s32.totalorder %s34, 1
      %p246 = por %p244, %p245
      %p247 = scmp.ne.s32.totalorder %s238, %s239
      %p248 = scmp.eq.s32.totalorder %s34, 0
      %p249 = por %p247, %p248
      %p250 = scmp.ne.s32.totalorder %s238, %s239
      %p251 = scmp.eq.s32.totalorder %s35, 1
      %p252 = por %p250, %p251
      %p254 = scmp.ne.s32.totalorder %s239, %s253
      %p255 = scmp.eq.s32.totalorder %s35, 0
      %p256 = por %p254, %p255
      %s258 = sadd.s32 %s257, 1
      %p261 = scmp.eq.s32.totalorder %s29, 1
      %p262 = scmp.ne.s32.totalorder %s257, %s259
      %p263 = scmp.eq.s32.totalorder %s29, 0
      %p264 = por %p262, %p263
      %p265 = scmp.ne.s32.totalorder %s257, %s259
      %p266 = scmp.eq.s32.totalorder %s34, 1
      %p267 = por %p265, %p266
      %p268 = scmp.ne.s32.totalorder %s259, %s260
      %p269 = scmp.eq.s32.totalorder %s34, 0
      %p270 = por %p268, %p269
      %p271 = scmp.ne.s32.totalorder %s259, %s260
      %p272 = scmp.eq.s32.totalorder %s35, 1
      %p273 = por %p271, %p272
      %p275 = scmp.ne.s32.totalorder %s260, %s274
      %p276 = scmp.eq.s32.totalorder %s35, 0
      %p277 = por %p275, %p276
      %s279 = sadd.s32 %s278, 1
      %p282 = scmp.eq.s32.totalorder %s29, 1
      %p283 = scmp.ne.s32.totalorder %s278, %s280
      %p284 = scmp.eq.s32.totalorder %s29, 0
      %p285 = por %p283, %p284
      %p286 = scmp.ne.s32.totalorder %s278, %s280
      %p287 = scmp.eq.s32.totalorder %s34, 1
      %p288 = por %p286, %p287
      %p289 = scmp.ne.s32.totalorder %s280, %s281
      %p290 = scmp.eq.s32.totalorder %s34, 0
      %p291 = por %p289, %p290
      %p292 = scmp.ne.s32.totalorder %s280, %s281
      %p293 = scmp.eq.s32.totalorder %s35, 1
      %p294 = por %p292, %p293
      %p296 = scmp.ne.s32.totalorder %s281, %s295
      %p297 = scmp.eq.s32.totalorder %s35, 0
      %p298 = por %p296, %p297
      %s300 = sadd.s32 %s299, 1
      %p303 = scmp.eq.s32.totalorder %s29, 1
      %p304 = scmp.ne.s32.totalorder %s299, %s301
      %p305 = scmp.eq.s32.totalorder %s29, 0
      %p306 = por %p304, %p305
      %p307 = scmp.ne.s32.totalorder %s299, %s301
      %p308 = scmp.eq.s32.totalorder %s34, 1
      %p309 = por %p307, %p308
      %p310 = scmp.ne.s32.totalorder %s301, %s302
      %p311 = scmp.eq.s32.totalorder %s34, 0
      %p312 = por %p310, %p311
      %p313 = scmp.ne.s32.totalorder %s301, %s302
      %p314 = scmp.eq.s32.totalorder %s35, 1
      %p315 = por %p313, %p314
      %p317 = scmp.ne.s32.totalorder %s302, %s316
      %p318 = scmp.eq.s32.totalorder %s35, 0
      %p319 = por %p317, %p318
      %s321 = sadd.s32 %s320, 1
      %p324 = scmp.eq.s32.totalorder %s29, 1
      %p325 = scmp.ne.s32.totalorder %s320, %s322
      %p326 = scmp.eq.s32.totalorder %s29, 0
      %p327 = por %p325, %p326
      %p328 = scmp.ne.s32.totalorder %s320, %s322
      %p329 = scmp.eq.s32.totalorder %s34, 1
      %p330 = por %p328, %p329
      %p331 = scmp.ne.s32.totalorder %s322, %s323
      %p332 = scmp.eq.s32.totalorder %s34, 0
      %p333 = por %p331, %p332
      %p334 = scmp.ne.s32.totalorder %s322, %s323
      %p335 = scmp.eq.s32.totalorder %s35, 1
      %p336 = por %p334, %p335
      %p338 = scmp.ne.s32.totalorder %s323, %s337
      %p339 = scmp.eq.s32.totalorder %s35, 0
      %p340 = por %p338, %p339
      %s342 = sadd.s32 %s341, 1
      %p345 = scmp.eq.s32.totalorder %s29, 1
      %p346 = scmp.ne.s32.totalorder %s341, %s343
      %p347 = scmp.eq.s32.totalorder %s29, 0
      %p348 = por %p346, %p347
      %p349 = scmp.ne.s32.totalorder %s341, %s343
      %p350 = scmp.eq.s32.totalorder %s34, 1
      %p351 = por %p349, %p350
      %p352 = scmp.ne.s32.totalorder %s343, %s344
      %p353 = scmp.eq.s32.totalorder %s34, 0
      %p354 = por %p352, %p353
      %p355 = scmp.ne.s32.totalorder %s343, %s344
      %p356 = scmp.eq.s32.totalorder %s35, 1
      %p357 = por %p355, %p356
      %p359 = scmp.ne.s32.totalorder %s344, %s358
      %p360 = scmp.eq.s32.totalorder %s35, 0
      %p361 = por %p359, %p360
      %s363 = sadd.s32 %s362, 1
      %p366 = scmp.eq.s32.totalorder %s29, 1
      %p367 = scmp.ne.s32.totalorder %s362, %s364
      %p368 = scmp.eq.s32.totalorder %s29, 0
      %p369 = por %p367, %p368
      %p370 = scmp.ne.s32.totalorder %s362, %s364
      %p371 = scmp.eq.s32.totalorder %s34, 1
      %p372 = por %p370, %p371
      %p373 = scmp.ne.s32.totalorder %s364, %s365
      %p374 = scmp.eq.s32.totalorder %s34, 0
      %p375 = por %p373, %p374
      %p376 = scmp.ne.s32.totalorder %s364, %s365
      %p377 = scmp.eq.s32.totalorder %s35, 1
      %p378 = por %p376, %p377
      %p380 = scmp.ne.s32.totalorder %s365, %s379
      %p381 = scmp.eq.s32.totalorder %s35, 0
      %p382 = por %p380, %p381
      %s384 = sadd.s32 %s383, 1
      %p387 = scmp.eq.s32.totalorder %s29, 1
      %p388 = scmp.ne.s32.totalorder %s383, %s385
      %p389 = scmp.eq.s32.totalorder %s29, 0
      %p390 = por %p388, %p389
      %p391 = scmp.ne.s32.totalorder %s383, %s385
      %p392 = scmp.eq.s32.totalorder %s34, 1
      %p393 = por %p391, %p392
      %p394 = scmp.ne.s32.totalorder %s385, %s386
      %p395 = scmp.eq.s32.totalorder %s34, 0
      %p396 = por %p394, %p395
      %p397 = scmp.ne.s32.totalorder %s385, %s386
      %p398 = scmp.eq.s32.totalorder %s35, 1
      %p399 = por %p397, %p398
      %p401 = scmp.ne.s32.totalorder %s386, %s400
      %p402 = scmp.eq.s32.totalorder %s35, 0
      %p403 = por %p401, %p402
      %s405 = sadd.s32 %s404, 1
      %p408 = scmp.eq.s32.totalorder %s29, 1
      %p409 = scmp.ne.s32.totalorder %s404, %s406
      %p410 = scmp.eq.s32.totalorder %s29, 0
      %p411 = por %p409, %p410
      %p412 = scmp.ne.s32.totalorder %s404, %s406
      %p413 = scmp.eq.s32.totalorder %s34, 1
      %p414 = por %p412, %p413
      %p415 = scmp.ne.s32.totalorder %s406, %s407
      %p416 = scmp.eq.s32.totalorder %s34, 0
      %p417 = por %p415, %p416
      %p418 = scmp.ne.s32.totalorder %s406, %s407
      %p419 = scmp.eq.s32.totalorder %s35, 1
      %p420 = por %p418, %p419
      %p422 = scmp.ne.s32.totalorder %s407, %s421
      %p423 = scmp.eq.s32.totalorder %s35, 0
      %p424 = por %p422, %p423
      %s425 = ssub.s32 %s29, %s36
      %p426 = scmp.eq.s32.totalorder %s425, 0
      %s428 = sadd.s32 %s427, 1
      %s429 = scalar_select %p426, %s427, %s428
      %p432 = pneg %p426
      %p433 = scmp.eq.s32.totalorder %s29, 1
      %p434 = por %p432, %p433
      %p435 = scmp.ne.s32.totalorder %s427, %s430
      %p436 = scmp.eq.s32.totalorder %s29, 0
      %p437 = por %p435, %p436
      %p438 = scmp.ne.s32.totalorder %s427, %s430
      %p439 = scmp.eq.s32.totalorder %s34, 1
      %p440 = por %p438, %p439
      %p441 = scmp.ne.s32.totalorder %s430, %s431
      %p442 = scmp.eq.s32.totalorder %s34, 0
      %p443 = por %p441, %p442
      %p444 = scmp.ne.s32.totalorder %s430, %s431
      %p445 = scmp.eq.s32.totalorder %s35, 1
      %p446 = por %p444, %p445
      %p448 = scmp.ne.s32.totalorder %s431, %s447
      %p449 = scmp.eq.s32.totalorder %s35, 0
      %p450 = por %p448, %p449
      %p451 = scmp.le.s32.totalorder 1, %s29
      %p452 = scmp.lt.s32.totalorder %s29, 3
      %p453 = pnand %p451, %p452
      %p454 = pneg %p453
      // Predicated region
      $region9: #{_lambda_.3} parent=5 // pred_check
        _
      $region10: #{_lambda_.3} parent=5 // pred_check_branch
        %456 = sbr.rel (%p453) target = $region12
      $region11: #{_lambda_.3} parent=5 // pred_region
        %s457 = ssub.s32 %s29, 1
        // Predicated region
        $region13: #{_lambda_.3} parent=11 // pred_check
          %p458 = pneg %p102
        $region14: #{_lambda_.3} parent=11 // pred_check_branch
          %460 = sbr.rel (%p458) target = $region16
        $region15: #{_lambda_.3} parent=11 // pred_region
          _
        $region16: #{_lambda_.3} parent=11 // pred_fallthru
          _
        // Predicated region
        $region17: #{_lambda_.3} parent=11 // pred_check
          %p461 = pneg %p123
        $region18: #{_lambda_.3} parent=11 // pred_check_branch
          %463 = sbr.rel (%p461) target = $region20
        $region19: #{_lambda_.3} parent=11 // pred_region
          _
        $region20: #{_lambda_.3} parent=11 // pred_fallthru
          _
        // Predicated region
        $region21: #{_lambda_.3} parent=11 // pred_check
          %p464 = pneg %p144
        $region22: #{_lambda_.3} parent=11 // pred_check_branch
          %466 = sbr.rel (%p464) target = $region24
        $region23: #{_lambda_.3} parent=11 // pred_region
          _
        $region24: #{_lambda_.3} parent=11 // pred_fallthru
          _
        // Predicated region
        $region25: #{_lambda_.3} parent=11 // pred_check
          %p467 = pneg %p165
        $region26: #{_lambda_.3} parent=11 // pred_check_branch
          %469 = sbr.rel (%p467) target = $region28
        $region27: #{_lambda_.3} parent=11 // pred_region
          _
        $region28: #{_lambda_.3} parent=11 // pred_fallthru
          _
        // Predicated region
        $region29: #{_lambda_.3} parent=11 // pred_check
          %p470 = pneg %p186
        $region30: #{_lambda_.3} parent=11 // pred_check_branch
          %472 = sbr.rel (%p470) target = $region32
        $region31: #{_lambda_.3} parent=11 // pred_region
          _
        $region32: #{_lambda_.3} parent=11 // pred_fallthru
          _
        // Predicated region
        $region33: #{_lambda_.3} parent=11 // pred_check
          %p473 = pneg %p207
        $region34: #{_lambda_.3} parent=11 // pred_check_branch
          %475 = sbr.rel (%p473) target = $region36
        $region35: #{_lambda_.3} parent=11 // pred_region
          _
        $region36: #{_lambda_.3} parent=11 // pred_fallthru
          _
        // Predicated region
        $region37: #{_lambda_.3} parent=11 // pred_check
          %p476 = pneg %p228
        $region38: #{_lambda_.3} parent=11 // pred_check_branch
          %478 = sbr.rel (%p476) target = $region40
        $region39: #{_lambda_.3} parent=11 // pred_region
          _
        $region40: #{_lambda_.3} parent=11 // pred_fallthru
          _
        // Predicated region
        $region41: #{_lambda_.3} parent=11 // pred_check
          %p479 = pneg %p249
        $region42: #{_lambda_.3} parent=11 // pred_check_branch
          %481 = sbr.rel (%p479) target = $region44
        $region43: #{_lambda_.3} parent=11 // pred_region
          _
        $region44: #{_lambda_.3} parent=11 // pred_fallthru
          _
        // Predicated region
        $region45: #{_lambda_.3} parent=11 // pred_check
          %p482 = pneg %p270
        $region46: #{_lambda_.3} parent=11 // pred_check_branch
          %484 = sbr.rel (%p482) target = $region48
        $region47: #{_lambda_.3} parent=11 // pred_region
          _
        $region48: #{_lambda_.3} parent=11 // pred_fallthru
          _
        // Predicated region
        $region49: #{_lambda_.3} parent=11 // pred_check
          %p485 = pneg %p291
        $region50: #{_lambda_.3} parent=11 // pred_check_branch
          %487 = sbr.rel (%p485) target = $region52
        $region51: #{_lambda_.3} parent=11 // pred_region
          _
        $region52: #{_lambda_.3} parent=11 // pred_fallthru
          _
        // Predicated region
        $region53: #{_lambda_.3} parent=11 // pred_check
          %p488 = pneg %p312
        $region54: #{_lambda_.3} parent=11 // pred_check_branch
          %490 = sbr.rel (%p488) target = $region56
        $region55: #{_lambda_.3} parent=11 // pred_region
          _
        $region56: #{_lambda_.3} parent=11 // pred_fallthru
          _
        // Predicated region
        $region57: #{_lambda_.3} parent=11 // pred_check
          %p491 = pneg %p333
        $region58: #{_lambda_.3} parent=11 // pred_check_branch
          %493 = sbr.rel (%p491) target = $region60
        $region59: #{_lambda_.3} parent=11 // pred_region
          _
        $region60: #{_lambda_.3} parent=11 // pred_fallthru
          _
        // Predicated region
        $region61: #{_lambda_.3} parent=11 // pred_check
          %p494 = pneg %p354
        $region62: #{_lambda_.3} parent=11 // pred_check_branch
          %496 = sbr.rel (%p494) target = $region64
        $region63: #{_lambda_.3} parent=11 // pred_region
          _
        $region64: #{_lambda_.3} parent=11 // pred_fallthru
          _
        // Predicated region
        $region65: #{_lambda_.3} parent=11 // pred_check
          %p497 = pneg %p375
        $region66: #{_lambda_.3} parent=11 // pred_check_branch
          %499 = sbr.rel (%p497) target = $region68
        $region67: #{_lambda_.3} parent=11 // pred_region
          _
        $region68: #{_lambda_.3} parent=11 // pred_fallthru
          _
        // Predicated region
        $region69: #{_lambda_.3} parent=11 // pred_check
          %p500 = pneg %p396
        $region70: #{_lambda_.3} parent=11 // pred_check_branch
          %502 = sbr.rel (%p500) target = $region72
        $region71: #{_lambda_.3} parent=11 // pred_region
          _
        $region72: #{_lambda_.3} parent=11 // pred_fallthru
          _
        // Predicated region
        $region73: #{_lambda_.3} parent=11 // pred_check
          %p503 = pneg %p417
        $region74: #{_lambda_.3} parent=11 // pred_check_branch
          %505 = sbr.rel (%p503) target = $region76
        $region75: #{_lambda_.3} parent=11 // pred_region
          _
        $region76: #{_lambda_.3} parent=11 // pred_fallthru
          _
      $region12: #{_lambda_.3} parent=5 // pred_fallthru
        _
      %p506 = scmp.lt.s32.totalorder %s29, 2
      // Predicated region
      $region77: #{_lambda_.3} parent=5 // pred_check
        %p507 = pneg %p506
      $region78: #{_lambda_.3} parent=5 // pred_check_branch
        %509 = sbr.rel (%p507) target = $region80
      $region79: #{_lambda_.3} parent=5 // pred_region
        // Predicated region
        $region81: #{_lambda_.3} parent=79 // pred_check
          %p510 = pneg %p49
        $region82: #{_lambda_.3} parent=79 // pred_check_branch
          %512 = sbr.rel (%p510) target = $region84
        $region83: #{_lambda_.3} parent=79 // pred_region
          %p513 = scmp.lt.s32.totalorder %s29, 1
          %s514 = scalar_select %p513, %s29, 1
          %s515 = smul.addr %s514, 8
          %s516 = scalar_lea.vmem %s0, %s515
        $region84: #{_lambda_.3} parent=79 // pred_fallthru
          _
        // Predicated region
        $region85: #{_lambda_.3} parent=79 // pred_check
          %p517 = pneg %p75
        $region86: #{_lambda_.3} parent=79 // pred_check_branch
          %519 = sbr.rel (%p517) target = $region88
        $region87: #{_lambda_.3} parent=79 // pred_region
          %p520 = scmp.lt.s32.totalorder %s29, 1
          %s521 = scalar_select %p520, %s29, 1
          %s522 = smul.addr %s521, 8
          %s523 = scalar_lea.vmem %s1, %s522
        $region88: #{_lambda_.3} parent=79 // pred_fallthru
          _
      $region80: #{_lambda_.3} parent=5 // pred_fallthru
        _
      %p524 = scmp.le.s32.totalorder 1, %s29
      %p525 = scmp.lt.s32.totalorder %s29, 3
      %p526 = pnand %p524, %p525
      %p527 = pneg %p526
      // Predicated region
      $region89: #{_lambda_.3} parent=5 // pred_check
        _
      $region90: #{_lambda_.3} parent=5 // pred_check_branch
        %529 = sbr.rel (%p526) target = $region92
      $region91: #{_lambda_.3} parent=5 // pred_region
        %s530 = ssub.s32 %s29, 1
        %p531 = scmp.lt.s32.totalorder %s34, 1
        %s532 = scalar_select %p531, %s34, 1
        %s533 = smul.addr %s532, 8
        %s534 = scalar_lea.vmem %s0, %s533
        %p535 = pneg %p55
        %p536 = pneg %p52
        %p537 = scmp.lt.s32.totalorder %s34, 1
        %s538 = scalar_select %p537, %s34, 1
        %s539 = smul.addr %s538, 8
        %s540 = scalar_lea.vmem %s1, %s539
        %p541 = pneg %p81
        %p542 = pneg %p78
        %p543 = pneg %p102
        %p544 = pneg %p99
        %p545 = pneg %p123
        %p546 = pneg %p120
        %p547 = pneg %p144
        %p548 = pneg %p141
        %p549 = pneg %p165
        %p550 = pneg %p162
        %p551 = pneg %p186
        %p552 = pneg %p183
        %p553 = pneg %p207
        %p554 = pneg %p204
        %p555 = pneg %p228
        %p556 = pneg %p225
        %p557 = pneg %p249
        %p558 = pneg %p246
        %p559 = pneg %p270
        %p560 = pneg %p267
        %p561 = pneg %p291
        %p562 = pneg %p288
        %p563 = pneg %p312
        %p564 = pneg %p309
        %p565 = pneg %p333
        %p566 = pneg %p330
        %p567 = pneg %p354
        %p568 = pneg %p351
        %p569 = pneg %p375
        %p570 = pneg %p372
        %p571 = pneg %p396
        %p572 = pneg %p393
        %p573 = pneg %p417
        %p574 = pneg %p414
        %p575 = pneg %p443
        %p576 = pneg %p440
        %s577 = sand.u32 %s430, 1
        %s578 = scalar_lea.sflag [#allocation4], %s577
        %s579 = sand.u32 %s430, 1
        %s580 = smul.addr %s579, 8
        %s581 = scalar_lea.vmem [#allocation3], %s580
        %p582 = scmp.lt.s32.totalorder %s34, 1
        %s583 = scalar_select %p582, %s34, 1
        %s584 = smul.addr %s583, 8
        %s585 = scalar_lea.vmem %s0, %s584
        %p586 = scmp.lt.s32.totalorder %s34, 1
        %s587 = scalar_select %p586, %s34, 1
        %s588 = smul.addr %s587, 8
        %s589 = scalar_lea.vmem %s1, %s588
        %v590 = vld [vmem:[%s589] sm:$0xff]
        %v591 = vld [vmem:[%s2] sm:$0x1]
        %593 = vset.pattern.permute.xlu0 0
        %594 = vperm.xlu0 %593, %v590
        %v595 = vpop.permute.xlu0 %594
        %v598 = vlaneseq
        %v599 = vshrl.u32 %v598, 7
        %v600 = vsub.s32 0, %v599
        %v601 = vrot.slane %v591, %v600
        %v603 = vmul.f32 %v595, %v601
        %v604 = vld [vmem:[%s3] sm:$0x1]
        %v606 = vlaneseq
        %v607 = vshrl.u32 %v606, 7
        %v608 = vsub.s32 0, %v607
        %v609 = vrot.slane %v604, %v608
        %v611 = vadd.f32 %v603, %v609
        %v612 = vld [vmem:[%s585] sm:$0xff]
        %v614 = vcombine.high %v611, %v611
        %v616 = vunpack.c.l.s4 1966171168
        %v617 = vunpack.c.0.s8 %v616
        %v618 = vlaneseq
        %v619 = vshrl.u32 %v618, 7
        %v620 = vsub.s32 %v617, %v619
        %v621 = vrot.slane %v611, %v620
        %v623 = vunpack.c.l.s4 1966171168
        %v624 = vunpack.c.0.s8 %v623
        %v625 = vlaneseq
        %v626 = vshrl.u32 %v625, 7
        %v627 = vsub.s32 %v624, %v626
        %v628 = vrot.slane %v614, %v627
        %v629 = vcombine.high %v621, %v621
        %v630 = vcombine.high %v628, %v628
        %v632 = vunpack.c.l.s4 1966171168
        %v633 = vunpack.c.0.s8 %v632
        %v634 = vlaneseq
        %v635 = vshrl.u32 %v634, 7
        %v636 = vsub.s32 %v633, %v635
        %v637 = vrot.slane %v621, %v636
        %v639 = vunpack.c.l.s4 1966171168
        %v640 = vunpack.c.0.s8 %v639
        %v641 = vlaneseq
        %v642 = vshrl.u32 %v641, 7
        %v643 = vsub.s32 %v640, %v642
        %v644 = vrot.slane %v628, %v643
        %v646 = vunpack.c.l.s4 1966171168
        %v647 = vunpack.c.0.s8 %v646
        %v648 = vlaneseq
        %v649 = vshrl.u32 %v648, 7
        %v650 = vsub.s32 %v647, %v649
        %v651 = vrot.slane %v629, %v650
        %v653 = vunpack.c.l.s4 1966171168
        %v654 = vunpack.c.0.s8 %v653
        %v655 = vlaneseq
        %v656 = vshrl.u32 %v655, 7
        %v657 = vsub.s32 %v654, %v656
        %v658 = vrot.slane %v630, %v657
        %v659 = vcombine.high %v637, %v637
        %v660 = vcombine.high %v644, %v644
        %v661 = vcombine.high %v651, %v651
        %v662 = vcombine.high %v658, %v658
        %v663 = vlaneseq
        %v664 = vshrl.u32 %v663, 7
        %v665 = vsub.s32 0, %v664
        %v666 = vrot.slane %v637, %v665
        %v667 = vlaneseq
        %v668 = vshrl.u32 %v667, 7
        %v669 = vsub.s32 0, %v668
        %v670 = vrot.slane %v651, %v669
        %v671 = vlaneseq
        %v672 = vshrl.u32 %v671, 7
        %v673 = vsub.s32 0, %v672
        %v674 = vrot.slane %v659, %v673
        %v675 = vlaneseq
        %v676 = vshrl.u32 %v675, 7
        %v677 = vsub.s32 0, %v676
        %v678 = vrot.slane %v661, %v677
        %v679 = vlaneseq
        %v680 = vshrl.u32 %v679, 7
        %v681 = vsub.s32 0, %v680
        %v682 = vrot.slane %v644, %v681
        %v683 = vlaneseq
        %v684 = vshrl.u32 %v683, 7
        %v685 = vsub.s32 0, %v684
        %v686 = vrot.slane %v658, %v685
        %v687 = vlaneseq
        %v688 = vshrl.u32 %v687, 7
        %v689 = vsub.s32 0, %v688
        %v690 = vrot.slane %v660, %v689
        %v691 = vlaneseq
        %v692 = vshrl.u32 %v691, 7
        %v693 = vsub.s32 0, %v692
        %v694 = vrot.slane %v662, %v693
        %v703 = vadd.f32 %v612, %v666
        %v704 = vadd.f32 %v612, %v670
        %v705 = vadd.f32 %v612, %v674
        %v706 = vadd.f32 %v612, %v678
        %v707 = vadd.f32 %v612, %v682
        %v708 = vadd.f32 %v612, %v686
        %v709 = vadd.f32 %v612, %v690
        %v710 = vadd.f32 %v612, %v694
        %v711 = vld [vmem:[%s4] sm:$0x1]
        %v712 = vld [vmem:[%s5] sm:$0x1]
        %vm713 = vcmask 261120
        %v714 = vsel %vm713, %v703, 0.0
        %715 = vadd.xlane.f32.xlu0 %v714
        %v716 = vpop.xlane.xlu0 %715
        %v717 = vsel %vm713, %v704, 0.0
        %718 = vadd.xlane.f32.xlu0 %v717
        %v719 = vpop.xlane.xlu0 %718
        %v720 = vsel %vm713, %v705, 0.0
        %721 = vadd.xlane.f32.xlu0 %v720
        %v722 = vpop.xlane.xlu0 %721
        %v723 = vsel %vm713, %v706, 0.0
        %724 = vadd.xlane.f32.xlu0 %v723
        %v725 = vpop.xlane.xlu0 %724
        %v726 = vsel %vm713, %v707, 0.0
        %727 = vadd.xlane.f32.xlu0 %v726
        %v728 = vpop.xlane.xlu0 %727
        %v729 = vsel %vm713, %v708, 0.0
        %730 = vadd.xlane.f32.xlu0 %v729
        %v731 = vpop.xlane.xlu0 %730
        %v732 = vsel %vm713, %v709, 0.0
        %733 = vadd.xlane.f32.xlu0 %v732
        %v734 = vpop.xlane.xlu0 %733
        %v735 = vsel %vm713, %v710, 0.0
        %736 = vadd.xlane.f32.xlu0 %v735
        %v737 = vpop.xlane.xlu0 %736
        %v738 = vrcp.pop 32.0
        %v739 = vmul.f32 %v716, %v738
        %v740 = vmul.f32 %v719, %v738
        %v741 = vmul.f32 %v722, %v738
        %v742 = vmul.f32 %v725, %v738
        %v743 = vmul.f32 %v728, %v738
        %v744 = vmul.f32 %v731, %v738
        %v745 = vmul.f32 %v734, %v738
        %v746 = vmul.f32 %v737, %v738
        %v747 = vsub.f32 %v703, %v739
        %v748 = vsub.f32 %v704, %v740
        %v749 = vsub.f32 %v705, %v741
        %v750 = vsub.f32 %v706, %v742
        %v751 = vsub.f32 %v707, %v743
        %v752 = vsub.f32 %v708, %v744
        %v753 = vsub.f32 %v709, %v745
        %v754 = vsub.f32 %v710, %v746
        %v755 = vmul.f32 %v747, %v747
        %v756 = vmul.f32 %v748, %v748
        %v757 = vmul.f32 %v749, %v749
        %v758 = vmul.f32 %v750, %v750
        %v759 = vmul.f32 %v751, %v751
        %v760 = vmul.f32 %v752, %v752
        %v761 = vmul.f32 %v753, %v753
        %v762 = vmul.f32 %v754, %v754
        %v763 = vsel %vm713, %v755, 0.0
        %764 = vadd.xlane.f32.xlu0 %v763
        %v765 = vpop.xlane.xlu0 %764
        %v766 = vsel %vm713, %v756, 0.0
        %767 = vadd.xlane.f32.xlu0 %v766
        %v768 = vpop.xlane.xlu0 %767
        %v769 = vsel %vm713, %v757, 0.0
        %770 = vadd.xlane.f32.xlu0 %v769
        %v771 = vpop.xlane.xlu0 %770
        %v772 = vsel %vm713, %v758, 0.0
        %773 = vadd.xlane.f32.xlu0 %v772
        %v774 = vpop.xlane.xlu0 %773
        %v775 = vsel %vm713, %v759, 0.0
        %776 = vadd.xlane.f32.xlu0 %v775
        %v777 = vpop.xlane.xlu0 %776
        %v778 = vsel %vm713, %v760, 0.0
        %779 = vadd.xlane.f32.xlu0 %v778
        %v780 = vpop.xlane.xlu0 %779
        %v781 = vsel %vm713, %v761, 0.0
        %782 = vadd.xlane.f32.xlu0 %v781
        %v783 = vpop.xlane.xlu0 %782
        %v784 = vsel %vm713, %v762, 0.0
        %785 = vadd.xlane.f32.xlu0 %v784
        %v786 = vpop.xlane.xlu0 %785
        %v787 = vmul.f32 %v765, %v738
        %v788 = vmul.f32 %v768, %v738
        %v789 = vmul.f32 %v771, %v738
        %v790 = vmul.f32 %v774, %v738
        %v791 = vmul.f32 %v777, %v738
        %v792 = vmul.f32 %v780, %v738
        %v793 = vmul.f32 %v783, %v738
        %v794 = vmul.f32 %v786, %v738
        %v795 = vadd.f32 %v787, 1e-05
        %v796 = vadd.f32 %v788, 1e-05
        %v797 = vadd.f32 %v789, 1e-05
        %v798 = vadd.f32 %v790, 1e-05
        %v799 = vadd.f32 %v791, 1e-05
        %v800 = vadd.f32 %v792, 1e-05
        %v801 = vadd.f32 %v793, 1e-05
        %v802 = vadd.f32 %v794, 1e-05
        %v803 = vrsqrt.pop %v795
        %v804 = vrsqrt.pop %v796
        %v805 = vrsqrt.pop %v797
        %v806 = vrsqrt.pop %v798
        %v807 = vrsqrt.pop %v799
        %v808 = vrsqrt.pop %v800
        %v809 = vrsqrt.pop %v801
        %v810 = vrsqrt.pop %v802
        %v811 = vmul.f32 %v747, %v803
        %v812 = vmul.f32 %v748, %v804
        %v813 = vmul.f32 %v749, %v805
        %v814 = vmul.f32 %v750, %v806
        %v815 = vmul.f32 %v751, %v807
        %v816 = vmul.f32 %v752, %v808
        %v817 = vmul.f32 %v753, %v809
        %v818 = vmul.f32 %v754, %v810
        %v820 = vlaneseq
        %v821 = vshrl.u32 %v820, 7
        %v822 = vsub.s32 0, %v821
        %v823 = vrot.slane %v711, %v822
        %v825 = vmul.f32 %v811, %v823
        %v826 = vmul.f32 %v812, %v823
        %v827 = vmul.f32 %v813, %v823
        %v828 = vmul.f32 %v814, %v823
        %v829 = vmul.f32 %v815, %v823
        %v830 = vmul.f32 %v816, %v823
        %v831 = vmul.f32 %v817, %v823
        %v832 = vmul.f32 %v818, %v823
        %v834 = vlaneseq
        %v835 = vshrl.u32 %v834, 7
        %v836 = vsub.s32 0, %v835
        %v837 = vrot.slane %v712, %v836
        %v839 = vadd.f32 %v825, %v837
        %v840 = vadd.f32 %v826, %v837
        %v841 = vadd.f32 %v827, %v837
        %v842 = vadd.f32 %v828, %v837
        %v843 = vadd.f32 %v829, %v837
        %v844 = vadd.f32 %v830, %v837
        %v845 = vadd.f32 %v831, %v837
        %v846 = vadd.f32 %v832, %v837
        %v847 = vld [vmem:[%s6] sm:$0xff]
        %v848 = vld [vmem:[%s6 + $0x8] sm:$0xff]
        %v849 = vld [vmem:[%s6 + $0x10] sm:$0xff]
        %v850 = vld [vmem:[%s6 + $0x18] sm:$0xff]
        %v851 = vld [vmem:[%s7] sm:$0x1]
        %v853 = vlaneseq
        %v854 = vshrl.u32 %v853, 7
        %v855 = vsub.s32 0, %v854
        %v856 = vrot.slane %v851, %v855
        %v859 = vsel %vm713, %v839, 0
        %v862 = vsel %vm713, %v840, 0
        %v865 = vsel %vm713, %v841, 0
        %v868 = vsel %vm713, %v842, 0
        %v871 = vsel %vm713, %v843, 0
        %v874 = vsel %vm713, %v844, 0
        %v877 = vsel %vm713, %v845, 0
        %v880 = vsel %vm713, %v846, 0
        %882 = vmatprep.subr.mxu0 0.0
        %883 = vmatpush1.msra.mxu0 %v847
        %884 = vmatprep.subr.mxu0 0.0
        %885 = vmatpush1.msra.mxu0 %v848
        %886 = vmatprep.subr.mxu0 0.0
        %887 = vmatpush1.msra.mxu0 %v849
        %888 = vmatprep.subr.mxu0 0.0
        %889 = vmatpush1.msra.mxu0 %v850
        %890 = vmatprep.subr.mxu0 0.0
        %891 = vmatpush1.msra.mxu0 0.0
        %892 = vmatprep.subr.mxu0 0.0
        %893 = vmatpush1.msra.mxu0 0.0
        %894 = vmatprep.subr.mxu0 0.0
        %895 = vmatpush1.msra.mxu0 0.0
        %896 = vmatprep.subr.mxu0 0.0
        %897 = vmatpush1.msra.mxu0 0.0
        %898 = vmatprep.subr.mxu0 0.0
        %899 = vmatpush1.msra.mxu0 0.0
        %900 = vmatprep.subr.mxu0 0.0
        %901 = vmatpush1.msra.mxu0 0.0
        %902 = vmatprep.subr.mxu0 0.0
        %903 = vmatpush1.msra.mxu0 0.0
        %904 = vmatprep.subr.mxu0 0.0
        %905 = vmatpush1.msra.mxu0 0.0
        %906 = vmatprep.subr.mxu0 0.0
        %907 = vmatpush1.msra.mxu0 0.0
        %908 = vmatprep.subr.mxu0 0.0
        %909 = vmatpush1.msra.mxu0 0.0
        %910 = vmatprep.subr.mxu0 0.0
        %911 = vmatpush1.msra.mxu0 0.0
        %912 = vmatprep.subr.mxu0 0.0
        %913 = vmatpush1.msra.mxu0 0.0
        %914 = vmatprep.subr.mxu0 0.0
        %915 = vmatpush1.msra.mxu0 0.0
        %916 = vmatprep.subr.mxu0 0.0
        %917 = vmatpush1.msra.mxu0 0.0
        %918 = vmatprep.subr.mxu0 0.0
        %919 = vmatpush1.msra.mxu0 0.0
        %920 = vmatprep.subr.mxu0 0.0
        %921 = vmatpush1.msra.mxu0 0.0
        %922 = vmatprep.subr.mxu0 0.0
        %923 = vmatpush1.msra.mxu0 0.0
        %924 = vmatprep.subr.mxu0 0.0
        %925 = vmatpush1.msra.mxu0 0.0
        %926 = vmatprep.subr.mxu0 0.0
        %927 = vmatpush1.msra.mxu0 0.0
        %928 = vmatprep.subr.mxu0 0.0
        %929 = vmatpush1.msra.mxu0 0.0
        %930 = vmatprep.subr.mxu0 0.0
        %931 = vmatpush1.msra.mxu0 0.0
        %932 = vmatprep.subr.mxu0 0.0
        %933 = vmatpush1.msra.mxu0 0.0
        %934 = vmatprep.subr.mxu0 0.0
        %935 = vmatpush1.msra.mxu0 0.0
        %936 = vmatprep.subr.mxu0 0.0
        %937 = vmatpush1.msra.mxu0 0.0
        %938 = vmatprep.subr.mxu0 0.0
        %939 = vmatpush1.msra.mxu0 0.0
        %940 = vmatprep.subr.mxu0 0.0
        %941 = vmatpush1.msra.mxu0 0.0
        %942 = vmatprep.subr.mxu0 0.0
        %943 = vmatpush1.msra.mxu0 0.0
        %944 = vmatprep.subr.mxu0 0.0
        %945 = vmatpush1.msra.mxu0 0.0
        %946 = vmatprep.mubr.f32.mxu0 0.0
        %947 = vmatmul.mubr.f32.gmra.mrb[0].mxu0 %v859
        %v948 = vpop.f32.mrb[0].mxu0
        %v949 = vadd.f32 %v856, %v948
        %v950 = vpop.f32.mrb[0].mxu0
        %951 = vmatprep.mubr.f32.mxu0 0.0
        %952 = vmatmul.mubr.f32.gmra.mrb[0].mxu0 %v862
        %v953 = vpop.f32.mrb[0].mxu0
        %v954 = vadd.f32 %v856, %v953
        %v955 = vpop.f32.mrb[0].mxu0
        %956 = vmatprep.mubr.f32.mxu0 0.0
        %957 = vmatmul.mubr.f32.gmra.mrb[0].mxu0 %v865
        %v958 = vpop.f32.mrb[0].mxu0
        %v959 = vadd.f32 %v856, %v958
        %v960 = vpop.f32.mrb[0].mxu0
        %961 = vmatprep.mubr.f32.mxu0 0.0
        %962 = vmatmul.mubr.f32.gmra.mrb[0].mxu0 %v868
        %v963 = vpop.f32.mrb[0].mxu0
        %v964 = vadd.f32 %v856, %v963
        %v965 = vpop.f32.mrb[0].mxu0
        %966 = vmatprep.mubr.f32.mxu0 0.0
        %967 = vmatmul.mubr.f32.gmra.mrb[0].mxu0 %v871
        %v968 = vpop.f32.mrb[0].mxu0
        %v969 = vadd.f32 %v856, %v968
        %v970 = vpop.f32.mrb[0].mxu0
        %971 = vmatprep.mubr.f32.mxu0 0.0
        %972 = vmatmul.mubr.f32.gmra.mrb[0].mxu0 %v874
        %v973 = vpop.f32.mrb[0].mxu0
        %v974 = vadd.f32 %v856, %v973
        %v975 = vpop.f32.mrb[0].mxu0
        %976 = vmatprep.mubr.f32.mxu0 0.0
        %977 = vmatmul.mubr.f32.gmra.mrb[0].mxu0 %v877
        %v978 = vpop.f32.mrb[0].mxu0
        %v979 = vadd.f32 %v856, %v978
        %v980 = vpop.f32.mrb[0].mxu0
        %981 = vmatprep.mubr.f32.mxu0 0.0
        %982 = vmatmul.mubr.f32.gmra.mrb[0].mxu0 %v880
        %v983 = vpop.f32.mrb[0].mxu0
        %v984 = vadd.f32 %v856, %v983
        %v985 = vpop.f32.mrb[0].mxu0
        %986 = vdwg.mxu0
        %v987 = vld [vmem:[%s8] sm:$0xff]
        %v988 = vld [vmem:[%s8 + $0x8] sm:$0xff]
        %v989 = vld [vmem:[%s8 + $0x10] sm:$0xff]
        %v990 = vld [vmem:[%s8 + $0x18] sm:$0xff]
        %v991 = vld [vmem:[%s9] sm:$0x1]
        %993 = vrot.lane.b32.xlu0 %v949, 96
        %v994 = vpop.permute.xlu0 %993
        %vm995 = vcmask 64512
        %v996 = vsel %vm995, %v949, 0
        %v998 = vsel %vm995, %v994, 0
        %1000 = vmatprep.subr.mxu0 0.0
        %1001 = vmatpush1.xpose.msra.mxu0 %v998
        %1002 = vmatprep.subr.mxu0 0.0
        %1003 = vmatpush1.xpose.msra.mxu0 0.0
        %1004 = vmatprep.subr.mxu0 0.0
        %1005 = vmatpush1.xpose.msra.mxu0 0.0
        %1006 = vmatprep.subr.mxu0 0.0
        %1007 = vmatpush1.xpose.msra.mxu0 0.0
        %1008 = vmatprep.subr.mxu0 0.0
        %1009 = vmatpush1.xpose.msra.mxu0 0.0
        %1010 = vmatprep.subr.mxu0 0.0
        %1011 = vmatpush1.xpose.msra.mxu0 0.0
        %1012 = vmatprep.subr.mxu0 0.0
        %1013 = vmatpush1.xpose.msra.mxu0 0.0
        %1014 = vmatprep.subr.mxu0 0.0
        %1015 = vmatpush1.xpose.msra.mxu0 0.0
        %1016 = vmatprep.subr.mxu0 0.0
        %1017 = vmatpush1.xpose.msra.mxu0 0.0
        %1018 = vmatprep.subr.mxu0 0.0
        %1019 = vmatpush1.xpose.msra.mxu0 0.0
        %1020 = vmatprep.subr.mxu0 0.0
        %1021 = vmatpush1.xpose.msra.mxu0 0.0
        %1022 = vmatprep.subr.mxu0 0.0
        %1023 = vmatpush1.xpose.msra.mxu0 0.0
        %1024 = vmatprep.subr.mxu0 0.0
        %1025 = vmatpush1.xpose.msra.mxu0 0.0
        %1026 = vmatprep.subr.mxu0 0.0
        %1027 = vmatpush1.xpose.msra.mxu0 0.0
        %1028 = vmatprep.subr.mxu0 0.0
        %1029 = vmatpush1.xpose.msra.mxu0 0.0
        %1030 = vmatprep.subr.mxu0 0.0
        %1031 = vmatpush1.xpose.msra.mxu0 0.0
        %1032 = vmatprep.subr.mxu0 0.0
        %1033 = vmatpush1.xpose.msra.mxu0 0.0
        %1034 = vmatprep.subr.mxu0 0.0
        %1035 = vmatpush1.xpose.msra.mxu0 0.0
        %1036 = vmatprep.subr.mxu0 0.0
        %1037 = vmatpush1.xpose.msra.mxu0 0.0
        %1038 = vmatprep.subr.mxu0 0.0
        %1039 = vmatpush1.xpose.msra.mxu0 0.0
        %1040 = vmatprep.subr.mxu0 0.0
        %1041 = vmatpush1.xpose.msra.mxu0 0.0
        %1042 = vmatprep.subr.mxu0 0.0
        %1043 = vmatpush1.xpose.msra.mxu0 0.0
        %1044 = vmatprep.subr.mxu0 0.0
        %1045 = vmatpush1.xpose.msra.mxu0 0.0
        %1046 = vmatprep.subr.mxu0 0.0
        %1047 = vmatpush1.xpose.msra.mxu0 0.0
        %1048 = vmatprep.subr.mxu0 0.0
        %1049 = vmatpush1.xpose.msra.mxu0 0.0
        %1050 = vmatprep.subr.mxu0 0.0
        %1051 = vmatpush1.xpose.msra.mxu0 0.0
        %1052 = vmatprep.subr.mxu0 0.0
        %1053 = vmatpush1.xpose.msra.mxu0 0.0
        %1054 = vmatprep.subr.mxu0 0.0
        %1055 = vmatpush1.xpose.msra.mxu0 0.0
        %1056 = vmatprep.subr.mxu0 0.0
        %1057 = vmatpush1.xpose.msra.mxu0 0.0
        %1058 = vmatprep.subr.mxu0 0.0
        %1059 = vmatpush1.xpose.msra.mxu0 0.0
        %1060 = vmatprep.subr.mxu0 0.0
        %1061 = vmatpush1.xpose.msra.mxu0 0.0
        %1062 = vmatprep.subr.mxu0 0.0
        %1063 = vmatpush1.xpose.msra.mxu0 0.0
        %1064 = vmatprep.mubr.f32.mxu0 0.0
        %1065 = vmatmul.mubr.f32.gmra.mrb[0].mxu0 %v996
        %v1066 = vpop.f32.mrb[0].mxu0
        %v1067 = vadd.f32 0.0, %v1066
        %v1068 = vpop.f32.mrb[0].mxu0
        %1069 = vdwg.mxu0
        %1071 = vrot.lane.b32.xlu0 %v954, 96
        %v1072 = vpop.permute.xlu0 %1071
        %v1073 = vsel %vm995, %v954, 0
        %v1075 = vsel %vm995, %v1072, 0
        %1077 = vmatprep.subr.mxu0 0.0
        %1078 = vmatpush1.xpose.msra.mxu0 %v1075
        %1079 = vmatprep.subr.mxu0 0.0
        %1080 = vmatpush1.xpose.msra.mxu0 0.0
        %1081 = vmatprep.subr.mxu0 0.0
        %1082 = vmatpush1.xpose.msra.mxu0 0.0
        %1083 = vmatprep.subr.mxu0 0.0
        %1084 = vmatpush1.xpose.msra.mxu0 0.0
        %1085 = vmatprep.subr.mxu0 0.0
        %1086 = vmatpush1.xpose.msra.mxu0 0.0
        %1087 = vmatprep.subr.mxu0 0.0
        %1088 = vmatpush1.xpose.msra.mxu0 0.0
        %1089 = vmatprep.subr.mxu0 0.0
        %1090 = vmatpush1.xpose.msra.mxu0 0.0
        %1091 = vmatprep.subr.mxu0 0.0
        %1092 = vmatpush1.xpose.msra.mxu0 0.0
        %1093 = vmatprep.subr.mxu0 0.0
        %1094 = vmatpush1.xpose.msra.mxu0 0.0
        %1095 = vmatprep.subr.mxu0 0.0
        %1096 = vmatpush1.xpose.msra.mxu0 0.0
        %1097 = vmatprep.subr.mxu0 0.0
        %1098 = vmatpush1.xpose.msra.mxu0 0.0
        %1099 = vmatprep.subr.mxu0 0.0
        %1100 = vmatpush1.xpose.msra.mxu0 0.0
        %1101 = vmatprep.subr.mxu0 0.0
        %1102 = vmatpush1.xpose.msra.mxu0 0.0
        %1103 = vmatprep.subr.mxu0 0.0
        %1104 = vmatpush1.xpose.msra.mxu0 0.0
        %1105 = vmatprep.subr.mxu0 0.0
        %1106 = vmatpush1.xpose.msra.mxu0 0.0
        %1107 = vmatprep.subr.mxu0 0.0
        %1108 = vmatpush1.xpose.msra.mxu0 0.0
        %1109 = vmatprep.subr.mxu0 0.0
        %1110 = vmatpush1.xpose.msra.mxu0 0.0
        %1111 = vmatprep.subr.mxu0 0.0
        %1112 = vmatpush1.xpose.msra.mxu0 0.0
        %1113 = vmatprep.subr.mxu0 0.0
        %1114 = vmatpush1.xpose.msra.mxu0 0.0
        %1115 = vmatprep.subr.mxu0 0.0
        %1116 = vmatpush1.xpose.msra.mxu0 0.0
        %1117 = vmatprep.subr.mxu0 0.0
        %1118 = vmatpush1.xpose.msra.mxu0 0.0
        %1119 = vmatprep.subr.mxu0 0.0
        %1120 = vmatpush1.xpose.msra.mxu0 0.0
        %1121 = vmatprep.subr.mxu0 0.0
        %1122 = vmatpush1.xpose.msra.mxu0 0.0
        %1123 = vmatprep.subr.mxu0 0.0
        %1124 = vmatpush1.xpose.msra.mxu0 0.0
        %1125 = vmatprep.subr.mxu0 0.0
        %1126 = vmatpush1.xpose.msra.mxu0 0.0
        %1127 = vmatprep.subr.mxu0 0.0
        %1128 = vmatpush1.xpose.msra.mxu0 0.0
        %1129 = vmatprep.subr.mxu0 0.0
        %1130 = vmatpush1.xpose.msra.mxu0 0.0
        %1131 = vmatprep.subr.mxu0 0.0
        %1132 = vmatpush1.xpose.msra.mxu0 0.0
        %1133 = vmatprep.subr.mxu0 0.0
        %1134 = vmatpush1.xpose.msra.mxu0 0.0
        %1135 = vmatprep.subr.mxu0 0.0
        %1136 = vmatpush1.xpose.msra.mxu0 0.0
        %1137 = vmatprep.subr.mxu0 0.0
        %1138 = vmatpush1.xpose.msra.mxu0 0.0
        %1139 = vmatprep.subr.mxu0 0.0
        %1140 = vmatpush1.xpose.msra.mxu0 0.0
        %1141 = vmatprep.mubr.f32.mxu0 0.0
        %1142 = vmatmul.mubr.f32.gmra.mrb[0].mxu0 %v1073
        %v1143 = vpop.f32.mrb[0].mxu0
        %v1144 = vadd.f32 0.0, %v1143
        %v1145 = vpop.f32.mrb[0].mxu0
        %1146 = vdwg.mxu0
        %1148 = vrot.lane.b32.xlu0 %v959, 96
        %v1149 = vpop.permute.xlu0 %1148
        %v1150 = vsel %vm995, %v959, 0
        %v1152 = vsel %vm995, %v1149, 0
        %1154 = vmatprep.subr.mxu0 0.0
        %1155 = vmatpush1.xpose.msra.mxu0 %v1152
        %1156 = vmatprep.subr.mxu0 0.0
        %1157 = vmatpush1.xpose.msra.mxu0 0.0
        %1158 = vmatprep.subr.mxu0 0.0
        %1159 = vmatpush1.xpose.msra.mxu0 0.0
        %1160 = vmatprep.subr.mxu0 0.0
        %1161 = vmatpush1.xpose.msra.mxu0 0.0
        %1162 = vmatprep.subr.mxu0 0.0
        %1163 = vmatpush1.xpose.msra.mxu0 0.0
        %1164 = vmatprep.subr.mxu0 0.0
        %1165 = vmatpush1.xpose.msra.mxu0 0.0
        %1166 = vmatprep.subr.mxu0 0.0
        %1167 = vmatpush1.xpose.msra.mxu0 0.0
        %1168 = vmatprep.subr.mxu0 0.0
        %1169 = vmatpush1.xpose.msra.mxu0 0.0
        %1170 = vmatprep.subr.mxu0 0.0
        %1171 = vmatpush1.xpose.msra.mxu0 0.0
        %1172 = vmatprep.subr.mxu0 0.0
        %1173 = vmatpush1.xpose.msra.mxu0 0.0
        %1174 = vmatprep.subr.mxu0 0.0
        %1175 = vmatpush1.xpose.msra.mxu0 0.0
        %1176 = vmatprep.subr.mxu0 0.0
        %1177 = vmatpush1.xpose.msra.mxu0 0.0
        %1178 = vmatprep.subr.mxu0 0.0
        %1179 = vmatpush1.xpose.msra.mxu0 0.0
        %1180 = vmatprep.subr.mxu0 0.0
        %1181 = vmatpush1.xpose.msra.mxu0 0.0
        %1182 = vmatprep.subr.mxu0 0.0
        %1183 = vmatpush1.xpose.msra.mxu0 0.0
        %1184 = vmatprep.subr.mxu0 0.0
        %1185 = vmatpush1.xpose.msra.mxu0 0.0
        %1186 = vmatprep.subr.mxu0 0.0
        %1187 = vmatpush1.xpose.msra.mxu0 0.0
        %1188 = vmatprep.subr.mxu0 0.0
        %1189 = vmatpush1.xpose.msra.mxu0 0.0
        %1190 = vmatprep.subr.mxu0 0.0
        %1191 = vmatpush1.xpose.msra.mxu0 0.0
        %1192 = vmatprep.subr.mxu0 0.0
        %1193 = vmatpush1.xpose.msra.mxu0 0.0
        %1194 = vmatprep.subr.mxu0 0.0
        %1195 = vmatpush1.xpose.msra.mxu0 0.0
        %1196 = vmatprep.subr.mxu0 0.0
        %1197 = vmatpush1.xpose.msra.mxu0 0.0
        %1198 = vmatprep.subr.mxu0 0.0
        %1199 = vmatpush1.xpose.msra.mxu0 0.0
        %1200 = vmatprep.subr.mxu0 0.0
        %1201 = vmatpush1.xpose.msra.mxu0 0.0
        %1202 = vmatprep.subr.mxu0 0.0
        %1203 = vmatpush1.xpose.msra.mxu0 0.0
        %1204 = vmatprep.subr.mxu0 0.0
        %1205 = vmatpush1.xpose.msra.mxu0 0.0
        %1206 = vmatprep.subr.mxu0 0.0
        %1207 = vmatpush1.xpose.msra.mxu0 0.0
        %1208 = vmatprep.subr.mxu0 0.0
        %1209 = vmatpush1.xpose.msra.mxu0 0.0
        %1210 = vmatprep.subr.mxu0 0.0
        %1211 = vmatpush1.xpose.msra.mxu0 0.0
        %1212 = vmatprep.subr.mxu0 0.0
        %1213 = vmatpush1.xpose.msra.mxu0 0.0
        %1214 = vmatprep.subr.mxu0 0.0
        %1215 = vmatpush1.xpose.msra.mxu0 0.0
        %1216 = vmatprep.subr.mxu0 0.0
        %1217 = vmatpush1.xpose.msra.mxu0 0.0
        %1218 = vmatprep.mubr.f32.mxu0 0.0
        %1219 = vmatmul.mubr.f32.gmra.mrb[0].mxu0 %v1150
        %v1220 = vpop.f32.mrb[0].mxu0
        %v1221 = vadd.f32 0.0, %v1220
        %v1222 = vpop.f32.mrb[0].mxu0
        %1223 = vdwg.mxu0
        %1225 = vrot.lane.b32.xlu0 %v964, 96
        %v1226 = vpop.permute.xlu0 %1225
        %v1227 = vsel %vm995, %v964, 0
        %v1229 = vsel %vm995, %v1226, 0
        %1231 = vmatprep.subr.mxu0 0.0
        %1232 = vmatpush1.xpose.msra.mxu0 %v1229
        %1233 = vmatprep.subr.mxu0 0.0
        %1234 = vmatpush1.xpose.msra.mxu0 0.0
        %1235 = vmatprep.subr.mxu0 0.0
        %1236 = vmatpush1.xpose.msra.mxu0 0.0
        %1237 = vmatprep.subr.mxu0 0.0
        %1238 = vmatpush1.xpose.msra.mxu0 0.0
        %1239 = vmatprep.subr.mxu0 0.0
        %1240 = vmatpush1.xpose.msra.mxu0 0.0
        %1241 = vmatprep.subr.mxu0 0.0
        %1242 = vmatpush1.xpose.msra.mxu0 0.0
        %1243 = vmatprep.subr.mxu0 0.0
        %1244 = vmatpush1.xpose.msra.mxu0 0.0
        %1245 = vmatprep.subr.mxu0 0.0
        %1246 = vmatpush1.xpose.msra.mxu0 0.0
        %1247 = vmatprep.subr.mxu0 0.0
        %1248 = vmatpush1.xpose.msra.mxu0 0.0
        %1249 = vmatprep.subr.mxu0 0.0
        %1250 = vmatpush1.xpose.msra.mxu0 0.0
        %1251 = vmatprep.subr.mxu0 0.0
        %1252 = vmatpush1.xpose.msra.mxu0 0.0
        %1253 = vmatprep.subr.mxu0 0.0
        %1254 = vmatpush1.xpose.msra.mxu0 0.0
        %1255 = vmatprep.subr.mxu0 0.0
        %1256 = vmatpush1.xpose.msra.mxu0 0.0
        %1257 = vmatprep.subr.mxu0 0.0
        %1258 = vmatpush1.xpose.msra.mxu0 0.0
        %1259 = vmatprep.subr.mxu0 0.0
        %1260 = vmatpush1.xpose.msra.mxu0 0.0
        %1261 = vmatprep.subr.mxu0 0.0
        %1262 = vmatpush1.xpose.msra.mxu0 0.0
        %1263 = vmatprep.subr.mxu0 0.0
        %1264 = vmatpush1.xpose.msra.mxu0 0.0
        %1265 = vmatprep.subr.mxu0 0.0
        %1266 = vmatpush1.xpose.msra.mxu0 0.0
        %1267 = vmatprep.subr.mxu0 0.0
        %1268 = vmatpush1.xpose.msra.mxu0 0.0
        %1269 = vmatprep.subr.mxu0 0.0
        %1270 = vmatpush1.xpose.msra.mxu0 0.0
        %1271 = vmatprep.subr.mxu0 0.0
        %1272 = vmatpush1.xpose.msra.mxu0 0.0
        %1273 = vmatprep.subr.mxu0 0.0
        %1274 = vmatpush1.xpose.msra.mxu0 0.0
        %1275 = vmatprep.subr.mxu0 0.0
        %1276 = vmatpush1.xpose.msra.mxu0 0.0
        %1277 = vmatprep.subr.mxu0 0.0
        %1278 = vmatpush1.xpose.msra.mxu0 0.0
        %1279 = vmatprep.subr.mxu0 0.0
        %1280 = vmatpush1.xpose.msra.mxu0 0.0
        %1281 = vmatprep.subr.mxu0 0.0
        %1282 = vmatpush1.xpose.msra.mxu0 0.0
        %1283 = vmatprep.subr.mxu0 0.0
        %1284 = vmatpush1.xpose.msra.mxu0 0.0
        %1285 = vmatprep.subr.mxu0 0.0
        %1286 = vmatpush1.xpose.msra.mxu0 0.0
        %1287 = vmatprep.subr.mxu0 0.0
        %1288 = vmatpush1.xpose.msra.mxu0 0.0
        %1289 = vmatprep.subr.mxu0 0.0
        %1290 = vmatpush1.xpose.msra.mxu0 0.0
        %1291 = vmatprep.subr.mxu0 0.0
        %1292 = vmatpush1.xpose.msra.mxu0 0.0
        %1293 = vmatprep.subr.mxu0 0.0
        %1294 = vmatpush1.xpose.msra.mxu0 0.0
        %1295 = vmatprep.mubr.f32.mxu0 0.0
        %1296 = vmatmul.mubr.f32.gmra.mrb[0].mxu0 %v1227
        %v1297 = vpop.f32.mrb[0].mxu0
        %v1298 = vadd.f32 0.0, %v1297
        %v1299 = vpop.f32.mrb[0].mxu0
        %1300 = vdwg.mxu0
        %1302 = vrot.lane.b32.xlu0 %v969, 96
        %v1303 = vpop.permute.xlu0 %1302
        %v1304 = vsel %vm995, %v969, 0
        %v1306 = vsel %vm995, %v1303, 0
        %1308 = vmatprep.subr.mxu0 0.0
        %1309 = vmatpush1.xpose.msra.mxu0 %v1306
        %1310 = vmatprep.subr.mxu0 0.0
        %1311 = vmatpush1.xpose.msra.mxu0 0.0
        %1312 = vmatprep.subr.mxu0 0.0
        %1313 = vmatpush1.xpose.msra.mxu0 0.0
        %1314 = vmatprep.subr.mxu0 0.0
        %1315 = vmatpush1.xpose.msra.mxu0 0.0
        %1316 = vmatprep.subr.mxu0 0.0
        %1317 = vmatpush1.xpose.msra.mxu0 0.0
        %1318 = vmatprep.subr.mxu0 0.0
        %1319 = vmatpush1.xpose.msra.mxu0 0.0
        %1320 = vmatprep.subr.mxu0 0.0
        %1321 = vmatpush1.xpose.msra.mxu0 0.0
        %1322 = vmatprep.subr.mxu0 0.0
        %1323 = vmatpush1.xpose.msra.mxu0 0.0
        %1324 = vmatprep.subr.mxu0 0.0
        %1325 = vmatpush1.xpose.msra.mxu0 0.0
        %1326 = vmatprep.subr.mxu0 0.0
        %1327 = vmatpush1.xpose.msra.mxu0 0.0
        %1328 = vmatprep.subr.mxu0 0.0
        %1329 = vmatpush1.xpose.msra.mxu0 0.0
        %1330 = vmatprep.subr.mxu0 0.0
        %1331 = vmatpush1.xpose.msra.mxu0 0.0
        %1332 = vmatprep.subr.mxu0 0.0
        %1333 = vmatpush1.xpose.msra.mxu0 0.0
        %1334 = vmatprep.subr.mxu0 0.0
        %1335 = vmatpush1.xpose.msra.mxu0 0.0
        %1336 = vmatprep.subr.mxu0 0.0
        %1337 = vmatpush1.xpose.msra.mxu0 0.0
        %1338 = vmatprep.subr.mxu0 0.0
        %1339 = vmatpush1.xpose.msra.mxu0 0.0
        %1340 = vmatprep.subr.mxu0 0.0
        %1341 = vmatpush1.xpose.msra.mxu0 0.0
        %1342 = vmatprep.subr.mxu0 0.0
        %1343 = vmatpush1.xpose.msra.mxu0 0.0
        %1344 = vmatprep.subr.mxu0 0.0
        %1345 = vmatpush1.xpose.msra.mxu0 0.0
        %1346 = vmatprep.subr.mxu0 0.0
        %1347 = vmatpush1.xpose.msra.mxu0 0.0
        %1348 = vmatprep.subr.mxu0 0.0
        %1349 = vmatpush1.xpose.msra.mxu0 0.0
        %1350 = vmatprep.subr.mxu0 0.0
        %1351 = vmatpush1.xpose.msra.mxu0 0.0
        %1352 = vmatprep.subr.mxu0 0.0
        %1353 = vmatpush1.xpose.msra.mxu0 0.0
        %1354 = vmatprep.subr.mxu0 0.0
        %1355 = vmatpush1.xpose.msra.mxu0 0.0
        %1356 = vmatprep.subr.mxu0 0.0
        %1357 = vmatpush1.xpose.msra.mxu0 0.0
        %1358 = vmatprep.subr.mxu0 0.0
        %1359 = vmatpush1.xpose.msra.mxu0 0.0
        %1360 = vmatprep.subr.mxu0 0.0
        %1361 = vmatpush1.xpose.msra.mxu0 0.0
        %1362 = vmatprep.subr.mxu0 0.0
        %1363 = vmatpush1.xpose.msra.mxu0 0.0
        %1364 = vmatprep.subr.mxu0 0.0
        %1365 = vmatpush1.xpose.msra.mxu0 0.0
        %1366 = vmatprep.subr.mxu0 0.0
        %1367 = vmatpush1.xpose.msra.mxu0 0.0
        %1368 = vmatprep.subr.mxu0 0.0
        %1369 = vmatpush1.xpose.msra.mxu0 0.0
        %1370 = vmatprep.subr.mxu0 0.0
        %1371 = vmatpush1.xpose.msra.mxu0 0.0
        %1372 = vmatprep.mubr.f32.mxu0 0.0
        %1373 = vmatmul.mubr.f32.gmra.mrb[0].mxu0 %v1304
        %v1374 = vpop.f32.mrb[0].mxu0
        %v1375 = vadd.f32 0.0, %v1374
        %v1376 = vpop.f32.mrb[0].mxu0
        %1377 = vdwg.mxu0
        %1379 = vrot.lane.b32.xlu0 %v974, 96
        %v1380 = vpop.permute.xlu0 %1379
        %v1381 = vsel %vm995, %v974, 0
        %v1383 = vsel %vm995, %v1380, 0
        %1385 = vmatprep.subr.mxu0 0.0
        %1386 = vmatpush1.xpose.msra.mxu0 %v1383
        %1387 = vmatprep.subr.mxu0 0.0
        %1388 = vmatpush1.xpose.msra.mxu0 0.0
        %1389 = vmatprep.subr.mxu0 0.0
        %1390 = vmatpush1.xpose.msra.mxu0 0.0
        %1391 = vmatprep.subr.mxu0 0.0
        %1392 = vmatpush1.xpose.msra.mxu0 0.0
        %1393 = vmatprep.subr.mxu0 0.0
        %1394 = vmatpush1.xpose.msra.mxu0 0.0
        %1395 = vmatprep.subr.mxu0 0.0
        %1396 = vmatpush1.xpose.msra.mxu0 0.0
        %1397 = vmatprep.subr.mxu0 0.0
        %1398 = vmatpush1.xpose.msra.mxu0 0.0
        %1399 = vmatprep.subr.mxu0 0.0
        %1400 = vmatpush1.xpose.msra.mxu0 0.0
        %1401 = vmatprep.subr.mxu0 0.0
        %1402 = vmatpush1.xpose.msra.mxu0 0.0
        %1403 = vmatprep.subr.mxu0 0.0
        %1404 = vmatpush1.xpose.msra.mxu0 0.0
        %1405 = vmatprep.subr.mxu0 0.0
        %1406 = vmatpush1.xpose.msra.mxu0 0.0
        %1407 = vmatprep.subr.mxu0 0.0
        %1408 = vmatpush1.xpose.msra.mxu0 0.0
        %1409 = vmatprep.subr.mxu0 0.0
        %1410 = vmatpush1.xpose.msra.mxu0 0.0
        %1411 = vmatprep.subr.mxu0 0.0
        %1412 = vmatpush1.xpose.msra.mxu0 0.0
        %1413 = vmatprep.subr.mxu0 0.0
        %1414 = vmatpush1.xpose.msra.mxu0 0.0
        %1415 = vmatprep.subr.mxu0 0.0
        %1416 = vmatpush1.xpose.msra.mxu0 0.0
        %1417 = vmatprep.subr.mxu0 0.0
        %1418 = vmatpush1.xpose.msra.mxu0 0.0
        %1419 = vmatprep.subr.mxu0 0.0
        %1420 = vmatpush1.xpose.msra.mxu0 0.0
        %1421 = vmatprep.subr.mxu0 0.0
        %1422 = vmatpush1.xpose.msra.mxu0 0.0
        %1423 = vmatprep.subr.mxu0 0.0
        %1424 = vmatpush1.xpose.msra.mxu0 0.0
        %1425 = vmatprep.subr.mxu0 0.0
        %1426 = vmatpush1.xpose.msra.mxu0 0.0
        %1427 = vmatprep.subr.mxu0 0.0
        %1428 = vmatpush1.xpose.msra.mxu0 0.0
        %1429 = vmatprep.subr.mxu0 0.0
        %1430 = vmatpush1.xpose.msra.mxu0 0.0
        %1431 = vmatprep.subr.mxu0 0.0
        %1432 = vmatpush1.xpose.msra.mxu0 0.0
        %1433 = vmatprep.subr.mxu0 0.0
        %1434 = vmatpush1.xpose.msra.mxu0 0.0
        %1435 = vmatprep.subr.mxu0 0.0
        %1436 = vmatpush1.xpose.msra.mxu0 0.0
        %1437 = vmatprep.subr.mxu0 0.0
        %1438 = vmatpush1.xpose.msra.mxu0 0.0
        %1439 = vmatprep.subr.mxu0 0.0
        %1440 = vmatpush1.xpose.msra.mxu0 0.0
        %1441 = vmatprep.subr.mxu0 0.0
        %1442 = vmatpush1.xpose.msra.mxu0 0.0
        %1443 = vmatprep.subr.mxu0 0.0
        %1444 = vmatpush1.xpose.msra.mxu0 0.0
        %1445 = vmatprep.subr.mxu0 0.0
        %1446 = vmatpush1.xpose.msra.mxu0 0.0
        %1447 = vmatprep.subr.mxu0 0.0
        %1448 = vmatpush1.xpose.msra.mxu0 0.0
        %1449 = vmatprep.mubr.f32.mxu0 0.0
        %1450 = vmatmul.mubr.f32.gmra.mrb[0].mxu0 %v1381
        %v1451 = vpop.f32.mrb[0].mxu0
        %v1452 = vadd.f32 0.0, %v1451
        %v1453 = vpop.f32.mrb[0].mxu0
        %1454 = vdwg.mxu0
        %1456 = vrot.lane.b32.xlu0 %v979, 96
        %v1457 = vpop.permute.xlu0 %1456
        %v1458 = vsel %vm995, %v979, 0
        %v1460 = vsel %vm995, %v1457, 0
        %1462 = vmatprep.subr.mxu0 0.0
        %1463 = vmatpush1.xpose.msra.mxu0 %v1460
        %1464 = vmatprep.subr.mxu0 0.0
        %1465 = vmatpush1.xpose.msra.mxu0 0.0
        %1466 = vmatprep.subr.mxu0 0.0
        %1467 = vmatpush1.xpose.msra.mxu0 0.0
        %1468 = vmatprep.subr.mxu0 0.0
        %1469 = vmatpush1.xpose.msra.mxu0 0.0
        %1470 = vmatprep.subr.mxu0 0.0
        %1471 = vmatpush1.xpose.msra.mxu0 0.0
        %1472 = vmatprep.subr.mxu0 0.0
        %1473 = vmatpush1.xpose.msra.mxu0 0.0
        %1474 = vmatprep.subr.mxu0 0.0
        %1475 = vmatpush1.xpose.msra.mxu0 0.0
        %1476 = vmatprep.subr.mxu0 0.0
        %1477 = vmatpush1.xpose.msra.mxu0 0.0
        %1478 = vmatprep.subr.mxu0 0.0
        %1479 = vmatpush1.xpose.msra.mxu0 0.0
        %1480 = vmatprep.subr.mxu0 0.0
        %1481 = vmatpush1.xpose.msra.mxu0 0.0
        %1482 = vmatprep.subr.mxu0 0.0
        %1483 = vmatpush1.xpose.msra.mxu0 0.0
        %1484 = vmatprep.subr.mxu0 0.0
        %1485 = vmatpush1.xpose.msra.mxu0 0.0
        %1486 = vmatprep.subr.mxu0 0.0
        %1487 = vmatpush1.xpose.msra.mxu0 0.0
        %1488 = vmatprep.subr.mxu0 0.0
        %1489 = vmatpush1.xpose.msra.mxu0 0.0
        %1490 = vmatprep.subr.mxu0 0.0
        %1491 = vmatpush1.xpose.msra.mxu0 0.0
        %1492 = vmatprep.subr.mxu0 0.0
        %1493 = vmatpush1.xpose.msra.mxu0 0.0
        %1494 = vmatprep.subr.mxu0 0.0
        %1495 = vmatpush1.xpose.msra.mxu0 0.0
        %1496 = vmatprep.subr.mxu0 0.0
        %1497 = vmatpush1.xpose.msra.mxu0 0.0
        %1498 = vmatprep.subr.mxu0 0.0
        %1499 = vmatpush1.xpose.msra.mxu0 0.0
        %1500 = vmatprep.subr.mxu0 0.0
        %1501 = vmatpush1.xpose.msra.mxu0 0.0
        %1502 = vmatprep.subr.mxu0 0.0
        %1503 = vmatpush1.xpose.msra.mxu0 0.0
        %1504 = vmatprep.subr.mxu0 0.0
        %1505 = vmatpush1.xpose.msra.mxu0 0.0
        %1506 = vmatprep.subr.mxu0 0.0
        %1507 = vmatpush1.xpose.msra.mxu0 0.0
        %1508 = vmatprep.subr.mxu0 0.0
        %1509 = vmatpush1.xpose.msra.mxu0 0.0
        %1510 = vmatprep.subr.mxu0 0.0
        %1511 = vmatpush1.xpose.msra.mxu0 0.0
        %1512 = vmatprep.subr.mxu0 0.0
        %1513 = vmatpush1.xpose.msra.mxu0 0.0
        %1514 = vmatprep.subr.mxu0 0.0
        %1515 = vmatpush1.xpose.msra.mxu0 0.0
        %1516 = vmatprep.subr.mxu0 0.0
        %1517 = vmatpush1.xpose.msra.mxu0 0.0
        %1518 = vmatprep.subr.mxu0 0.0
        %1519 = vmatpush1.xpose.msra.mxu0 0.0
        %1520 = vmatprep.subr.mxu0 0.0
        %1521 = vmatpush1.xpose.msra.mxu0 0.0
        %1522 = vmatprep.subr.mxu0 0.0
        %1523 = vmatpush1.xpose.msra.mxu0 0.0
        %1524 = vmatprep.subr.mxu0 0.0
        %1525 = vmatpush1.xpose.msra.mxu0 0.0
        %1526 = vmatprep.mubr.f32.mxu0 0.0
        %1527 = vmatmul.mubr.f32.gmra.mrb[0].mxu0 %v1458
        %v1528 = vpop.f32.mrb[0].mxu0
        %v1529 = vadd.f32 0.0, %v1528
        %v1530 = vpop.f32.mrb[0].mxu0
        %1531 = vdwg.mxu0
        %1533 = vrot.lane.b32.xlu0 %v984, 96
        %v1534 = vpop.permute.xlu0 %1533
        %v1535 = vsel %vm995, %v984, 0
        %v1537 = vsel %vm995, %v1534, 0
        %1539 = vmatprep.subr.mxu0 0.0
        %1540 = vmatpush1.xpose.msra.mxu0 %v1537
        %1541 = vmatprep.subr.mxu0 0.0
        %1542 = vmatpush1.xpose.msra.mxu0 0.0
        %1543 = vmatprep.subr.mxu0 0.0
        %1544 = vmatpush1.xpose.msra.mxu0 0.0
        %1545 = vmatprep.subr.mxu0 0.0
        %1546 = vmatpush1.xpose.msra.mxu0 0.0
        %1547 = vmatprep.subr.mxu0 0.0
        %1548 = vmatpush1.xpose.msra.mxu0 0.0
        %1549 = vmatprep.subr.mxu0 0.0
        %1550 = vmatpush1.xpose.msra.mxu0 0.0
        %1551 = vmatprep.subr.mxu0 0.0
        %1552 = vmatpush1.xpose.msra.mxu0 0.0
        %1553 = vmatprep.subr.mxu0 0.0
        %1554 = vmatpush1.xpose.msra.mxu0 0.0
        %1555 = vmatprep.subr.mxu0 0.0
        %1556 = vmatpush1.xpose.msra.mxu0 0.0
        %1557 = vmatprep.subr.mxu0 0.0
        %1558 = vmatpush1.xpose.msra.mxu0 0.0
        %1559 = vmatprep.subr.mxu0 0.0
        %1560 = vmatpush1.xpose.msra.mxu0 0.0
        %1561 = vmatprep.subr.mxu0 0.0
        %1562 = vmatpush1.xpose.msra.mxu0 0.0
        %1563 = vmatprep.subr.mxu0 0.0
        %1564 = vmatpush1.xpose.msra.mxu0 0.0
        %1565 = vmatprep.subr.mxu0 0.0
        %1566 = vmatpush1.xpose.msra.mxu0 0.0
        %1567 = vmatprep.subr.mxu0 0.0
        %1568 = vmatpush1.xpose.msra.mxu0 0.0
        %1569 = vmatprep.subr.mxu0 0.0
        %1570 = vmatpush1.xpose.msra.mxu0 0.0
        %1571 = vmatprep.subr.mxu0 0.0
        %1572 = vmatpush1.xpose.msra.mxu0 0.0
        %1573 = vmatprep.subr.mxu0 0.0
        %1574 = vmatpush1.xpose.msra.mxu0 0.0
        %1575 = vmatprep.subr.mxu0 0.0
        %1576 = vmatpush1.xpose.msra.mxu0 0.0
        %1577 = vmatprep.subr.mxu0 0.0
        %1578 = vmatpush1.xpose.msra.mxu0 0.0
        %1579 = vmatprep.subr.mxu0 0.0
        %1580 = vmatpush1.xpose.msra.mxu0 0.0
        %1581 = vmatprep.subr.mxu0 0.0
        %1582 = vmatpush1.xpose.msra.mxu0 0.0
        %1583 = vmatprep.subr.mxu0 0.0
        %1584 = vmatpush1.xpose.msra.mxu0 0.0
        %1585 = vmatprep.subr.mxu0 0.0
        %1586 = vmatpush1.xpose.msra.mxu0 0.0
        %1587 = vmatprep.subr.mxu0 0.0
        %1588 = vmatpush1.xpose.msra.mxu0 0.0
        %1589 = vmatprep.subr.mxu0 0.0
        %1590 = vmatpush1.xpose.msra.mxu0 0.0
        %1591 = vmatprep.subr.mxu0 0.0
        %1592 = vmatpush1.xpose.msra.mxu0 0.0
        %1593 = vmatprep.subr.mxu0 0.0
        %1594 = vmatpush1.xpose.msra.mxu0 0.0
        %1595 = vmatprep.subr.mxu0 0.0
        %1596 = vmatpush1.xpose.msra.mxu0 0.0
        %1597 = vmatprep.subr.mxu0 0.0
        %1598 = vmatpush1.xpose.msra.mxu0 0.0
        %1599 = vmatprep.subr.mxu0 0.0
        %1600 = vmatpush1.xpose.msra.mxu0 0.0
        %1601 = vmatprep.subr.mxu0 0.0
        %1602 = vmatpush1.xpose.msra.mxu0 0.0
        %1603 = vmatprep.mubr.f32.mxu0 0.0
        %1604 = vmatmul.mubr.f32.gmra.mrb[0].mxu0 %v1535
        %v1605 = vpop.f32.mrb[0].mxu0
        %v1606 = vadd.f32 0.0, %v1605
        %v1607 = vpop.f32.mrb[0].mxu0
        %1608 = vdwg.mxu0
        %v1609 = vmul.f32 %v1067, 0.35355338
        %v1610 = vmul.f32 %v1144, 0.35355338
        %v1611 = vmul.f32 %v1221, 0.35355338
        %v1612 = vmul.f32 %v1298, 0.35355338
        %v1613 = vmul.f32 %v1375, 0.35355338
        %v1614 = vmul.f32 %v1452, 0.35355338
        %v1615 = vmul.f32 %v1529, 0.35355338
        %v1616 = vmul.f32 %v1606, 0.35355338
        %v1617 = vsel %vm995, %v1609, -inf
        %1618 = vmax.xlane.f32.xlu0 %v1617
        %v1619 = vpop.xlane.xlu0 %1618
        %v1620 = vsel %vm995, %v1610, -inf
        %1621 = vmax.xlane.f32.xlu0 %v1620
        %v1622 = vpop.xlane.xlu0 %1621
        %v1623 = vsel %vm995, %v1611, -inf
        %1624 = vmax.xlane.f32.xlu0 %v1623
        %v1625 = vpop.xlane.xlu0 %1624
        %v1626 = vsel %vm995, %v1612, -inf
        %1627 = vmax.xlane.f32.xlu0 %v1626
        %v1628 = vpop.xlane.xlu0 %1627
        %v1629 = vsel %vm995, %v1613, -inf
        %1630 = vmax.xlane.f32.xlu0 %v1629
        %v1631 = vpop.xlane.xlu0 %1630
        %v1632 = vsel %vm995, %v1614, -inf
        %1633 = vmax.xlane.f32.xlu0 %v1632
        %v1634 = vpop.xlane.xlu0 %1633
        %v1635 = vsel %vm995, %v1615, -inf
        %1636 = vmax.xlane.f32.xlu0 %v1635
        %v1637 = vpop.xlane.xlu0 %1636
        %v1638 = vsel %vm995, %v1616, -inf
        %1639 = vmax.xlane.f32.xlu0 %v1638
        %v1640 = vpop.xlane.xlu0 %1639
        %v1641 = vsub.f32 %v1609, %v1619
        %v1642 = vsub.f32 %v1610, %v1622
        %v1643 = vsub.f32 %v1611, %v1625
        %v1644 = vsub.f32 %v1612, %v1628
        %v1645 = vsub.f32 %v1613, %v1631
        %v1646 = vsub.f32 %v1614, %v1634
        %v1647 = vsub.f32 %v1615, %v1637
        %v1648 = vsub.f32 %v1616, %v1640
        %v1649 = vmul.f32 %v1641, 1.442695
        %v1650 = vpow.pop %v1649
        %v1651 = vmul.f32 %v1642, 1.442695
        %v1652 = vpow.pop %v1651
        %v1653 = vmul.f32 %v1643, 1.442695
        %v1654 = vpow.pop %v1653
        %v1655 = vmul.f32 %v1644, 1.442695
        %v1656 = vpow.pop %v1655
        %v1657 = vmul.f32 %v1645, 1.442695
        %v1658 = vpow.pop %v1657
        %v1659 = vmul.f32 %v1646, 1.442695
        %v1660 = vpow.pop %v1659
        %v1661 = vmul.f32 %v1647, 1.442695
        %v1662 = vpow.pop %v1661
        %v1663 = vmul.f32 %v1648, 1.442695
        %v1664 = vpow.pop %v1663
        %v1665 = vsel %vm995, %v1650, 0.0
        %1666 = vadd.xlane.f32.xlu0 %v1665
        %v1667 = vpop.xlane.xlu0 %1666
        %v1668 = vsel %vm995, %v1652, 0.0
        %1669 = vadd.xlane.f32.xlu0 %v1668
        %v1670 = vpop.xlane.xlu0 %1669
        %v1671 = vsel %vm995, %v1654, 0.0
        %1672 = vadd.xlane.f32.xlu0 %v1671
        %v1673 = vpop.xlane.xlu0 %1672
        %v1674 = vsel %vm995, %v1656, 0.0
        %1675 = vadd.xlane.f32.xlu0 %v1674
        %v1676 = vpop.xlane.xlu0 %1675
        %v1677 = vsel %vm995, %v1658, 0.0
        %1678 = vadd.xlane.f32.xlu0 %v1677
        %v1679 = vpop.xlane.xlu0 %1678
        %v1680 = vsel %vm995, %v1660, 0.0
        %1681 = vadd.xlane.f32.xlu0 %v1680
        %v1682 = vpop.xlane.xlu0 %1681
        %v1683 = vsel %vm995, %v1662, 0.0
        %1684 = vadd.xlane.f32.xlu0 %v1683
        %v1685 = vpop.xlane.xlu0 %1684
        %v1686 = vsel %vm995, %v1664, 0.0
        %1687 = vadd.xlane.f32.xlu0 %v1686
        %v1688 = vpop.xlane.xlu0 %1687
        %v1689 = vrcp.pop %v1667
        %v1690 = vrcp.pop %v1670
        %v1691 = vrcp.pop %v1673
        %v1692 = vrcp.pop %v1676
        %v1693 = vrcp.pop %v1679
        %v1694 = vrcp.pop %v1682
        %v1695 = vrcp.pop %v1685
        %v1696 = vrcp.pop %v1688
        %v1697 = vmul.f32 %v1650, %v1689
        %v1698 = vmul.f32 %v1652, %v1690
        %v1699 = vmul.f32 %v1654, %v1691
        %v1700 = vmul.f32 %v1656, %v1692
        %v1701 = vmul.f32 %v1658, %v1693
        %v1702 = vmul.f32 %v1660, %v1694
        %v1703 = vmul.f32 %v1662, %v1695
        %v1704 = vmul.f32 %v1664, %v1696
        %1705 = vrot.lane.b32.xlu0 %v949, 64
        %v1706 = vpop.permute.xlu0 %1705
        %v1709 = vsel %vm995, %v1697, 0
        %1711 = vmatprep.subr.mxu0 0.0
        %1712 = vmatpush1.msra.mxu0 %v1706
        %1713 = vmatprep.subr.mxu0 0.0
        %1714 = vmatpush1.msra.mxu0 0.0
        %1715 = vmatprep.subr.mxu0 0.0
        %1716 = vmatpush1.msra.mxu0 0.0
        %1717 = vmatprep.subr.mxu0 0.0
        %1718 = vmatpush1.msra.mxu0 0.0
        %1719 = vmatprep.subr.mxu0 0.0
        %1720 = vmatpush1.msra.mxu0 0.0
        %1721 = vmatprep.subr.mxu0 0.0
        %1722 = vmatpush1.msra.mxu0 0.0
        %1723 = vmatprep.subr.mxu0 0.0
        %1724 = vmatpush1.msra.mxu0 0.0
        %1725 = vmatprep.subr.mxu0 0.0
        %1726 = vmatpush1.msra.mxu0 0.0
        %1727 = vmatprep.subr.mxu0 0.0
        %1728 = vmatpush1.msra.mxu0 0.0
        %1729 = vmatprep.subr.mxu0 0.0
        %1730 = vmatpush1.msra.mxu0 0.0
        %1731 = vmatprep.subr.mxu0 0.0
        %1732 = vmatpush1.msra.mxu0 0.0
        %1733 = vmatprep.subr.mxu0 0.0
        %1734 = vmatpush1.msra.mxu0 0.0
        %1735 = vmatprep.subr.mxu0 0.0
        %1736 = vmatpush1.msra.mxu0 0.0
        %1737 = vmatprep.subr.mxu0 0.0
        %1738 = vmatpush1.msra.mxu0 0.0
        %1739 = vmatprep.subr.mxu0 0.0
        %1740 = vmatpush1.msra.mxu0 0.0
        %1741 = vmatprep.subr.mxu0 0.0
        %1742 = vmatpush1.msra.mxu0 0.0
        %1743 = vmatprep.subr.mxu0 0.0
        %1744 = vmatpush1.msra.mxu0 0.0
        %1745 = vmatprep.subr.mxu0 0.0
        %1746 = vmatpush1.msra.mxu0 0.0
        %1747 = vmatprep.subr.mxu0 0.0
        %1748 = vmatpush1.msra.mxu0 0.0
        %1749 = vmatprep.subr.mxu0 0.0
        %1750 = vmatpush1.msra.mxu0 0.0
        %1751 = vmatprep.subr.mxu0 0.0
        %1752 = vmatpush1.msra.mxu0 0.0
        %1753 = vmatprep.subr.mxu0 0.0
        %1754 = vmatpush1.msra.mxu0 0.0
        %1755 = vmatprep.subr.mxu0 0.0
        %1756 = vmatpush1.msra.mxu0 0.0
        %1757 = vmatprep.subr.mxu0 0.0
        %1758 = vmatpush1.msra.mxu0 0.0
        %1759 = vmatprep.subr.mxu0 0.0
        %1760 = vmatpush1.msra.mxu0 0.0
        %1761 = vmatprep.subr.mxu0 0.0
        %1762 = vmatpush1.msra.mxu0 0.0
        %1763 = vmatprep.subr.mxu0 0.0
        %1764 = vmatpush1.msra.mxu0 0.0
        %1765 = vmatprep.subr.mxu0 0.0
        %1766 = vmatpush1.msra.mxu0 0.0
        %1767 = vmatprep.subr.mxu0 0.0
        %1768 = vmatpush1.msra.mxu0 0.0
        %1769 = vmatprep.subr.mxu0 0.0
        %1770 = vmatpush1.msra.mxu0 0.0
        %1771 = vmatprep.subr.mxu0 0.0
        %1772 = vmatpush1.msra.mxu0 0.0
        %1773 = vmatprep.subr.mxu0 0.0
        %1774 = vmatpush1.msra.mxu0 0.0
        %1775 = vmatprep.mubr.f32.mxu0 0.0
        %1776 = vmatmul.mubr.f32.gmra.mrb[0].mxu0 %v1709
        %v1777 = vpop.f32.mrb[0].mxu0
        %v1778 = vadd.f32 0.0, %v1777
        %v1779 = vpop.f32.mrb[0].mxu0
        %1780 = vdwg.mxu0
        %1781 = vrot.lane.b32.xlu0 %v954, 64
        %v1782 = vpop.permute.xlu0 %1781
        %v1785 = vsel %vm995, %v1698, 0
        %1787 = vmatprep.subr.mxu0 0.0
        %1788 = vmatpush1.msra.mxu0 %v1782
        %1789 = vmatprep.subr.mxu0 0.0
        %1790 = vmatpush1.msra.mxu0 0.0
        %1791 = vmatprep.subr.mxu0 0.0
        %1792 = vmatpush1.msra.mxu0 0.0
        %1793 = vmatprep.subr.mxu0 0.0
        %1794 = vmatpush1.msra.mxu0 0.0
        %1795 = vmatprep.subr.mxu0 0.0
        %1796 = vmatpush1.msra.mxu0 0.0
        %1797 = vmatprep.subr.mxu0 0.0
        %1798 = vmatpush1.msra.mxu0 0.0
        %1799 = vmatprep.subr.mxu0 0.0
        %1800 = vmatpush1.msra.mxu0 0.0
        %1801 = vmatprep.subr.mxu0 0.0
        %1802 = vmatpush1.msra.mxu0 0.0
        %1803 = vmatprep.subr.mxu0 0.0
        %1804 = vmatpush1.msra.mxu0 0.0
        %1805 = vmatprep.subr.mxu0 0.0
        %1806 = vmatpush1.msra.mxu0 0.0
        %1807 = vmatprep.subr.mxu0 0.0
        %1808 = vmatpush1.msra.mxu0 0.0
        %1809 = vmatprep.subr.mxu0 0.0
        %1810 = vmatpush1.msra.mxu0 0.0
        %1811 = vmatprep.subr.mxu0 0.0
        %1812 = vmatpush1.msra.mxu0 0.0
        %1813 = vmatprep.subr.mxu0 0.0
        %1814 = vmatpush1.msra.mxu0 0.0
        %1815 = vmatprep.subr.mxu0 0.0
        %1816 = vmatpush1.msra.mxu0 0.0
        %1817 = vmatprep.subr.mxu0 0.0
        %1818 = vmatpush1.msra.mxu0 0.0
        %1819 = vmatprep.subr.mxu0 0.0
        %1820 = vmatpush1.msra.mxu0 0.0
        %1821 = vmatprep.subr.mxu0 0.0
        %1822 = vmatpush1.msra.mxu0 0.0
        %1823 = vmatprep.subr.mxu0 0.0
        %1824 = vmatpush1.msra.mxu0 0.0
        %1825 = vmatprep.subr.mxu0 0.0
        %1826 = vmatpush1.msra.mxu0 0.0
        %1827 = vmatprep.subr.mxu0 0.0
        %1828 = vmatpush1.msra.mxu0 0.0
        %1829 = vmatprep.subr.mxu0 0.0
        %1830 = vmatpush1.msra.mxu0 0.0
        %1831 = vmatprep.subr.mxu0 0.0
        %1832 = vmatpush1.msra.mxu0 0.0
        %1833 = vmatprep.subr.mxu0 0.0
        %1834 = vmatpush1.msra.mxu0 0.0
        %1835 = vmatprep.subr.mxu0 0.0
        %1836 = vmatpush1.msra.mxu0 0.0
        %1837 = vmatprep.subr.mxu0 0.0
        %1838 = vmatpush1.msra.mxu0 0.0
        %1839 = vmatprep.subr.mxu0 0.0
        %1840 = vmatpush1.msra.mxu0 0.0
        %1841 = vmatprep.subr.mxu0 0.0
        %1842 = vmatpush1.msra.mxu0 0.0
        %1843 = vmatprep.subr.mxu0 0.0
        %1844 = vmatpush1.msra.mxu0 0.0
        %1845 = vmatprep.subr.mxu0 0.0
        %1846 = vmatpush1.msra.mxu0 0.0
        %1847 = vmatprep.subr.mxu0 0.0
        %1848 = vmatpush1.msra.mxu0 0.0
        %1849 = vmatprep.subr.mxu0 0.0
        %1850 = vmatpush1.msra.mxu0 0.0
        %1851 = vmatprep.mubr.f32.mxu0 0.0
        %1852 = vmatmul.mubr.f32.gmra.mrb[0].mxu0 %v1785
        %v1853 = vpop.f32.mrb[0].mxu0
        %v1854 = vadd.f32 0.0, %v1853
        %v1855 = vpop.f32.mrb[0].mxu0
        %1856 = vdwg.mxu0
        %1857 = vrot.lane.b32.xlu0 %v959, 64
        %v1858 = vpop.permute.xlu0 %1857
        %v1861 = vsel %vm995, %v1699, 0
        %1863 = vmatprep.subr.mxu0 0.0
        %1864 = vmatpush1.msra.mxu0 %v1858
        %1865 = vmatprep.subr.mxu0 0.0
        %1866 = vmatpush1.msra.mxu0 0.0
        %1867 = vmatprep.subr.mxu0 0.0
        %1868 = vmatpush1.msra.mxu0 0.0
        %1869 = vmatprep.subr.mxu0 0.0
        %1870 = vmatpush1.msra.mxu0 0.0
        %1871 = vmatprep.subr.mxu0 0.0
        %1872 = vmatpush1.msra.mxu0 0.0
        %1873 = vmatprep.subr.mxu0 0.0
        %1874 = vmatpush1.msra.mxu0 0.0
        %1875 = vmatprep.subr.mxu0 0.0
        %1876 = vmatpush1.msra.mxu0 0.0
        %1877 = vmatprep.subr.mxu0 0.0
        %1878 = vmatpush1.msra.mxu0 0.0
        %1879 = vmatprep.subr.mxu0 0.0
        %1880 = vmatpush1.msra.mxu0 0.0
        %1881 = vmatprep.subr.mxu0 0.0
        %1882 = vmatpush1.msra.mxu0 0.0
        %1883 = vmatprep.subr.mxu0 0.0
        %1884 = vmatpush1.msra.mxu0 0.0
        %1885 = vmatprep.subr.mxu0 0.0
        %1886 = vmatpush1.msra.mxu0 0.0
        %1887 = vmatprep.subr.mxu0 0.0
        %1888 = vmatpush1.msra.mxu0 0.0
        %1889 = vmatprep.subr.mxu0 0.0
        %1890 = vmatpush1.msra.mxu0 0.0
        %1891 = vmatprep.subr.mxu0 0.0
        %1892 = vmatpush1.msra.mxu0 0.0
        %1893 = vmatprep.subr.mxu0 0.0
        %1894 = vmatpush1.msra.mxu0 0.0
        %1895 = vmatprep.subr.mxu0 0.0
        %1896 = vmatpush1.msra.mxu0 0.0
        %1897 = vmatprep.subr.mxu0 0.0
        %1898 = vmatpush1.msra.mxu0 0.0
        %1899 = vmatprep.subr.mxu0 0.0
        %1900 = vmatpush1.msra.mxu0 0.0
        %1901 = vmatprep.subr.mxu0 0.0
        %1902 = vmatpush1.msra.mxu0 0.0
        %1903 = vmatprep.subr.mxu0 0.0
        %1904 = vmatpush1.msra.mxu0 0.0
        %1905 = vmatprep.subr.mxu0 0.0
        %1906 = vmatpush1.msra.mxu0 0.0
        %1907 = vmatprep.subr.mxu0 0.0
        %1908 = vmatpush1.msra.mxu0 0.0
        %1909 = vmatprep.subr.mxu0 0.0
        %1910 = vmatpush1.msra.mxu0 0.0
        %1911 = vmatprep.subr.mxu0 0.0
        %1912 = vmatpush1.msra.mxu0 0.0
        %1913 = vmatprep.subr.mxu0 0.0
        %1914 = vmatpush1.msra.mxu0 0.0
        %1915 = vmatprep.subr.mxu0 0.0
        %1916 = vmatpush1.msra.mxu0 0.0
        %1917 = vmatprep.subr.mxu0 0.0
        %1918 = vmatpush1.msra.mxu0 0.0
        %1919 = vmatprep.subr.mxu0 0.0
        %1920 = vmatpush1.msra.mxu0 0.0
        %1921 = vmatprep.subr.mxu0 0.0
        %1922 = vmatpush1.msra.mxu0 0.0
        %1923 = vmatprep.subr.mxu0 0.0
        %1924 = vmatpush1.msra.mxu0 0.0
        %1925 = vmatprep.subr.mxu0 0.0
        %1926 = vmatpush1.msra.mxu0 0.0
        %1927 = vmatprep.mubr.f32.mxu0 0.0
        %1928 = vmatmul.mubr.f32.gmra.mrb[0].mxu0 %v1861
        %v1929 = vpop.f32.mrb[0].mxu0
        %v1930 = vadd.f32 0.0, %v1929
        %v1931 = vpop.f32.mrb[0].mxu0
        %1932 = vdwg.mxu0
        %1933 = vrot.lane.b32.xlu0 %v964, 64
        %v1934 = vpop.permute.xlu0 %1933
        %v1937 = vsel %vm995, %v1700, 0
        %1939 = vmatprep.subr.mxu0 0.0
        %1940 = vmatpush1.msra.mxu0 %v1934
        %1941 = vmatprep.subr.mxu0 0.0
        %1942 = vmatpush1.msra.mxu0 0.0
        %1943 = vmatprep.subr.mxu0 0.0
        %1944 = vmatpush1.msra.mxu0 0.0
        %1945 = vmatprep.subr.mxu0 0.0
        %1946 = vmatpush1.msra.mxu0 0.0
        %1947 = vmatprep.subr.mxu0 0.0
        %1948 = vmatpush1.msra.mxu0 0.0
        %1949 = vmatprep.subr.mxu0 0.0
        %1950 = vmatpush1.msra.mxu0 0.0
        %1951 = vmatprep.subr.mxu0 0.0
        %1952 = vmatpush1.msra.mxu0 0.0
        %1953 = vmatprep.subr.mxu0 0.0
        %1954 = vmatpush1.msra.mxu0 0.0
        %1955 = vmatprep.subr.mxu0 0.0
        %1956 = vmatpush1.msra.mxu0 0.0
        %1957 = vmatprep.subr.mxu0 0.0
        %1958 = vmatpush1.msra.mxu0 0.0
        %1959 = vmatprep.subr.mxu0 0.0
        %1960 = vmatpush1.msra.mxu0 0.0
        %1961 = vmatprep.subr.mxu0 0.0
        %1962 = vmatpush1.msra.mxu0 0.0
        %1963 = vmatprep.subr.mxu0 0.0
        %1964 = vmatpush1.msra.mxu0 0.0
        %1965 = vmatprep.subr.mxu0 0.0
        %1966 = vmatpush1.msra.mxu0 0.0
        %1967 = vmatprep.subr.mxu0 0.0
        %1968 = vmatpush1.msra.mxu0 0.0
        %1969 = vmatprep.subr.mxu0 0.0
        %1970 = vmatpush1.msra.mxu0 0.0
        %1971 = vmatprep.subr.mxu0 0.0
        %1972 = vmatpush1.msra.mxu0 0.0
        %1973 = vmatprep.subr.mxu0 0.0
        %1974 = vmatpush1.msra.mxu0 0.0
        %1975 = vmatprep.subr.mxu0 0.0
        %1976 = vmatpush1.msra.mxu0 0.0
        %1977 = vmatprep.subr.mxu0 0.0
        %1978 = vmatpush1.msra.mxu0 0.0
        %1979 = vmatprep.subr.mxu0 0.0
        %1980 = vmatpush1.msra.mxu0 0.0
        %1981 = vmatprep.subr.mxu0 0.0
        %1982 = vmatpush1.msra.mxu0 0.0
        %1983 = vmatprep.subr.mxu0 0.0
        %1984 = vmatpush1.msra.mxu0 0.0
        %1985 = vmatprep.subr.mxu0 0.0
        %1986 = vmatpush1.msra.mxu0 0.0
        %1987 = vmatprep.subr.mxu0 0.0
        %1988 = vmatpush1.msra.mxu0 0.0
        %1989 = vmatprep.subr.mxu0 0.0
        %1990 = vmatpush1.msra.mxu0 0.0
        %1991 = vmatprep.subr.mxu0 0.0
        %1992 = vmatpush1.msra.mxu0 0.0
        %1993 = vmatprep.subr.mxu0 0.0
        %1994 = vmatpush1.msra.mxu0 0.0
        %1995 = vmatprep.subr.mxu0 0.0
        %1996 = vmatpush1.msra.mxu0 0.0
        %1997 = vmatprep.subr.mxu0 0.0
        %1998 = vmatpush1.msra.mxu0 0.0
        %1999 = vmatprep.subr.mxu0 0.0
        %2000 = vmatpush1.msra.mxu0 0.0
        %2001 = vmatprep.subr.mxu0 0.0
        %2002 = vmatpush1.msra.mxu0 0.0
        %2003 = vmatprep.mubr.f32.mxu0 0.0
        %2004 = vmatmul.mubr.f32.gmra.mrb[0].mxu0 %v1937
        %v2005 = vpop.f32.mrb[0].mxu0
        %v2006 = vadd.f32 0.0, %v2005
        %v2007 = vpop.f32.mrb[0].mxu0
        %2008 = vdwg.mxu0
        %2009 = vrot.lane.b32.xlu0 %v969, 64
        %v2010 = vpop.permute.xlu0 %2009
        %v2013 = vsel %vm995, %v1701, 0
        %2015 = vmatprep.subr.mxu0 0.0
        %2016 = vmatpush1.msra.mxu0 %v2010
        %2017 = vmatprep.subr.mxu0 0.0
        %2018 = vmatpush1.msra.mxu0 0.0
        %2019 = vmatprep.subr.mxu0 0.0
        %2020 = vmatpush1.msra.mxu0 0.0
        %2021 = vmatprep.subr.mxu0 0.0
        %2022 = vmatpush1.msra.mxu0 0.0
        %2023 = vmatprep.subr.mxu0 0.0
        %2024 = vmatpush1.msra.mxu0 0.0
        %2025 = vmatprep.subr.mxu0 0.0
        %2026 = vmatpush1.msra.mxu0 0.0
        %2027 = vmatprep.subr.mxu0 0.0
        %2028 = vmatpush1.msra.mxu0 0.0
        %2029 = vmatprep.subr.mxu0 0.0
        %2030 = vmatpush1.msra.mxu0 0.0
        %2031 = vmatprep.subr.mxu0 0.0
        %2032 = vmatpush1.msra.mxu0 0.0
        %2033 = vmatprep.subr.mxu0 0.0
        %2034 = vmatpush1.msra.mxu0 0.0
        %2035 = vmatprep.subr.mxu0 0.0
        %2036 = vmatpush1.msra.mxu0 0.0
        %2037 = vmatprep.subr.mxu0 0.0
        %2038 = vmatpush1.msra.mxu0 0.0
        %2039 = vmatprep.subr.mxu0 0.0
        %2040 = vmatpush1.msra.mxu0 0.0
        %2041 = vmatprep.subr.mxu0 0.0
        %2042 = vmatpush1.msra.mxu0 0.0
        %2043 = vmatprep.subr.mxu0 0.0
        %2044 = vmatpush1.msra.mxu0 0.0
        %2045 = vmatprep.subr.mxu0 0.0
        %2046 = vmatpush1.msra.mxu0 0.0
        %2047 = vmatprep.subr.mxu0 0.0
        %2048 = vmatpush1.msra.mxu0 0.0
        %2049 = vmatprep.subr.mxu0 0.0
        %2050 = vmatpush1.msra.mxu0 0.0
        %2051 = vmatprep.subr.mxu0 0.0
        %2052 = vmatpush1.msra.mxu0 0.0
        %2053 = vmatprep.subr.mxu0 0.0
        %2054 = vmatpush1.msra.mxu0 0.0
        %2055 = vmatprep.subr.mxu0 0.0
        %2056 = vmatpush1.msra.mxu0 0.0
        %2057 = vmatprep.subr.mxu0 0.0
        %2058 = vmatpush1.msra.mxu0 0.0
        %2059 = vmatprep.subr.mxu0 0.0
        %2060 = vmatpush1.msra.mxu0 0.0
        %2061 = vmatprep.subr.mxu0 0.0
        %2062 = vmatpush1.msra.mxu0 0.0
        %2063 = vmatprep.subr.mxu0 0.0
        %2064 = vmatpush1.msra.mxu0 0.0
        %2065 = vmatprep.subr.mxu0 0.0
        %2066 = vmatpush1.msra.mxu0 0.0
        %2067 = vmatprep.subr.mxu0 0.0
        %2068 = vmatpush1.msra.mxu0 0.0
        %2069 = vmatprep.subr.mxu0 0.0
        %2070 = vmatpush1.msra.mxu0 0.0
        %2071 = vmatprep.subr.mxu0 0.0
        %2072 = vmatpush1.msra.mxu0 0.0
        %2073 = vmatprep.subr.mxu0 0.0
        %2074 = vmatpush1.msra.mxu0 0.0
        %2075 = vmatprep.subr.mxu0 0.0
        %2076 = vmatpush1.msra.mxu0 0.0
        %2077 = vmatprep.subr.mxu0 0.0
        %2078 = vmatpush1.msra.mxu0 0.0
        %2079 = vmatprep.mubr.f32.mxu0 0.0
        %2080 = vmatmul.mubr.f32.gmra.mrb[0].mxu0 %v2013
        %v2081 = vpop.f32.mrb[0].mxu0
        %v2082 = vadd.f32 0.0, %v2081
        %v2083 = vpop.f32.mrb[0].mxu0
        %2084 = vdwg.mxu0
        %2085 = vrot.lane.b32.xlu0 %v974, 64
        %v2086 = vpop.permute.xlu0 %2085
        %v2089 = vsel %vm995, %v1702, 0
        %2091 = vmatprep.subr.mxu0 0.0
        %2092 = vmatpush1.msra.mxu0 %v2086
        %2093 = vmatprep.subr.mxu0 0.0
        %2094 = vmatpush1.msra.mxu0 0.0
        %2095 = vmatprep.subr.mxu0 0.0
        %2096 = vmatpush1.msra.mxu0 0.0
        %2097 = vmatprep.subr.mxu0 0.0
        %2098 = vmatpush1.msra.mxu0 0.0
        %2099 = vmatprep.subr.mxu0 0.0
        %2100 = vmatpush1.msra.mxu0 0.0
        %2101 = vmatprep.subr.mxu0 0.0
        %2102 = vmatpush1.msra.mxu0 0.0
        %2103 = vmatprep.subr.mxu0 0.0
        %2104 = vmatpush1.msra.mxu0 0.0
        %2105 = vmatprep.subr.mxu0 0.0
        %2106 = vmatpush1.msra.mxu0 0.0
        %2107 = vmatprep.subr.mxu0 0.0
        %2108 = vmatpush1.msra.mxu0 0.0
        %2109 = vmatprep.subr.mxu0 0.0
        %2110 = vmatpush1.msra.mxu0 0.0
        %2111 = vmatprep.subr.mxu0 0.0
        %2112 = vmatpush1.msra.mxu0 0.0
        %2113 = vmatprep.subr.mxu0 0.0
        %2114 = vmatpush1.msra.mxu0 0.0
        %2115 = vmatprep.subr.mxu0 0.0
        %2116 = vmatpush1.msra.mxu0 0.0
        %2117 = vmatprep.subr.mxu0 0.0
        %2118 = vmatpush1.msra.mxu0 0.0
        %2119 = vmatprep.subr.mxu0 0.0
        %2120 = vmatpush1.msra.mxu0 0.0
        %2121 = vmatprep.subr.mxu0 0.0
        %2122 = vmatpush1.msra.mxu0 0.0
        %2123 = vmatprep.subr.mxu0 0.0
        %2124 = vmatpush1.msra.mxu0 0.0
        %2125 = vmatprep.subr.mxu0 0.0
        %2126 = vmatpush1.msra.mxu0 0.0
        %2127 = vmatprep.subr.mxu0 0.0
        %2128 = vmatpush1.msra.mxu0 0.0
        %2129 = vmatprep.subr.mxu0 0.0
        %2130 = vmatpush1.msra.mxu0 0.0
        %2131 = vmatprep.subr.mxu0 0.0
        %2132 = vmatpush1.msra.mxu0 0.0
        %2133 = vmatprep.subr.mxu0 0.0
        %2134 = vmatpush1.msra.mxu0 0.0
        %2135 = vmatprep.subr.mxu0 0.0
        %2136 = vmatpush1.msra.mxu0 0.0
        %2137 = vmatprep.subr.mxu0 0.0
        %2138 = vmatpush1.msra.mxu0 0.0
        %2139 = vmatprep.subr.mxu0 0.0
        %2140 = vmatpush1.msra.mxu0 0.0
        %2141 = vmatprep.subr.mxu0 0.0
        %2142 = vmatpush1.msra.mxu0 0.0
        %2143 = vmatprep.subr.mxu0 0.0
        %2144 = vmatpush1.msra.mxu0 0.0
        %2145 = vmatprep.subr.mxu0 0.0
        %2146 = vmatpush1.msra.mxu0 0.0
        %2147 = vmatprep.subr.mxu0 0.0
        %2148 = vmatpush1.msra.mxu0 0.0
        %2149 = vmatprep.subr.mxu0 0.0
        %2150 = vmatpush1.msra.mxu0 0.0
        %2151 = vmatprep.subr.mxu0 0.0
        %2152 = vmatpush1.msra.mxu0 0.0
        %2153 = vmatprep.subr.mxu0 0.0
        %2154 = vmatpush1.msra.mxu0 0.0
        %2155 = vmatprep.mubr.f32.mxu0 0.0
        %2156 = vmatmul.mubr.f32.gmra.mrb[0].mxu0 %v2089
        %v2157 = vpop.f32.mrb[0].mxu0
        %v2158 = vadd.f32 0.0, %v2157
        %v2159 = vpop.f32.mrb[0].mxu0
        %2160 = vdwg.mxu0
        %2161 = vrot.lane.b32.xlu0 %v979, 64
        %v2162 = vpop.permute.xlu0 %2161
        %v2165 = vsel %vm995, %v1703, 0
        %2167 = vmatprep.subr.mxu0 0.0
        %2168 = vmatpush1.msra.mxu0 %v2162
        %2169 = vmatprep.subr.mxu0 0.0
        %2170 = vmatpush1.msra.mxu0 0.0
        %2171 = vmatprep.subr.mxu0 0.0
        %2172 = vmatpush1.msra.mxu0 0.0
        %2173 = vmatprep.subr.mxu0 0.0
        %2174 = vmatpush1.msra.mxu0 0.0
        %2175 = vmatprep.subr.mxu0 0.0
        %2176 = vmatpush1.msra.mxu0 0.0
        %2177 = vmatprep.subr.mxu0 0.0
        %2178 = vmatpush1.msra.mxu0 0.0
        %2179 = vmatprep.subr.mxu0 0.0
        %2180 = vmatpush1.msra.mxu0 0.0
        %2181 = vmatprep.subr.mxu0 0.0
        %2182 = vmatpush1.msra.mxu0 0.0
        %2183 = vmatprep.subr.mxu0 0.0
        %2184 = vmatpush1.msra.mxu0 0.0
        %2185 = vmatprep.subr.mxu0 0.0
        %2186 = vmatpush1.msra.mxu0 0.0
        %2187 = vmatprep.subr.mxu0 0.0
        %2188 = vmatpush1.msra.mxu0 0.0
        %2189 = vmatprep.subr.mxu0 0.0
        %2190 = vmatpush1.msra.mxu0 0.0
        %2191 = vmatprep.subr.mxu0 0.0
        %2192 = vmatpush1.msra.mxu0 0.0
        %2193 = vmatprep.subr.mxu0 0.0
        %2194 = vmatpush1.msra.mxu0 0.0
        %2195 = vmatprep.subr.mxu0 0.0
        %2196 = vmatpush1.msra.mxu0 0.0
        %2197 = vmatprep.subr.mxu0 0.0
        %2198 = vmatpush1.msra.mxu0 0.0
        %2199 = vmatprep.subr.mxu0 0.0
        %2200 = vmatpush1.msra.mxu0 0.0
        %2201 = vmatprep.subr.mxu0 0.0
        %2202 = vmatpush1.msra.mxu0 0.0
        %2203 = vmatprep.subr.mxu0 0.0
        %2204 = vmatpush1.msra.mxu0 0.0
        %2205 = vmatprep.subr.mxu0 0.0
        %2206 = vmatpush1.msra.mxu0 0.0
        %2207 = vmatprep.subr.mxu0 0.0
        %2208 = vmatpush1.msra.mxu0 0.0
        %2209 = vmatprep.subr.mxu0 0.0
        %2210 = vmatpush1.msra.mxu0 0.0
        %2211 = vmatprep.subr.mxu0 0.0
        %2212 = vmatpush1.msra.mxu0 0.0
        %2213 = vmatprep.subr.mxu0 0.0
        %2214 = vmatpush1.msra.mxu0 0.0
        %2215 = vmatprep.subr.mxu0 0.0
        %2216 = vmatpush1.msra.mxu0 0.0
        %2217 = vmatprep.subr.mxu0 0.0
        %2218 = vmatpush1.msra.mxu0 0.0
        %2219 = vmatprep.subr.mxu0 0.0
        %2220 = vmatpush1.msra.mxu0 0.0
        %2221 = vmatprep.subr.mxu0 0.0
        %2222 = vmatpush1.msra.mxu0 0.0
        %2223 = vmatprep.subr.mxu0 0.0
        %2224 = vmatpush1.msra.mxu0 0.0
        %2225 = vmatprep.subr.mxu0 0.0
        %2226 = vmatpush1.msra.mxu0 0.0
        %2227 = vmatprep.subr.mxu0 0.0
        %2228 = vmatpush1.msra.mxu0 0.0
        %2229 = vmatprep.subr.mxu0 0.0
        %2230 = vmatpush1.msra.mxu0 0.0
        %2231 = vmatprep.mubr.f32.mxu0 0.0
        %2232 = vmatmul.mubr.f32.gmra.mrb[0].mxu0 %v2165
        %v2233 = vpop.f32.mrb[0].mxu0
        %v2234 = vadd.f32 0.0, %v2233
        %v2235 = vpop.f32.mrb[0].mxu0
        %2236 = vdwg.mxu0
        %2237 = vrot.lane.b32.xlu0 %v984, 64
        %v2238 = vpop.permute.xlu0 %2237
        %v2241 = vsel %vm995, %v1704, 0
        %2243 = vmatprep.subr.mxu0 0.0
        %2244 = vmatpush1.msra.mxu0 %v2238
        %2245 = vmatprep.subr.mxu0 0.0
        %2246 = vmatpush1.msra.mxu0 0.0
        %2247 = vmatprep.subr.mxu0 0.0
        %2248 = vmatpush1.msra.mxu0 0.0
        %2249 = vmatprep.subr.mxu0 0.0
        %2250 = vmatpush1.msra.mxu0 0.0
        %2251 = vmatprep.subr.mxu0 0.0
        %2252 = vmatpush1.msra.mxu0 0.0
        %2253 = vmatprep.subr.mxu0 0.0
        %2254 = vmatpush1.msra.mxu0 0.0
        %2255 = vmatprep.subr.mxu0 0.0
        %2256 = vmatpush1.msra.mxu0 0.0
        %2257 = vmatprep.subr.mxu0 0.0
        %2258 = vmatpush1.msra.mxu0 0.0
        %2259 = vmatprep.subr.mxu0 0.0
        %2260 = vmatpush1.msra.mxu0 0.0
        %2261 = vmatprep.subr.mxu0 0.0
        %2262 = vmatpush1.msra.mxu0 0.0
        %2263 = vmatprep.subr.mxu0 0.0
        %2264 = vmatpush1.msra.mxu0 0.0
        %2265 = vmatprep.subr.mxu0 0.0
        %2266 = vmatpush1.msra.mxu0 0.0
        %2267 = vmatprep.subr.mxu0 0.0
        %2268 = vmatpush1.msra.mxu0 0.0
        %2269 = vmatprep.subr.mxu0 0.0
        %2270 = vmatpush1.msra.mxu0 0.0
        %2271 = vmatprep.subr.mxu0 0.0
        %2272 = vmatpush1.msra.mxu0 0.0
        %2273 = vmatprep.subr.mxu0 0.0
        %2274 = vmatpush1.msra.mxu0 0.0
        %2275 = vmatprep.subr.mxu0 0.0
        %2276 = vmatpush1.msra.mxu0 0.0
        %2277 = vmatprep.subr.mxu0 0.0
        %2278 = vmatpush1.msra.mxu0 0.0
        %2279 = vmatprep.subr.mxu0 0.0
        %2280 = vmatpush1.msra.mxu0 0.0
        %2281 = vmatprep.subr.mxu0 0.0
        %2282 = vmatpush1.msra.mxu0 0.0
        %2283 = vmatprep.subr.mxu0 0.0
        %2284 = vmatpush1.msra.mxu0 0.0
        %2285 = vmatprep.subr.mxu0 0.0
        %2286 = vmatpush1.msra.mxu0 0.0
        %2287 = vmatprep.subr.mxu0 0.0
        %2288 = vmatpush1.msra.mxu0 0.0
        %2289 = vmatprep.subr.mxu0 0.0
        %2290 = vmatpush1.msra.mxu0 0.0
        %2291 = vmatprep.subr.mxu0 0.0
        %2292 = vmatpush1.msra.mxu0 0.0
        %2293 = vmatprep.subr.mxu0 0.0
        %2294 = vmatpush1.msra.mxu0 0.0
        %2295 = vmatprep.subr.mxu0 0.0
        %2296 = vmatpush1.msra.mxu0 0.0
        %2297 = vmatprep.subr.mxu0 0.0
        %2298 = vmatpush1.msra.mxu0 0.0
        %2299 = vmatprep.subr.mxu0 0.0
        %2300 = vmatpush1.msra.mxu0 0.0
        %2301 = vmatprep.subr.mxu0 0.0
        %2302 = vmatpush1.msra.mxu0 0.0
        %2303 = vmatprep.subr.mxu0 0.0
        %2304 = vmatpush1.msra.mxu0 0.0
        %2305 = vmatprep.subr.mxu0 0.0
        %2306 = vmatpush1.msra.mxu0 0.0
        %2307 = vmatprep.mubr.f32.mxu0 0.0
        %2308 = vmatmul.mubr.f32.gmra.mrb[0].mxu0 %v2241
        %v2309 = vpop.f32.mrb[0].mxu0
        %v2310 = vadd.f32 0.0, %v2309
        %v2311 = vpop.f32.mrb[0].mxu0
        %2312 = vdwg.mxu0
        %v2314 = vsel %vm995, %v1778, 0
        %v2317 = vsel %vm995, %v1854, 0
        %v2320 = vsel %vm995, %v1930, 0
        %v2323 = vsel %vm995, %v2006, 0
        %v2326 = vsel %vm995, %v2082, 0
        %v2329 = vsel %vm995, %v2158, 0
        %v2332 = vsel %vm995, %v2234, 0
        %v2335 = vsel %vm995, %v2310, 0
        %2337 = vmatprep.subr.mxu0 0.0
        %2338 = vmatpush1.msra.mxu0 %v987
        %2339 = vmatprep.subr.mxu0 0.0
        %2340 = vmatpush1.msra.mxu0 0.0
        %2341 = vmatprep.subr.mxu0 0.0
        %2342 = vmatpush1.msra.mxu0 0.0
        %2343 = vmatprep.subr.mxu0 0.0
        %2344 = vmatpush1.msra.mxu0 0.0
        %2345 = vmatprep.subr.mxu0 0.0
        %2346 = vmatpush1.msra.mxu0 0.0
        %2347 = vmatprep.subr.mxu0 0.0
        %2348 = vmatpush1.msra.mxu0 0.0
        %2349 = vmatprep.subr.mxu0 0.0
        %2350 = vmatpush1.msra.mxu0 0.0
        %2351 = vmatprep.subr.mxu0 0.0
        %2352 = vmatpush1.msra.mxu0 0.0
        %2353 = vmatprep.subr.mxu0 0.0
        %2354 = vmatpush1.msra.mxu0 0.0
        %2355 = vmatprep.subr.mxu0 0.0
        %2356 = vmatpush1.msra.mxu0 0.0
        %2357 = vmatprep.subr.mxu0 0.0
        %2358 = vmatpush1.msra.mxu0 0.0
        %2359 = vmatprep.subr.mxu0 0.0
        %2360 = vmatpush1.msra.mxu0 0.0
        %2361 = vmatprep.subr.mxu0 0.0
        %2362 = vmatpush1.msra.mxu0 0.0
        %2363 = vmatprep.subr.mxu0 0.0
        %2364 = vmatpush1.msra.mxu0 0.0
        %2365 = vmatprep.subr.mxu0 0.0
        %2366 = vmatpush1.msra.mxu0 0.0
        %2367 = vmatprep.subr.mxu0 0.0
        %2368 = vmatpush1.msra.mxu0 0.0
        %2369 = vmatprep.subr.mxu0 0.0
        %2370 = vmatpush1.msra.mxu0 0.0
        %2371 = vmatprep.subr.mxu0 0.0
        %2372 = vmatpush1.msra.mxu0 0.0
        %2373 = vmatprep.subr.mxu0 0.0
        %2374 = vmatpush1.msra.mxu0 0.0
        %2375 = vmatprep.subr.mxu0 0.0
        %2376 = vmatpush1.msra.mxu0 0.0
        %2377 = vmatprep.subr.mxu0 0.0
        %2378 = vmatpush1.msra.mxu0 0.0
        %2379 = vmatprep.subr.mxu0 0.0
        %2380 = vmatpush1.msra.mxu0 0.0
        %2381 = vmatprep.subr.mxu0 0.0
        %2382 = vmatpush1.msra.mxu0 0.0
        %2383 = vmatprep.subr.mxu0 0.0
        %2384 = vmatpush1.msra.mxu0 0.0
        %2385 = vmatprep.subr.mxu0 0.0
        %2386 = vmatpush1.msra.mxu0 0.0
        %2387 = vmatprep.subr.mxu0 0.0
        %2388 = vmatpush1.msra.mxu0 0.0
        %2389 = vmatprep.subr.mxu0 0.0
        %2390 = vmatpush1.msra.mxu0 0.0
        %2391 = vmatprep.subr.mxu0 0.0
        %2392 = vmatpush1.msra.mxu0 0.0
        %2393 = vmatprep.subr.mxu0 0.0
        %2394 = vmatpush1.msra.mxu0 0.0
        %2395 = vmatprep.subr.mxu0 0.0
        %2396 = vmatpush1.msra.mxu0 0.0
        %2397 = vmatprep.subr.mxu0 0.0
        %2398 = vmatpush1.msra.mxu0 0.0
        %2399 = vmatprep.subr.mxu0 0.0
        %2400 = vmatpush1.msra.mxu0 0.0
        %2401 = vmatprep.mubr.f32.mxu0 0.0
        %2402 = vmatmul.mubr.f32.gmra.mrb[0].mxu0 %v2314
        %v2403 = vpop.f32.mrb[0].mxu0
        %v2404 = vadd.f32 0.0, %v2403
        %v2405 = vpop.f32.mrb[0].mxu0
        %2406 = vmatprep.mubr.f32.mxu0 0.0
        %2407 = vmatmul.mubr.f32.gmra.mrb[0].mxu0 %v2317
        %v2408 = vpop.f32.mrb[0].mxu0
        %v2409 = vadd.f32 0.0, %v2408
        %v2410 = vpop.f32.mrb[0].mxu0
        %2411 = vmatprep.mubr.f32.mxu0 0.0
        %2412 = vmatmul.mubr.f32.gmra.mrb[0].mxu0 %v2320
        %v2413 = vpop.f32.mrb[0].mxu0
        %v2414 = vadd.f32 0.0, %v2413
        %v2415 = vpop.f32.mrb[0].mxu0
        %2416 = vmatprep.mubr.f32.mxu0 0.0
        %2417 = vmatmul.mubr.f32.gmra.mrb[0].mxu0 %v2323
        %v2418 = vpop.f32.mrb[0].mxu0
        %v2419 = vadd.f32 0.0, %v2418
        %v2420 = vpop.f32.mrb[0].mxu0
        %2421 = vmatprep.mubr.f32.mxu0 0.0
        %2422 = vmatmul.mubr.f32.gmra.mrb[0].mxu0 %v2326
        %v2423 = vpop.f32.mrb[0].mxu0
        %v2424 = vadd.f32 0.0, %v2423
        %v2425 = vpop.f32.mrb[0].mxu0
        %2426 = vmatprep.mubr.f32.mxu0 0.0
        %2427 = vmatmul.mubr.f32.gmra.mrb[0].mxu0 %v2329
        %v2428 = vpop.f32.mrb[0].mxu0
        %v2429 = vadd.f32 0.0, %v2428
        %v2430 = vpop.f32.mrb[0].mxu0
        %2431 = vmatprep.mubr.f32.mxu0 0.0
        %2432 = vmatmul.mubr.f32.gmra.mrb[0].mxu0 %v2332
        %v2433 = vpop.f32.mrb[0].mxu0
        %v2434 = vadd.f32 0.0, %v2433
        %v2435 = vpop.f32.mrb[0].mxu0
        %2436 = vmatprep.mubr.f32.mxu0 0.0
        %2437 = vmatmul.mubr.f32.gmra.mrb[0].mxu0 %v2335
        %v2438 = vpop.f32.mrb[0].mxu0
        %v2439 = vadd.f32 0.0, %v2438
        %v2440 = vpop.f32.mrb[0].mxu0
        %2441 = vdwg.mxu0
        %v2443 = vlaneseq
        %v2444 = vshrl.u32 %v2443, 7
        %v2445 = vsub.s32 0, %v2444
        %v2446 = vrot.slane %v991, %v2445
        %v2448 = vadd.f32 %v2446, %v2404
        %v2449 = vadd.f32 %v2446, %v2409
        %v2450 = vadd.f32 %v2446, %v2414
        %v2451 = vadd.f32 %v2446, %v2419
        %v2452 = vadd.f32 %v2446, %v2424
        %v2453 = vadd.f32 %v2446, %v2429
        %v2454 = vadd.f32 %v2446, %v2434
        %v2455 = vadd.f32 %v2446, %v2439
        %2456 = vrot.lane.b32.xlu0 %v949, 120
        %v2457 = vpop.permute.xlu0 %2456
        %2458 = vrot.lane.b32.xlu0 %v949, 88
        %v2459 = vpop.permute.xlu0 %2458
        %v2460 = vsel %vm995, %v2457, 0
        %v2462 = vsel %vm995, %v2459, 0
        %2464 = vmatprep.subr.mxu0 0.0
        %2465 = vmatpush1.xpose.msra.mxu0 %v2462
        %2466 = vmatprep.subr.mxu0 0.0
        %2467 = vmatpush1.xpose.msra.mxu0 0.0
        %2468 = vmatprep.subr.mxu0 0.0
        %2469 = vmatpush1.xpose.msra.mxu0 0.0
        %2470 = vmatprep.subr.mxu0 0.0
        %2471 = vmatpush1.xpose.msra.mxu0 0.0
        %2472 = vmatprep.subr.mxu0 0.0
        %2473 = vmatpush1.xpose.msra.mxu0 0.0
        %2474 = vmatprep.subr.mxu0 0.0
        %2475 = vmatpush1.xpose.msra.mxu0 0.0
        %2476 = vmatprep.subr.mxu0 0.0
        %2477 = vmatpush1.xpose.msra.mxu0 0.0
        %2478 = vmatprep.subr.mxu0 0.0
        %2479 = vmatpush1.xpose.msra.mxu0 0.0
        %2480 = vmatprep.subr.mxu0 0.0
        %2481 = vmatpush1.xpose.msra.mxu0 0.0
        %2482 = vmatprep.subr.mxu0 0.0
        %2483 = vmatpush1.xpose.msra.mxu0 0.0
        %2484 = vmatprep.subr.mxu0 0.0
        %2485 = vmatpush1.xpose.msra.mxu0 0.0
        %2486 = vmatprep.subr.mxu0 0.0
        %2487 = vmatpush1.xpose.msra.mxu0 0.0
        %2488 = vmatprep.subr.mxu0 0.0
        %2489 = vmatpush1.xpose.msra.mxu0 0.0
        %2490 = vmatprep.subr.mxu0 0.0
        %2491 = vmatpush1.xpose.msra.mxu0 0.0
        %2492 = vmatprep.subr.mxu0 0.0
        %2493 = vmatpush1.xpose.msra.mxu0 0.0
        %2494 = vmatprep.subr.mxu0 0.0
        %2495 = vmatpush1.xpose.msra.mxu0 0.0
        %2496 = vmatprep.subr.mxu0 0.0
        %2497 = vmatpush1.xpose.msra.mxu0 0.0
        %2498 = vmatprep.subr.mxu0 0.0
        %2499 = vmatpush1.xpose.msra.mxu0 0.0
        %2500 = vmatprep.subr.mxu0 0.0
        %2501 = vmatpush1.xpose.msra.mxu0 0.0
        %2502 = vmatprep.subr.mxu0 0.0
        %2503 = vmatpush1.xpose.msra.mxu0 0.0
        %2504 = vmatprep.subr.mxu0 0.0
        %2505 = vmatpush1.xpose.msra.mxu0 0.0
        %2506 = vmatprep.subr.mxu0 0.0
        %2507 = vmatpush1.xpose.msra.mxu0 0.0
        %2508 = vmatprep.subr.mxu0 0.0
        %2509 = vmatpush1.xpose.msra.mxu0 0.0
        %2510 = vmatprep.subr.mxu0 0.0
        %2511 = vmatpush1.xpose.msra.mxu0 0.0
        %2512 = vmatprep.subr.mxu0 0.0
        %2513 = vmatpush1.xpose.msra.mxu0 0.0
        %2514 = vmatprep.subr.mxu0 0.0
        %2515 = vmatpush1.xpose.msra.mxu0 0.0
        %2516 = vmatprep.subr.mxu0 0.0
        %2517 = vmatpush1.xpose.msra.mxu0 0.0
        %2518 = vmatprep.subr.mxu0 0.0
        %2519 = vmatpush1.xpose.msra.mxu0 0.0
        %2520 = vmatprep.subr.mxu0 0.0
        %2521 = vmatpush1.xpose.msra.mxu0 0.0
        %2522 = vmatprep.subr.mxu0 0.0
        %2523 = vmatpush1.xpose.msra.mxu0 0.0
        %2524 = vmatprep.subr.mxu0 0.0
        %2525 = vmatpush1.xpose.msra.mxu0 0.0
        %2526 = vmatprep.subr.mxu0 0.0
        %2527 = vmatpush1.xpose.msra.mxu0 0.0
        %2528 = vmatprep.mubr.f32.mxu0 0.0
        %2529 = vmatmul.mubr.f32.gmra.mrb[0].mxu0 %v2460
        %v2530 = vpop.f32.mrb[0].mxu0
        %v2531 = vadd.f32 0.0, %v2530
        %v2532 = vpop.f32.mrb[0].mxu0
        %2533 = vdwg.mxu0
        %2534 = vrot.lane.b32.xlu0 %v954, 120
        %v2535 = vpop.permute.xlu0 %2534
        %2536 = vrot.lane.b32.xlu0 %v954, 88
        %v2537 = vpop.permute.xlu0 %2536
        %v2538 = vsel %vm995, %v2535, 0
        %v2540 = vsel %vm995, %v2537, 0
        %2542 = vmatprep.subr.mxu0 0.0
        %2543 = vmatpush1.xpose.msra.mxu0 %v2540
        %2544 = vmatprep.subr.mxu0 0.0
        %2545 = vmatpush1.xpose.msra.mxu0 0.0
        %2546 = vmatprep.subr.mxu0 0.0
        %2547 = vmatpush1.xpose.msra.mxu0 0.0
        %2548 = vmatprep.subr.mxu0 0.0
        %2549 = vmatpush1.xpose.msra.mxu0 0.0
        %2550 = vmatprep.subr.mxu0 0.0
        %2551 = vmatpush1.xpose.msra.mxu0 0.0
        %2552 = vmatprep.subr.mxu0 0.0
        %2553 = vmatpush1.xpose.msra.mxu0 0.0
        %2554 = vmatprep.subr.mxu0 0.0
        %2555 = vmatpush1.xpose.msra.mxu0 0.0
        %2556 = vmatprep.subr.mxu0 0.0
        %2557 = vmatpush1.xpose.msra.mxu0 0.0
        %2558 = vmatprep.subr.mxu0 0.0
        %2559 = vmatpush1.xpose.msra.mxu0 0.0
        %2560 = vmatprep.subr.mxu0 0.0
        %2561 = vmatpush1.xpose.msra.mxu0 0.0
        %2562 = vmatprep.subr.mxu0 0.0
        %2563 = vmatpush1.xpose.msra.mxu0 0.0
        %2564 = vmatprep.subr.mxu0 0.0
        %2565 = vmatpush1.xpose.msra.mxu0 0.0
        %2566 = vmatprep.subr.mxu0 0.0
        %2567 = vmatpush1.xpose.msra.mxu0 0.0
        %2568 = vmatprep.subr.mxu0 0.0
        %2569 = vmatpush1.xpose.msra.mxu0 0.0
        %2570 = vmatprep.subr.mxu0 0.0
        %2571 = vmatpush1.xpose.msra.mxu0 0.0
        %2572 = vmatprep.subr.mxu0 0.0
        %2573 = vmatpush1.xpose.msra.mxu0 0.0
        %2574 = vmatprep.subr.mxu0 0.0
        %2575 = vmatpush1.xpose.msra.mxu0 0.0
        %2576 = vmatprep.subr.mxu0 0.0
        %2577 = vmatpush1.xpose.msra.mxu0 0.0
        %2578 = vmatprep.subr.mxu0 0.0
        %2579 = vmatpush1.xpose.msra.mxu0 0.0
        %2580 = vmatprep.subr.mxu0 0.0
        %2581 = vmatpush1.xpose.msra.mxu0 0.0
        %2582 = vmatprep.subr.mxu0 0.0
        %2583 = vmatpush1.xpose.msra.mxu0 0.0
        %2584 = vmatprep.subr.mxu0 0.0
        %2585 = vmatpush1.xpose.msra.mxu0 0.0
        %2586 = vmatprep.subr.mxu0 0.0
        %2587 = vmatpush1.xpose.msra.mxu0 0.0
        %2588 = vmatprep.subr.mxu0 0.0
        %2589 = vmatpush1.xpose.msra.mxu0 0.0
        %2590 = vmatprep.subr.mxu0 0.0
        %2591 = vmatpush1.xpose.msra.mxu0 0.0
        %2592 = vmatprep.subr.mxu0 0.0
        %2593 = vmatpush1.xpose.msra.mxu0 0.0
        %2594 = vmatprep.subr.mxu0 0.0
        %2595 = vmatpush1.xpose.msra.mxu0 0.0
        %2596 = vmatprep.subr.mxu0 0.0
        %2597 = vmatpush1.xpose.msra.mxu0 0.0
        %2598 = vmatprep.subr.mxu0 0.0
        %2599 = vmatpush1.xpose.msra.mxu0 0.0
        %2600 = vmatprep.subr.mxu0 0.0
        %2601 = vmatpush1.xpose.msra.mxu0 0.0
        %2602 = vmatprep.subr.mxu0 0.0
        %2603 = vmatpush1.xpose.msra.mxu0 0.0
        %2604 = vmatprep.subr.mxu0 0.0
        %2605 = vmatpush1.xpose.msra.mxu0 0.0
        %2606 = vmatprep.mubr.f32.mxu0 0.0
        %2607 = vmatmul.mubr.f32.gmra.mrb[0].mxu0 %v2538
        %v2608 = vpop.f32.mrb[0].mxu0
        %v2609 = vadd.f32 0.0, %v2608
        %v2610 = vpop.f32.mrb[0].mxu0
        %2611 = vdwg.mxu0
        %2612 = vrot.lane.b32.xlu0 %v959, 120
        %v2613 = vpop.permute.xlu0 %2612
        %2614 = vrot.lane.b32.xlu0 %v959, 88
        %v2615 = vpop.permute.xlu0 %2614
        %v2616 = vsel %vm995, %v2613, 0
        %v2618 = vsel %vm995, %v2615, 0
        %2620 = vmatprep.subr.mxu0 0.0
        %2621 = vmatpush1.xpose.msra.mxu0 %v2618
        %2622 = vmatprep.subr.mxu0 0.0
        %2623 = vmatpush1.xpose.msra.mxu0 0.0
        %2624 = vmatprep.subr.mxu0 0.0
        %2625 = vmatpush1.xpose.msra.mxu0 0.0
        %2626 = vmatprep.subr.mxu0 0.0
        %2627 = vmatpush1.xpose.msra.mxu0 0.0
        %2628 = vmatprep.subr.mxu0 0.0
        %2629 = vmatpush1.xpose.msra.mxu0 0.0
        %2630 = vmatprep.subr.mxu0 0.0
        %2631 = vmatpush1.xpose.msra.mxu0 0.0
        %2632 = vmatprep.subr.mxu0 0.0
        %2633 = vmatpush1.xpose.msra.mxu0 0.0
        %2634 = vmatprep.subr.mxu0 0.0
        %2635 = vmatpush1.xpose.msra.mxu0 0.0
        %2636 = vmatprep.subr.mxu0 0.0
        %2637 = vmatpush1.xpose.msra.mxu0 0.0
        %2638 = vmatprep.subr.mxu0 0.0
        %2639 = vmatpush1.xpose.msra.mxu0 0.0
        %2640 = vmatprep.subr.mxu0 0.0
        %2641 = vmatpush1.xpose.msra.mxu0 0.0
        %2642 = vmatprep.subr.mxu0 0.0
        %2643 = vmatpush1.xpose.msra.mxu0 0.0
        %2644 = vmatprep.subr.mxu0 0.0
        %2645 = vmatpush1.xpose.msra.mxu0 0.0
        %2646 = vmatprep.subr.mxu0 0.0
        %2647 = vmatpush1.xpose.msra.mxu0 0.0
        %2648 = vmatprep.subr.mxu0 0.0
        %2649 = vmatpush1.xpose.msra.mxu0 0.0
        %2650 = vmatprep.subr.mxu0 0.0
        %2651 = vmatpush1.xpose.msra.mxu0 0.0
        %2652 = vmatprep.subr.mxu0 0.0
        %2653 = vmatpush1.xpose.msra.mxu0 0.0
        %2654 = vmatprep.subr.mxu0 0.0
        %2655 = vmatpush1.xpose.msra.mxu0 0.0
        %2656 = vmatprep.subr.mxu0 0.0
        %2657 = vmatpush1.xpose.msra.mxu0 0.0
        %2658 = vmatprep.subr.mxu0 0.0
        %2659 = vmatpush1.xpose.msra.mxu0 0.0
        %2660 = vmatprep.subr.mxu0 0.0
        %2661 = vmatpush1.xpose.msra.mxu0 0.0
        %2662 = vmatprep.subr.mxu0 0.0
        %2663 = vmatpush1.xpose.msra.mxu0 0.0
        %2664 = vmatprep.subr.mxu0 0.0
        %2665 = vmatpush1.xpose.msra.mxu0 0.0
        %2666 = vmatprep.subr.mxu0 0.0
        %2667 = vmatpush1.xpose.msra.mxu0 0.0
        %2668 = vmatprep.subr.mxu0 0.0
        %2669 = vmatpush1.xpose.msra.mxu0 0.0
        %2670 = vmatprep.subr.mxu0 0.0
        %2671 = vmatpush1.xpose.msra.mxu0 0.0
        %2672 = vmatprep.subr.mxu0 0.0
        %2673 = vmatpush1.xpose.msra.mxu0 0.0
        %2674 = vmatprep.subr.mxu0 0.0
        %2675 = vmatpush1.xpose.msra.mxu0 0.0
        %2676 = vmatprep.subr.mxu0 0.0
        %2677 = vmatpush1.xpose.msra.mxu0 0.0
        %2678 = vmatprep.subr.mxu0 0.0
        %2679 = vmatpush1.xpose.msra.mxu0 0.0
        %2680 = vmatprep.subr.mxu0 0.0
        %2681 = vmatpush1.xpose.msra.mxu0 0.0
        %2682 = vmatprep.subr.mxu0 0.0
        %2683 = vmatpush1.xpose.msra.mxu0 0.0
        %2684 = vmatprep.mubr.f32.mxu0 0.0
        %2685 = vmatmul.mubr.f32.gmra.mrb[0].mxu0 %v2616
        %v2686 = vpop.f32.mrb[0].mxu0
        %v2687 = vadd.f32 0.0, %v2686
        %v2688 = vpop.f32.mrb[0].mxu0
        %2689 = vdwg.mxu0
        %2690 = vrot.lane.b32.xlu0 %v964, 120
        %v2691 = vpop.permute.xlu0 %2690
        %2692 = vrot.lane.b32.xlu0 %v964, 88
        %v2693 = vpop.permute.xlu0 %2692
        %v2694 = vsel %vm995, %v2691, 0
        %v2696 = vsel %vm995, %v2693, 0
        %2698 = vmatprep.subr.mxu0 0.0
        %2699 = vmatpush1.xpose.msra.mxu0 %v2696
        %2700 = vmatprep.subr.mxu0 0.0
        %2701 = vmatpush1.xpose.msra.mxu0 0.0
        %2702 = vmatprep.subr.mxu0 0.0
        %2703 = vmatpush1.xpose.msra.mxu0 0.0
        %2704 = vmatprep.subr.mxu0 0.0
        %2705 = vmatpush1.xpose.msra.mxu0 0.0
        %2706 = vmatprep.subr.mxu0 0.0
        %2707 = vmatpush1.xpose.msra.mxu0 0.0
        %2708 = vmatprep.subr.mxu0 0.0
        %2709 = vmatpush1.xpose.msra.mxu0 0.0
        %2710 = vmatprep.subr.mxu0 0.0
        %2711 = vmatpush1.xpose.msra.mxu0 0.0
        %2712 = vmatprep.subr.mxu0 0.0
        %2713 = vmatpush1.xpose.msra.mxu0 0.0
        %2714 = vmatprep.subr.mxu0 0.0
        %2715 = vmatpush1.xpose.msra.mxu0 0.0
        %2716 = vmatprep.subr.mxu0 0.0
        %2717 = vmatpush1.xpose.msra.mxu0 0.0
        %2718 = vmatprep.subr.mxu0 0.0
        %2719 = vmatpush1.xpose.msra.mxu0 0.0
        %2720 = vmatprep.subr.mxu0 0.0
        %2721 = vmatpush1.xpose.msra.mxu0 0.0
        %2722 = vmatprep.subr.mxu0 0.0
        %2723 = vmatpush1.xpose.msra.mxu0 0.0
        %2724 = vmatprep.subr.mxu0 0.0
        %2725 = vmatpush1.xpose.msra.mxu0 0.0
        %2726 = vmatprep.subr.mxu0 0.0
        %2727 = vmatpush1.xpose.msra.mxu0 0.0
        %2728 = vmatprep.subr.mxu0 0.0
        %2729 = vmatpush1.xpose.msra.mxu0 0.0
        %2730 = vmatprep.subr.mxu0 0.0
        %2731 = vmatpush1.xpose.msra.mxu0 0.0
        %2732 = vmatprep.subr.mxu0 0.0
        %2733 = vmatpush1.xpose.msra.mxu0 0.0
        %2734 = vmatprep.subr.mxu0 0.0
        %2735 = vmatpush1.xpose.msra.mxu0 0.0
        %2736 = vmatprep.subr.mxu0 0.0
        %2737 = vmatpush1.xpose.msra.mxu0 0.0
        %2738 = vmatprep.subr.mxu0 0.0
        %2739 = vmatpush1.xpose.msra.mxu0 0.0
        %2740 = vmatprep.subr.mxu0 0.0
        %2741 = vmatpush1.xpose.msra.mxu0 0.0
        %2742 = vmatprep.subr.mxu0 0.0
        %2743 = vmatpush1.xpose.msra.mxu0 0.0
        %2744 = vmatprep.subr.mxu0 0.0
        %2745 = vmatpush1.xpose.msra.mxu0 0.0
        %2746 = vmatprep.subr.mxu0 0.0
        %2747 = vmatpush1.xpose.msra.mxu0 0.0
        %2748 = vmatprep.subr.mxu0 0.0
        %2749 = vmatpush1.xpose.msra.mxu0 0.0
        %2750 = vmatprep.subr.mxu0 0.0
        %2751 = vmatpush1.xpose.msra.mxu0 0.0
        %2752 = vmatprep.subr.mxu0 0.0
        %2753 = vmatpush1.xpose.msra.mxu0 0.0
        %2754 = vmatprep.subr.mxu0 0.0
        %2755 = vmatpush1.xpose.msra.mxu0 0.0
        %2756 = vmatprep.subr.mxu0 0.0
        %2757 = vmatpush1.xpose.msra.mxu0 0.0
        %2758 = vmatprep.subr.mxu0 0.0
        %2759 = vmatpush1.xpose.msra.mxu0 0.0
        %2760 = vmatprep.subr.mxu0 0.0
        %2761 = vmatpush1.xpose.msra.mxu0 0.0
        %2762 = vmatprep.mubr.f32.mxu0 0.0
        %2763 = vmatmul.mubr.f32.gmra.mrb[0].mxu0 %v2694
        %v2764 = vpop.f32.mrb[0].mxu0
        %v2765 = vadd.f32 0.0, %v2764
        %v2766 = vpop.f32.mrb[0].mxu0
        %2767 = vdwg.mxu0
        %2768 = vrot.lane.b32.xlu0 %v969, 120
        %v2769 = vpop.permute.xlu0 %2768
        %2770 = vrot.lane.b32.xlu0 %v969, 88
        %v2771 = vpop.permute.xlu0 %2770
        %v2772 = vsel %vm995, %v2769, 0
        %v2774 = vsel %vm995, %v2771, 0
        %2776 = vmatprep.subr.mxu0 0.0
        %2777 = vmatpush1.xpose.msra.mxu0 %v2774
        %2778 = vmatprep.subr.mxu0 0.0
        %2779 = vmatpush1.xpose.msra.mxu0 0.0
        %2780 = vmatprep.subr.mxu0 0.0
        %2781 = vmatpush1.xpose.msra.mxu0 0.0
        %2782 = vmatprep.subr.mxu0 0.0
        %2783 = vmatpush1.xpose.msra.mxu0 0.0
        %2784 = vmatprep.subr.mxu0 0.0
        %2785 = vmatpush1.xpose.msra.mxu0 0.0
        %2786 = vmatprep.subr.mxu0 0.0
        %2787 = vmatpush1.xpose.msra.mxu0 0.0
        %2788 = vmatprep.subr.mxu0 0.0
        %2789 = vmatpush1.xpose.msra.mxu0 0.0
        %2790 = vmatprep.subr.mxu0 0.0
        %2791 = vmatpush1.xpose.msra.mxu0 0.0
        %2792 = vmatprep.subr.mxu0 0.0
        %2793 = vmatpush1.xpose.msra.mxu0 0.0
        %2794 = vmatprep.subr.mxu0 0.0
        %2795 = vmatpush1.xpose.msra.mxu0 0.0
        %2796 = vmatprep.subr.mxu0 0.0
        %2797 = vmatpush1.xpose.msra.mxu0 0.0
        %2798 = vmatprep.subr.mxu0 0.0
        %2799 = vmatpush1.xpose.msra.mxu0 0.0
        %2800 = vmatprep.subr.mxu0 0.0
        %2801 = vmatpush1.xpose.msra.mxu0 0.0
        %2802 = vmatprep.subr.mxu0 0.0
        %2803 = vmatpush1.xpose.msra.mxu0 0.0
        %2804 = vmatprep.subr.mxu0 0.0
        %2805 = vmatpush1.xpose.msra.mxu0 0.0
        %2806 = vmatprep.subr.mxu0 0.0
        %2807 = vmatpush1.xpose.msra.mxu0 0.0
        %2808 = vmatprep.subr.mxu0 0.0
        %2809 = vmatpush1.xpose.msra.mxu0 0.0
        %2810 = vmatprep.subr.mxu0 0.0
        %2811 = vmatpush1.xpose.msra.mxu0 0.0
        %2812 = vmatprep.subr.mxu0 0.0
        %2813 = vmatpush1.xpose.msra.mxu0 0.0
        %2814 = vmatprep.subr.mxu0 0.0
        %2815 = vmatpush1.xpose.msra.mxu0 0.0
        %2816 = vmatprep.subr.mxu0 0.0
        %2817 = vmatpush1.xpose.msra.mxu0 0.0
        %2818 = vmatprep.subr.mxu0 0.0
        %2819 = vmatpush1.xpose.msra.mxu0 0.0
        %2820 = vmatprep.subr.mxu0 0.0
        %2821 = vmatpush1.xpose.msra.mxu0 0.0
        %2822 = vmatprep.subr.mxu0 0.0
        %2823 = vmatpush1.xpose.msra.mxu0 0.0
        %2824 = vmatprep.subr.mxu0 0.0
        %2825 = vmatpush1.xpose.msra.mxu0 0.0
        %2826 = vmatprep.subr.mxu0 0.0
        %2827 = vmatpush1.xpose.msra.mxu0 0.0
        %2828 = vmatprep.subr.mxu0 0.0
        %2829 = vmatpush1.xpose.msra.mxu0 0.0
        %2830 = vmatprep.subr.mxu0 0.0
        %2831 = vmatpush1.xpose.msra.mxu0 0.0
        %2832 = vmatprep.subr.mxu0 0.0
        %2833 = vmatpush1.xpose.msra.mxu0 0.0
        %2834 = vmatprep.subr.mxu0 0.0
        %2835 = vmatpush1.xpose.msra.mxu0 0.0
        %2836 = vmatprep.subr.mxu0 0.0
        %2837 = vmatpush1.xpose.msra.mxu0 0.0
        %2838 = vmatprep.subr.mxu0 0.0
        %2839 = vmatpush1.xpose.msra.mxu0 0.0
        %2840 = vmatprep.mubr.f32.mxu0 0.0
        %2841 = vmatmul.mubr.f32.gmra.mrb[0].mxu0 %v2772
        %v2842 = vpop.f32.mrb[0].mxu0
        %v2843 = vadd.f32 0.0, %v2842
        %v2844 = vpop.f32.mrb[0].mxu0
        %2845 = vdwg.mxu0
        %2846 = vrot.lane.b32.xlu0 %v974, 120
        %v2847 = vpop.permute.xlu0 %2846
        %2848 = vrot.lane.b32.xlu0 %v974, 88
        %v2849 = vpop.permute.xlu0 %2848
        %v2850 = vsel %vm995, %v2847, 0
        %v2852 = vsel %vm995, %v2849, 0
        %2854 = vmatprep.subr.mxu0 0.0
        %2855 = vmatpush1.xpose.msra.mxu0 %v2852
        %2856 = vmatprep.subr.mxu0 0.0
        %2857 = vmatpush1.xpose.msra.mxu0 0.0
        %2858 = vmatprep.subr.mxu0 0.0
        %2859 = vmatpush1.xpose.msra.mxu0 0.0
        %2860 = vmatprep.subr.mxu0 0.0
        %2861 = vmatpush1.xpose.msra.mxu0 0.0
        %2862 = vmatprep.subr.mxu0 0.0
        %2863 = vmatpush1.xpose.msra.mxu0 0.0
        %2864 = vmatprep.subr.mxu0 0.0
        %2865 = vmatpush1.xpose.msra.mxu0 0.0
        %2866 = vmatprep.subr.mxu0 0.0
        %2867 = vmatpush1.xpose.msra.mxu0 0.0
        %2868 = vmatprep.subr.mxu0 0.0
        %2869 = vmatpush1.xpose.msra.mxu0 0.0
        %2870 = vmatprep.subr.mxu0 0.0
        %2871 = vmatpush1.xpose.msra.mxu0 0.0
        %2872 = vmatprep.subr.mxu0 0.0
        %2873 = vmatpush1.xpose.msra.mxu0 0.0
        %2874 = vmatprep.subr.mxu0 0.0
        %2875 = vmatpush1.xpose.msra.mxu0 0.0
        %2876 = vmatprep.subr.mxu0 0.0
        %2877 = vmatpush1.xpose.msra.mxu0 0.0
        %2878 = vmatprep.subr.mxu0 0.0
        %2879 = vmatpush1.xpose.msra.mxu0 0.0
        %2880 = vmatprep.subr.mxu0 0.0
        %2881 = vmatpush1.xpose.msra.mxu0 0.0
        %2882 = vmatprep.subr.mxu0 0.0
        %2883 = vmatpush1.xpose.msra.mxu0 0.0
        %2884 = vmatprep.subr.mxu0 0.0
        %2885 = vmatpush1.xpose.msra.mxu0 0.0
        %2886 = vmatprep.subr.mxu0 0.0
        %2887 = vmatpush1.xpose.msra.mxu0 0.0
        %2888 = vmatprep.subr.mxu0 0.0
        %2889 = vmatpush1.xpose.msra.mxu0 0.0
        %2890 = vmatprep.subr.mxu0 0.0
        %2891 = vmatpush1.xpose.msra.mxu0 0.0
        %2892 = vmatprep.subr.mxu0 0.0
        %2893 = vmatpush1.xpose.msra.mxu0 0.0
        %2894 = vmatprep.subr.mxu0 0.0
        %2895 = vmatpush1.xpose.msra.mxu0 0.0
        %2896 = vmatprep.subr.mxu0 0.0
        %2897 = vmatpush1.xpose.msra.mxu0 0.0
        %2898 = vmatprep.subr.mxu0 0.0
        %2899 = vmatpush1.xpose.msra.mxu0 0.0
        %2900 = vmatprep.subr.mxu0 0.0
        %2901 = vmatpush1.xpose.msra.mxu0 0.0
        %2902 = vmatprep.subr.mxu0 0.0
        %2903 = vmatpush1.xpose.msra.mxu0 0.0
        %2904 = vmatprep.subr.mxu0 0.0
        %2905 = vmatpush1.xpose.msra.mxu0 0.0
        %2906 = vmatprep.subr.mxu0 0.0
        %2907 = vmatpush1.xpose.msra.mxu0 0.0
        %2908 = vmatprep.subr.mxu0 0.0
        %2909 = vmatpush1.xpose.msra.mxu0 0.0
        %2910 = vmatprep.subr.mxu0 0.0
        %2911 = vmatpush1.xpose.msra.mxu0 0.0
        %2912 = vmatprep.subr.mxu0 0.0
        %2913 = vmatpush1.xpose.msra.mxu0 0.0
        %2914 = vmatprep.subr.mxu0 0.0
        %2915 = vmatpush1.xpose.msra.mxu0 0.0
        %2916 = vmatprep.subr.mxu0 0.0
        %2917 = vmatpush1.xpose.msra.mxu0 0.0
        %2918 = vmatprep.mubr.f32.mxu0 0.0
        %2919 = vmatmul.mubr.f32.gmra.mrb[0].mxu0 %v2850
        %v2920 = vpop.f32.mrb[0].mxu0
        %v2921 = vadd.f32 0.0, %v2920
        %v2922 = vpop.f32.mrb[0].mxu0
        %2923 = vdwg.mxu0
        %2924 = vrot.lane.b32.xlu0 %v979, 120
        %v2925 = vpop.permute.xlu0 %2924
        %2926 = vrot.lane.b32.xlu0 %v979, 88
        %v2927 = vpop.permute.xlu0 %2926
        %v2928 = vsel %vm995, %v2925, 0
        %v2930 = vsel %vm995, %v2927, 0
        %2932 = vmatprep.subr.mxu0 0.0
        %2933 = vmatpush1.xpose.msra.mxu0 %v2930
        %2934 = vmatprep.subr.mxu0 0.0
        %2935 = vmatpush1.xpose.msra.mxu0 0.0
        %2936 = vmatprep.subr.mxu0 0.0
        %2937 = vmatpush1.xpose.msra.mxu0 0.0
        %2938 = vmatprep.subr.mxu0 0.0
        %2939 = vmatpush1.xpose.msra.mxu0 0.0
        %2940 = vmatprep.subr.mxu0 0.0
        %2941 = vmatpush1.xpose.msra.mxu0 0.0
        %2942 = vmatprep.subr.mxu0 0.0
        %2943 = vmatpush1.xpose.msra.mxu0 0.0
        %2944 = vmatprep.subr.mxu0 0.0
        %2945 = vmatpush1.xpose.msra.mxu0 0.0
        %2946 = vmatprep.subr.mxu0 0.0
        %2947 = vmatpush1.xpose.msra.mxu0 0.0
        %2948 = vmatprep.subr.mxu0 0.0
        %2949 = vmatpush1.xpose.msra.mxu0 0.0
        %2950 = vmatprep.subr.mxu0 0.0
        %2951 = vmatpush1.xpose.msra.mxu0 0.0
        %2952 = vmatprep.subr.mxu0 0.0
        %2953 = vmatpush1.xpose.msra.mxu0 0.0
        %2954 = vmatprep.subr.mxu0 0.0
        %2955 = vmatpush1.xpose.msra.mxu0 0.0
        %2956 = vmatprep.subr.mxu0 0.0
        %2957 = vmatpush1.xpose.msra.mxu0 0.0
        %2958 = vmatprep.subr.mxu0 0.0
        %2959 = vmatpush1.xpose.msra.mxu0 0.0
        %2960 = vmatprep.subr.mxu0 0.0
        %2961 = vmatpush1.xpose.msra.mxu0 0.0
        %2962 = vmatprep.subr.mxu0 0.0
        %2963 = vmatpush1.xpose.msra.mxu0 0.0
        %2964 = vmatprep.subr.mxu0 0.0
        %2965 = vmatpush1.xpose.msra.mxu0 0.0
        %2966 = vmatprep.subr.mxu0 0.0
        %2967 = vmatpush1.xpose.msra.mxu0 0.0
        %2968 = vmatprep.subr.mxu0 0.0
        %2969 = vmatpush1.xpose.msra.mxu0 0.0
        %2970 = vmatprep.subr.mxu0 0.0
        %2971 = vmatpush1.xpose.msra.mxu0 0.0
        %2972 = vmatprep.subr.mxu0 0.0
        %2973 = vmatpush1.xpose.msra.mxu0 0.0
        %2974 = vmatprep.subr.mxu0 0.0
        %2975 = vmatpush1.xpose.msra.mxu0 0.0
        %2976 = vmatprep.subr.mxu0 0.0
        %2977 = vmatpush1.xpose.msra.mxu0 0.0
        %2978 = vmatprep.subr.mxu0 0.0
        %2979 = vmatpush1.xpose.msra.mxu0 0.0
        %2980 = vmatprep.subr.mxu0 0.0
        %2981 = vmatpush1.xpose.msra.mxu0 0.0
        %2982 = vmatprep.subr.mxu0 0.0
        %2983 = vmatpush1.xpose.msra.mxu0 0.0
        %2984 = vmatprep.subr.mxu0 0.0
        %2985 = vmatpush1.xpose.msra.mxu0 0.0
        %2986 = vmatprep.subr.mxu0 0.0
        %2987 = vmatpush1.xpose.msra.mxu0 0.0
        %2988 = vmatprep.subr.mxu0 0.0
        %2989 = vmatpush1.xpose.msra.mxu0 0.0
        %2990 = vmatprep.subr.mxu0 0.0
        %2991 = vmatpush1.xpose.msra.mxu0 0.0
        %2992 = vmatprep.subr.mxu0 0.0
        %2993 = vmatpush1.xpose.msra.mxu0 0.0
        %2994 = vmatprep.subr.mxu0 0.0
        %2995 = vmatpush1.xpose.msra.mxu0 0.0
        %2996 = vmatprep.mubr.f32.mxu0 0.0
        %2997 = vmatmul.mubr.f32.gmra.mrb[0].mxu0 %v2928
        %v2998 = vpop.f32.mrb[0].mxu0
        %v2999 = vadd.f32 0.0, %v2998
        %v3000 = vpop.f32.mrb[0].mxu0
        %3001 = vdwg.mxu0
        %3002 = vrot.lane.b32.xlu0 %v984, 120
        %v3003 = vpop.permute.xlu0 %3002
        %3004 = vrot.lane.b32.xlu0 %v984, 88
        %v3005 = vpop.permute.xlu0 %3004
        %v3006 = vsel %vm995, %v3003, 0
        %v3008 = vsel %vm995, %v3005, 0
        %3010 = vmatprep.subr.mxu0 0.0
        %3011 = vmatpush1.xpose.msra.mxu0 %v3008
        %3012 = vmatprep.subr.mxu0 0.0
        %3013 = vmatpush1.xpose.msra.mxu0 0.0
        %3014 = vmatprep.subr.mxu0 0.0
        %3015 = vmatpush1.xpose.msra.mxu0 0.0
        %3016 = vmatprep.subr.mxu0 0.0
        %3017 = vmatpush1.xpose.msra.mxu0 0.0
        %3018 = vmatprep.subr.mxu0 0.0
        %3019 = vmatpush1.xpose.msra.mxu0 0.0
        %3020 = vmatprep.subr.mxu0 0.0
        %3021 = vmatpush1.xpose.msra.mxu0 0.0
        %3022 = vmatprep.subr.mxu0 0.0
        %3023 = vmatpush1.xpose.msra.mxu0 0.0
        %3024 = vmatprep.subr.mxu0 0.0
        %3025 = vmatpush1.xpose.msra.mxu0 0.0
        %3026 = vmatprep.subr.mxu0 0.0
        %3027 = vmatpush1.xpose.msra.mxu0 0.0
        %3028 = vmatprep.subr.mxu0 0.0
        %3029 = vmatpush1.xpose.msra.mxu0 0.0
        %3030 = vmatprep.subr.mxu0 0.0
        %3031 = vmatpush1.xpose.msra.mxu0 0.0
        %3032 = vmatprep.subr.mxu0 0.0
        %3033 = vmatpush1.xpose.msra.mxu0 0.0
        %3034 = vmatprep.subr.mxu0 0.0
        %3035 = vmatpush1.xpose.msra.mxu0 0.0
        %3036 = vmatprep.subr.mxu0 0.0
        %3037 = vmatpush1.xpose.msra.mxu0 0.0
        %3038 = vmatprep.subr.mxu0 0.0
        %3039 = vmatpush1.xpose.msra.mxu0 0.0
        %3040 = vmatprep.subr.mxu0 0.0
        %3041 = vmatpush1.xpose.msra.mxu0 0.0
        %3042 = vmatprep.subr.mxu0 0.0
        %3043 = vmatpush1.xpose.msra.mxu0 0.0
        %3044 = vmatprep.subr.mxu0 0.0
        %3045 = vmatpush1.xpose.msra.mxu0 0.0
        %3046 = vmatprep.subr.mxu0 0.0
        %3047 = vmatpush1.xpose.msra.mxu0 0.0
        %3048 = vmatprep.subr.mxu0 0.0
        %3049 = vmatpush1.xpose.msra.mxu0 0.0
        %3050 = vmatprep.subr.mxu0 0.0
        %3051 = vmatpush1.xpose.msra.mxu0 0.0
        %3052 = vmatprep.subr.mxu0 0.0
        %3053 = vmatpush1.xpose.msra.mxu0 0.0
        %3054 = vmatprep.subr.mxu0 0.0
        %3055 = vmatpush1.xpose.msra.mxu0 0.0
        %3056 = vmatprep.subr.mxu0 0.0
        %3057 = vmatpush1.xpose.msra.mxu0 0.0
        %3058 = vmatprep.subr.mxu0 0.0
        %3059 = vmatpush1.xpose.msra.mxu0 0.0
        %3060 = vmatprep.subr.mxu0 0.0
        %3061 = vmatpush1.xpose.msra.mxu0 0.0
        %3062 = vmatprep.subr.mxu0 0.0
        %3063 = vmatpush1.xpose.msra.mxu0 0.0
        %3064 = vmatprep.subr.mxu0 0.0
        %3065 = vmatpush1.xpose.msra.mxu0 0.0
        %3066 = vmatprep.subr.mxu0 0.0
        %3067 = vmatpush1.xpose.msra.mxu0 0.0
        %3068 = vmatprep.subr.mxu0 0.0
        %3069 = vmatpush1.xpose.msra.mxu0 0.0
        %3070 = vmatprep.subr.mxu0 0.0
        %3071 = vmatpush1.xpose.msra.mxu0 0.0
        %3072 = vmatprep.subr.mxu0 0.0
        %3073 = vmatpush1.xpose.msra.mxu0 0.0
        %3074 = vmatprep.mubr.f32.mxu0 0.0
        %3075 = vmatmul.mubr.f32.gmra.mrb[0].mxu0 %v3006
        %v3076 = vpop.f32.mrb[0].mxu0
        %v3077 = vadd.f32 0.0, %v3076
        %v3078 = vpop.f32.mrb[0].mxu0
        %3079 = vdwg.mxu0
        %v3080 = vmul.f32 %v2531, 0.35355338
        %v3081 = vmul.f32 %v2609, 0.35355338
        %v3082 = vmul.f32 %v2687, 0.35355338
        %v3083 = vmul.f32 %v2765, 0.35355338
        %v3084 = vmul.f32 %v2843, 0.35355338
        %v3085 = vmul.f32 %v2921, 0.35355338
        %v3086 = vmul.f32 %v2999, 0.35355338
        %v3087 = vmul.f32 %v3077, 0.35355338
        %v3088 = vsel %vm995, %v3080, -inf
        %3089 = vmax.xlane.f32.xlu0 %v3088
        %v3090 = vpop.xlane.xlu0 %3089
        %v3091 = vsel %vm995, %v3081, -inf
        %3092 = vmax.xlane.f32.xlu0 %v3091
        %v3093 = vpop.xlane.xlu0 %3092
        %v3094 = vsel %vm995, %v3082, -inf
        %3095 = vmax.xlane.f32.xlu0 %v3094
        %v3096 = vpop.xlane.xlu0 %3095
        %v3097 = vsel %vm995, %v3083, -inf
        %3098 = vmax.xlane.f32.xlu0 %v3097
        %v3099 = vpop.xlane.xlu0 %3098
        %v3100 = vsel %vm995, %v3084, -inf
        %3101 = vmax.xlane.f32.xlu0 %v3100
        %v3102 = vpop.xlane.xlu0 %3101
        %v3103 = vsel %vm995, %v3085, -inf
        %3104 = vmax.xlane.f32.xlu0 %v3103
        %v3105 = vpop.xlane.xlu0 %3104
        %v3106 = vsel %vm995, %v3086, -inf
        %3107 = vmax.xlane.f32.xlu0 %v3106
        %v3108 = vpop.xlane.xlu0 %3107
        %v3109 = vsel %vm995, %v3087, -inf
        %3110 = vmax.xlane.f32.xlu0 %v3109
        %v3111 = vpop.xlane.xlu0 %3110
        %v3112 = vsub.f32 %v3080, %v3090
        %v3113 = vsub.f32 %v3081, %v3093
        %v3114 = vsub.f32 %v3082, %v3096
        %v3115 = vsub.f32 %v3083, %v3099
        %v3116 = vsub.f32 %v3084, %v3102
        %v3117 = vsub.f32 %v3085, %v3105
        %v3118 = vsub.f32 %v3086, %v3108
        %v3119 = vsub.f32 %v3087, %v3111
        %v3120 = vmul.f32 %v3112, 1.442695
        %v3121 = vpow.pop %v3120
        %v3122 = vmul.f32 %v3113, 1.442695
        %v3123 = vpow.pop %v3122
        %v3124 = vmul.f32 %v3114, 1.442695
        %v3125 = vpow.pop %v3124
        %v3126 = vmul.f32 %v3115, 1.442695
        %v3127 = vpow.pop %v3126
        %v3128 = vmul.f32 %v3116, 1.442695
        %v3129 = vpow.pop %v3128
        %v3130 = vmul.f32 %v3117, 1.442695
        %v3131 = vpow.pop %v3130
        %v3132 = vmul.f32 %v3118, 1.442695
        %v3133 = vpow.pop %v3132
        %v3134 = vmul.f32 %v3119, 1.442695
        %v3135 = vpow.pop %v3134
        %v3136 = vsel %vm995, %v3121, 0.0
        %3137 = vadd.xlane.f32.xlu0 %v3136
        %v3138 = vpop.xlane.xlu0 %3137
        %v3139 = vsel %vm995, %v3123, 0.0
        %3140 = vadd.xlane.f32.xlu0 %v3139
        %v3141 = vpop.xlane.xlu0 %3140
        %v3142 = vsel %vm995, %v3125, 0.0
        %3143 = vadd.xlane.f32.xlu0 %v3142
        %v3144 = vpop.xlane.xlu0 %3143
        %v3145 = vsel %vm995, %v3127, 0.0
        %3146 = vadd.xlane.f32.xlu0 %v3145
        %v3147 = vpop.xlane.xlu0 %3146
        %v3148 = vsel %vm995, %v3129, 0.0
        %3149 = vadd.xlane.f32.xlu0 %v3148
        %v3150 = vpop.xlane.xlu0 %3149
        %v3151 = vsel %vm995, %v3131, 0.0
        %3152 = vadd.xlane.f32.xlu0 %v3151
        %v3153 = vpop.xlane.xlu0 %3152
        %v3154 = vsel %vm995, %v3133, 0.0
        %3155 = vadd.xlane.f32.xlu0 %v3154
        %v3156 = vpop.xlane.xlu0 %3155
        %v3157 = vsel %vm995, %v3135, 0.0
        %3158 = vadd.xlane.f32.xlu0 %v3157
        %v3159 = vpop.xlane.xlu0 %3158
        %v3160 = vrcp.pop %v3138
        %v3161 = vrcp.pop %v3141
        %v3162 = vrcp.pop %v3144
        %v3163 = vrcp.pop %v3147
        %v3164 = vrcp.pop %v3150
        %v3165 = vrcp.pop %v3153
        %v3166 = vrcp.pop %v3156
        %v3167 = vrcp.pop %v3159
        %v3168 = vmul.f32 %v3121, %v3160
        %v3169 = vmul.f32 %v3123, %v3161
        %v3170 = vmul.f32 %v3125, %v3162
        %v3171 = vmul.f32 %v3127, %v3163
        %v3172 = vmul.f32 %v3129, %v3164
        %v3173 = vmul.f32 %v3131, %v3165
        %v3174 = vmul.f32 %v3133, %v3166
        %v3175 = vmul.f32 %v3135, %v3167
        %3176 = vrot.lane.b32.xlu0 %v949, 56
        %v3177 = vpop.permute.xlu0 %3176
        %v3180 = vsel %vm995, %v3168, 0
        %3182 = vmatprep.subr.mxu0 0.0
        %3183 = vmatpush1.msra.mxu0 %v3177
        %3184 = vmatprep.subr.mxu0 0.0
        %3185 = vmatpush1.msra.mxu0 0.0
        %3186 = vmatprep.subr.mxu0 0.0
        %3187 = vmatpush1.msra.mxu0 0.0
        %3188 = vmatprep.subr.mxu0 0.0
        %3189 = vmatpush1.msra.mxu0 0.0
        %3190 = vmatprep.subr.mxu0 0.0
        %3191 = vmatpush1.msra.mxu0 0.0
        %3192 = vmatprep.subr.mxu0 0.0
        %3193 = vmatpush1.msra.mxu0 0.0
        %3194 = vmatprep.subr.mxu0 0.0
        %3195 = vmatpush1.msra.mxu0 0.0
        %3196 = vmatprep.subr.mxu0 0.0
        %3197 = vmatpush1.msra.mxu0 0.0
        %3198 = vmatprep.subr.mxu0 0.0
        %3199 = vmatpush1.msra.mxu0 0.0
        %3200 = vmatprep.subr.mxu0 0.0
        %3201 = vmatpush1.msra.mxu0 0.0
        %3202 = vmatprep.subr.mxu0 0.0
        %3203 = vmatpush1.msra.mxu0 0.0
        %3204 = vmatprep.subr.mxu0 0.0
        %3205 = vmatpush1.msra.mxu0 0.0
        %3206 = vmatprep.subr.mxu0 0.0
        %3207 = vmatpush1.msra.mxu0 0.0
        %3208 = vmatprep.subr.mxu0 0.0
        %3209 = vmatpush1.msra.mxu0 0.0
        %3210 = vmatprep.subr.mxu0 0.0
        %3211 = vmatpush1.msra.mxu0 0.0
        %3212 = vmatprep.subr.mxu0 0.0
        %3213 = vmatpush1.msra.mxu0 0.0
        %3214 = vmatprep.subr.mxu0 0.0
        %3215 = vmatpush1.msra.mxu0 0.0
        %3216 = vmatprep.subr.mxu0 0.0
        %3217 = vmatpush1.msra.mxu0 0.0
        %3218 = vmatprep.subr.mxu0 0.0
        %3219 = vmatpush1.msra.mxu0 0.0
        %3220 = vmatprep.subr.mxu0 0.0
        %3221 = vmatpush1.msra.mxu0 0.0
        %3222 = vmatprep.subr.mxu0 0.0
        %3223 = vmatpush1.msra.mxu0 0.0
        %3224 = vmatprep.subr.mxu0 0.0
        %3225 = vmatpush1.msra.mxu0 0.0
        %3226 = vmatprep.subr.mxu0 0.0
        %3227 = vmatpush1.msra.mxu0 0.0
        %3228 = vmatprep.subr.mxu0 0.0
        %3229 = vmatpush1.msra.mxu0 0.0
        %3230 = vmatprep.subr.mxu0 0.0
        %3231 = vmatpush1.msra.mxu0 0.0
        %3232 = vmatprep.subr.mxu0 0.0
        %3233 = vmatpush1.msra.mxu0 0.0
        %3234 = vmatprep.subr.mxu0 0.0
        %3235 = vmatpush1.msra.mxu0 0.0
        %3236 = vmatprep.subr.mxu0 0.0
        %3237 = vmatpush1.msra.mxu0 0.0
        %3238 = vmatprep.subr.mxu0 0.0
        %3239 = vmatpush1.msra.mxu0 0.0
        %3240 = vmatprep.subr.mxu0 0.0
        %3241 = vmatpush1.msra.mxu0 0.0
        %3242 = vmatprep.subr.mxu0 0.0
        %3243 = vmatpush1.msra.mxu0 0.0
        %3244 = vmatprep.subr.mxu0 0.0
        %3245 = vmatpush1.msra.mxu0 0.0
        %3246 = vmatprep.mubr.f32.mxu0 0.0
        %3247 = vmatmul.mubr.f32.gmra.mrb[0].mxu0 %v3180
        %v3248 = vpop.f32.mrb[0].mxu0
        %v3249 = vadd.f32 0.0, %v3248
        %v3250 = vpop.f32.mrb[0].mxu0
        %3251 = vdwg.mxu0
        %3252 = vrot.lane.b32.xlu0 %v954, 56
        %v3253 = vpop.permute.xlu0 %3252
        %v3256 = vsel %vm995, %v3169, 0
        %3258 = vmatprep.subr.mxu0 0.0
        %3259 = vmatpush1.msra.mxu0 %v3253
        %3260 = vmatprep.subr.mxu0 0.0
        %3261 = vmatpush1.msra.mxu0 0.0
        %3262 = vmatprep.subr.mxu0 0.0
        %3263 = vmatpush1.msra.mxu0 0.0
        %3264 = vmatprep.subr.mxu0 0.0
        %3265 = vmatpush1.msra.mxu0 0.0
        %3266 = vmatprep.subr.mxu0 0.0
        %3267 = vmatpush1.msra.mxu0 0.0
        %3268 = vmatprep.subr.mxu0 0.0
        %3269 = vmatpush1.msra.mxu0 0.0
        %3270 = vmatprep.subr.mxu0 0.0
        %3271 = vmatpush1.msra.mxu0 0.0
        %3272 = vmatprep.subr.mxu0 0.0
        %3273 = vmatpush1.msra.mxu0 0.0
        %3274 = vmatprep.subr.mxu0 0.0
        %3275 = vmatpush1.msra.mxu0 0.0
        %3276 = vmatprep.subr.mxu0 0.0
        %3277 = vmatpush1.msra.mxu0 0.0
        %3278 = vmatprep.subr.mxu0 0.0
        %3279 = vmatpush1.msra.mxu0 0.0
        %3280 = vmatprep.subr.mxu0 0.0
        %3281 = vmatpush1.msra.mxu0 0.0
        %3282 = vmatprep.subr.mxu0 0.0
        %3283 = vmatpush1.msra.mxu0 0.0
        %3284 = vmatprep.subr.mxu0 0.0
        %3285 = vmatpush1.msra.mxu0 0.0
        %3286 = vmatprep.subr.mxu0 0.0
        %3287 = vmatpush1.msra.mxu0 0.0
        %3288 = vmatprep.subr.mxu0 0.0
        %3289 = vmatpush1.msra.mxu0 0.0
        %3290 = vmatprep.subr.mxu0 0.0
        %3291 = vmatpush1.msra.mxu0 0.0
        %3292 = vmatprep.subr.mxu0 0.0
        %3293 = vmatpush1.msra.mxu0 0.0
        %3294 = vmatprep.subr.mxu0 0.0
        %3295 = vmatpush1.msra.mxu0 0.0
        %3296 = vmatprep.subr.mxu0 0.0
        %3297 = vmatpush1.msra.mxu0 0.0
        %3298 = vmatprep.subr.mxu0 0.0
        %3299 = vmatpush1.msra.mxu0 0.0
        %3300 = vmatprep.subr.mxu0 0.0
        %3301 = vmatpush1.msra.mxu0 0.0
        %3302 = vmatprep.subr.mxu0 0.0
        %3303 = vmatpush1.msra.mxu0 0.0
        %3304 = vmatprep.subr.mxu0 0.0
        %3305 = vmatpush1.msra.mxu0 0.0
        %3306 = vmatprep.subr.mxu0 0.0
        %3307 = vmatpush1.msra.mxu0 0.0
        %3308 = vmatprep.subr.mxu0 0.0
        %3309 = vmatpush1.msra.mxu0 0.0
        %3310 = vmatprep.subr.mxu0 0.0
        %3311 = vmatpush1.msra.mxu0 0.0
        %3312 = vmatprep.subr.mxu0 0.0
        %3313 = vmatpush1.msra.mxu0 0.0
        %3314 = vmatprep.subr.mxu0 0.0
        %3315 = vmatpush1.msra.mxu0 0.0
        %3316 = vmatprep.subr.mxu0 0.0
        %3317 = vmatpush1.msra.mxu0 0.0
        %3318 = vmatprep.subr.mxu0 0.0
        %3319 = vmatpush1.msra.mxu0 0.0
        %3320 = vmatprep.subr.mxu0 0.0
        %3321 = vmatpush1.msra.mxu0 0.0
        %3322 = vmatprep.mubr.f32.mxu0 0.0
        %3323 = vmatmul.mubr.f32.gmra.mrb[0].mxu0 %v3256
        %v3324 = vpop.f32.mrb[0].mxu0
        %v3325 = vadd.f32 0.0, %v3324
        %v3326 = vpop.f32.mrb[0].mxu0
        %3327 = vdwg.mxu0
        %3328 = vrot.lane.b32.xlu0 %v959, 56
        %v3329 = vpop.permute.xlu0 %3328
        %v3332 = vsel %vm995, %v3170, 0
        %3334 = vmatprep.subr.mxu0 0.0
        %3335 = vmatpush1.msra.mxu0 %v3329
        %3336 = vmatprep.subr.mxu0 0.0
        %3337 = vmatpush1.msra.mxu0 0.0
        %3338 = vmatprep.subr.mxu0 0.0
        %3339 = vmatpush1.msra.mxu0 0.0
        %3340 = vmatprep.subr.mxu0 0.0
        %3341 = vmatpush1.msra.mxu0 0.0
        %3342 = vmatprep.subr.mxu0 0.0
        %3343 = vmatpush1.msra.mxu0 0.0
        %3344 = vmatprep.subr.mxu0 0.0
        %3345 = vmatpush1.msra.mxu0 0.0
        %3346 = vmatprep.subr.mxu0 0.0
        %3347 = vmatpush1.msra.mxu0 0.0
        %3348 = vmatprep.subr.mxu0 0.0
        %3349 = vmatpush1.msra.mxu0 0.0
        %3350 = vmatprep.subr.mxu0 0.0
        %3351 = vmatpush1.msra.mxu0 0.0
        %3352 = vmatprep.subr.mxu0 0.0
        %3353 = vmatpush1.msra.mxu0 0.0
        %3354 = vmatprep.subr.mxu0 0.0
        %3355 = vmatpush1.msra.mxu0 0.0
        %3356 = vmatprep.subr.mxu0 0.0
        %3357 = vmatpush1.msra.mxu0 0.0
        %3358 = vmatprep.subr.mxu0 0.0
        %3359 = vmatpush1.msra.mxu0 0.0
        %3360 = vmatprep.subr.mxu0 0.0
        %3361 = vmatpush1.msra.mxu0 0.0
        %3362 = vmatprep.subr.mxu0 0.0
        %3363 = vmatpush1.msra.mxu0 0.0
        %3364 = vmatprep.subr.mxu0 0.0
        %3365 = vmatpush1.msra.mxu0 0.0
        %3366 = vmatprep.subr.mxu0 0.0
        %3367 = vmatpush1.msra.mxu0 0.0
        %3368 = vmatprep.subr.mxu0 0.0
        %3369 = vmatpush1.msra.mxu0 0.0
        %3370 = vmatprep.subr.mxu0 0.0
        %3371 = vmatpush1.msra.mxu0 0.0
        %3372 = vmatprep.subr.mxu0 0.0
        %3373 = vmatpush1.msra.mxu0 0.0
        %3374 = vmatprep.subr.mxu0 0.0
        %3375 = vmatpush1.msra.mxu0 0.0
        %3376 = vmatprep.subr.mxu0 0.0
        %3377 = vmatpush1.msra.mxu0 0.0
        %3378 = vmatprep.subr.mxu0 0.0
        %3379 = vmatpush1.msra.mxu0 0.0
        %3380 = vmatprep.subr.mxu0 0.0
        %3381 = vmatpush1.msra.mxu0 0.0
        %3382 = vmatprep.subr.mxu0 0.0
        %3383 = vmatpush1.msra.mxu0 0.0
        %3384 = vmatprep.subr.mxu0 0.0
        %3385 = vmatpush1.msra.mxu0 0.0
        %3386 = vmatprep.subr.mxu0 0.0
        %3387 = vmatpush1.msra.mxu0 0.0
        %3388 = vmatprep.subr.mxu0 0.0
        %3389 = vmatpush1.msra.mxu0 0.0
        %3390 = vmatprep.subr.mxu0 0.0
        %3391 = vmatpush1.msra.mxu0 0.0
        %3392 = vmatprep.subr.mxu0 0.0
        %3393 = vmatpush1.msra.mxu0 0.0
        %3394 = vmatprep.subr.mxu0 0.0
        %3395 = vmatpush1.msra.mxu0 0.0
        %3396 = vmatprep.subr.mxu0 0.0
        %3397 = vmatpush1.msra.mxu0 0.0
        %3398 = vmatprep.mubr.f32.mxu0 0.0
        %3399 = vmatmul.mubr.f32.gmra.mrb[0].mxu0 %v3332
        %v3400 = vpop.f32.mrb[0].mxu0
        %v3401 = vadd.f32 0.0, %v3400
        %v3402 = vpop.f32.mrb[0].mxu0
        %3403 = vdwg.mxu0
        %3404 = vrot.lane.b32.xlu0 %v964, 56
        %v3405 = vpop.permute.xlu0 %3404
        %v3408 = vsel %vm995, %v3171, 0
        %3410 = vmatprep.subr.mxu0 0.0
        %3411 = vmatpush1.msra.mxu0 %v3405
        %3412 = vmatprep.subr.mxu0 0.0
        %3413 = vmatpush1.msra.mxu0 0.0
        %3414 = vmatprep.subr.mxu0 0.0
        %3415 = vmatpush1.msra.mxu0 0.0
        %3416 = vmatprep.subr.mxu0 0.0
        %3417 = vmatpush1.msra.mxu0 0.0
        %3418 = vmatprep.subr.mxu0 0.0
        %3419 = vmatpush1.msra.mxu0 0.0
        %3420 = vmatprep.subr.mxu0 0.0
        %3421 = vmatpush1.msra.mxu0 0.0
        %3422 = vmatprep.subr.mxu0 0.0
        %3423 = vmatpush1.msra.mxu0 0.0
        %3424 = vmatprep.subr.mxu0 0.0
        %3425 = vmatpush1.msra.mxu0 0.0
        %3426 = vmatprep.subr.mxu0 0.0
        %3427 = vmatpush1.msra.mxu0 0.0
        %3428 = vmatprep.subr.mxu0 0.0
        %3429 = vmatpush1.msra.mxu0 0.0
        %3430 = vmatprep.subr.mxu0 0.0
        %3431 = vmatpush1.msra.mxu0 0.0
        %3432 = vmatprep.subr.mxu0 0.0
        %3433 = vmatpush1.msra.mxu0 0.0
        %3434 = vmatprep.subr.mxu0 0.0
        %3435 = vmatpush1.msra.mxu0 0.0
        %3436 = vmatprep.subr.mxu0 0.0
        %3437 = vmatpush1.msra.mxu0 0.0
        %3438 = vmatprep.subr.mxu0 0.0
        %3439 = vmatpush1.msra.mxu0 0.0
        %3440 = vmatprep.subr.mxu0 0.0
        %3441 = vmatpush1.msra.mxu0 0.0
        %3442 = vmatprep.subr.mxu0 0.0
        %3443 = vmatpush1.msra.mxu0 0.0
        %3444 = vmatprep.subr.mxu0 0.0
        %3445 = vmatpush1.msra.mxu0 0.0
        %3446 = vmatprep.subr.mxu0 0.0
        %3447 = vmatpush1.msra.mxu0 0.0
        %3448 = vmatprep.subr.mxu0 0.0
        %3449 = vmatpush1.msra.mxu0 0.0
        %3450 = vmatprep.subr.mxu0 0.0
        %3451 = vmatpush1.msra.mxu0 0.0
        %3452 = vmatprep.subr.mxu0 0.0
        %3453 = vmatpush1.msra.mxu0 0.0
        %3454 = vmatprep.subr.mxu0 0.0
        %3455 = vmatpush1.msra.mxu0 0.0
        %3456 = vmatprep.subr.mxu0 0.0
        %3457 = vmatpush1.msra.mxu0 0.0
        %3458 = vmatprep.subr.mxu0 0.0
        %3459 = vmatpush1.msra.mxu0 0.0
        %3460 = vmatprep.subr.mxu0 0.0
        %3461 = vmatpush1.msra.mxu0 0.0
        %3462 = vmatprep.subr.mxu0 0.0
        %3463 = vmatpush1.msra.mxu0 0.0
        %3464 = vmatprep.subr.mxu0 0.0
        %3465 = vmatpush1.msra.mxu0 0.0
        %3466 = vmatprep.subr.mxu0 0.0
        %3467 = vmatpush1.msra.mxu0 0.0
        %3468 = vmatprep.subr.mxu0 0.0
        %3469 = vmatpush1.msra.mxu0 0.0
        %3470 = vmatprep.subr.mxu0 0.0
        %3471 = vmatpush1.msra.mxu0 0.0
        %3472 = vmatprep.subr.mxu0 0.0
        %3473 = vmatpush1.msra.mxu0 0.0
        %3474 = vmatprep.mubr.f32.mxu0 0.0
        %3475 = vmatmul.mubr.f32.gmra.mrb[0].mxu0 %v3408
        %v3476 = vpop.f32.mrb[0].mxu0
        %v3477 = vadd.f32 0.0, %v3476
        %v3478 = vpop.f32.mrb[0].mxu0
        %3479 = vdwg.mxu0
        %3480 = vrot.lane.b32.xlu0 %v969, 56
        %v3481 = vpop.permute.xlu0 %3480
        %v3484 = vsel %vm995, %v3172, 0
        %3486 = vmatprep.subr.mxu0 0.0
        %3487 = vmatpush1.msra.mxu0 %v3481
        %3488 = vmatprep.subr.mxu0 0.0
        %3489 = vmatpush1.msra.mxu0 0.0
        %3490 = vmatprep.subr.mxu0 0.0
        %3491 = vmatpush1.msra.mxu0 0.0
        %3492 = vmatprep.subr.mxu0 0.0
        %3493 = vmatpush1.msra.mxu0 0.0
        %3494 = vmatprep.subr.mxu0 0.0
        %3495 = vmatpush1.msra.mxu0 0.0
        %3496 = vmatprep.subr.mxu0 0.0
        %3497 = vmatpush1.msra.mxu0 0.0
        %3498 = vmatprep.subr.mxu0 0.0
        %3499 = vmatpush1.msra.mxu0 0.0
        %3500 = vmatprep.subr.mxu0 0.0
        %3501 = vmatpush1.msra.mxu0 0.0
        %3502 = vmatprep.subr.mxu0 0.0
        %3503 = vmatpush1.msra.mxu0 0.0
        %3504 = vmatprep.subr.mxu0 0.0
        %3505 = vmatpush1.msra.mxu0 0.0
        %3506 = vmatprep.subr.mxu0 0.0
        %3507 = vmatpush1.msra.mxu0 0.0
        %3508 = vmatprep.subr.mxu0 0.0
        %3509 = vmatpush1.msra.mxu0 0.0
        %3510 = vmatprep.subr.mxu0 0.0
        %3511 = vmatpush1.msra.mxu0 0.0
        %3512 = vmatprep.subr.mxu0 0.0
        %3513 = vmatpush1.msra.mxu0 0.0
        %3514 = vmatprep.subr.mxu0 0.0
        %3515 = vmatpush1.msra.mxu0 0.0
        %3516 = vmatprep.subr.mxu0 0.0
        %3517 = vmatpush1.msra.mxu0 0.0
        %3518 = vmatprep.subr.mxu0 0.0
        %3519 = vmatpush1.msra.mxu0 0.0
        %3520 = vmatprep.subr.mxu0 0.0
        %3521 = vmatpush1.msra.mxu0 0.0
        %3522 = vmatprep.subr.mxu0 0.0
        %3523 = vmatpush1.msra.mxu0 0.0
        %3524 = vmatprep.subr.mxu0 0.0
        %3525 = vmatpush1.msra.mxu0 0.0
        %3526 = vmatprep.subr.mxu0 0.0
        %3527 = vmatpush1.msra.mxu0 0.0
        %3528 = vmatprep.subr.mxu0 0.0
        %3529 = vmatpush1.msra.mxu0 0.0
        %3530 = vmatprep.subr.mxu0 0.0
        %3531 = vmatpush1.msra.mxu0 0.0
        %3532 = vmatprep.subr.mxu0 0.0
        %3533 = vmatpush1.msra.mxu0 0.0
        %3534 = vmatprep.subr.mxu0 0.0
        %3535 = vmatpush1.msra.mxu0 0.0
        %3536 = vmatprep.subr.mxu0 0.0
        %3537 = vmatpush1.msra.mxu0 0.0
        %3538 = vmatprep.subr.mxu0 0.0
        %3539 = vmatpush1.msra.mxu0 0.0
        %3540 = vmatprep.subr.mxu0 0.0
        %3541 = vmatpush1.msra.mxu0 0.0
        %3542 = vmatprep.subr.mxu0 0.0
        %3543 = vmatpush1.msra.mxu0 0.0
        %3544 = vmatprep.subr.mxu0 0.0
        %3545 = vmatpush1.msra.mxu0 0.0
        %3546 = vmatprep.subr.mxu0 0.0
        %3547 = vmatpush1.msra.mxu0 0.0
        %3548 = vmatprep.subr.mxu0 0.0
        %3549 = vmatpush1.msra.mxu0 0.0
        %3550 = vmatprep.mubr.f32.mxu0 0.0
        %3551 = vmatmul.mubr.f32.gmra.mrb[0].mxu0 %v3484
        %v3552 = vpop.f32.mrb[0].mxu0
        %v3553 = vadd.f32 0.0, %v3552
        %v3554 = vpop.f32.mrb[0].mxu0
        %3555 = vdwg.mxu0
        %3556 = vrot.lane.b32.xlu0 %v974, 56
        %v3557 = vpop.permute.xlu0 %3556
        %v3560 = vsel %vm995, %v3173, 0
        %3562 = vmatprep.subr.mxu0 0.0
        %3563 = vmatpush1.msra.mxu0 %v3557
        %3564 = vmatprep.subr.mxu0 0.0
        %3565 = vmatpush1.msra.mxu0 0.0
        %3566 = vmatprep.subr.mxu0 0.0
        %3567 = vmatpush1.msra.mxu0 0.0
        %3568 = vmatprep.subr.mxu0 0.0
        %3569 = vmatpush1.msra.mxu0 0.0
        %3570 = vmatprep.subr.mxu0 0.0
        %3571 = vmatpush1.msra.mxu0 0.0
        %3572 = vmatprep.subr.mxu0 0.0
        %3573 = vmatpush1.msra.mxu0 0.0
        %3574 = vmatprep.subr.mxu0 0.0
        %3575 = vmatpush1.msra.mxu0 0.0
        %3576 = vmatprep.subr.mxu0 0.0
        %3577 = vmatpush1.msra.mxu0 0.0
        %3578 = vmatprep.subr.mxu0 0.0
        %3579 = vmatpush1.msra.mxu0 0.0
        %3580 = vmatprep.subr.mxu0 0.0
        %3581 = vmatpush1.msra.mxu0 0.0
        %3582 = vmatprep.subr.mxu0 0.0
        %3583 = vmatpush1.msra.mxu0 0.0
        %3584 = vmatprep.subr.mxu0 0.0
        %3585 = vmatpush1.msra.mxu0 0.0
        %3586 = vmatprep.subr.mxu0 0.0
        %3587 = vmatpush1.msra.mxu0 0.0
        %3588 = vmatprep.subr.mxu0 0.0
        %3589 = vmatpush1.msra.mxu0 0.0
        %3590 = vmatprep.subr.mxu0 0.0
        %3591 = vmatpush1.msra.mxu0 0.0
        %3592 = vmatprep.subr.mxu0 0.0
        %3593 = vmatpush1.msra.mxu0 0.0
        %3594 = vmatprep.subr.mxu0 0.0
        %3595 = vmatpush1.msra.mxu0 0.0
        %3596 = vmatprep.subr.mxu0 0.0
        %3597 = vmatpush1.msra.mxu0 0.0
        %3598 = vmatprep.subr.mxu0 0.0
        %3599 = vmatpush1.msra.mxu0 0.0
        %3600 = vmatprep.subr.mxu0 0.0
        %3601 = vmatpush1.msra.mxu0 0.0
        %3602 = vmatprep.subr.mxu0 0.0
        %3603 = vmatpush1.msra.mxu0 0.0
        %3604 = vmatprep.subr.mxu0 0.0
        %3605 = vmatpush1.msra.mxu0 0.0
        %3606 = vmatprep.subr.mxu0 0.0
        %3607 = vmatpush1.msra.mxu0 0.0
        %3608 = vmatprep.subr.mxu0 0.0
        %3609 = vmatpush1.msra.mxu0 0.0
        %3610 = vmatprep.subr.mxu0 0.0
        %3611 = vmatpush1.msra.mxu0 0.0
        %3612 = vmatprep.subr.mxu0 0.0
        %3613 = vmatpush1.msra.mxu0 0.0
        %3614 = vmatprep.subr.mxu0 0.0
        %3615 = vmatpush1.msra.mxu0 0.0
        %3616 = vmatprep.subr.mxu0 0.0
        %3617 = vmatpush1.msra.mxu0 0.0
        %3618 = vmatprep.subr.mxu0 0.0
        %3619 = vmatpush1.msra.mxu0 0.0
        %3620 = vmatprep.subr.mxu0 0.0
        %3621 = vmatpush1.msra.mxu0 0.0
        %3622 = vmatprep.subr.mxu0 0.0
        %3623 = vmatpush1.msra.mxu0 0.0
        %3624 = vmatprep.subr.mxu0 0.0
        %3625 = vmatpush1.msra.mxu0 0.0
        %3626 = vmatprep.mubr.f32.mxu0 0.0
        %3627 = vmatmul.mubr.f32.gmra.mrb[0].mxu0 %v3560
        %v3628 = vpop.f32.mrb[0].mxu0
        %v3629 = vadd.f32 0.0, %v3628
        %v3630 = vpop.f32.mrb[0].mxu0
        %3631 = vdwg.mxu0
        %3632 = vrot.lane.b32.xlu0 %v979, 56
        %v3633 = vpop.permute.xlu0 %3632
        %v3636 = vsel %vm995, %v3174, 0
        %3638 = vmatprep.subr.mxu0 0.0
        %3639 = vmatpush1.msra.mxu0 %v3633
        %3640 = vmatprep.subr.mxu0 0.0
        %3641 = vmatpush1.msra.mxu0 0.0
        %3642 = vmatprep.subr.mxu0 0.0
        %3643 = vmatpush1.msra.mxu0 0.0
        %3644 = vmatprep.subr.mxu0 0.0
        %3645 = vmatpush1.msra.mxu0 0.0
        %3646 = vmatprep.subr.mxu0 0.0
        %3647 = vmatpush1.msra.mxu0 0.0
        %3648 = vmatprep.subr.mxu0 0.0
        %3649 = vmatpush1.msra.mxu0 0.0
        %3650 = vmatprep.subr.mxu0 0.0
        %3651 = vmatpush1.msra.mxu0 0.0
        %3652 = vmatprep.subr.mxu0 0.0
        %3653 = vmatpush1.msra.mxu0 0.0
        %3654 = vmatprep.subr.mxu0 0.0
        %3655 = vmatpush1.msra.mxu0 0.0
        %3656 = vmatprep.subr.mxu0 0.0
        %3657 = vmatpush1.msra.mxu0 0.0
        %3658 = vmatprep.subr.mxu0 0.0
        %3659 = vmatpush1.msra.mxu0 0.0
        %3660 = vmatprep.subr.mxu0 0.0
        %3661 = vmatpush1.msra.mxu0 0.0
        %3662 = vmatprep.subr.mxu0 0.0
        %3663 = vmatpush1.msra.mxu0 0.0
        %3664 = vmatprep.subr.mxu0 0.0
        %3665 = vmatpush1.msra.mxu0 0.0
        %3666 = vmatprep.subr.mxu0 0.0
        %3667 = vmatpush1.msra.mxu0 0.0
        %3668 = vmatprep.subr.mxu0 0.0
        %3669 = vmatpush1.msra.mxu0 0.0
        %3670 = vmatprep.subr.mxu0 0.0
        %3671 = vmatpush1.msra.mxu0 0.0
        %3672 = vmatprep.subr.mxu0 0.0
        %3673 = vmatpush1.msra.mxu0 0.0
        %3674 = vmatprep.subr.mxu0 0.0
        %3675 = vmatpush1.msra.mxu0 0.0
        %3676 = vmatprep.subr.mxu0 0.0
        %3677 = vmatpush1.msra.mxu0 0.0
        %3678 = vmatprep.subr.mxu0 0.0
        %3679 = vmatpush1.msra.mxu0 0.0
        %3680 = vmatprep.subr.mxu0 0.0
        %3681 = vmatpush1.msra.mxu0 0.0
        %3682 = vmatprep.subr.mxu0 0.0
        %3683 = vmatpush1.msra.mxu0 0.0
        %3684 = vmatprep.subr.mxu0 0.0
        %3685 = vmatpush1.msra.mxu0 0.0
        %3686 = vmatprep.subr.mxu0 0.0
        %3687 = vmatpush1.msra.mxu0 0.0
        %3688 = vmatprep.subr.mxu0 0.0
        %3689 = vmatpush1.msra.mxu0 0.0
        %3690 = vmatprep.subr.mxu0 0.0
        %3691 = vmatpush1.msra.mxu0 0.0
        %3692 = vmatprep.subr.mxu0 0.0
        %3693 = vmatpush1.msra.mxu0 0.0
        %3694 = vmatprep.subr.mxu0 0.0
        %3695 = vmatpush1.msra.mxu0 0.0
        %3696 = vmatprep.subr.mxu0 0.0
        %3697 = vmatpush1.msra.mxu0 0.0
        %3698 = vmatprep.subr.mxu0 0.0
        %3699 = vmatpush1.msra.mxu0 0.0
        %3700 = vmatprep.subr.mxu0 0.0
        %3701 = vmatpush1.msra.mxu0 0.0
        %3702 = vmatprep.mubr.f32.mxu0 0.0
        %3703 = vmatmul.mubr.f32.gmra.mrb[0].mxu0 %v3636
        %v3704 = vpop.f32.mrb[0].mxu0
        %v3705 = vadd.f32 0.0, %v3704
        %v3706 = vpop.f32.mrb[0].mxu0
        %3707 = vdwg.mxu0
        %3708 = vrot.lane.b32.xlu0 %v984, 56
        %v3709 = vpop.permute.xlu0 %3708
        %v3712 = vsel %vm995, %v3175, 0
        %3714 = vmatprep.subr.mxu0 0.0
        %3715 = vmatpush1.msra.mxu0 %v3709
        %3716 = vmatprep.subr.mxu0 0.0
        %3717 = vmatpush1.msra.mxu0 0.0
        %3718 = vmatprep.subr.mxu0 0.0
        %3719 = vmatpush1.msra.mxu0 0.0
        %3720 = vmatprep.subr.mxu0 0.0
        %3721 = vmatpush1.msra.mxu0 0.0
        %3722 = vmatprep.subr.mxu0 0.0
        %3723 = vmatpush1.msra.mxu0 0.0
        %3724 = vmatprep.subr.mxu0 0.0
        %3725 = vmatpush1.msra.mxu0 0.0
        %3726 = vmatprep.subr.mxu0 0.0
        %3727 = vmatpush1.msra.mxu0 0.0
        %3728 = vmatprep.subr.mxu0 0.0
        %3729 = vmatpush1.msra.mxu0 0.0
        %3730 = vmatprep.subr.mxu0 0.0
        %3731 = vmatpush1.msra.mxu0 0.0
        %3732 = vmatprep.subr.mxu0 0.0
        %3733 = vmatpush1.msra.mxu0 0.0
        %3734 = vmatprep.subr.mxu0 0.0
        %3735 = vmatpush1.msra.mxu0 0.0
        %3736 = vmatprep.subr.mxu0 0.0
        %3737 = vmatpush1.msra.mxu0 0.0
        %3738 = vmatprep.subr.mxu0 0.0
        %3739 = vmatpush1.msra.mxu0 0.0
        %3740 = vmatprep.subr.mxu0 0.0
        %3741 = vmatpush1.msra.mxu0 0.0
        %3742 = vmatprep.subr.mxu0 0.0
        %3743 = vmatpush1.msra.mxu0 0.0
        %3744 = vmatprep.subr.mxu0 0.0
        %3745 = vmatpush1.msra.mxu0 0.0
        %3746 = vmatprep.subr.mxu0 0.0
        %3747 = vmatpush1.msra.mxu0 0.0
        %3748 = vmatprep.subr.mxu0 0.0
        %3749 = vmatpush1.msra.mxu0 0.0
        %3750 = vmatprep.subr.mxu0 0.0
        %3751 = vmatpush1.msra.mxu0 0.0
        %3752 = vmatprep.subr.mxu0 0.0
        %3753 = vmatpush1.msra.mxu0 0.0
        %3754 = vmatprep.subr.mxu0 0.0
        %3755 = vmatpush1.msra.mxu0 0.0
        %3756 = vmatprep.subr.mxu0 0.0
        %3757 = vmatpush1.msra.mxu0 0.0
        %3758 = vmatprep.subr.mxu0 0.0
        %3759 = vmatpush1.msra.mxu0 0.0
        %3760 = vmatprep.subr.mxu0 0.0
        %3761 = vmatpush1.msra.mxu0 0.0
        %3762 = vmatprep.subr.mxu0 0.0
        %3763 = vmatpush1.msra.mxu0 0.0
        %3764 = vmatprep.subr.mxu0 0.0
        %3765 = vmatpush1.msra.mxu0 0.0
        %3766 = vmatprep.subr.mxu0 0.0
        %3767 = vmatpush1.msra.mxu0 0.0
        %3768 = vmatprep.subr.mxu0 0.0
        %3769 = vmatpush1.msra.mxu0 0.0
        %3770 = vmatprep.subr.mxu0 0.0
        %3771 = vmatpush1.msra.mxu0 0.0
        %3772 = vmatprep.subr.mxu0 0.0
        %3773 = vmatpush1.msra.mxu0 0.0
        %3774 = vmatprep.subr.mxu0 0.0
        %3775 = vmatpush1.msra.mxu0 0.0
        %3776 = vmatprep.subr.mxu0 0.0
        %3777 = vmatpush1.msra.mxu0 0.0
        %3778 = vmatprep.mubr.f32.mxu0 0.0
        %3779 = vmatmul.mubr.f32.gmra.mrb[0].mxu0 %v3712
        %v3780 = vpop.f32.mrb[0].mxu0
        %v3781 = vadd.f32 0.0, %v3780
        %v3782 = vpop.f32.mrb[0].mxu0
        %3783 = vdwg.mxu0
        %v3785 = vsel %vm995, %v3249, 0
        %v3788 = vsel %vm995, %v3325, 0
        %v3791 = vsel %vm995, %v3401, 0
        %v3794 = vsel %vm995, %v3477, 0
        %v3797 = vsel %vm995, %v3553, 0
        %v3800 = vsel %vm995, %v3629, 0
        %v3803 = vsel %vm995, %v3705, 0
        %v3806 = vsel %vm995, %v3781, 0
        %3808 = vmatprep.subr.mxu0 0.0
        %3809 = vmatpush1.msra.mxu0 %v988
        %3810 = vmatprep.subr.mxu0 0.0
        %3811 = vmatpush1.msra.mxu0 0.0
        %3812 = vmatprep.subr.mxu0 0.0
        %3813 = vmatpush1.msra.mxu0 0.0
        %3814 = vmatprep.subr.mxu0 0.0
        %3815 = vmatpush1.msra.mxu0 0.0
        %3816 = vmatprep.subr.mxu0 0.0
        %3817 = vmatpush1.msra.mxu0 0.0
        %3818 = vmatprep.subr.mxu0 0.0
        %3819 = vmatpush1.msra.mxu0 0.0
        %3820 = vmatprep.subr.mxu0 0.0
        %3821 = vmatpush1.msra.mxu0 0.0
        %3822 = vmatprep.subr.mxu0 0.0
        %3823 = vmatpush1.msra.mxu0 0.0
        %3824 = vmatprep.subr.mxu0 0.0
        %3825 = vmatpush1.msra.mxu0 0.0
        %3826 = vmatprep.subr.mxu0 0.0
        %3827 = vmatpush1.msra.mxu0 0.0
        %3828 = vmatprep.subr.mxu0 0.0
        %3829 = vmatpush1.msra.mxu0 0.0
        %3830 = vmatprep.subr.mxu0 0.0
        %3831 = vmatpush1.msra.mxu0 0.0
        %3832 = vmatprep.subr.mxu0 0.0
        %3833 = vmatpush1.msra.mxu0 0.0
        %3834 = vmatprep.subr.mxu0 0.0
        %3835 = vmatpush1.msra.mxu0 0.0
        %3836 = vmatprep.subr.mxu0 0.0
        %3837 = vmatpush1.msra.mxu0 0.0
        %3838 = vmatprep.subr.mxu0 0.0
        %3839 = vmatpush1.msra.mxu0 0.0
        %3840 = vmatprep.subr.mxu0 0.0
        %3841 = vmatpush1.msra.mxu0 0.0
        %3842 = vmatprep.subr.mxu0 0.0
        %3843 = vmatpush1.msra.mxu0 0.0
        %3844 = vmatprep.subr.mxu0 0.0
        %3845 = vmatpush1.msra.mxu0 0.0
        %3846 = vmatprep.subr.mxu0 0.0
        %3847 = vmatpush1.msra.mxu0 0.0
        %3848 = vmatprep.subr.mxu0 0.0
        %3849 = vmatpush1.msra.mxu0 0.0
        %3850 = vmatprep.subr.mxu0 0.0
        %3851 = vmatpush1.msra.mxu0 0.0
        %3852 = vmatprep.subr.mxu0 0.0
        %3853 = vmatpush1.msra.mxu0 0.0
        %3854 = vmatprep.subr.mxu0 0.0
        %3855 = vmatpush1.msra.mxu0 0.0
        %3856 = vmatprep.subr.mxu0 0.0
        %3857 = vmatpush1.msra.mxu0 0.0
        %3858 = vmatprep.subr.mxu0 0.0
        %3859 = vmatpush1.msra.mxu0 0.0
        %3860 = vmatprep.subr.mxu0 0.0
        %3861 = vmatpush1.msra.mxu0 0.0
        %3862 = vmatprep.subr.mxu0 0.0
        %3863 = vmatpush1.msra.mxu0 0.0
        %3864 = vmatprep.subr.mxu0 0.0
        %3865 = vmatpush1.msra.mxu0 0.0
        %3866 = vmatprep.subr.mxu0 0.0
        %3867 = vmatpush1.msra.mxu0 0.0
        %3868 = vmatprep.subr.mxu0 0.0
        %3869 = vmatpush1.msra.mxu0 0.0
        %3870 = vmatprep.subr.mxu0 0.0
        %3871 = vmatpush1.msra.mxu0 0.0
        %3872 = vmatprep.mubr.f32.mxu0 0.0
        %3873 = vmatmul.mubr.f32.gmra.mrb[0].mxu0 %v3785
        %v3874 = vpop.f32.mrb[0].mxu0
        %v3875 = vadd.f32 0.0, %v3874
        %v3876 = vpop.f32.mrb[0].mxu0
        %3877 = vmatprep.mubr.f32.mxu0 0.0
        %3878 = vmatmul.mubr.f32.gmra.mrb[0].mxu0 %v3788
        %v3879 = vpop.f32.mrb[0].mxu0
        %v3880 = vadd.f32 0.0, %v3879
        %v3881 = vpop.f32.mrb[0].mxu0
        %3882 = vmatprep.mubr.f32.mxu0 0.0
        %3883 = vmatmul.mubr.f32.gmra.mrb[0].mxu0 %v3791
        %v3884 = vpop.f32.mrb[0].mxu0
        %v3885 = vadd.f32 0.0, %v3884
        %v3886 = vpop.f32.mrb[0].mxu0
        %3887 = vmatprep.mubr.f32.mxu0 0.0
        %3888 = vmatmul.mubr.f32.gmra.mrb[0].mxu0 %v3794
        %v3889 = vpop.f32.mrb[0].mxu0
        %v3890 = vadd.f32 0.0, %v3889
        %v3891 = vpop.f32.mrb[0].mxu0
        %3892 = vmatprep.mubr.f32.mxu0 0.0
        %3893 = vmatmul.mubr.f32.gmra.mrb[0].mxu0 %v3797
        %v3894 = vpop.f32.mrb[0].mxu0
        %v3895 = vadd.f32 0.0, %v3894
        %v3896 = vpop.f32.mrb[0].mxu0
        %3897 = vmatprep.mubr.f32.mxu0 0.0
        %3898 = vmatmul.mubr.f32.gmra.mrb[0].mxu0 %v3800
        %v3899 = vpop.f32.mrb[0].mxu0
        %v3900 = vadd.f32 0.0, %v3899
        %v3901 = vpop.f32.mrb[0].mxu0
        %3902 = vmatprep.mubr.f32.mxu0 0.0
        %3903 = vmatmul.mubr.f32.gmra.mrb[0].mxu0 %v3803
        %v3904 = vpop.f32.mrb[0].mxu0
        %v3905 = vadd.f32 0.0, %v3904
        %v3906 = vpop.f32.mrb[0].mxu0
        %3907 = vmatprep.mubr.f32.mxu0 0.0
        %3908 = vmatmul.mubr.f32.gmra.mrb[0].mxu0 %v3806
        %v3909 = vpop.f32.mrb[0].mxu0
        %v3910 = vadd.f32 0.0, %v3909
        %v3911 = vpop.f32.mrb[0].mxu0
        %3912 = vdwg.mxu0
        %v3913 = vadd.f32 %v2448, %v3875
        %v3914 = vadd.f32 %v2449, %v3880
        %v3915 = vadd.f32 %v2450, %v3885
        %v3916 = vadd.f32 %v2451, %v3890
        %v3917 = vadd.f32 %v2452, %v3895
        %v3918 = vadd.f32 %v2453, %v3900
        %v3919 = vadd.f32 %v2454, %v3905
        %v3920 = vadd.f32 %v2455, %v3910
        %3921 = vrot.lane.b32.xlu0 %v949, 112
        %v3922 = vpop.permute.xlu0 %3921
        %3923 = vrot.lane.b32.xlu0 %v949, 80
        %v3924 = vpop.permute.xlu0 %3923
        %v3925 = vsel %vm995, %v3922, 0
        %v3927 = vsel %vm995, %v3924, 0
        %3929 = vmatprep.subr.mxu0 0.0
        %3930 = vmatpush1.xpose.msra.mxu0 %v3927
        %3931 = vmatprep.subr.mxu0 0.0
        %3932 = vmatpush1.xpose.msra.mxu0 0.0
        %3933 = vmatprep.subr.mxu0 0.0
        %3934 = vmatpush1.xpose.msra.mxu0 0.0
        %3935 = vmatprep.subr.mxu0 0.0
        %3936 = vmatpush1.xpose.msra.mxu0 0.0
        %3937 = vmatprep.subr.mxu0 0.0
        %3938 = vmatpush1.xpose.msra.mxu0 0.0
        %3939 = vmatprep.subr.mxu0 0.0
        %3940 = vmatpush1.xpose.msra.mxu0 0.0
        %3941 = vmatprep.subr.mxu0 0.0
        %3942 = vmatpush1.xpose.msra.mxu0 0.0
        %3943 = vmatprep.subr.mxu0 0.0
        %3944 = vmatpush1.xpose.msra.mxu0 0.0
        %3945 = vmatprep.subr.mxu0 0.0
        %3946 = vmatpush1.xpose.msra.mxu0 0.0
        %3947 = vmatprep.subr.mxu0 0.0
        %3948 = vmatpush1.xpose.msra.mxu0 0.0
        %3949 = vmatprep.subr.mxu0 0.0
        %3950 = vmatpush1.xpose.msra.mxu0 0.0
        %3951 = vmatprep.subr.mxu0 0.0
        %3952 = vmatpush1.xpose.msra.mxu0 0.0
        %3953 = vmatprep.subr.mxu0 0.0
        %3954 = vmatpush1.xpose.msra.mxu0 0.0
        %3955 = vmatprep.subr.mxu0 0.0
        %3956 = vmatpush1.xpose.msra.mxu0 0.0
        %3957 = vmatprep.subr.mxu0 0.0
        %3958 = vmatpush1.xpose.msra.mxu0 0.0
        %3959 = vmatprep.subr.mxu0 0.0
        %3960 = vmatpush1.xpose.msra.mxu0 0.0
        %3961 = vmatprep.subr.mxu0 0.0
        %3962 = vmatpush1.xpose.msra.mxu0 0.0
        %3963 = vmatprep.subr.mxu0 0.0
        %3964 = vmatpush1.xpose.msra.mxu0 0.0
        %3965 = vmatprep.subr.mxu0 0.0
        %3966 = vmatpush1.xpose.msra.mxu0 0.0
        %3967 = vmatprep.subr.mxu0 0.0
        %3968 = vmatpush1.xpose.msra.mxu0 0.0
        %3969 = vmatprep.subr.mxu0 0.0
        %3970 = vmatpush1.xpose.msra.mxu0 0.0
        %3971 = vmatprep.subr.mxu0 0.0
        %3972 = vmatpush1.xpose.msra.mxu0 0.0
        %3973 = vmatprep.subr.mxu0 0.0
        %3974 = vmatpush1.xpose.msra.mxu0 0.0
        %3975 = vmatprep.subr.mxu0 0.0
        %3976 = vmatpush1.xpose.msra.mxu0 0.0
        %3977 = vmatprep.subr.mxu0 0.0
        %3978 = vmatpush1.xpose.msra.mxu0 0.0
        %3979 = vmatprep.subr.mxu0 0.0
        %3980 = vmatpush1.xpose.msra.mxu0 0.0
        %3981 = vmatprep.subr.mxu0 0.0
        %3982 = vmatpush1.xpose.msra.mxu0 0.0
        %3983 = vmatprep.subr.mxu0 0.0
        %3984 = vmatpush1.xpose.msra.mxu0 0.0
        %3985 = vmatprep.subr.mxu0 0.0
        %3986 = vmatpush1.xpose.msra.mxu0 0.0
        %3987 = vmatprep.subr.mxu0 0.0
        %3988 = vmatpush1.xpose.msra.mxu0 0.0
        %3989 = vmatprep.subr.mxu0 0.0
        %3990 = vmatpush1.xpose.msra.mxu0 0.0
        %3991 = vmatprep.subr.mxu0 0.0
        %3992 = vmatpush1.xpose.msra.mxu0 0.0
        %3993 = vmatprep.mubr.f32.mxu0 0.0
        %3994 = vmatmul.mubr.f32.gmra.mrb[0].mxu0 %v3925
        %v3995 = vpop.f32.mrb[0].mxu0
        %v3996 = vadd.f32 0.0, %v3995
        %v3997 = vpop.f32.mrb[0].mxu0
        %3998 = vdwg.mxu0
        %3999 = vrot.lane.b32.xlu0 %v954, 112
        %v4000 = vpop.permute.xlu0 %3999
        %4001 = vrot.lane.b32.xlu0 %v954, 80
        %v4002 = vpop.permute.xlu0 %4001
        %v4003 = vsel %vm995, %v4000, 0
        %v4005 = vsel %vm995, %v4002, 0
        %4007 = vmatprep.subr.mxu0 0.0
        %4008 = vmatpush1.xpose.msra.mxu0 %v4005
        %4009 = vmatprep.subr.mxu0 0.0
        %4010 = vmatpush1.xpose.msra.mxu0 0.0
        %4011 = vmatprep.subr.mxu0 0.0
        %4012 = vmatpush1.xpose.msra.mxu0 0.0
        %4013 = vmatprep.subr.mxu0 0.0
        %4014 = vmatpush1.xpose.msra.mxu0 0.0
        %4015 = vmatprep.subr.mxu0 0.0
        %4016 = vmatpush1.xpose.msra.mxu0 0.0
        %4017 = vmatprep.subr.mxu0 0.0
        %4018 = vmatpush1.xpose.msra.mxu0 0.0
        %4019 = vmatprep.subr.mxu0 0.0
        %4020 = vmatpush1.xpose.msra.mxu0 0.0
        %4021 = vmatprep.subr.mxu0 0.0
        %4022 = vmatpush1.xpose.msra.mxu0 0.0
        %4023 = vmatprep.subr.mxu0 0.0
        %4024 = vmatpush1.xpose.msra.mxu0 0.0
        %4025 = vmatprep.subr.mxu0 0.0
        %4026 = vmatpush1.xpose.msra.mxu0 0.0
        %4027 = vmatprep.subr.mxu0 0.0
        %4028 = vmatpush1.xpose.msra.mxu0 0.0
        %4029 = vmatprep.subr.mxu0 0.0
        %4030 = vmatpush1.xpose.msra.mxu0 0.0
        %4031 = vmatprep.subr.mxu0 0.0
        %4032 = vmatpush1.xpose.msra.mxu0 0.0
        %4033 = vmatprep.subr.mxu0 0.0
        %4034 = vmatpush1.xpose.msra.mxu0 0.0
        %4035 = vmatprep.subr.mxu0 0.0
        %4036 = vmatpush1.xpose.msra.mxu0 0.0
        %4037 = vmatprep.subr.mxu0 0.0
        %4038 = vmatpush1.xpose.msra.mxu0 0.0
        %4039 = vmatprep.subr.mxu0 0.0
        %4040 = vmatpush1.xpose.msra.mxu0 0.0
        %4041 = vmatprep.subr.mxu0 0.0
        %4042 = vmatpush1.xpose.msra.mxu0 0.0
        %4043 = vmatprep.subr.mxu0 0.0
        %4044 = vmatpush1.xpose.msra.mxu0 0.0
        %4045 = vmatprep.subr.mxu0 0.0
        %4046 = vmatpush1.xpose.msra.mxu0 0.0
        %4047 = vmatprep.subr.mxu0 0.0
        %4048 = vmatpush1.xpose.msra.mxu0 0.0
        %4049 = vmatprep.subr.mxu0 0.0
        %4050 = vmatpush1.xpose.msra.mxu0 0.0
        %4051 = vmatprep.subr.mxu0 0.0
        %4052 = vmatpush1.xpose.msra.mxu0 0.0
        %4053 = vmatprep.subr.mxu0 0.0
        %4054 = vmatpush1.xpose.msra.mxu0 0.0
        %4055 = vmatprep.subr.mxu0 0.0
        %4056 = vmatpush1.xpose.msra.mxu0 0.0
        %4057 = vmatprep.subr.mxu0 0.0
        %4058 = vmatpush1.xpose.msra.mxu0 0.0
        %4059 = vmatprep.subr.mxu0 0.0
        %4060 = vmatpush1.xpose.msra.mxu0 0.0
        %4061 = vmatprep.subr.mxu0 0.0
        %4062 = vmatpush1.xpose.msra.mxu0 0.0
        %4063 = vmatprep.subr.mxu0 0.0
        %4064 = vmatpush1.xpose.msra.mxu0 0.0
        %4065 = vmatprep.subr.mxu0 0.0
        %4066 = vmatpush1.xpose.msra.mxu0 0.0
        %4067 = vmatprep.subr.mxu0 0.0
        %4068 = vmatpush1.xpose.msra.mxu0 0.0
        %4069 = vmatprep.subr.mxu0 0.0
        %4070 = vmatpush1.xpose.msra.mxu0 0.0
        %4071 = vmatprep.mubr.f32.mxu0 0.0
        %4072 = vmatmul.mubr.f32.gmra.mrb[0].mxu0 %v4003
        %v4073 = vpop.f32.mrb[0].mxu0
        %v4074 = vadd.f32 0.0, %v4073
        %v4075 = vpop.f32.mrb[0].mxu0
        %4076 = vdwg.mxu0
        %4077 = vrot.lane.b32.xlu0 %v959, 112
        %v4078 = vpop.permute.xlu0 %4077
        %4079 = vrot.lane.b32.xlu0 %v959, 80
        %v4080 = vpop.permute.xlu0 %4079
        %v4081 = vsel %vm995, %v4078, 0
        %v4083 = vsel %vm995, %v4080, 0
        %4085 = vmatprep.subr.mxu0 0.0
        %4086 = vmatpush1.xpose.msra.mxu0 %v4083
        %4087 = vmatprep.subr.mxu0 0.0
        %4088 = vmatpush1.xpose.msra.mxu0 0.0
        %4089 = vmatprep.subr.mxu0 0.0
        %4090 = vmatpush1.xpose.msra.mxu0 0.0
        %4091 = vmatprep.subr.mxu0 0.0
        %4092 = vmatpush1.xpose.msra.mxu0 0.0
        %4093 = vmatprep.subr.mxu0 0.0
        %4094 = vmatpush1.xpose.msra.mxu0 0.0
        %4095 = vmatprep.subr.mxu0 0.0
        %4096 = vmatpush1.xpose.msra.mxu0 0.0
        %4097 = vmatprep.subr.mxu0 0.0
        %4098 = vmatpush1.xpose.msra.mxu0 0.0
        %4099 = vmatprep.subr.mxu0 0.0
        %4100 = vmatpush1.xpose.msra.mxu0 0.0
        %4101 = vmatprep.subr.mxu0 0.0
        %4102 = vmatpush1.xpose.msra.mxu0 0.0
        %4103 = vmatprep.subr.mxu0 0.0
        %4104 = vmatpush1.xpose.msra.mxu0 0.0
        %4105 = vmatprep.subr.mxu0 0.0
        %4106 = vmatpush1.xpose.msra.mxu0 0.0
        %4107 = vmatprep.subr.mxu0 0.0
        %4108 = vmatpush1.xpose.msra.mxu0 0.0
        %4109 = vmatprep.subr.mxu0 0.0
        %4110 = vmatpush1.xpose.msra.mxu0 0.0
        %4111 = vmatprep.subr.mxu0 0.0
        %4112 = vmatpush1.xpose.msra.mxu0 0.0
        %4113 = vmatprep.subr.mxu0 0.0
        %4114 = vmatpush1.xpose.msra.mxu0 0.0
        %4115 = vmatprep.subr.mxu0 0.0
        %4116 = vmatpush1.xpose.msra.mxu0 0.0
        %4117 = vmatprep.subr.mxu0 0.0
        %4118 = vmatpush1.xpose.msra.mxu0 0.0
        %4119 = vmatprep.subr.mxu0 0.0
        %4120 = vmatpush1.xpose.msra.mxu0 0.0
        %4121 = vmatprep.subr.mxu0 0.0
        %4122 = vmatpush1.xpose.msra.mxu0 0.0
        %4123 = vmatprep.subr.mxu0 0.0
        %4124 = vmatpush1.xpose.msra.mxu0 0.0
        %4125 = vmatprep.subr.mxu0 0.0
        %4126 = vmatpush1.xpose.msra.mxu0 0.0
        %4127 = vmatprep.subr.mxu0 0.0
        %4128 = vmatpush1.xpose.msra.mxu0 0.0
        %4129 = vmatprep.subr.mxu0 0.0
        %4130 = vmatpush1.xpose.msra.mxu0 0.0
        %4131 = vmatprep.subr.mxu0 0.0
        %4132 = vmatpush1.xpose.msra.mxu0 0.0
        %4133 = vmatprep.subr.mxu0 0.0
        %4134 = vmatpush1.xpose.msra.mxu0 0.0
        %4135 = vmatprep.subr.mxu0 0.0
        %4136 = vmatpush1.xpose.msra.mxu0 0.0
        %4137 = vmatprep.subr.mxu0 0.0
        %4138 = vmatpush1.xpose.msra.mxu0 0.0
        %4139 = vmatprep.subr.mxu0 0.0
        %4140 = vmatpush1.xpose.msra.mxu0 0.0
        %4141 = vmatprep.subr.mxu0 0.0
        %4142 = vmatpush1.xpose.msra.mxu0 0.0
        %4143 = vmatprep.subr.mxu0 0.0
        %4144 = vmatpush1.xpose.msra.mxu0 0.0
        %4145 = vmatprep.subr.mxu0 0.0
        %4146 = vmatpush1.xpose.msra.mxu0 0.0
        %4147 = vmatprep.subr.mxu0 0.0
        %4148 = vmatpush1.xpose.msra.mxu0 0.0
        %4149 = vmatprep.mubr.f32.mxu0 0.0
        %4150 = vmatmul.mubr.f32.gmra.mrb[0].mxu0 %v4081
        %v4151 = vpop.f32.mrb[0].mxu0
        %v4152 = vadd.f32 0.0, %v4151
        %v4153 = vpop.f32.mrb[0].mxu0
        %4154 = vdwg.mxu0
        %4155 = vrot.lane.b32.xlu0 %v964, 112
        %v4156 = vpop.permute.xlu0 %4155
        %4157 = vrot.lane.b32.xlu0 %v964, 80
        %v4158 = vpop.permute.xlu0 %4157
        %v4159 = vsel %vm995, %v4156, 0
        %v4161 = vsel %vm995, %v4158, 0
        %4163 = vmatprep.subr.mxu0 0.0
        %4164 = vmatpush1.xpose.msra.mxu0 %v4161
        %4165 = vmatprep.subr.mxu0 0.0
        %4166 = vmatpush1.xpose.msra.mxu0 0.0
        %4167 = vmatprep.subr.mxu0 0.0
        %4168 = vmatpush1.xpose.msra.mxu0 0.0
        %4169 = vmatprep.subr.mxu0 0.0
        %4170 = vmatpush1.xpose.msra.mxu0 0.0
        %4171 = vmatprep.subr.mxu0 0.0
        %4172 = vmatpush1.xpose.msra.mxu0 0.0
        %4173 = vmatprep.subr.mxu0 0.0
        %4174 = vmatpush1.xpose.msra.mxu0 0.0
        %4175 = vmatprep.subr.mxu0 0.0
        %4176 = vmatpush1.xpose.msra.mxu0 0.0
        %4177 = vmatprep.subr.mxu0 0.0
        %4178 = vmatpush1.xpose.msra.mxu0 0.0
        %4179 = vmatprep.subr.mxu0 0.0
        %4180 = vmatpush1.xpose.msra.mxu0 0.0
        %4181 = vmatprep.subr.mxu0 0.0
        %4182 = vmatpush1.xpose.msra.mxu0 0.0
        %4183 = vmatprep.subr.mxu0 0.0
        %4184 = vmatpush1.xpose.msra.mxu0 0.0
        %4185 = vmatprep.subr.mxu0 0.0
        %4186 = vmatpush1.xpose.msra.mxu0 0.0
        %4187 = vmatprep.subr.mxu0 0.0
        %4188 = vmatpush1.xpose.msra.mxu0 0.0
        %4189 = vmatprep.subr.mxu0 0.0
        %4190 = vmatpush1.xpose.msra.mxu0 0.0
        %4191 = vmatprep.subr.mxu0 0.0
        %4192 = vmatpush1.xpose.msra.mxu0 0.0
        %4193 = vmatprep.subr.mxu0 0.0
        %4194 = vmatpush1.xpose.msra.mxu0 0.0
        %4195 = vmatprep.subr.mxu0 0.0
        %4196 = vmatpush1.xpose.msra.mxu0 0.0
        %4197 = vmatprep.subr.mxu0 0.0
        %4198 = vmatpush1.xpose.msra.mxu0 0.0
        %4199 = vmatprep.subr.mxu0 0.0
        %4200 = vmatpush1.xpose.msra.mxu0 0.0
        %4201 = vmatprep.subr.mxu0 0.0
        %4202 = vmatpush1.xpose.msra.mxu0 0.0
        %4203 = vmatprep.subr.mxu0 0.0
        %4204 = vmatpush1.xpose.msra.mxu0 0.0
        %4205 = vmatprep.subr.mxu0 0.0
        %4206 = vmatpush1.xpose.msra.mxu0 0.0
        %4207 = vmatprep.subr.mxu0 0.0
        %4208 = vmatpush1.xpose.msra.mxu0 0.0
        %4209 = vmatprep.subr.mxu0 0.0
        %4210 = vmatpush1.xpose.msra.mxu0 0.0
        %4211 = vmatprep.subr.mxu0 0.0
        %4212 = vmatpush1.xpose.msra.mxu0 0.0
        %4213 = vmatprep.subr.mxu0 0.0
        %4214 = vmatpush1.xpose.msra.mxu0 0.0
        %4215 = vmatprep.subr.mxu0 0.0
        %4216 = vmatpush1.xpose.msra.mxu0 0.0
        %4217 = vmatprep.subr.mxu0 0.0
        %4218 = vmatpush1.xpose.msra.mxu0 0.0
        %4219 = vmatprep.subr.mxu0 0.0
        %4220 = vmatpush1.xpose.msra.mxu0 0.0
        %4221 = vmatprep.subr.mxu0 0.0
        %4222 = vmatpush1.xpose.msra.mxu0 0.0
        %4223 = vmatprep.subr.mxu0 0.0
        %4224 = vmatpush1.xpose.msra.mxu0 0.0
        %4225 = vmatprep.subr.mxu0 0.0
        %4226 = vmatpush1.xpose.msra.mxu0 0.0
        %4227 = vmatprep.mubr.f32.mxu0 0.0
        %4228 = vmatmul.mubr.f32.gmra.mrb[0].mxu0 %v4159
        %v4229 = vpop.f32.mrb[0].mxu0
        %v4230 = vadd.f32 0.0, %v4229
        %v4231 = vpop.f32.mrb[0].mxu0
        %4232 = vdwg.mxu0
        %4233 = vrot.lane.b32.xlu0 %v969, 112
        %v4234 = vpop.permute.xlu0 %4233
        %4235 = vrot.lane.b32.xlu0 %v969, 80
        %v4236 = vpop.permute.xlu0 %4235
        %v4237 = vsel %vm995, %v4234, 0
        %v4239 = vsel %vm995, %v4236, 0
        %4241 = vmatprep.subr.mxu0 0.0
        %4242 = vmatpush1.xpose.msra.mxu0 %v4239
        %4243 = vmatprep.subr.mxu0 0.0
        %4244 = vmatpush1.xpose.msra.mxu0 0.0
        %4245 = vmatprep.subr.mxu0 0.0
        %4246 = vmatpush1.xpose.msra.mxu0 0.0
        %4247 = vmatprep.subr.mxu0 0.0
        %4248 = vmatpush1.xpose.msra.mxu0 0.0
        %4249 = vmatprep.subr.mxu0 0.0
        %4250 = vmatpush1.xpose.msra.mxu0 0.0
        %4251 = vmatprep.subr.mxu0 0.0
        %4252 = vmatpush1.xpose.msra.mxu0 0.0
        %4253 = vmatprep.subr.mxu0 0.0
        %4254 = vmatpush1.xpose.msra.mxu0 0.0
        %4255 = vmatprep.subr.mxu0 0.0
        %4256 = vmatpush1.xpose.msra.mxu0 0.0
        %4257 = vmatprep.subr.mxu0 0.0
        %4258 = vmatpush1.xpose.msra.mxu0 0.0
        %4259 = vmatprep.subr.mxu0 0.0
        %4260 = vmatpush1.xpose.msra.mxu0 0.0
        %4261 = vmatprep.subr.mxu0 0.0
        %4262 = vmatpush1.xpose.msra.mxu0 0.0
        %4263 = vmatprep.subr.mxu0 0.0
        %4264 = vmatpush1.xpose.msra.mxu0 0.0
        %4265 = vmatprep.subr.mxu0 0.0
        %4266 = vmatpush1.xpose.msra.mxu0 0.0
        %4267 = vmatprep.subr.mxu0 0.0
        %4268 = vmatpush1.xpose.msra.mxu0 0.0
        %4269 = vmatprep.subr.mxu0 0.0
        %4270 = vmatpush1.xpose.msra.mxu0 0.0
        %4271 = vmatprep.subr.mxu0 0.0
        %4272 = vmatpush1.xpose.msra.mxu0 0.0
        %4273 = vmatprep.subr.mxu0 0.0
        %4274 = vmatpush1.xpose.msra.mxu0 0.0
        %4275 = vmatprep.subr.mxu0 0.0
        %4276 = vmatpush1.xpose.msra.mxu0 0.0
        %4277 = vmatprep.subr.mxu0 0.0
        %4278 = vmatpush1.xpose.msra.mxu0 0.0
        %4279 = vmatprep.subr.mxu0 0.0
        %4280 = vmatpush1.xpose.msra.mxu0 0.0
        %4281 = vmatprep.subr.mxu0 0.0
        %4282 = vmatpush1.xpose.msra.mxu0 0.0
        %4283 = vmatprep.subr.mxu0 0.0
        %4284 = vmatpush1.xpose.msra.mxu0 0.0
        %4285 = vmatprep.subr.mxu0 0.0
        %4286 = vmatpush1.xpose.msra.mxu0 0.0
        %4287 = vmatprep.subr.mxu0 0.0
        %4288 = vmatpush1.xpose.msra.mxu0 0.0
        %4289 = vmatprep.subr.mxu0 0.0
        %4290 = vmatpush1.xpose.msra.mxu0 0.0
        %4291 = vmatprep.subr.mxu0 0.0
        %4292 = vmatpush1.xpose.msra.mxu0 0.0
        %4293 = vmatprep.subr.mxu0 0.0
        %4294 = vmatpush1.xpose.msra.mxu0 0.0
        %4295 = vmatprep.subr.mxu0 0.0
        %4296 = vmatpush1.xpose.msra.mxu0 0.0
        %4297 = vmatprep.subr.mxu0 0.0
        %4298 = vmatpush1.xpose.msra.mxu0 0.0
        %4299 = vmatprep.subr.mxu0 0.0
        %4300 = vmatpush1.xpose.msra.mxu0 0.0
        %4301 = vmatprep.subr.mxu0 0.0
        %4302 = vmatpush1.xpose.msra.mxu0 0.0
        %4303 = vmatprep.subr.mxu0 0.0
        %4304 = vmatpush1.xpose.msra.mxu0 0.0
        %4305 = vmatprep.mubr.f32.mxu0 0.0
        %4306 = vmatmul.mubr.f32.gmra.mrb[0].mxu0 %v4237
        %v4307 = vpop.f32.mrb[0].mxu0
        %v4308 = vadd.f32 0.0, %v4307
        %v4309 = vpop.f32.mrb[0].mxu0
        %4310 = vdwg.mxu0
        %4311 = vrot.lane.b32.xlu0 %v974, 112
        %v4312 = vpop.permute.xlu0 %4311
        %4313 = vrot.lane.b32.xlu0 %v974, 80
        %v4314 = vpop.permute.xlu0 %4313
        %v4315 = vsel %vm995, %v4312, 0
        %v4317 = vsel %vm995, %v4314, 0
        %4319 = vmatprep.subr.mxu0 0.0
        %4320 = vmatpush1.xpose.msra.mxu0 %v4317
        %4321 = vmatprep.subr.mxu0 0.0
        %4322 = vmatpush1.xpose.msra.mxu0 0.0
        %4323 = vmatprep.subr.mxu0 0.0
        %4324 = vmatpush1.xpose.msra.mxu0 0.0
        %4325 = vmatprep.subr.mxu0 0.0
        %4326 = vmatpush1.xpose.msra.mxu0 0.0
        %4327 = vmatprep.subr.mxu0 0.0
        %4328 = vmatpush1.xpose.msra.mxu0 0.0
        %4329 = vmatprep.subr.mxu0 0.0
        %4330 = vmatpush1.xpose.msra.mxu0 0.0
        %4331 = vmatprep.subr.mxu0 0.0
        %4332 = vmatpush1.xpose.msra.mxu0 0.0
        %4333 = vmatprep.subr.mxu0 0.0
        %4334 = vmatpush1.xpose.msra.mxu0 0.0
        %4335 = vmatprep.subr.mxu0 0.0
        %4336 = vmatpush1.xpose.msra.mxu0 0.0
        %4337 = vmatprep.subr.mxu0 0.0
        %4338 = vmatpush1.xpose.msra.mxu0 0.0
        %4339 = vmatprep.subr.mxu0 0.0
        %4340 = vmatpush1.xpose.msra.mxu0 0.0
        %4341 = vmatprep.subr.mxu0 0.0
        %4342 = vmatpush1.xpose.msra.mxu0 0.0
        %4343 = vmatprep.subr.mxu0 0.0
        %4344 = vmatpush1.xpose.msra.mxu0 0.0
        %4345 = vmatprep.subr.mxu0 0.0
        %4346 = vmatpush1.xpose.msra.mxu0 0.0
        %4347 = vmatprep.subr.mxu0 0.0
        %4348 = vmatpush1.xpose.msra.mxu0 0.0
        %4349 = vmatprep.subr.mxu0 0.0
        %4350 = vmatpush1.xpose.msra.mxu0 0.0
        %4351 = vmatprep.subr.mxu0 0.0
        %4352 = vmatpush1.xpose.msra.mxu0 0.0
        %4353 = vmatprep.subr.mxu0 0.0
        %4354 = vmatpush1.xpose.msra.mxu0 0.0
        %4355 = vmatprep.subr.mxu0 0.0
        %4356 = vmatpush1.xpose.msra.mxu0 0.0
        %4357 = vmatprep.subr.mxu0 0.0
        %4358 = vmatpush1.xpose.msra.mxu0 0.0
        %4359 = vmatprep.subr.mxu0 0.0
        %4360 = vmatpush1.xpose.msra.mxu0 0.0
        %4361 = vmatprep.subr.mxu0 0.0
        %4362 = vmatpush1.xpose.msra.mxu0 0.0
        %4363 = vmatprep.subr.mxu0 0.0
        %4364 = vmatpush1.xpose.msra.mxu0 0.0
        %4365 = vmatprep.subr.mxu0 0.0
        %4366 = vmatpush1.xpose.msra.mxu0 0.0
        %4367 = vmatprep.subr.mxu0 0.0
        %4368 = vmatpush1.xpose.msra.mxu0 0.0
        %4369 = vmatprep.subr.mxu0 0.0
        %4370 = vmatpush1.xpose.msra.mxu0 0.0
        %4371 = vmatprep.subr.mxu0 0.0
        %4372 = vmatpush1.xpose.msra.mxu0 0.0
        %4373 = vmatprep.subr.mxu0 0.0
        %4374 = vmatpush1.xpose.msra.mxu0 0.0
        %4375 = vmatprep.subr.mxu0 0.0
        %4376 = vmatpush1.xpose.msra.mxu0 0.0
        %4377 = vmatprep.subr.mxu0 0.0
        %4378 = vmatpush1.xpose.msra.mxu0 0.0
        %4379 = vmatprep.subr.mxu0 0.0
        %4380 = vmatpush1.xpose.msra.mxu0 0.0
        %4381 = vmatprep.subr.mxu0 0.0
        %4382 = vmatpush1.xpose.msra.mxu0 0.0
        %4383 = vmatprep.mubr.f32.mxu0 0.0
        %4384 = vmatmul.mubr.f32.gmra.mrb[0].mxu0 %v4315
        %v4385 = vpop.f32.mrb[0].mxu0
        %v4386 = vadd.f32 0.0, %v4385
        %v4387 = vpop.f32.mrb[0].mxu0
        %4388 = vdwg.mxu0
        %4389 = vrot.lane.b32.xlu0 %v979, 112
        %v4390 = vpop.permute.xlu0 %4389
        %4391 = vrot.lane.b32.xlu0 %v979, 80
        %v4392 = vpop.permute.xlu0 %4391
        %v4393 = vsel %vm995, %v4390, 0
        %v4395 = vsel %vm995, %v4392, 0
        %4397 = vmatprep.subr.mxu0 0.0
        %4398 = vmatpush1.xpose.msra.mxu0 %v4395
        %4399 = vmatprep.subr.mxu0 0.0
        %4400 = vmatpush1.xpose.msra.mxu0 0.0
        %4401 = vmatprep.subr.mxu0 0.0
        %4402 = vmatpush1.xpose.msra.mxu0 0.0
        %4403 = vmatprep.subr.mxu0 0.0
        %4404 = vmatpush1.xpose.msra.mxu0 0.0
        %4405 = vmatprep.subr.mxu0 0.0
        %4406 = vmatpush1.xpose.msra.mxu0 0.0
        %4407 = vmatprep.subr.mxu0 0.0
        %4408 = vmatpush1.xpose.msra.mxu0 0.0
        %4409 = vmatprep.subr.mxu0 0.0
        %4410 = vmatpush1.xpose.msra.mxu0 0.0
        %4411 = vmatprep.subr.mxu0 0.0
        %4412 = vmatpush1.xpose.msra.mxu0 0.0
        %4413 = vmatprep.subr.mxu0 0.0
        %4414 = vmatpush1.xpose.msra.mxu0 0.0
        %4415 = vmatprep.subr.mxu0 0.0
        %4416 = vmatpush1.xpose.msra.mxu0 0.0
        %4417 = vmatprep.subr.mxu0 0.0
        %4418 = vmatpush1.xpose.msra.mxu0 0.0
        %4419 = vmatprep.subr.mxu0 0.0
        %4420 = vmatpush1.xpose.msra.mxu0 0.0
        %4421 = vmatprep.subr.mxu0 0.0
        %4422 = vmatpush1.xpose.msra.mxu0 0.0
        %4423 = vmatprep.subr.mxu0 0.0
        %4424 = vmatpush1.xpose.msra.mxu0 0.0
        %4425 = vmatprep.subr.mxu0 0.0
        %4426 = vmatpush1.xpose.msra.mxu0 0.0
        %4427 = vmatprep.subr.mxu0 0.0
        %4428 = vmatpush1.xpose.msra.mxu0 0.0
        %4429 = vmatprep.subr.mxu0 0.0
        %4430 = vmatpush1.xpose.msra.mxu0 0.0
        %4431 = vmatprep.subr.mxu0 0.0
        %4432 = vmatpush1.xpose.msra.mxu0 0.0
        %4433 = vmatprep.subr.mxu0 0.0
        %4434 = vmatpush1.xpose.msra.mxu0 0.0
        %4435 = vmatprep.subr.mxu0 0.0
        %4436 = vmatpush1.xpose.msra.mxu0 0.0
        %4437 = vmatprep.subr.mxu0 0.0
        %4438 = vmatpush1.xpose.msra.mxu0 0.0
        %4439 = vmatprep.subr.mxu0 0.0
        %4440 = vmatpush1.xpose.msra.mxu0 0.0
        %4441 = vmatprep.subr.mxu0 0.0
        %4442 = vmatpush1.xpose.msra.mxu0 0.0
        %4443 = vmatprep.subr.mxu0 0.0
        %4444 = vmatpush1.xpose.msra.mxu0 0.0
        %4445 = vmatprep.subr.mxu0 0.0
        %4446 = vmatpush1.xpose.msra.mxu0 0.0
        %4447 = vmatprep.subr.mxu0 0.0
        %4448 = vmatpush1.xpose.msra.mxu0 0.0
        %4449 = vmatprep.subr.mxu0 0.0
        %4450 = vmatpush1.xpose.msra.mxu0 0.0
        %4451 = vmatprep.subr.mxu0 0.0
        %4452 = vmatpush1.xpose.msra.mxu0 0.0
        %4453 = vmatprep.subr.mxu0 0.0
        %4454 = vmatpush1.xpose.msra.mxu0 0.0
        %4455 = vmatprep.subr.mxu0 0.0
        %4456 = vmatpush1.xpose.msra.mxu0 0.0
        %4457 = vmatprep.subr.mxu0 0.0
        %4458 = vmatpush1.xpose.msra.mxu0 0.0
        %4459 = vmatprep.subr.mxu0 0.0
        %4460 = vmatpush1.xpose.msra.mxu0 0.0
        %4461 = vmatprep.mubr.f32.mxu0 0.0
        %4462 = vmatmul.mubr.f32.gmra.mrb[0].mxu0 %v4393
        %v4463 = vpop.f32.mrb[0].mxu0
        %v4464 = vadd.f32 0.0, %v4463
        %v4465 = vpop.f32.mrb[0].mxu0
        %4466 = vdwg.mxu0
        %4467 = vrot.lane.b32.xlu0 %v984, 112
        %v4468 = vpop.permute.xlu0 %4467
        %4469 = vrot.lane.b32.xlu0 %v984, 80
        %v4470 = vpop.permute.xlu0 %4469
        %v4471 = vsel %vm995, %v4468, 0
        %v4473 = vsel %vm995, %v4470, 0
        %4475 = vmatprep.subr.mxu0 0.0
        %4476 = vmatpush1.xpose.msra.mxu0 %v4473
        %4477 = vmatprep.subr.mxu0 0.0
        %4478 = vmatpush1.xpose.msra.mxu0 0.0
        %4479 = vmatprep.subr.mxu0 0.0
        %4480 = vmatpush1.xpose.msra.mxu0 0.0
        %4481 = vmatprep.subr.mxu0 0.0
        %4482 = vmatpush1.xpose.msra.mxu0 0.0
        %4483 = vmatprep.subr.mxu0 0.0
        %4484 = vmatpush1.xpose.msra.mxu0 0.0
        %4485 = vmatprep.subr.mxu0 0.0
        %4486 = vmatpush1.xpose.msra.mxu0 0.0
        %4487 = vmatprep.subr.mxu0 0.0
        %4488 = vmatpush1.xpose.msra.mxu0 0.0
        %4489 = vmatprep.subr.mxu0 0.0
        %4490 = vmatpush1.xpose.msra.mxu0 0.0
        %4491 = vmatprep.subr.mxu0 0.0
        %4492 = vmatpush1.xpose.msra.mxu0 0.0
        %4493 = vmatprep.subr.mxu0 0.0
        %4494 = vmatpush1.xpose.msra.mxu0 0.0
        %4495 = vmatprep.subr.mxu0 0.0
        %4496 = vmatpush1.xpose.msra.mxu0 0.0
        %4497 = vmatprep.subr.mxu0 0.0
        %4498 = vmatpush1.xpose.msra.mxu0 0.0
        %4499 = vmatprep.subr.mxu0 0.0
        %4500 = vmatpush1.xpose.msra.mxu0 0.0
        %4501 = vmatprep.subr.mxu0 0.0
        %4502 = vmatpush1.xpose.msra.mxu0 0.0
        %4503 = vmatprep.subr.mxu0 0.0
        %4504 = vmatpush1.xpose.msra.mxu0 0.0
        %4505 = vmatprep.subr.mxu0 0.0
        %4506 = vmatpush1.xpose.msra.mxu0 0.0
        %4507 = vmatprep.subr.mxu0 0.0
        %4508 = vmatpush1.xpose.msra.mxu0 0.0
        %4509 = vmatprep.subr.mxu0 0.0
        %4510 = vmatpush1.xpose.msra.mxu0 0.0
        %4511 = vmatprep.subr.mxu0 0.0
        %4512 = vmatpush1.xpose.msra.mxu0 0.0
        %4513 = vmatprep.subr.mxu0 0.0
        %4514 = vmatpush1.xpose.msra.mxu0 0.0
        %4515 = vmatprep.subr.mxu0 0.0
        %4516 = vmatpush1.xpose.msra.mxu0 0.0
        %4517 = vmatprep.subr.mxu0 0.0
        %4518 = vmatpush1.xpose.msra.mxu0 0.0
        %4519 = vmatprep.subr.mxu0 0.0
        %4520 = vmatpush1.xpose.msra.mxu0 0.0
        %4521 = vmatprep.subr.mxu0 0.0
        %4522 = vmatpush1.xpose.msra.mxu0 0.0
        %4523 = vmatprep.subr.mxu0 0.0
        %4524 = vmatpush1.xpose.msra.mxu0 0.0
        %4525 = vmatprep.subr.mxu0 0.0
        %4526 = vmatpush1.xpose.msra.mxu0 0.0
        %4527 = vmatprep.subr.mxu0 0.0
        %4528 = vmatpush1.xpose.msra.mxu0 0.0
        %4529 = vmatprep.subr.mxu0 0.0
        %4530 = vmatpush1.xpose.msra.mxu0 0.0
        %4531 = vmatprep.subr.mxu0 0.0
        %4532 = vmatpush1.xpose.msra.mxu0 0.0
        %4533 = vmatprep.subr.mxu0 0.0
        %4534 = vmatpush1.xpose.msra.mxu0 0.0
        %4535 = vmatprep.subr.mxu0 0.0
        %4536 = vmatpush1.xpose.msra.mxu0 0.0
        %4537 = vmatprep.subr.mxu0 0.0
        %4538 = vmatpush1.xpose.msra.mxu0 0.0
        %4539 = vmatprep.mubr.f32.mxu0 0.0
        %4540 = vmatmul.mubr.f32.gmra.mrb[0].mxu0 %v4471
        %v4541 = vpop.f32.mrb[0].mxu0
        %v4542 = vadd.f32 0.0, %v4541
        %v4543 = vpop.f32.mrb[0].mxu0
        %4544 = vdwg.mxu0
        %v4545 = vmul.f32 %v3996, 0.35355338
        %v4546 = vmul.f32 %v4074, 0.35355338
        %v4547 = vmul.f32 %v4152, 0.35355338
        %v4548 = vmul.f32 %v4230, 0.35355338
        %v4549 = vmul.f32 %v4308, 0.35355338
        %v4550 = vmul.f32 %v4386, 0.35355338
        %v4551 = vmul.f32 %v4464, 0.35355338
        %v4552 = vmul.f32 %v4542, 0.35355338
        %v4553 = vsel %vm995, %v4545, -inf
        %4554 = vmax.xlane.f32.xlu0 %v4553
        %v4555 = vpop.xlane.xlu0 %4554
        %v4556 = vsel %vm995, %v4546, -inf
        %4557 = vmax.xlane.f32.xlu0 %v4556
        %v4558 = vpop.xlane.xlu0 %4557
        %v4559 = vsel %vm995, %v4547, -inf
        %4560 = vmax.xlane.f32.xlu0 %v4559
        %v4561 = vpop.xlane.xlu0 %4560
        %v4562 = vsel %vm995, %v4548, -inf
        %4563 = vmax.xlane.f32.xlu0 %v4562
        %v4564 = vpop.xlane.xlu0 %4563
        %v4565 = vsel %vm995, %v4549, -inf
        %4566 = vmax.xlane.f32.xlu0 %v4565
        %v4567 = vpop.xlane.xlu0 %4566
        %v4568 = vsel %vm995, %v4550, -inf
        %4569 = vmax.xlane.f32.xlu0 %v4568
        %v4570 = vpop.xlane.xlu0 %4569
        %v4571 = vsel %vm995, %v4551, -inf
        %4572 = vmax.xlane.f32.xlu0 %v4571
        %v4573 = vpop.xlane.xlu0 %4572
        %v4574 = vsel %vm995, %v4552, -inf
        %4575 = vmax.xlane.f32.xlu0 %v4574
        %v4576 = vpop.xlane.xlu0 %4575
        %v4577 = vsub.f32 %v4545, %v4555
        %v4578 = vsub.f32 %v4546, %v4558
        %v4579 = vsub.f32 %v4547, %v4561
        %v4580 = vsub.f32 %v4548, %v4564
        %v4581 = vsub.f32 %v4549, %v4567
        %v4582 = vsub.f32 %v4550, %v4570
        %v4583 = vsub.f32 %v4551, %v4573
        %v4584 = vsub.f32 %v4552, %v4576
        %v4585 = vmul.f32 %v4577, 1.442695
        %v4586 = vpow.pop %v4585
        %v4587 = vmul.f32 %v4578, 1.442695
        %v4588 = vpow.pop %v4587
        %v4589 = vmul.f32 %v4579, 1.442695
        %v4590 = vpow.pop %v4589
        %v4591 = vmul.f32 %v4580, 1.442695
        %v4592 = vpow.pop %v4591
        %v4593 = vmul.f32 %v4581, 1.442695
        %v4594 = vpow.pop %v4593
        %v4595 = vmul.f32 %v4582, 1.442695
        %v4596 = vpow.pop %v4595
        %v4597 = vmul.f32 %v4583, 1.442695
        %v4598 = vpow.pop %v4597
        %v4599 = vmul.f32 %v4584, 1.442695
        %v4600 = vpow.pop %v4599
        %v4601 = vsel %vm995, %v4586, 0.0
        %4602 = vadd.xlane.f32.xlu0 %v4601
        %v4603 = vpop.xlane.xlu0 %4602
        %v4604 = vsel %vm995, %v4588, 0.0
        %4605 = vadd.xlane.f32.xlu0 %v4604
        %v4606 = vpop.xlane.xlu0 %4605
        %v4607 = vsel %vm995, %v4590, 0.0
        %4608 = vadd.xlane.f32.xlu0 %v4607
        %v4609 = vpop.xlane.xlu0 %4608
        %v4610 = vsel %vm995, %v4592, 0.0
        %4611 = vadd.xlane.f32.xlu0 %v4610
        %v4612 = vpop.xlane.xlu0 %4611
        %v4613 = vsel %vm995, %v4594, 0.0
        %4614 = vadd.xlane.f32.xlu0 %v4613
        %v4615 = vpop.xlane.xlu0 %4614
        %v4616 = vsel %vm995, %v4596, 0.0
        %4617 = vadd.xlane.f32.xlu0 %v4616
        %v4618 = vpop.xlane.xlu0 %4617
        %v4619 = vsel %vm995, %v4598, 0.0
        %4620 = vadd.xlane.f32.xlu0 %v4619
        %v4621 = vpop.xlane.xlu0 %4620
        %v4622 = vsel %vm995, %v4600, 0.0
        %4623 = vadd.xlane.f32.xlu0 %v4622
        %v4624 = vpop.xlane.xlu0 %4623
        %v4625 = vrcp.pop %v4603
        %v4626 = vrcp.pop %v4606
        %v4627 = vrcp.pop %v4609
        %v4628 = vrcp.pop %v4612
        %v4629 = vrcp.pop %v4615
        %v4630 = vrcp.pop %v4618
        %v4631 = vrcp.pop %v4621
        %v4632 = vrcp.pop %v4624
        %v4633 = vmul.f32 %v4586, %v4625
        %v4634 = vmul.f32 %v4588, %v4626
        %v4635 = vmul.f32 %v4590, %v4627
        %v4636 = vmul.f32 %v4592, %v4628
        %v4637 = vmul.f32 %v4594, %v4629
        %v4638 = vmul.f32 %v4596, %v4630
        %v4639 = vmul.f32 %v4598, %v4631
        %v4640 = vmul.f32 %v4600, %v4632
        %4641 = vrot.lane.b32.xlu0 %v949, 48
        %v4642 = vpop.permute.xlu0 %4641
        %v4645 = vsel %vm995, %v4633, 0
        %4647 = vmatprep.subr.mxu0 0.0
        %4648 = vmatpush1.msra.mxu0 %v4642
        %4649 = vmatprep.subr.mxu0 0.0
        %4650 = vmatpush1.msra.mxu0 0.0
        %4651 = vmatprep.subr.mxu0 0.0
        %4652 = vmatpush1.msra.mxu0 0.0
        %4653 = vmatprep.subr.mxu0 0.0
        %4654 = vmatpush1.msra.mxu0 0.0
        %4655 = vmatprep.subr.mxu0 0.0
        %4656 = vmatpush1.msra.mxu0 0.0
        %4657 = vmatprep.subr.mxu0 0.0
        %4658 = vmatpush1.msra.mxu0 0.0
        %4659 = vmatprep.subr.mxu0 0.0
        %4660 = vmatpush1.msra.mxu0 0.0
        %4661 = vmatprep.subr.mxu0 0.0
        %4662 = vmatpush1.msra.mxu0 0.0
        %4663 = vmatprep.subr.mxu0 0.0
        %4664 = vmatpush1.msra.mxu0 0.0
        %4665 = vmatprep.subr.mxu0 0.0
        %4666 = vmatpush1.msra.mxu0 0.0
        %4667 = vmatprep.subr.mxu0 0.0
        %4668 = vmatpush1.msra.mxu0 0.0
        %4669 = vmatprep.subr.mxu0 0.0
        %4670 = vmatpush1.msra.mxu0 0.0
        %4671 = vmatprep.subr.mxu0 0.0
        %4672 = vmatpush1.msra.mxu0 0.0
        %4673 = vmatprep.subr.mxu0 0.0
        %4674 = vmatpush1.msra.mxu0 0.0
        %4675 = vmatprep.subr.mxu0 0.0
        %4676 = vmatpush1.msra.mxu0 0.0
        %4677 = vmatprep.subr.mxu0 0.0
        %4678 = vmatpush1.msra.mxu0 0.0
        %4679 = vmatprep.subr.mxu0 0.0
        %4680 = vmatpush1.msra.mxu0 0.0
        %4681 = vmatprep.subr.mxu0 0.0
        %4682 = vmatpush1.msra.mxu0 0.0
        %4683 = vmatprep.subr.mxu0 0.0
        %4684 = vmatpush1.msra.mxu0 0.0
        %4685 = vmatprep.subr.mxu0 0.0
        %4686 = vmatpush1.msra.mxu0 0.0
        %4687 = vmatprep.subr.mxu0 0.0
        %4688 = vmatpush1.msra.mxu0 0.0
        %4689 = vmatprep.subr.mxu0 0.0
        %4690 = vmatpush1.msra.mxu0 0.0
        %4691 = vmatprep.subr.mxu0 0.0
        %4692 = vmatpush1.msra.mxu0 0.0
        %4693 = vmatprep.subr.mxu0 0.0
        %4694 = vmatpush1.msra.mxu0 0.0
        %4695 = vmatprep.subr.mxu0 0.0
        %4696 = vmatpush1.msra.mxu0 0.0
        %4697 = vmatprep.subr.mxu0 0.0
        %4698 = vmatpush1.msra.mxu0 0.0
        %4699 = vmatprep.subr.mxu0 0.0
        %4700 = vmatpush1.msra.mxu0 0.0
        %4701 = vmatprep.subr.mxu0 0.0
        %4702 = vmatpush1.msra.mxu0 0.0
        %4703 = vmatprep.subr.mxu0 0.0
        %4704 = vmatpush1.msra.mxu0 0.0
        %4705 = vmatprep.subr.mxu0 0.0
        %4706 = vmatpush1.msra.mxu0 0.0
        %4707 = vmatprep.subr.mxu0 0.0
        %4708 = vmatpush1.msra.mxu0 0.0
        %4709 = vmatprep.subr.mxu0 0.0
        %4710 = vmatpush1.msra.mxu0 0.0
        %4711 = vmatprep.mubr.f32.mxu0 0.0
        %4712 = vmatmul.mubr.f32.gmra.mrb[0].mxu0 %v4645
        %v4713 = vpop.f32.mrb[0].mxu0
        %v4714 = vadd.f32 0.0, %v4713
        %v4715 = vpop.f32.mrb[0].mxu0
        %4716 = vdwg.mxu0
        %4717 = vrot.lane.b32.xlu0 %v954, 48
        %v4718 = vpop.permute.xlu0 %4717
        %v4721 = vsel %vm995, %v4634, 0
        %4723 = vmatprep.subr.mxu0 0.0
        %4724 = vmatpush1.msra.mxu0 %v4718
        %4725 = vmatprep.subr.mxu0 0.0
        %4726 = vmatpush1.msra.mxu0 0.0
        %4727 = vmatprep.subr.mxu0 0.0
        %4728 = vmatpush1.msra.mxu0 0.0
        %4729 = vmatprep.subr.mxu0 0.0
        %4730 = vmatpush1.msra.mxu0 0.0
        %4731 = vmatprep.subr.mxu0 0.0
        %4732 = vmatpush1.msra.mxu0 0.0
        %4733 = vmatprep.subr.mxu0 0.0
        %4734 = vmatpush1.msra.mxu0 0.0
        %4735 = vmatprep.subr.mxu0 0.0
        %4736 = vmatpush1.msra.mxu0 0.0
        %4737 = vmatprep.subr.mxu0 0.0
        %4738 = vmatpush1.msra.mxu0 0.0
        %4739 = vmatprep.subr.mxu0 0.0
        %4740 = vmatpush1.msra.mxu0 0.0
        %4741 = vmatprep.subr.mxu0 0.0
        %4742 = vmatpush1.msra.mxu0 0.0
        %4743 = vmatprep.subr.mxu0 0.0
        %4744 = vmatpush1.msra.mxu0 0.0
        %4745 = vmatprep.subr.mxu0 0.0
        %4746 = vmatpush1.msra.mxu0 0.0
        %4747 = vmatprep.subr.mxu0 0.0
        %4748 = vmatpush1.msra.mxu0 0.0
        %4749 = vmatprep.subr.mxu0 0.0
        %4750 = vmatpush1.msra.mxu0 0.0
        %4751 = vmatprep.subr.mxu0 0.0
        %4752 = vmatpush1.msra.mxu0 0.0
        %4753 = vmatprep.subr.mxu0 0.0
        %4754 = vmatpush1.msra.mxu0 0.0
        %4755 = vmatprep.subr.mxu0 0.0
        %4756 = vmatpush1.msra.mxu0 0.0
        %4757 = vmatprep.subr.mxu0 0.0
        %4758 = vmatpush1.msra.mxu0 0.0
        %4759 = vmatprep.subr.mxu0 0.0
        %4760 = vmatpush1.msra.mxu0 0.0
        %4761 = vmatprep.subr.mxu0 0.0
        %4762 = vmatpush1.msra.mxu0 0.0
        %4763 = vmatprep.subr.mxu0 0.0
        %4764 = vmatpush1.msra.mxu0 0.0
        %4765 = vmatprep.subr.mxu0 0.0
        %4766 = vmatpush1.msra.mxu0 0.0
        %4767 = vmatprep.subr.mxu0 0.0
        %4768 = vmatpush1.msra.mxu0 0.0
        %4769 = vmatprep.subr.mxu0 0.0
        %4770 = vmatpush1.msra.mxu0 0.0
        %4771 = vmatprep.subr.mxu0 0.0
        %4772 = vmatpush1.msra.mxu0 0.0
        %4773 = vmatprep.subr.mxu0 0.0
        %4774 = vmatpush1.msra.mxu0 0.0
        %4775 = vmatprep.subr.mxu0 0.0
        %4776 = vmatpush1.msra.mxu0 0.0
        %4777 = vmatprep.subr.mxu0 0.0
        %4778 = vmatpush1.msra.mxu0 0.0
        %4779 = vmatprep.subr.mxu0 0.0
        %4780 = vmatpush1.msra.mxu0 0.0
        %4781 = vmatprep.subr.mxu0 0.0
        %4782 = vmatpush1.msra.mxu0 0.0
        %4783 = vmatprep.subr.mxu0 0.0
        %4784 = vmatpush1.msra.mxu0 0.0
        %4785 = vmatprep.subr.mxu0 0.0
        %4786 = vmatpush1.msra.mxu0 0.0
        %4787 = vmatprep.mubr.f32.mxu0 0.0
        %4788 = vmatmul.mubr.f32.gmra.mrb[0].mxu0 %v4721
        %v4789 = vpop.f32.mrb[0].mxu0
        %v4790 = vadd.f32 0.0, %v4789
        %v4791 = vpop.f32.mrb[0].mxu0
        %4792 = vdwg.mxu0
        %4793 = vrot.lane.b32.xlu0 %v959, 48
        %v4794 = vpop.permute.xlu0 %4793
        %v4797 = vsel %vm995, %v4635, 0
        %4799 = vmatprep.subr.mxu0 0.0
        %4800 = vmatpush1.msra.mxu0 %v4794
        %4801 = vmatprep.subr.mxu0 0.0
        %4802 = vmatpush1.msra.mxu0 0.0
        %4803 = vmatprep.subr.mxu0 0.0
        %4804 = vmatpush1.msra.mxu0 0.0
        %4805 = vmatprep.subr.mxu0 0.0
        %4806 = vmatpush1.msra.mxu0 0.0
        %4807 = vmatprep.subr.mxu0 0.0
        %4808 = vmatpush1.msra.mxu0 0.0
        %4809 = vmatprep.subr.mxu0 0.0
        %4810 = vmatpush1.msra.mxu0 0.0
        %4811 = vmatprep.subr.mxu0 0.0
        %4812 = vmatpush1.msra.mxu0 0.0
        %4813 = vmatprep.subr.mxu0 0.0
        %4814 = vmatpush1.msra.mxu0 0.0
        %4815 = vmatprep.subr.mxu0 0.0
        %4816 = vmatpush1.msra.mxu0 0.0
        %4817 = vmatprep.subr.mxu0 0.0
        %4818 = vmatpush1.msra.mxu0 0.0
        %4819 = vmatprep.subr.mxu0 0.0
        %4820 = vmatpush1.msra.mxu0 0.0
        %4821 = vmatprep.subr.mxu0 0.0
        %4822 = vmatpush1.msra.mxu0 0.0
        %4823 = vmatprep.subr.mxu0 0.0
        %4824 = vmatpush1.msra.mxu0 0.0
        %4825 = vmatprep.subr.mxu0 0.0
        %4826 = vmatpush1.msra.mxu0 0.0
        %4827 = vmatprep.subr.mxu0 0.0
        %4828 = vmatpush1.msra.mxu0 0.0
        %4829 = vmatprep.subr.mxu0 0.0
        %4830 = vmatpush1.msra.mxu0 0.0
        %4831 = vmatprep.subr.mxu0 0.0
        %4832 = vmatpush1.msra.mxu0 0.0
        %4833 = vmatprep.subr.mxu0 0.0
        %4834 = vmatpush1.msra.mxu0 0.0
        %4835 = vmatprep.subr.mxu0 0.0
        %4836 = vmatpush1.msra.mxu0 0.0
        %4837 = vmatprep.subr.mxu0 0.0
        %4838 = vmatpush1.msra.mxu0 0.0
        %4839 = vmatprep.subr.mxu0 0.0
        %4840 = vmatpush1.msra.mxu0 0.0
        %4841 = vmatprep.subr.mxu0 0.0
        %4842 = vmatpush1.msra.mxu0 0.0
        %4843 = vmatprep.subr.mxu0 0.0
        %4844 = vmatpush1.msra.mxu0 0.0
        %4845 = vmatprep.subr.mxu0 0.0
        %4846 = vmatpush1.msra.mxu0 0.0
        %4847 = vmatprep.subr.mxu0 0.0
        %4848 = vmatpush1.msra.mxu0 0.0
        %4849 = vmatprep.subr.mxu0 0.0
        %4850 = vmatpush1.msra.mxu0 0.0
        %4851 = vmatprep.subr.mxu0 0.0
        %4852 = vmatpush1.msra.mxu0 0.0
        %4853 = vmatprep.subr.mxu0 0.0
        %4854 = vmatpush1.msra.mxu0 0.0
        %4855 = vmatprep.subr.mxu0 0.0
        %4856 = vmatpush1.msra.mxu0 0.0
        %4857 = vmatprep.subr.mxu0 0.0
        %4858 = vmatpush1.msra.mxu0 0.0
        %4859 = vmatprep.subr.mxu0 0.0
        %4860 = vmatpush1.msra.mxu0 0.0
        %4861 = vmatprep.subr.mxu0 0.0
        %4862 = vmatpush1.msra.mxu0 0.0
        %4863 = vmatprep.mubr.f32.mxu0 0.0
        %4864 = vmatmul.mubr.f32.gmra.mrb[0].mxu0 %v4797
        %v4865 = vpop.f32.mrb[0].mxu0
        %v4866 = vadd.f32 0.0, %v4865
        %v4867 = vpop.f32.mrb[0].mxu0
        %4868 = vdwg.mxu0
        %4869 = vrot.lane.b32.xlu0 %v964, 48
        %v4870 = vpop.permute.xlu0 %4869
        %v4873 = vsel %vm995, %v4636, 0
        %4875 = vmatprep.subr.mxu0 0.0
        %4876 = vmatpush1.msra.mxu0 %v4870
        %4877 = vmatprep.subr.mxu0 0.0
        %4878 = vmatpush1.msra.mxu0 0.0
        %4879 = vmatprep.subr.mxu0 0.0
        %4880 = vmatpush1.msra.mxu0 0.0
        %4881 = vmatprep.subr.mxu0 0.0
        %4882 = vmatpush1.msra.mxu0 0.0
        %4883 = vmatprep.subr.mxu0 0.0
        %4884 = vmatpush1.msra.mxu0 0.0
        %4885 = vmatprep.subr.mxu0 0.0
        %4886 = vmatpush1.msra.mxu0 0.0
        %4887 = vmatprep.subr.mxu0 0.0
        %4888 = vmatpush1.msra.mxu0 0.0
        %4889 = vmatprep.subr.mxu0 0.0
        %4890 = vmatpush1.msra.mxu0 0.0
        %4891 = vmatprep.subr.mxu0 0.0
        %4892 = vmatpush1.msra.mxu0 0.0
        %4893 = vmatprep.subr.mxu0 0.0
        %4894 = vmatpush1.msra.mxu0 0.0
        %4895 = vmatprep.subr.mxu0 0.0
        %4896 = vmatpush1.msra.mxu0 0.0
        %4897 = vmatprep.subr.mxu0 0.0
        %4898 = vmatpush1.msra.mxu0 0.0
        %4899 = vmatprep.subr.mxu0 0.0
        %4900 = vmatpush1.msra.mxu0 0.0
        %4901 = vmatprep.subr.mxu0 0.0
        %4902 = vmatpush1.msra.mxu0 0.0
        %4903 = vmatprep.subr.mxu0 0.0
        %4904 = vmatpush1.msra.mxu0 0.0
        %4905 = vmatprep.subr.mxu0 0.0
        %4906 = vmatpush1.msra.mxu0 0.0
        %4907 = vmatprep.subr.mxu0 0.0
        %4908 = vmatpush1.msra.mxu0 0.0
        %4909 = vmatprep.subr.mxu0 0.0
        %4910 = vmatpush1.msra.mxu0 0.0
        %4911 = vmatprep.subr.mxu0 0.0
        %4912 = vmatpush1.msra.mxu0 0.0
        %4913 = vmatprep.subr.mxu0 0.0
        %4914 = vmatpush1.msra.mxu0 0.0
        %4915 = vmatprep.subr.mxu0 0.0
        %4916 = vmatpush1.msra.mxu0 0.0
        %4917 = vmatprep.subr.mxu0 0.0
        %4918 = vmatpush1.msra.mxu0 0.0
        %4919 = vmatprep.subr.mxu0 0.0
        %4920 = vmatpush1.msra.mxu0 0.0
        %4921 = vmatprep.subr.mxu0 0.0
        %4922 = vmatpush1.msra.mxu0 0.0
        %4923 = vmatprep.subr.mxu0 0.0
        %4924 = vmatpush1.msra.mxu0 0.0
        %4925 = vmatprep.subr.mxu0 0.0
        %4926 = vmatpush1.msra.mxu0 0.0
        %4927 = vmatprep.subr.mxu0 0.0
        %4928 = vmatpush1.msra.mxu0 0.0
        %4929 = vmatprep.subr.mxu0 0.0
        %4930 = vmatpush1.msra.mxu0 0.0
        %4931 = vmatprep.subr.mxu0 0.0
        %4932 = vmatpush1.msra.mxu0 0.0
        %4933 = vmatprep.subr.mxu0 0.0
        %4934 = vmatpush1.msra.mxu0 0.0
        %4935 = vmatprep.subr.mxu0 0.0
        %4936 = vmatpush1.msra.mxu0 0.0
        %4937 = vmatprep.subr.mxu0 0.0
        %4938 = vmatpush1.msra.mxu0 0.0
        %4939 = vmatprep.mubr.f32.mxu0 0.0
        %4940 = vmatmul.mubr.f32.gmra.mrb[0].mxu0 %v4873
        %v4941 = vpop.f32.mrb[0].mxu0
        %v4942 = vadd.f32 0.0, %v4941
        %v4943 = vpop.f32.mrb[0].mxu0
        %4944 = vdwg.mxu0
        %4945 = vrot.lane.b32.xlu0 %v969, 48
        %v4946 = vpop.permute.xlu0 %4945
        %v4949 = vsel %vm995, %v4637, 0
        %4951 = vmatprep.subr.mxu0 0.0
        %4952 = vmatpush1.msra.mxu0 %v4946
        %4953 = vmatprep.subr.mxu0 0.0
        %4954 = vmatpush1.msra.mxu0 0.0
        %4955 = vmatprep.subr.mxu0 0.0
        %4956 = vmatpush1.msra.mxu0 0.0
        %4957 = vmatprep.subr.mxu0 0.0
        %4958 = vmatpush1.msra.mxu0 0.0
        %4959 = vmatprep.subr.mxu0 0.0
        %4960 = vmatpush1.msra.mxu0 0.0
        %4961 = vmatprep.subr.mxu0 0.0
        %4962 = vmatpush1.msra.mxu0 0.0
        %4963 = vmatprep.subr.mxu0 0.0
        %4964 = vmatpush1.msra.mxu0 0.0
        %4965 = vmatprep.subr.mxu0 0.0
        %4966 = vmatpush1.msra.mxu0 0.0
        %4967 = vmatprep.subr.mxu0 0.0
        %4968 = vmatpush1.msra.mxu0 0.0
        %4969 = vmatprep.subr.mxu0 0.0
        %4970 = vmatpush1.msra.mxu0 0.0
        %4971 = vmatprep.subr.mxu0 0.0
        %4972 = vmatpush1.msra.mxu0 0.0
        %4973 = vmatprep.subr.mxu0 0.0
        %4974 = vmatpush1.msra.mxu0 0.0
        %4975 = vmatprep.subr.mxu0 0.0
        %4976 = vmatpush1.msra.mxu0 0.0
        %4977 = vmatprep.subr.mxu0 0.0
        %4978 = vmatpush1.msra.mxu0 0.0
        %4979 = vmatprep.subr.mxu0 0.0
        %4980 = vmatpush1.msra.mxu0 0.0
        %4981 = vmatprep.subr.mxu0 0.0
        %4982 = vmatpush1.msra.mxu0 0.0
        %4983 = vmatprep.subr.mxu0 0.0
        %4984 = vmatpush1.msra.mxu0 0.0
        %4985 = vmatprep.subr.mxu0 0.0
        %4986 = vmatpush1.msra.mxu0 0.0
        %4987 = vmatprep.subr.mxu0 0.0
        %4988 = vmatpush1.msra.mxu0 0.0
        %4989 = vmatprep.subr.mxu0 0.0
        %4990 = vmatpush1.msra.mxu0 0.0
        %4991 = vmatprep.subr.mxu0 0.0
        %4992 = vmatpush1.msra.mxu0 0.0
        %4993 = vmatprep.subr.mxu0 0.0
        %4994 = vmatpush1.msra.mxu0 0.0
        %4995 = vmatprep.subr.mxu0 0.0
        %4996 = vmatpush1.msra.mxu0 0.0
        %4997 = vmatprep.subr.mxu0 0.0
        %4998 = vmatpush1.msra.mxu0 0.0
        %4999 = vmatprep.subr.mxu0 0.0
        %5000 = vmatpush1.msra.mxu0 0.0
        %5001 = vmatprep.subr.mxu0 0.0
        %5002 = vmatpush1.msra.mxu0 0.0
        %5003 = vmatprep.subr.mxu0 0.0
        %5004 = vmatpush1.msra.mxu0 0.0
        %5005 = vmatprep.subr.mxu0 0.0
        %5006 = vmatpush1.msra.mxu0 0.0
        %5007 = vmatprep.subr.mxu0 0.0
        %5008 = vmatpush1.msra.mxu0 0.0
        %5009 = vmatprep.subr.mxu0 0.0
        %5010 = vmatpush1.msra.mxu0 0.0
        %5011 = vmatprep.subr.mxu0 0.0
        %5012 = vmatpush1.msra.mxu0 0.0
        %5013 = vmatprep.subr.mxu0 0.0
        %5014 = vmatpush1.msra.mxu0 0.0
        %5015 = vmatprep.mubr.f32.mxu0 0.0
        %5016 = vmatmul.mubr.f32.gmra.mrb[0].mxu0 %v4949
        %v5017 = vpop.f32.mrb[0].mxu0
        %v5018 = vadd.f32 0.0, %v5017
        %v5019 = vpop.f32.mrb[0].mxu0
        %5020 = vdwg.mxu0
        %5021 = vrot.lane.b32.xlu0 %v974, 48
        %v5022 = vpop.permute.xlu0 %5021
        %v5025 = vsel %vm995, %v4638, 0
        %5027 = vmatprep.subr.mxu0 0.0
        %5028 = vmatpush1.msra.mxu0 %v5022
        %5029 = vmatprep.subr.mxu0 0.0
        %5030 = vmatpush1.msra.mxu0 0.0
        %5031 = vmatprep.subr.mxu0 0.0
        %5032 = vmatpush1.msra.mxu0 0.0
        %5033 = vmatprep.subr.mxu0 0.0
        %5034 = vmatpush1.msra.mxu0 0.0
        %5035 = vmatprep.subr.mxu0 0.0
        %5036 = vmatpush1.msra.mxu0 0.0
        %5037 = vmatprep.subr.mxu0 0.0
        %5038 = vmatpush1.msra.mxu0 0.0
        %5039 = vmatprep.subr.mxu0 0.0
        %5040 = vmatpush1.msra.mxu0 0.0
        %5041 = vmatprep.subr.mxu0 0.0
        %5042 = vmatpush1.msra.mxu0 0.0
        %5043 = vmatprep.subr.mxu0 0.0
        %5044 = vmatpush1.msra.mxu0 0.0
        %5045 = vmatprep.subr.mxu0 0.0
        %5046 = vmatpush1.msra.mxu0 0.0
        %5047 = vmatprep.subr.mxu0 0.0
        %5048 = vmatpush1.msra.mxu0 0.0
        %5049 = vmatprep.subr.mxu0 0.0
        %5050 = vmatpush1.msra.mxu0 0.0
        %5051 = vmatprep.subr.mxu0 0.0
        %5052 = vmatpush1.msra.mxu0 0.0
        %5053 = vmatprep.subr.mxu0 0.0
        %5054 = vmatpush1.msra.mxu0 0.0
        %5055 = vmatprep.subr.mxu0 0.0
        %5056 = vmatpush1.msra.mxu0 0.0
        %5057 = vmatprep.subr.mxu0 0.0
        %5058 = vmatpush1.msra.mxu0 0.0
        %5059 = vmatprep.subr.mxu0 0.0
        %5060 = vmatpush1.msra.mxu0 0.0
        %5061 = vmatprep.subr.mxu0 0.0
        %5062 = vmatpush1.msra.mxu0 0.0
        %5063 = vmatprep.subr.mxu0 0.0
        %5064 = vmatpush1.msra.mxu0 0.0
        %5065 = vmatprep.subr.mxu0 0.0
        %5066 = vmatpush1.msra.mxu0 0.0
        %5067 = vmatprep.subr.mxu0 0.0
        %5068 = vmatpush1.msra.mxu0 0.0
        %5069 = vmatprep.subr.mxu0 0.0
        %5070 = vmatpush1.msra.mxu0 0.0
        %5071 = vmatprep.subr.mxu0 0.0
        %5072 = vmatpush1.msra.mxu0 0.0
        %5073 = vmatprep.subr.mxu0 0.0
        %5074 = vmatpush1.msra.mxu0 0.0
        %5075 = vmatprep.subr.mxu0 0.0
        %5076 = vmatpush1.msra.mxu0 0.0
        %5077 = vmatprep.subr.mxu0 0.0
        %5078 = vmatpush1.msra.mxu0 0.0
        %5079 = vmatprep.subr.mxu0 0.0
        %5080 = vmatpush1.msra.mxu0 0.0
        %5081 = vmatprep.subr.mxu0 0.0
        %5082 = vmatpush1.msra.mxu0 0.0
        %5083 = vmatprep.subr.mxu0 0.0
        %5084 = vmatpush1.msra.mxu0 0.0
        %5085 = vmatprep.subr.mxu0 0.0
        %5086 = vmatpush1.msra.mxu0 0.0
        %5087 = vmatprep.subr.mxu0 0.0
        %5088 = vmatpush1.msra.mxu0 0.0
        %5089 = vmatprep.subr.mxu0 0.0
        %5090 = vmatpush1.msra.mxu0 0.0
        %5091 = vmatprep.mubr.f32.mxu0 0.0
        %5092 = vmatmul.mubr.f32.gmra.mrb[0].mxu0 %v5025
        %v5093 = vpop.f32.mrb[0].mxu0
        %v5094 = vadd.f32 0.0, %v5093
        %v5095 = vpop.f32.mrb[0].mxu0
        %5096 = vdwg.mxu0
        %5097 = vrot.lane.b32.xlu0 %v979, 48
        %v5098 = vpop.permute.xlu0 %5097
        %v5101 = vsel %vm995, %v4639, 0
        %5103 = vmatprep.subr.mxu0 0.0
        %5104 = vmatpush1.msra.mxu0 %v5098
        %5105 = vmatprep.subr.mxu0 0.0
        %5106 = vmatpush1.msra.mxu0 0.0
        %5107 = vmatprep.subr.mxu0 0.0
        %5108 = vmatpush1.msra.mxu0 0.0
        %5109 = vmatprep.subr.mxu0 0.0
        %5110 = vmatpush1.msra.mxu0 0.0
        %5111 = vmatprep.subr.mxu0 0.0
        %5112 = vmatpush1.msra.mxu0 0.0
        %5113 = vmatprep.subr.mxu0 0.0
        %5114 = vmatpush1.msra.mxu0 0.0
        %5115 = vmatprep.subr.mxu0 0.0
        %5116 = vmatpush1.msra.mxu0 0.0
        %5117 = vmatprep.subr.mxu0 0.0
        %5118 = vmatpush1.msra.mxu0 0.0
        %5119 = vmatprep.subr.mxu0 0.0
        %5120 = vmatpush1.msra.mxu0 0.0
        %5121 = vmatprep.subr.mxu0 0.0
        %5122 = vmatpush1.msra.mxu0 0.0
        %5123 = vmatprep.subr.mxu0 0.0
        %5124 = vmatpush1.msra.mxu0 0.0
        %5125 = vmatprep.subr.mxu0 0.0
        %5126 = vmatpush1.msra.mxu0 0.0
        %5127 = vmatprep.subr.mxu0 0.0
        %5128 = vmatpush1.msra.mxu0 0.0
        %5129 = vmatprep.subr.mxu0 0.0
        %5130 = vmatpush1.msra.mxu0 0.0
        %5131 = vmatprep.subr.mxu0 0.0
        %5132 = vmatpush1.msra.mxu0 0.0
        %5133 = vmatprep.subr.mxu0 0.0
        %5134 = vmatpush1.msra.mxu0 0.0
        %5135 = vmatprep.subr.mxu0 0.0
        %5136 = vmatpush1.msra.mxu0 0.0
        %5137 = vmatprep.subr.mxu0 0.0
        %5138 = vmatpush1.msra.mxu0 0.0
        %5139 = vmatprep.subr.mxu0 0.0
        %5140 = vmatpush1.msra.mxu0 0.0
        %5141 = vmatprep.subr.mxu0 0.0
        %5142 = vmatpush1.msra.mxu0 0.0
        %5143 = vmatprep.subr.mxu0 0.0
        %5144 = vmatpush1.msra.mxu0 0.0
        %5145 = vmatprep.subr.mxu0 0.0
        %5146 = vmatpush1.msra.mxu0 0.0
        %5147 = vmatprep.subr.mxu0 0.0
        %5148 = vmatpush1.msra.mxu0 0.0
        %5149 = vmatprep.subr.mxu0 0.0
        %5150 = vmatpush1.msra.mxu0 0.0
        %5151 = vmatprep.subr.mxu0 0.0
        %5152 = vmatpush1.msra.mxu0 0.0
        %5153 = vmatprep.subr.mxu0 0.0
        %5154 = vmatpush1.msra.mxu0 0.0
        %5155 = vmatprep.subr.mxu0 0.0
        %5156 = vmatpush1.msra.mxu0 0.0
        %5157 = vmatprep.subr.mxu0 0.0
        %5158 = vmatpush1.msra.mxu0 0.0
        %5159 = vmatprep.subr.mxu0 0.0
        %5160 = vmatpush1.msra.mxu0 0.0
        %5161 = vmatprep.subr.mxu0 0.0
        %5162 = vmatpush1.msra.mxu0 0.0
        %5163 = vmatprep.subr.mxu0 0.0
        %5164 = vmatpush1.msra.mxu0 0.0
        %5165 = vmatprep.subr.mxu0 0.0
        %5166 = vmatpush1.msra.mxu0 0.0
        %5167 = vmatprep.mubr.f32.mxu0 0.0
        %5168 = vmatmul.mubr.f32.gmra.mrb[0].mxu0 %v5101
        %v5169 = vpop.f32.mrb[0].mxu0
        %v5170 = vadd.f32 0.0, %v5169
        %v5171 = vpop.f32.mrb[0].mxu0
        %5172 = vdwg.mxu0
        %5173 = vrot.lane.b32.xlu0 %v984, 48
        %v5174 = vpop.permute.xlu0 %5173
        %v5177 = vsel %vm995, %v4640, 0
        %5179 = vmatprep.subr.mxu0 0.0
        %5180 = vmatpush1.msra.mxu0 %v5174
        %5181 = vmatprep.subr.mxu0 0.0
        %5182 = vmatpush1.msra.mxu0 0.0
        %5183 = vmatprep.subr.mxu0 0.0
        %5184 = vmatpush1.msra.mxu0 0.0
        %5185 = vmatprep.subr.mxu0 0.0
        %5186 = vmatpush1.msra.mxu0 0.0
        %5187 = vmatprep.subr.mxu0 0.0
        %5188 = vmatpush1.msra.mxu0 0.0
        %5189 = vmatprep.subr.mxu0 0.0
        %5190 = vmatpush1.msra.mxu0 0.0
        %5191 = vmatprep.subr.mxu0 0.0
        %5192 = vmatpush1.msra.mxu0 0.0
        %5193 = vmatprep.subr.mxu0 0.0
        %5194 = vmatpush1.msra.mxu0 0.0
        %5195 = vmatprep.subr.mxu0 0.0
        %5196 = vmatpush1.msra.mxu0 0.0
        %5197 = vmatprep.subr.mxu0 0.0
        %5198 = vmatpush1.msra.mxu0 0.0
        %5199 = vmatprep.subr.mxu0 0.0
        %5200 = vmatpush1.msra.mxu0 0.0
        %5201 = vmatprep.subr.mxu0 0.0
        %5202 = vmatpush1.msra.mxu0 0.0
        %5203 = vmatprep.subr.mxu0 0.0
        %5204 = vmatpush1.msra.mxu0 0.0
        %5205 = vmatprep.subr.mxu0 0.0
        %5206 = vmatpush1.msra.mxu0 0.0
        %5207 = vmatprep.subr.mxu0 0.0
        %5208 = vmatpush1.msra.mxu0 0.0
        %5209 = vmatprep.subr.mxu0 0.0
        %5210 = vmatpush1.msra.mxu0 0.0
        %5211 = vmatprep.subr.mxu0 0.0
        %5212 = vmatpush1.msra.mxu0 0.0
        %5213 = vmatprep.subr.mxu0 0.0
        %5214 = vmatpush1.msra.mxu0 0.0
        %5215 = vmatprep.subr.mxu0 0.0
        %5216 = vmatpush1.msra.mxu0 0.0
        %5217 = vmatprep.subr.mxu0 0.0
        %5218 = vmatpush1.msra.mxu0 0.0
        %5219 = vmatprep.subr.mxu0 0.0
        %5220 = vmatpush1.msra.mxu0 0.0
        %5221 = vmatprep.subr.mxu0 0.0
        %5222 = vmatpush1.msra.mxu0 0.0
        %5223 = vmatprep.subr.mxu0 0.0
        %5224 = vmatpush1.msra.mxu0 0.0
        %5225 = vmatprep.subr.mxu0 0.0
        %5226 = vmatpush1.msra.mxu0 0.0
        %5227 = vmatprep.subr.mxu0 0.0
        %5228 = vmatpush1.msra.mxu0 0.0
        %5229 = vmatprep.subr.mxu0 0.0
        %5230 = vmatpush1.msra.mxu0 0.0
        %5231 = vmatprep.subr.mxu0 0.0
        %5232 = vmatpush1.msra.mxu0 0.0
        %5233 = vmatprep.subr.mxu0 0.0
        %5234 = vmatpush1.msra.mxu0 0.0
        %5235 = vmatprep.subr.mxu0 0.0
        %5236 = vmatpush1.msra.mxu0 0.0
        %5237 = vmatprep.subr.mxu0 0.0
        %5238 = vmatpush1.msra.mxu0 0.0
        %5239 = vmatprep.subr.mxu0 0.0
        %5240 = vmatpush1.msra.mxu0 0.0
        %5241 = vmatprep.subr.mxu0 0.0
        %5242 = vmatpush1.msra.mxu0 0.0
        %5243 = vmatprep.mubr.f32.mxu0 0.0
        %5244 = vmatmul.mubr.f32.gmra.mrb[0].mxu0 %v5177
        %v5245 = vpop.f32.mrb[0].mxu0
        %v5246 = vadd.f32 0.0, %v5245
        %v5247 = vpop.f32.mrb[0].mxu0
        %5248 = vdwg.mxu0
        %v5250 = vsel %vm995, %v4714, 0
        %v5253 = vsel %vm995, %v4790, 0
        %v5256 = vsel %vm995, %v4866, 0
        %v5259 = vsel %vm995, %v4942, 0
        %v5262 = vsel %vm995, %v5018, 0
        %v5265 = vsel %vm995, %v5094, 0
        %v5268 = vsel %vm995, %v5170, 0
        %v5271 = vsel %vm995, %v5246, 0
        %5273 = vmatprep.subr.mxu0 0.0
        %5274 = vmatpush1.msra.mxu0 %v989
        %5275 = vmatprep.subr.mxu0 0.0
        %5276 = vmatpush1.msra.mxu0 0.0
        %5277 = vmatprep.subr.mxu0 0.0
        %5278 = vmatpush1.msra.mxu0 0.0
        %5279 = vmatprep.subr.mxu0 0.0
        %5280 = vmatpush1.msra.mxu0 0.0
        %5281 = vmatprep.subr.mxu0 0.0
        %5282 = vmatpush1.msra.mxu0 0.0
        %5283 = vmatprep.subr.mxu0 0.0
        %5284 = vmatpush1.msra.mxu0 0.0
        %5285 = vmatprep.subr.mxu0 0.0
        %5286 = vmatpush1.msra.mxu0 0.0
        %5287 = vmatprep.subr.mxu0 0.0
        %5288 = vmatpush1.msra.mxu0 0.0
        %5289 = vmatprep.subr.mxu0 0.0
        %5290 = vmatpush1.msra.mxu0 0.0
        %5291 = vmatprep.subr.mxu0 0.0
        %5292 = vmatpush1.msra.mxu0 0.0
        %5293 = vmatprep.subr.mxu0 0.0
        %5294 = vmatpush1.msra.mxu0 0.0
        %5295 = vmatprep.subr.mxu0 0.0
        %5296 = vmatpush1.msra.mxu0 0.0
        %5297 = vmatprep.subr.mxu0 0.0
        %5298 = vmatpush1.msra.mxu0 0.0
        %5299 = vmatprep.subr.mxu0 0.0
        %5300 = vmatpush1.msra.mxu0 0.0
        %5301 = vmatprep.subr.mxu0 0.0
        %5302 = vmatpush1.msra.mxu0 0.0
        %5303 = vmatprep.subr.mxu0 0.0
        %5304 = vmatpush1.msra.mxu0 0.0
        %5305 = vmatprep.subr.mxu0 0.0
        %5306 = vmatpush1.msra.mxu0 0.0
        %5307 = vmatprep.subr.mxu0 0.0
        %5308 = vmatpush1.msra.mxu0 0.0
        %5309 = vmatprep.subr.mxu0 0.0
        %5310 = vmatpush1.msra.mxu0 0.0
        %5311 = vmatprep.subr.mxu0 0.0
        %5312 = vmatpush1.msra.mxu0 0.0
        %5313 = vmatprep.subr.mxu0 0.0
        %5314 = vmatpush1.msra.mxu0 0.0
        %5315 = vmatprep.subr.mxu0 0.0
        %5316 = vmatpush1.msra.mxu0 0.0
        %5317 = vmatprep.subr.mxu0 0.0
        %5318 = vmatpush1.msra.mxu0 0.0
        %5319 = vmatprep.subr.mxu0 0.0
        %5320 = vmatpush1.msra.mxu0 0.0
        %5321 = vmatprep.subr.mxu0 0.0
        %5322 = vmatpush1.msra.mxu0 0.0
        %5323 = vmatprep.subr.mxu0 0.0
        %5324 = vmatpush1.msra.mxu0 0.0
        %5325 = vmatprep.subr.mxu0 0.0
        %5326 = vmatpush1.msra.mxu0 0.0
        %5327 = vmatprep.subr.mxu0 0.0
        %5328 = vmatpush1.msra.mxu0 0.0
        %5329 = vmatprep.subr.mxu0 0.0
        %5330 = vmatpush1.msra.mxu0 0.0
        %5331 = vmatprep.subr.mxu0 0.0
        %5332 = vmatpush1.msra.mxu0 0.0
        %5333 = vmatprep.subr.mxu0 0.0
        %5334 = vmatpush1.msra.mxu0 0.0
        %5335 = vmatprep.subr.mxu0 0.0
        %5336 = vmatpush1.msra.mxu0 0.0
        %5337 = vmatprep.mubr.f32.mxu0 0.0
        %5338 = vmatmul.mubr.f32.gmra.mrb[0].mxu0 %v5250
        %v5339 = vpop.f32.mrb[0].mxu0
        %v5340 = vadd.f32 0.0, %v5339
        %v5341 = vpop.f32.mrb[0].mxu0
        %5342 = vmatprep.mubr.f32.mxu0 0.0
        %5343 = vmatmul.mubr.f32.gmra.mrb[0].mxu0 %v5253
        %v5344 = vpop.f32.mrb[0].mxu0
        %v5345 = vadd.f32 0.0, %v5344
        %v5346 = vpop.f32.mrb[0].mxu0
        %5347 = vmatprep.mubr.f32.mxu0 0.0
        %5348 = vmatmul.mubr.f32.gmra.mrb[0].mxu0 %v5256
        %v5349 = vpop.f32.mrb[0].mxu0
        %v5350 = vadd.f32 0.0, %v5349
        %v5351 = vpop.f32.mrb[0].mxu0
        %5352 = vmatprep.mubr.f32.mxu0 0.0
        %5353 = vmatmul.mubr.f32.gmra.mrb[0].mxu0 %v5259
        %v5354 = vpop.f32.mrb[0].mxu0
        %v5355 = vadd.f32 0.0, %v5354
        %v5356 = vpop.f32.mrb[0].mxu0
        %5357 = vmatprep.mubr.f32.mxu0 0.0
        %5358 = vmatmul.mubr.f32.gmra.mrb[0].mxu0 %v5262
        %v5359 = vpop.f32.mrb[0].mxu0
        %v5360 = vadd.f32 0.0, %v5359
        %v5361 = vpop.f32.mrb[0].mxu0
        %5362 = vmatprep.mubr.f32.mxu0 0.0
        %5363 = vmatmul.mubr.f32.gmra.mrb[0].mxu0 %v5265
        %v5364 = vpop.f32.mrb[0].mxu0
        %v5365 = vadd.f32 0.0, %v5364
        %v5366 = vpop.f32.mrb[0].mxu0
        %5367 = vmatprep.mubr.f32.mxu0 0.0
        %5368 = vmatmul.mubr.f32.gmra.mrb[0].mxu0 %v5268
        %v5369 = vpop.f32.mrb[0].mxu0
        %v5370 = vadd.f32 0.0, %v5369
        %v5371 = vpop.f32.mrb[0].mxu0
        %5372 = vmatprep.mubr.f32.mxu0 0.0
        %5373 = vmatmul.mubr.f32.gmra.mrb[0].mxu0 %v5271
        %v5374 = vpop.f32.mrb[0].mxu0
        %v5375 = vadd.f32 0.0, %v5374
        %v5376 = vpop.f32.mrb[0].mxu0
        %5377 = vdwg.mxu0
        %v5378 = vadd.f32 %v3913, %v5340
        %v5379 = vadd.f32 %v3914, %v5345
        %v5380 = vadd.f32 %v3915, %v5350
        %v5381 = vadd.f32 %v3916, %v5355
        %v5382 = vadd.f32 %v3917, %v5360
        %v5383 = vadd.f32 %v3918, %v5365
        %v5384 = vadd.f32 %v3919, %v5370
        %v5385 = vadd.f32 %v3920, %v5375
        %5386 = vrot.lane.b32.xlu0 %v949, 104
        %v5387 = vpop.permute.xlu0 %5386
        %5388 = vrot.lane.b32.xlu0 %v949, 72
        %v5389 = vpop.permute.xlu0 %5388
        %v5390 = vsel %vm995, %v5387, 0
        %v5392 = vsel %vm995, %v5389, 0
        %5394 = vmatprep.subr.mxu0 0.0
        %5395 = vmatpush1.xpose.msra.mxu0 %v5392
        %5396 = vmatprep.subr.mxu0 0.0
        %5397 = vmatpush1.xpose.msra.mxu0 0.0
        %5398 = vmatprep.subr.mxu0 0.0
        %5399 = vmatpush1.xpose.msra.mxu0 0.0
        %5400 = vmatprep.subr.mxu0 0.0
        %5401 = vmatpush1.xpose.msra.mxu0 0.0
        %5402 = vmatprep.subr.mxu0 0.0
        %5403 = vmatpush1.xpose.msra.mxu0 0.0
        %5404 = vmatprep.subr.mxu0 0.0
        %5405 = vmatpush1.xpose.msra.mxu0 0.0
        %5406 = vmatprep.subr.mxu0 0.0
        %5407 = vmatpush1.xpose.msra.mxu0 0.0
        %5408 = vmatprep.subr.mxu0 0.0
        %5409 = vmatpush1.xpose.msra.mxu0 0.0
        %5410 = vmatprep.subr.mxu0 0.0
        %5411 = vmatpush1.xpose.msra.mxu0 0.0
        %5412 = vmatprep.subr.mxu0 0.0
        %5413 = vmatpush1.xpose.msra.mxu0 0.0
        %5414 = vmatprep.subr.mxu0 0.0
        %5415 = vmatpush1.xpose.msra.mxu0 0.0
        %5416 = vmatprep.subr.mxu0 0.0
        %5417 = vmatpush1.xpose.msra.mxu0 0.0
        %5418 = vmatprep.subr.mxu0 0.0
        %5419 = vmatpush1.xpose.msra.mxu0 0.0
        %5420 = vmatprep.subr.mxu0 0.0
        %5421 = vmatpush1.xpose.msra.mxu0 0.0
        %5422 = vmatprep.subr.mxu0 0.0
        %5423 = vmatpush1.xpose.msra.mxu0 0.0
        %5424 = vmatprep.subr.mxu0 0.0
        %5425 = vmatpush1.xpose.msra.mxu0 0.0
        %5426 = vmatprep.subr.mxu0 0.0
        %5427 = vmatpush1.xpose.msra.mxu0 0.0
        %5428 = vmatprep.subr.mxu0 0.0
        %5429 = vmatpush1.xpose.msra.mxu0 0.0
        %5430 = vmatprep.subr.mxu0 0.0
        %5431 = vmatpush1.xpose.msra.mxu0 0.0
        %5432 = vmatprep.subr.mxu0 0.0
        %5433 = vmatpush1.xpose.msra.mxu0 0.0
        %5434 = vmatprep.subr.mxu0 0.0
        %5435 = vmatpush1.xpose.msra.mxu0 0.0
        %5436 = vmatprep.subr.mxu0 0.0
        %5437 = vmatpush1.xpose.msra.mxu0 0.0
        %5438 = vmatprep.subr.mxu0 0.0
        %5439 = vmatpush1.xpose.msra.mxu0 0.0
        %5440 = vmatprep.subr.mxu0 0.0
        %5441 = vmatpush1.xpose.msra.mxu0 0.0
        %5442 = vmatprep.subr.mxu0 0.0
        %5443 = vmatpush1.xpose.msra.mxu0 0.0
        %5444 = vmatprep.subr.mxu0 0.0
        %5445 = vmatpush1.xpose.msra.mxu0 0.0
        %5446 = vmatprep.subr.mxu0 0.0
        %5447 = vmatpush1.xpose.msra.mxu0 0.0
        %5448 = vmatprep.subr.mxu0 0.0
        %5449 = vmatpush1.xpose.msra.mxu0 0.0
        %5450 = vmatprep.subr.mxu0 0.0
        %5451 = vmatpush1.xpose.msra.mxu0 0.0
        %5452 = vmatprep.subr.mxu0 0.0
        %5453 = vmatpush1.xpose.msra.mxu0 0.0
        %5454 = vmatprep.subr.mxu0 0.0
        %5455 = vmatpush1.xpose.msra.mxu0 0.0
        %5456 = vmatprep.subr.mxu0 0.0
        %5457 = vmatpush1.xpose.msra.mxu0 0.0
        %5458 = vmatprep.mubr.f32.mxu0 0.0
        %5459 = vmatmul.mubr.f32.gmra.mrb[0].mxu0 %v5390
        %v5460 = vpop.f32.mrb[0].mxu0
        %v5461 = vadd.f32 0.0, %v5460
        %v5462 = vpop.f32.mrb[0].mxu0
        %5463 = vdwg.mxu0
        %5464 = vrot.lane.b32.xlu0 %v954, 104
        %v5465 = vpop.permute.xlu0 %5464
        %5466 = vrot.lane.b32.xlu0 %v954, 72
        %v5467 = vpop.permute.xlu0 %5466
        %v5468 = vsel %vm995, %v5465, 0
        %v5470 = vsel %vm995, %v5467, 0
        %5472 = vmatprep.subr.mxu0 0.0
        %5473 = vmatpush1.xpose.msra.mxu0 %v5470
        %5474 = vmatprep.subr.mxu0 0.0
        %5475 = vmatpush1.xpose.msra.mxu0 0.0
        %5476 = vmatprep.subr.mxu0 0.0
        %5477 = vmatpush1.xpose.msra.mxu0 0.0
        %5478 = vmatprep.subr.mxu0 0.0
        %5479 = vmatpush1.xpose.msra.mxu0 0.0
        %5480 = vmatprep.subr.mxu0 0.0
        %5481 = vmatpush1.xpose.msra.mxu0 0.0
        %5482 = vmatprep.subr.mxu0 0.0
        %5483 = vmatpush1.xpose.msra.mxu0 0.0
        %5484 = vmatprep.subr.mxu0 0.0
        %5485 = vmatpush1.xpose.msra.mxu0 0.0
        %5486 = vmatprep.subr.mxu0 0.0
        %5487 = vmatpush1.xpose.msra.mxu0 0.0
        %5488 = vmatprep.subr.mxu0 0.0
        %5489 = vmatpush1.xpose.msra.mxu0 0.0
        %5490 = vmatprep.subr.mxu0 0.0
        %5491 = vmatpush1.xpose.msra.mxu0 0.0
        %5492 = vmatprep.subr.mxu0 0.0
        %5493 = vmatpush1.xpose.msra.mxu0 0.0
        %5494 = vmatprep.subr.mxu0 0.0
        %5495 = vmatpush1.xpose.msra.mxu0 0.0
        %5496 = vmatprep.subr.mxu0 0.0
        %5497 = vmatpush1.xpose.msra.mxu0 0.0
        %5498 = vmatprep.subr.mxu0 0.0
        %5499 = vmatpush1.xpose.msra.mxu0 0.0
        %5500 = vmatprep.subr.mxu0 0.0
        %5501 = vmatpush1.xpose.msra.mxu0 0.0
        %5502 = vmatprep.subr.mxu0 0.0
        %5503 = vmatpush1.xpose.msra.mxu0 0.0
        %5504 = vmatprep.subr.mxu0 0.0
        %5505 = vmatpush1.xpose.msra.mxu0 0.0
        %5506 = vmatprep.subr.mxu0 0.0
        %5507 = vmatpush1.xpose.msra.mxu0 0.0
        %5508 = vmatprep.subr.mxu0 0.0
        %5509 = vmatpush1.xpose.msra.mxu0 0.0
        %5510 = vmatprep.subr.mxu0 0.0
        %5511 = vmatpush1.xpose.msra.mxu0 0.0
        %5512 = vmatprep.subr.mxu0 0.0
        %5513 = vmatpush1.xpose.msra.mxu0 0.0
        %5514 = vmatprep.subr.mxu0 0.0
        %5515 = vmatpush1.xpose.msra.mxu0 0.0
        %5516 = vmatprep.subr.mxu0 0.0
        %5517 = vmatpush1.xpose.msra.mxu0 0.0
        %5518 = vmatprep.subr.mxu0 0.0
        %5519 = vmatpush1.xpose.msra.mxu0 0.0
        %5520 = vmatprep.subr.mxu0 0.0
        %5521 = vmatpush1.xpose.msra.mxu0 0.0
        %5522 = vmatprep.subr.mxu0 0.0
        %5523 = vmatpush1.xpose.msra.mxu0 0.0
        %5524 = vmatprep.subr.mxu0 0.0
        %5525 = vmatpush1.xpose.msra.mxu0 0.0
        %5526 = vmatprep.subr.mxu0 0.0
        %5527 = vmatpush1.xpose.msra.mxu0 0.0
        %5528 = vmatprep.subr.mxu0 0.0
        %5529 = vmatpush1.xpose.msra.mxu0 0.0
        %5530 = vmatprep.subr.mxu0 0.0
        %5531 = vmatpush1.xpose.msra.mxu0 0.0
        %5532 = vmatprep.subr.mxu0 0.0
        %5533 = vmatpush1.xpose.msra.mxu0 0.0
        %5534 = vmatprep.subr.mxu0 0.0
        %5535 = vmatpush1.xpose.msra.mxu0 0.0
        %5536 = vmatprep.mubr.f32.mxu0 0.0
        %5537 = vmatmul.mubr.f32.gmra.mrb[0].mxu0 %v5468
        %v5538 = vpop.f32.mrb[0].mxu0
        %v5539 = vadd.f32 0.0, %v5538
        %v5540 = vpop.f32.mrb[0].mxu0
        %5541 = vdwg.mxu0
        %5542 = vrot.lane.b32.xlu0 %v959, 104
        %v5543 = vpop.permute.xlu0 %5542
        %5544 = vrot.lane.b32.xlu0 %v959, 72
        %v5545 = vpop.permute.xlu0 %5544
        %v5546 = vsel %vm995, %v5543, 0
        %v5548 = vsel %vm995, %v5545, 0
        %5550 = vmatprep.subr.mxu0 0.0
        %5551 = vmatpush1.xpose.msra.mxu0 %v5548
        %5552 = vmatprep.subr.mxu0 0.0
        %5553 = vmatpush1.xpose.msra.mxu0 0.0
        %5554 = vmatprep.subr.mxu0 0.0
        %5555 = vmatpush1.xpose.msra.mxu0 0.0
        %5556 = vmatprep.subr.mxu0 0.0
        %5557 = vmatpush1.xpose.msra.mxu0 0.0
        %5558 = vmatprep.subr.mxu0 0.0
        %5559 = vmatpush1.xpose.msra.mxu0 0.0
        %5560 = vmatprep.subr.mxu0 0.0
        %5561 = vmatpush1.xpose.msra.mxu0 0.0
        %5562 = vmatprep.subr.mxu0 0.0
        %5563 = vmatpush1.xpose.msra.mxu0 0.0
        %5564 = vmatprep.subr.mxu0 0.0
        %5565 = vmatpush1.xpose.msra.mxu0 0.0
        %5566 = vmatprep.subr.mxu0 0.0
        %5567 = vmatpush1.xpose.msra.mxu0 0.0
        %5568 = vmatprep.subr.mxu0 0.0
        %5569 = vmatpush1.xpose.msra.mxu0 0.0
        %5570 = vmatprep.subr.mxu0 0.0
        %5571 = vmatpush1.xpose.msra.mxu0 0.0
        %5572 = vmatprep.subr.mxu0 0.0
        %5573 = vmatpush1.xpose.msra.mxu0 0.0
        %5574 = vmatprep.subr.mxu0 0.0
        %5575 = vmatpush1.xpose.msra.mxu0 0.0
        %5576 = vmatprep.subr.mxu0 0.0
        %5577 = vmatpush1.xpose.msra.mxu0 0.0
        %5578 = vmatprep.subr.mxu0 0.0
        %5579 = vmatpush1.xpose.msra.mxu0 0.0
        %5580 = vmatprep.subr.mxu0 0.0
        %5581 = vmatpush1.xpose.msra.mxu0 0.0
        %5582 = vmatprep.subr.mxu0 0.0
        %5583 = vmatpush1.xpose.msra.mxu0 0.0
        %5584 = vmatprep.subr.mxu0 0.0
        %5585 = vmatpush1.xpose.msra.mxu0 0.0
        %5586 = vmatprep.subr.mxu0 0.0
        %5587 = vmatpush1.xpose.msra.mxu0 0.0
        %5588 = vmatprep.subr.mxu0 0.0
        %5589 = vmatpush1.xpose.msra.mxu0 0.0
        %5590 = vmatprep.subr.mxu0 0.0
        %5591 = vmatpush1.xpose.msra.mxu0 0.0
        %5592 = vmatprep.subr.mxu0 0.0
        %5593 = vmatpush1.xpose.msra.mxu0 0.0
        %5594 = vmatprep.subr.mxu0 0.0
        %5595 = vmatpush1.xpose.msra.mxu0 0.0
        %5596 = vmatprep.subr.mxu0 0.0
        %5597 = vmatpush1.xpose.msra.mxu0 0.0
        %5598 = vmatprep.subr.mxu0 0.0
        %5599 = vmatpush1.xpose.msra.mxu0 0.0
        %5600 = vmatprep.subr.mxu0 0.0
        %5601 = vmatpush1.xpose.msra.mxu0 0.0
        %5602 = vmatprep.subr.mxu0 0.0
        %5603 = vmatpush1.xpose.msra.mxu0 0.0
        %5604 = vmatprep.subr.mxu0 0.0
        %5605 = vmatpush1.xpose.msra.mxu0 0.0
        %5606 = vmatprep.subr.mxu0 0.0
        %5607 = vmatpush1.xpose.msra.mxu0 0.0
        %5608 = vmatprep.subr.mxu0 0.0
        %5609 = vmatpush1.xpose.msra.mxu0 0.0
        %5610 = vmatprep.subr.mxu0 0.0
        %5611 = vmatpush1.xpose.msra.mxu0 0.0
        %5612 = vmatprep.subr.mxu0 0.0
        %5613 = vmatpush1.xpose.msra.mxu0 0.0
        %5614 = vmatprep.mubr.f32.mxu0 0.0
        %5615 = vmatmul.mubr.f32.gmra.mrb[0].mxu0 %v5546
        %v5616 = vpop.f32.mrb[0].mxu0
        %v5617 = vadd.f32 0.0, %v5616
        %v5618 = vpop.f32.mrb[0].mxu0
        %5619 = vdwg.mxu0
        %5620 = vrot.lane.b32.xlu0 %v964, 104
        %v5621 = vpop.permute.xlu0 %5620
        %5622 = vrot.lane.b32.xlu0 %v964, 72
        %v5623 = vpop.permute.xlu0 %5622
        %v5624 = vsel %vm995, %v5621, 0
        %v5626 = vsel %vm995, %v5623, 0
        %5628 = vmatprep.subr.mxu0 0.0
        %5629 = vmatpush1.xpose.msra.mxu0 %v5626
        %5630 = vmatprep.subr.mxu0 0.0
        %5631 = vmatpush1.xpose.msra.mxu0 0.0
        %5632 = vmatprep.subr.mxu0 0.0
        %5633 = vmatpush1.xpose.msra.mxu0 0.0
        %5634 = vmatprep.subr.mxu0 0.0
        %5635 = vmatpush1.xpose.msra.mxu0 0.0
        %5636 = vmatprep.subr.mxu0 0.0
        %5637 = vmatpush1.xpose.msra.mxu0 0.0
        %5638 = vmatprep.subr.mxu0 0.0
        %5639 = vmatpush1.xpose.msra.mxu0 0.0
        %5640 = vmatprep.subr.mxu0 0.0
        %5641 = vmatpush1.xpose.msra.mxu0 0.0
        %5642 = vmatprep.subr.mxu0 0.0
        %5643 = vmatpush1.xpose.msra.mxu0 0.0
        %5644 = vmatprep.subr.mxu0 0.0
        %5645 = vmatpush1.xpose.msra.mxu0 0.0
        %5646 = vmatprep.subr.mxu0 0.0
        %5647 = vmatpush1.xpose.msra.mxu0 0.0
        %5648 = vmatprep.subr.mxu0 0.0
        %5649 = vmatpush1.xpose.msra.mxu0 0.0
        %5650 = vmatprep.subr.mxu0 0.0
        %5651 = vmatpush1.xpose.msra.mxu0 0.0
        %5652 = vmatprep.subr.mxu0 0.0
        %5653 = vmatpush1.xpose.msra.mxu0 0.0
        %5654 = vmatprep.subr.mxu0 0.0
        %5655 = vmatpush1.xpose.msra.mxu0 0.0
        %5656 = vmatprep.subr.mxu0 0.0
        %5657 = vmatpush1.xpose.msra.mxu0 0.0
        %5658 = vmatprep.subr.mxu0 0.0
        %5659 = vmatpush1.xpose.msra.mxu0 0.0
        %5660 = vmatprep.subr.mxu0 0.0
        %5661 = vmatpush1.xpose.msra.mxu0 0.0
        %5662 = vmatprep.subr.mxu0 0.0
        %5663 = vmatpush1.xpose.msra.mxu0 0.0
        %5664 = vmatprep.subr.mxu0 0.0
        %5665 = vmatpush1.xpose.msra.mxu0 0.0
        %5666 = vmatprep.subr.mxu0 0.0
        %5667 = vmatpush1.xpose.msra.mxu0 0.0
        %5668 = vmatprep.subr.mxu0 0.0
        %5669 = vmatpush1.xpose.msra.mxu0 0.0
        %5670 = vmatprep.subr.mxu0 0.0
        %5671 = vmatpush1.xpose.msra.mxu0 0.0
        %5672 = vmatprep.subr.mxu0 0.0
        %5673 = vmatpush1.xpose.msra.mxu0 0.0
        %5674 = vmatprep.subr.mxu0 0.0
        %5675 = vmatpush1.xpose.msra.mxu0 0.0
        %5676 = vmatprep.subr.mxu0 0.0
        %5677 = vmatpush1.xpose.msra.mxu0 0.0
        %5678 = vmatprep.subr.mxu0 0.0
        %5679 = vmatpush1.xpose.msra.mxu0 0.0
        %5680 = vmatprep.subr.mxu0 0.0
        %5681 = vmatpush1.xpose.msra.mxu0 0.0
        %5682 = vmatprep.subr.mxu0 0.0
        %5683 = vmatpush1.xpose.msra.mxu0 0.0
        %5684 = vmatprep.subr.mxu0 0.0
        %5685 = vmatpush1.xpose.msra.mxu0 0.0
        %5686 = vmatprep.subr.mxu0 0.0
        %5687 = vmatpush1.xpose.msra.mxu0 0.0
        %5688 = vmatprep.subr.mxu0 0.0
        %5689 = vmatpush1.xpose.msra.mxu0 0.0
        %5690 = vmatprep.subr.mxu0 0.0
        %5691 = vmatpush1.xpose.msra.mxu0 0.0
        %5692 = vmatprep.mubr.f32.mxu0 0.0
        %5693 = vmatmul.mubr.f32.gmra.mrb[0].mxu0 %v5624
        %v5694 = vpop.f32.mrb[0].mxu0
        %v5695 = vadd.f32 0.0, %v5694
        %v5696 = vpop.f32.mrb[0].mxu0
        %5697 = vdwg.mxu0
        %5698 = vrot.lane.b32.xlu0 %v969, 104
        %v5699 = vpop.permute.xlu0 %5698
        %5700 = vrot.lane.b32.xlu0 %v969, 72
        %v5701 = vpop.permute.xlu0 %5700
        %v5702 = vsel %vm995, %v5699, 0
        %v5704 = vsel %vm995, %v5701, 0
        %5706 = vmatprep.subr.mxu0 0.0
        %5707 = vmatpush1.xpose.msra.mxu0 %v5704
        %5708 = vmatprep.subr.mxu0 0.0
        %5709 = vmatpush1.xpose.msra.mxu0 0.0
        %5710 = vmatprep.subr.mxu0 0.0
        %5711 = vmatpush1.xpose.msra.mxu0 0.0
        %5712 = vmatprep.subr.mxu0 0.0
        %5713 = vmatpush1.xpose.msra.mxu0 0.0
        %5714 = vmatprep.subr.mxu0 0.0
        %5715 = vmatpush1.xpose.msra.mxu0 0.0
        %5716 = vmatprep.subr.mxu0 0.0
        %5717 = vmatpush1.xpose.msra.mxu0 0.0
        %5718 = vmatprep.subr.mxu0 0.0
        %5719 = vmatpush1.xpose.msra.mxu0 0.0
        %5720 = vmatprep.subr.mxu0 0.0
        %5721 = vmatpush1.xpose.msra.mxu0 0.0
        %5722 = vmatprep.subr.mxu0 0.0
        %5723 = vmatpush1.xpose.msra.mxu0 0.0
        %5724 = vmatprep.subr.mxu0 0.0
        %5725 = vmatpush1.xpose.msra.mxu0 0.0
        %5726 = vmatprep.subr.mxu0 0.0
        %5727 = vmatpush1.xpose.msra.mxu0 0.0
        %5728 = vmatprep.subr.mxu0 0.0
        %5729 = vmatpush1.xpose.msra.mxu0 0.0
        %5730 = vmatprep.subr.mxu0 0.0
        %5731 = vmatpush1.xpose.msra.mxu0 0.0
        %5732 = vmatprep.subr.mxu0 0.0
        %5733 = vmatpush1.xpose.msra.mxu0 0.0
        %5734 = vmatprep.subr.mxu0 0.0
        %5735 = vmatpush1.xpose.msra.mxu0 0.0
        %5736 = vmatprep.subr.mxu0 0.0
        %5737 = vmatpush1.xpose.msra.mxu0 0.0
        %5738 = vmatprep.subr.mxu0 0.0
        %5739 = vmatpush1.xpose.msra.mxu0 0.0
        %5740 = vmatprep.subr.mxu0 0.0
        %5741 = vmatpush1.xpose.msra.mxu0 0.0
        %5742 = vmatprep.subr.mxu0 0.0
        %5743 = vmatpush1.xpose.msra.mxu0 0.0
        %5744 = vmatprep.subr.mxu0 0.0
        %5745 = vmatpush1.xpose.msra.mxu0 0.0
        %5746 = vmatprep.subr.mxu0 0.0
        %5747 = vmatpush1.xpose.msra.mxu0 0.0
        %5748 = vmatprep.subr.mxu0 0.0
        %5749 = vmatpush1.xpose.msra.mxu0 0.0
        %5750 = vmatprep.subr.mxu0 0.0
        %5751 = vmatpush1.xpose.msra.mxu0 0.0
        %5752 = vmatprep.subr.mxu0 0.0
        %5753 = vmatpush1.xpose.msra.mxu0 0.0
        %5754 = vmatprep.subr.mxu0 0.0
        %5755 = vmatpush1.xpose.msra.mxu0 0.0
        %5756 = vmatprep.subr.mxu0 0.0
        %5757 = vmatpush1.xpose.msra.mxu0 0.0
        %5758 = vmatprep.subr.mxu0 0.0
        %5759 = vmatpush1.xpose.msra.mxu0 0.0
        %5760 = vmatprep.subr.mxu0 0.0
        %5761 = vmatpush1.xpose.msra.mxu0 0.0
        %5762 = vmatprep.subr.mxu0 0.0
        %5763 = vmatpush1.xpose.msra.mxu0 0.0
        %5764 = vmatprep.subr.mxu0 0.0
        %5765 = vmatpush1.xpose.msra.mxu0 0.0
        %5766 = vmatprep.subr.mxu0 0.0
        %5767 = vmatpush1.xpose.msra.mxu0 0.0
        %5768 = vmatprep.subr.mxu0 0.0
        %5769 = vmatpush1.xpose.msra.mxu0 0.0
        %5770 = vmatprep.mubr.f32.mxu0 0.0
        %5771 = vmatmul.mubr.f32.gmra.mrb[0].mxu0 %v5702
        %v5772 = vpop.f32.mrb[0].mxu0
        %v5773 = vadd.f32 0.0, %v5772
        %v5774 = vpop.f32.mrb[0].mxu0
        %5775 = vdwg.mxu0
        %5776 = vrot.lane.b32.xlu0 %v974, 104
        %v5777 = vpop.permute.xlu0 %5776
        %5778 = vrot.lane.b32.xlu0 %v974, 72
        %v5779 = vpop.permute.xlu0 %5778
        %v5780 = vsel %vm995, %v5777, 0
        %v5782 = vsel %vm995, %v5779, 0
        %5784 = vmatprep.subr.mxu0 0.0
        %5785 = vmatpush1.xpose.msra.mxu0 %v5782
        %5786 = vmatprep.subr.mxu0 0.0
        %5787 = vmatpush1.xpose.msra.mxu0 0.0
        %5788 = vmatprep.subr.mxu0 0.0
        %5789 = vmatpush1.xpose.msra.mxu0 0.0
        %5790 = vmatprep.subr.mxu0 0.0
        %5791 = vmatpush1.xpose.msra.mxu0 0.0
        %5792 = vmatprep.subr.mxu0 0.0
        %5793 = vmatpush1.xpose.msra.mxu0 0.0
        %5794 = vmatprep.subr.mxu0 0.0
        %5795 = vmatpush1.xpose.msra.mxu0 0.0
        %5796 = vmatprep.subr.mxu0 0.0
        %5797 = vmatpush1.xpose.msra.mxu0 0.0
        %5798 = vmatprep.subr.mxu0 0.0
        %5799 = vmatpush1.xpose.msra.mxu0 0.0
        %5800 = vmatprep.subr.mxu0 0.0
        %5801 = vmatpush1.xpose.msra.mxu0 0.0
        %5802 = vmatprep.subr.mxu0 0.0
        %5803 = vmatpush1.xpose.msra.mxu0 0.0
        %5804 = vmatprep.subr.mxu0 0.0
        %5805 = vmatpush1.xpose.msra.mxu0 0.0
        %5806 = vmatprep.subr.mxu0 0.0
        %5807 = vmatpush1.xpose.msra.mxu0 0.0
        %5808 = vmatprep.subr.mxu0 0.0
        %5809 = vmatpush1.xpose.msra.mxu0 0.0
        %5810 = vmatprep.subr.mxu0 0.0
        %5811 = vmatpush1.xpose.msra.mxu0 0.0
        %5812 = vmatprep.subr.mxu0 0.0
        %5813 = vmatpush1.xpose.msra.mxu0 0.0
        %5814 = vmatprep.subr.mxu0 0.0
        %5815 = vmatpush1.xpose.msra.mxu0 0.0
        %5816 = vmatprep.subr.mxu0 0.0
        %5817 = vmatpush1.xpose.msra.mxu0 0.0
        %5818 = vmatprep.subr.mxu0 0.0
        %5819 = vmatpush1.xpose.msra.mxu0 0.0
        %5820 = vmatprep.subr.mxu0 0.0
        %5821 = vmatpush1.xpose.msra.mxu0 0.0
        %5822 = vmatprep.subr.mxu0 0.0
        %5823 = vmatpush1.xpose.msra.mxu0 0.0
        %5824 = vmatprep.subr.mxu0 0.0
        %5825 = vmatpush1.xpose.msra.mxu0 0.0
        %5826 = vmatprep.subr.mxu0 0.0
        %5827 = vmatpush1.xpose.msra.mxu0 0.0
        %5828 = vmatprep.subr.mxu0 0.0
        %5829 = vmatpush1.xpose.msra.mxu0 0.0
        %5830 = vmatprep.subr.mxu0 0.0
        %5831 = vmatpush1.xpose.msra.mxu0 0.0
        %5832 = vmatprep.subr.mxu0 0.0
        %5833 = vmatpush1.xpose.msra.mxu0 0.0
        %5834 = vmatprep.subr.mxu0 0.0
        %5835 = vmatpush1.xpose.msra.mxu0 0.0
        %5836 = vmatprep.subr.mxu0 0.0
        %5837 = vmatpush1.xpose.msra.mxu0 0.0
        %5838 = vmatprep.subr.mxu0 0.0
        %5839 = vmatpush1.xpose.msra.mxu0 0.0
        %5840 = vmatprep.subr.mxu0 0.0
        %5841 = vmatpush1.xpose.msra.mxu0 0.0
        %5842 = vmatprep.subr.mxu0 0.0
        %5843 = vmatpush1.xpose.msra.mxu0 0.0
        %5844 = vmatprep.subr.mxu0 0.0
        %5845 = vmatpush1.xpose.msra.mxu0 0.0
        %5846 = vmatprep.subr.mxu0 0.0
        %5847 = vmatpush1.xpose.msra.mxu0 0.0
        %5848 = vmatprep.mubr.f32.mxu0 0.0
        %5849 = vmatmul.mubr.f32.gmra.mrb[0].mxu0 %v5780
        %v5850 = vpop.f32.mrb[0].mxu0
        %v5851 = vadd.f32 0.0, %v5850
        %v5852 = vpop.f32.mrb[0].mxu0
        %5853 = vdwg.mxu0
        %5854 = vrot.lane.b32.xlu0 %v979, 104
        %v5855 = vpop.permute.xlu0 %5854
        %5856 = vrot.lane.b32.xlu0 %v979, 72
        %v5857 = vpop.permute.xlu0 %5856
        %v5858 = vsel %vm995, %v5855, 0
        %v5860 = vsel %vm995, %v5857, 0
        %5862 = vmatprep.subr.mxu0 0.0
        %5863 = vmatpush1.xpose.msra.mxu0 %v5860
        %5864 = vmatprep.subr.mxu0 0.0
        %5865 = vmatpush1.xpose.msra.mxu0 0.0
        %5866 = vmatprep.subr.mxu0 0.0
        %5867 = vmatpush1.xpose.msra.mxu0 0.0
        %5868 = vmatprep.subr.mxu0 0.0
        %5869 = vmatpush1.xpose.msra.mxu0 0.0
        %5870 = vmatprep.subr.mxu0 0.0
        %5871 = vmatpush1.xpose.msra.mxu0 0.0
        %5872 = vmatprep.subr.mxu0 0.0
        %5873 = vmatpush1.xpose.msra.mxu0 0.0
        %5874 = vmatprep.subr.mxu0 0.0
        %5875 = vmatpush1.xpose.msra.mxu0 0.0
        %5876 = vmatprep.subr.mxu0 0.0
        %5877 = vmatpush1.xpose.msra.mxu0 0.0
        %5878 = vmatprep.subr.mxu0 0.0
        %5879 = vmatpush1.xpose.msra.mxu0 0.0
        %5880 = vmatprep.subr.mxu0 0.0
        %5881 = vmatpush1.xpose.msra.mxu0 0.0
        %5882 = vmatprep.subr.mxu0 0.0
        %5883 = vmatpush1.xpose.msra.mxu0 0.0
        %5884 = vmatprep.subr.mxu0 0.0
        %5885 = vmatpush1.xpose.msra.mxu0 0.0
        %5886 = vmatprep.subr.mxu0 0.0
        %5887 = vmatpush1.xpose.msra.mxu0 0.0
        %5888 = vmatprep.subr.mxu0 0.0
        %5889 = vmatpush1.xpose.msra.mxu0 0.0
        %5890 = vmatprep.subr.mxu0 0.0
        %5891 = vmatpush1.xpose.msra.mxu0 0.0
        %5892 = vmatprep.subr.mxu0 0.0
        %5893 = vmatpush1.xpose.msra.mxu0 0.0
        %5894 = vmatprep.subr.mxu0 0.0
        %5895 = vmatpush1.xpose.msra.mxu0 0.0
        %5896 = vmatprep.subr.mxu0 0.0
        %5897 = vmatpush1.xpose.msra.mxu0 0.0
        %5898 = vmatprep.subr.mxu0 0.0
        %5899 = vmatpush1.xpose.msra.mxu0 0.0
        %5900 = vmatprep.subr.mxu0 0.0
        %5901 = vmatpush1.xpose.msra.mxu0 0.0
        %5902 = vmatprep.subr.mxu0 0.0
        %5903 = vmatpush1.xpose.msra.mxu0 0.0
        %5904 = vmatprep.subr.mxu0 0.0
        %5905 = vmatpush1.xpose.msra.mxu0 0.0
        %5906 = vmatprep.subr.mxu0 0.0
        %5907 = vmatpush1.xpose.msra.mxu0 0.0
        %5908 = vmatprep.subr.mxu0 0.0
        %5909 = vmatpush1.xpose.msra.mxu0 0.0
        %5910 = vmatprep.subr.mxu0 0.0
        %5911 = vmatpush1.xpose.msra.mxu0 0.0
        %5912 = vmatprep.subr.mxu0 0.0
        %5913 = vmatpush1.xpose.msra.mxu0 0.0
        %5914 = vmatprep.subr.mxu0 0.0
        %5915 = vmatpush1.xpose.msra.mxu0 0.0
        %5916 = vmatprep.subr.mxu0 0.0
        %5917 = vmatpush1.xpose.msra.mxu0 0.0
        %5918 = vmatprep.subr.mxu0 0.0
        %5919 = vmatpush1.xpose.msra.mxu0 0.0
        %5920 = vmatprep.subr.mxu0 0.0
        %5921 = vmatpush1.xpose.msra.mxu0 0.0
        %5922 = vmatprep.subr.mxu0 0.0
        %5923 = vmatpush1.xpose.msra.mxu0 0.0
        %5924 = vmatprep.subr.mxu0 0.0
        %5925 = vmatpush1.xpose.msra.mxu0 0.0
        %5926 = vmatprep.mubr.f32.mxu0 0.0
        %5927 = vmatmul.mubr.f32.gmra.mrb[0].mxu0 %v5858
        %v5928 = vpop.f32.mrb[0].mxu0
        %v5929 = vadd.f32 0.0, %v5928
        %v5930 = vpop.f32.mrb[0].mxu0
        %5931 = vdwg.mxu0
        %5932 = vrot.lane.b32.xlu0 %v984, 104
        %v5933 = vpop.permute.xlu0 %5932
        %5934 = vrot.lane.b32.xlu0 %v984, 72
        %v5935 = vpop.permute.xlu0 %5934
        %v5936 = vsel %vm995, %v5933, 0
        %v5938 = vsel %vm995, %v5935, 0
        %5940 = vmatprep.subr.mxu0 0.0
        %5941 = vmatpush1.xpose.msra.mxu0 %v5938
        %5942 = vmatprep.subr.mxu0 0.0
        %5943 = vmatpush1.xpose.msra.mxu0 0.0
        %5944 = vmatprep.subr.mxu0 0.0
        %5945 = vmatpush1.xpose.msra.mxu0 0.0
        %5946 = vmatprep.subr.mxu0 0.0
        %5947 = vmatpush1.xpose.msra.mxu0 0.0
        %5948 = vmatprep.subr.mxu0 0.0
        %5949 = vmatpush1.xpose.msra.mxu0 0.0
        %5950 = vmatprep.subr.mxu0 0.0
        %5951 = vmatpush1.xpose.msra.mxu0 0.0
        %5952 = vmatprep.subr.mxu0 0.0
        %5953 = vmatpush1.xpose.msra.mxu0 0.0
        %5954 = vmatprep.subr.mxu0 0.0
        %5955 = vmatpush1.xpose.msra.mxu0 0.0
        %5956 = vmatprep.subr.mxu0 0.0
        %5957 = vmatpush1.xpose.msra.mxu0 0.0
        %5958 = vmatprep.subr.mxu0 0.0
        %5959 = vmatpush1.xpose.msra.mxu0 0.0
        %5960 = vmatprep.subr.mxu0 0.0
        %5961 = vmatpush1.xpose.msra.mxu0 0.0
        %5962 = vmatprep.subr.mxu0 0.0
        %5963 = vmatpush1.xpose.msra.mxu0 0.0
        %5964 = vmatprep.subr.mxu0 0.0
        %5965 = vmatpush1.xpose.msra.mxu0 0.0
        %5966 = vmatprep.subr.mxu0 0.0
        %5967 = vmatpush1.xpose.msra.mxu0 0.0
        %5968 = vmatprep.subr.mxu0 0.0
        %5969 = vmatpush1.xpose.msra.mxu0 0.0
        %5970 = vmatprep.subr.mxu0 0.0
        %5971 = vmatpush1.xpose.msra.mxu0 0.0
        %5972 = vmatprep.subr.mxu0 0.0
        %5973 = vmatpush1.xpose.msra.mxu0 0.0
        %5974 = vmatprep.subr.mxu0 0.0
        %5975 = vmatpush1.xpose.msra.mxu0 0.0
        %5976 = vmatprep.subr.mxu0 0.0
        %5977 = vmatpush1.xpose.msra.mxu0 0.0
        %5978 = vmatprep.subr.mxu0 0.0
        %5979 = vmatpush1.xpose.msra.mxu0 0.0
        %5980 = vmatprep.subr.mxu0 0.0
        %5981 = vmatpush1.xpose.msra.mxu0 0.0
        %5982 = vmatprep.subr.mxu0 0.0
        %5983 = vmatpush1.xpose.msra.mxu0 0.0
        %5984 = vmatprep.subr.mxu0 0.0
        %5985 = vmatpush1.xpose.msra.mxu0 0.0
        %5986 = vmatprep.subr.mxu0 0.0
        %5987 = vmatpush1.xpose.msra.mxu0 0.0
        %5988 = vmatprep.subr.mxu0 0.0
        %5989 = vmatpush1.xpose.msra.mxu0 0.0
        %5990 = vmatprep.subr.mxu0 0.0
        %5991 = vmatpush1.xpose.msra.mxu0 0.0
        %5992 = vmatprep.subr.mxu0 0.0
        %5993 = vmatpush1.xpose.msra.mxu0 0.0
        %5994 = vmatprep.subr.mxu0 0.0
        %5995 = vmatpush1.xpose.msra.mxu0 0.0
        %5996 = vmatprep.subr.mxu0 0.0
        %5997 = vmatpush1.xpose.msra.mxu0 0.0
        %5998 = vmatprep.subr.mxu0 0.0
        %5999 = vmatpush1.xpose.msra.mxu0 0.0
        %6000 = vmatprep.subr.mxu0 0.0
        %6001 = vmatpush1.xpose.msra.mxu0 0.0
        %6002 = vmatprep.subr.mxu0 0.0
        %6003 = vmatpush1.xpose.msra.mxu0 0.0
        %6004 = vmatprep.mubr.f32.mxu0 0.0
        %6005 = vmatmul.mubr.f32.gmra.mrb[0].mxu0 %v5936
        %v6006 = vpop.f32.mrb[0].mxu0
        %v6007 = vadd.f32 0.0, %v6006
        %v6008 = vpop.f32.mrb[0].mxu0
        %6009 = vdwg.mxu0
        %v6010 = vmul.f32 %v5461, 0.35355338
        %v6011 = vmul.f32 %v5539, 0.35355338
        %v6012 = vmul.f32 %v5617, 0.35355338
        %v6013 = vmul.f32 %v5695, 0.35355338
        %v6014 = vmul.f32 %v5773, 0.35355338
        %v6015 = vmul.f32 %v5851, 0.35355338
        %v6016 = vmul.f32 %v5929, 0.35355338
        %v6017 = vmul.f32 %v6007, 0.35355338
        %v6018 = vsel %vm995, %v6010, -inf
        %6019 = vmax.xlane.f32.xlu0 %v6018
        %v6020 = vpop.xlane.xlu0 %6019
        %v6021 = vsel %vm995, %v6011, -inf
        %6022 = vmax.xlane.f32.xlu0 %v6021
        %v6023 = vpop.xlane.xlu0 %6022
        %v6024 = vsel %vm995, %v6012, -inf
        %6025 = vmax.xlane.f32.xlu0 %v6024
        %v6026 = vpop.xlane.xlu0 %6025
        %v6027 = vsel %vm995, %v6013, -inf
        %6028 = vmax.xlane.f32.xlu0 %v6027
        %v6029 = vpop.xlane.xlu0 %6028
        %v6030 = vsel %vm995, %v6014, -inf
        %6031 = vmax.xlane.f32.xlu0 %v6030
        %v6032 = vpop.xlane.xlu0 %6031
        %v6033 = vsel %vm995, %v6015, -inf
        %6034 = vmax.xlane.f32.xlu0 %v6033
        %v6035 = vpop.xlane.xlu0 %6034
        %v6036 = vsel %vm995, %v6016, -inf
        %6037 = vmax.xlane.f32.xlu0 %v6036
        %v6038 = vpop.xlane.xlu0 %6037
        %v6039 = vsel %vm995, %v6017, -inf
        %6040 = vmax.xlane.f32.xlu0 %v6039
        %v6041 = vpop.xlane.xlu0 %6040
        %v6042 = vsub.f32 %v6010, %v6020
        %v6043 = vsub.f32 %v6011, %v6023
        %v6044 = vsub.f32 %v6012, %v6026
        %v6045 = vsub.f32 %v6013, %v6029
        %v6046 = vsub.f32 %v6014, %v6032
        %v6047 = vsub.f32 %v6015, %v6035
        %v6048 = vsub.f32 %v6016, %v6038
        %v6049 = vsub.f32 %v6017, %v6041
        %v6050 = vmul.f32 %v6042, 1.442695
        %v6051 = vpow.pop %v6050
        %v6052 = vmul.f32 %v6043, 1.442695
        %v6053 = vpow.pop %v6052
        %v6054 = vmul.f32 %v6044, 1.442695
        %v6055 = vpow.pop %v6054
        %v6056 = vmul.f32 %v6045, 1.442695
        %v6057 = vpow.pop %v6056
        %v6058 = vmul.f32 %v6046, 1.442695
        %v6059 = vpow.pop %v6058
        %v6060 = vmul.f32 %v6047, 1.442695
        %v6061 = vpow.pop %v6060
        %v6062 = vmul.f32 %v6048, 1.442695
        %v6063 = vpow.pop %v6062
        %v6064 = vmul.f32 %v6049, 1.442695
        %v6065 = vpow.pop %v6064
        %v6066 = vsel %vm995, %v6051, 0.0
        %6067 = vadd.xlane.f32.xlu0 %v6066
        %v6068 = vpop.xlane.xlu0 %6067
        %v6069 = vsel %vm995, %v6053, 0.0
        %6070 = vadd.xlane.f32.xlu0 %v6069
        %v6071 = vpop.xlane.xlu0 %6070
        %v6072 = vsel %vm995, %v6055, 0.0
        %6073 = vadd.xlane.f32.xlu0 %v6072
        %v6074 = vpop.xlane.xlu0 %6073
        %v6075 = vsel %vm995, %v6057, 0.0
        %6076 = vadd.xlane.f32.xlu0 %v6075
        %v6077 = vpop.xlane.xlu0 %6076
        %v6078 = vsel %vm995, %v6059, 0.0
        %6079 = vadd.xlane.f32.xlu0 %v6078
        %v6080 = vpop.xlane.xlu0 %6079
        %v6081 = vsel %vm995, %v6061, 0.0
        %6082 = vadd.xlane.f32.xlu0 %v6081
        %v6083 = vpop.xlane.xlu0 %6082
        %v6084 = vsel %vm995, %v6063, 0.0
        %6085 = vadd.xlane.f32.xlu0 %v6084
        %v6086 = vpop.xlane.xlu0 %6085
        %v6087 = vsel %vm995, %v6065, 0.0
        %6088 = vadd.xlane.f32.xlu0 %v6087
        %v6089 = vpop.xlane.xlu0 %6088
        %v6090 = vrcp.pop %v6068
        %v6091 = vrcp.pop %v6071
        %v6092 = vrcp.pop %v6074
        %v6093 = vrcp.pop %v6077
        %v6094 = vrcp.pop %v6080
        %v6095 = vrcp.pop %v6083
        %v6096 = vrcp.pop %v6086
        %v6097 = vrcp.pop %v6089
        %v6098 = vmul.f32 %v6051, %v6090
        %v6099 = vmul.f32 %v6053, %v6091
        %v6100 = vmul.f32 %v6055, %v6092
        %v6101 = vmul.f32 %v6057, %v6093
        %v6102 = vmul.f32 %v6059, %v6094
        %v6103 = vmul.f32 %v6061, %v6095
        %v6104 = vmul.f32 %v6063, %v6096
        %v6105 = vmul.f32 %v6065, %v6097
        %6106 = vrot.lane.b32.xlu0 %v949, 40
        %v6107 = vpop.permute.xlu0 %6106
        %v6110 = vsel %vm995, %v6098, 0
        %6112 = vmatprep.subr.mxu0 0.0
        %6113 = vmatpush1.msra.mxu0 %v6107
        %6114 = vmatprep.subr.mxu0 0.0
        %6115 = vmatpush1.msra.mxu0 0.0
        %6116 = vmatprep.subr.mxu0 0.0
        %6117 = vmatpush1.msra.mxu0 0.0
        %6118 = vmatprep.subr.mxu0 0.0
        %6119 = vmatpush1.msra.mxu0 0.0
        %6120 = vmatprep.subr.mxu0 0.0
        %6121 = vmatpush1.msra.mxu0 0.0
        %6122 = vmatprep.subr.mxu0 0.0
        %6123 = vmatpush1.msra.mxu0 0.0
        %6124 = vmatprep.subr.mxu0 0.0
        %6125 = vmatpush1.msra.mxu0 0.0
        %6126 = vmatprep.subr.mxu0 0.0
        %6127 = vmatpush1.msra.mxu0 0.0
        %6128 = vmatprep.subr.mxu0 0.0
        %6129 = vmatpush1.msra.mxu0 0.0
        %6130 = vmatprep.subr.mxu0 0.0
        %6131 = vmatpush1.msra.mxu0 0.0
        %6132 = vmatprep.subr.mxu0 0.0
        %6133 = vmatpush1.msra.mxu0 0.0
        %6134 = vmatprep.subr.mxu0 0.0
        %6135 = vmatpush1.msra.mxu0 0.0
        %6136 = vmatprep.subr.mxu0 0.0
        %6137 = vmatpush1.msra.mxu0 0.0
        %6138 = vmatprep.subr.mxu0 0.0
        %6139 = vmatpush1.msra.mxu0 0.0
        %6140 = vmatprep.subr.mxu0 0.0
        %6141 = vmatpush1.msra.mxu0 0.0
        %6142 = vmatprep.subr.mxu0 0.0
        %6143 = vmatpush1.msra.mxu0 0.0
        %6144 = vmatprep.subr.mxu0 0.0
        %6145 = vmatpush1.msra.mxu0 0.0
        %6146 = vmatprep.subr.mxu0 0.0
        %6147 = vmatpush1.msra.mxu0 0.0
        %6148 = vmatprep.subr.mxu0 0.0
        %6149 = vmatpush1.msra.mxu0 0.0
        %6150 = vmatprep.subr.mxu0 0.0
        %6151 = vmatpush1.msra.mxu0 0.0
        %6152 = vmatprep.subr.mxu0 0.0
        %6153 = vmatpush1.msra.mxu0 0.0
        %6154 = vmatprep.subr.mxu0 0.0
        %6155 = vmatpush1.msra.mxu0 0.0
        %6156 = vmatprep.subr.mxu0 0.0
        %6157 = vmatpush1.msra.mxu0 0.0
        %6158 = vmatprep.subr.mxu0 0.0
        %6159 = vmatpush1.msra.mxu0 0.0
        %6160 = vmatprep.subr.mxu0 0.0
        %6161 = vmatpush1.msra.mxu0 0.0
        %6162 = vmatprep.subr.mxu0 0.0
        %6163 = vmatpush1.msra.mxu0 0.0
        %6164 = vmatprep.subr.mxu0 0.0
        %6165 = vmatpush1.msra.mxu0 0.0
        %6166 = vmatprep.subr.mxu0 0.0
        %6167 = vmatpush1.msra.mxu0 0.0
        %6168 = vmatprep.subr.mxu0 0.0
        %6169 = vmatpush1.msra.mxu0 0.0
        %6170 = vmatprep.subr.mxu0 0.0
        %6171 = vmatpush1.msra.mxu0 0.0
        %6172 = vmatprep.subr.mxu0 0.0
        %6173 = vmatpush1.msra.mxu0 0.0
        %6174 = vmatprep.subr.mxu0 0.0
        %6175 = vmatpush1.msra.mxu0 0.0
        %6176 = vmatprep.mubr.f32.mxu0 0.0
        %6177 = vmatmul.mubr.f32.gmra.mrb[0].mxu0 %v6110
        %v6178 = vpop.f32.mrb[0].mxu0
        %v6179 = vadd.f32 0.0, %v6178
        %v6180 = vpop.f32.mrb[0].mxu0
        %6181 = vdwg.mxu0
        %6182 = vrot.lane.b32.xlu0 %v954, 40
        %v6183 = vpop.permute.xlu0 %6182
        %v6186 = vsel %vm995, %v6099, 0
        %6188 = vmatprep.subr.mxu0 0.0
        %6189 = vmatpush1.msra.mxu0 %v6183
        %6190 = vmatprep.subr.mxu0 0.0
        %6191 = vmatpush1.msra.mxu0 0.0
        %6192 = vmatprep.subr.mxu0 0.0
        %6193 = vmatpush1.msra.mxu0 0.0
        %6194 = vmatprep.subr.mxu0 0.0
        %6195 = vmatpush1.msra.mxu0 0.0
        %6196 = vmatprep.subr.mxu0 0.0
        %6197 = vmatpush1.msra.mxu0 0.0
        %6198 = vmatprep.subr.mxu0 0.0
        %6199 = vmatpush1.msra.mxu0 0.0
        %6200 = vmatprep.subr.mxu0 0.0
        %6201 = vmatpush1.msra.mxu0 0.0
        %6202 = vmatprep.subr.mxu0 0.0
        %6203 = vmatpush1.msra.mxu0 0.0
        %6204 = vmatprep.subr.mxu0 0.0
        %6205 = vmatpush1.msra.mxu0 0.0
        %6206 = vmatprep.subr.mxu0 0.0
        %6207 = vmatpush1.msra.mxu0 0.0
        %6208 = vmatprep.subr.mxu0 0.0
        %6209 = vmatpush1.msra.mxu0 0.0
        %6210 = vmatprep.subr.mxu0 0.0
        %6211 = vmatpush1.msra.mxu0 0.0
        %6212 = vmatprep.subr.mxu0 0.0
        %6213 = vmatpush1.msra.mxu0 0.0
        %6214 = vmatprep.subr.mxu0 0.0
        %6215 = vmatpush1.msra.mxu0 0.0
        %6216 = vmatprep.subr.mxu0 0.0
        %6217 = vmatpush1.msra.mxu0 0.0
        %6218 = vmatprep.subr.mxu0 0.0
        %6219 = vmatpush1.msra.mxu0 0.0
        %6220 = vmatprep.subr.mxu0 0.0
        %6221 = vmatpush1.msra.mxu0 0.0
        %6222 = vmatprep.subr.mxu0 0.0
        %6223 = vmatpush1.msra.mxu0 0.0
        %6224 = vmatprep.subr.mxu0 0.0
        %6225 = vmatpush1.msra.mxu0 0.0
        %6226 = vmatprep.subr.mxu0 0.0
        %6227 = vmatpush1.msra.mxu0 0.0
        %6228 = vmatprep.subr.mxu0 0.0
        %6229 = vmatpush1.msra.mxu0 0.0
        %6230 = vmatprep.subr.mxu0 0.0
        %6231 = vmatpush1.msra.mxu0 0.0
        %6232 = vmatprep.subr.mxu0 0.0
        %6233 = vmatpush1.msra.mxu0 0.0
        %6234 = vmatprep.subr.mxu0 0.0
        %6235 = vmatpush1.msra.mxu0 0.0
        %6236 = vmatprep.subr.mxu0 0.0
        %6237 = vmatpush1.msra.mxu0 0.0
        %6238 = vmatprep.subr.mxu0 0.0
        %6239 = vmatpush1.msra.mxu0 0.0
        %6240 = vmatprep.subr.mxu0 0.0
        %6241 = vmatpush1.msra.mxu0 0.0
        %6242 = vmatprep.subr.mxu0 0.0
        %6243 = vmatpush1.msra.mxu0 0.0
        %6244 = vmatprep.subr.mxu0 0.0
        %6245 = vmatpush1.msra.mxu0 0.0
        %6246 = vmatprep.subr.mxu0 0.0
        %6247 = vmatpush1.msra.mxu0 0.0
        %6248 = vmatprep.subr.mxu0 0.0
        %6249 = vmatpush1.msra.mxu0 0.0
        %6250 = vmatprep.subr.mxu0 0.0
        %6251 = vmatpush1.msra.mxu0 0.0
        %6252 = vmatprep.mubr.f32.mxu0 0.0
        %6253 = vmatmul.mubr.f32.gmra.mrb[0].mxu0 %v6186
        %v6254 = vpop.f32.mrb[0].mxu0
        %v6255 = vadd.f32 0.0, %v6254
        %v6256 = vpop.f32.mrb[0].mxu0
        %6257 = vdwg.mxu0
        %6258 = vrot.lane.b32.xlu0 %v959, 40
        %v6259 = vpop.permute.xlu0 %6258
        %v6262 = vsel %vm995, %v6100, 0
        %6264 = vmatprep.subr.mxu0 0.0
        %6265 = vmatpush1.msra.mxu0 %v6259
        %6266 = vmatprep.subr.mxu0 0.0
        %6267 = vmatpush1.msra.mxu0 0.0
        %6268 = vmatprep.subr.mxu0 0.0
        %6269 = vmatpush1.msra.mxu0 0.0
        %6270 = vmatprep.subr.mxu0 0.0
        %6271 = vmatpush1.msra.mxu0 0.0
        %6272 = vmatprep.subr.mxu0 0.0
        %6273 = vmatpush1.msra.mxu0 0.0
        %6274 = vmatprep.subr.mxu0 0.0
        %6275 = vmatpush1.msra.mxu0 0.0
        %6276 = vmatprep.subr.mxu0 0.0
        %6277 = vmatpush1.msra.mxu0 0.0
        %6278 = vmatprep.subr.mxu0 0.0
        %6279 = vmatpush1.msra.mxu0 0.0
        %6280 = vmatprep.subr.mxu0 0.0
        %6281 = vmatpush1.msra.mxu0 0.0
        %6282 = vmatprep.subr.mxu0 0.0
        %6283 = vmatpush1.msra.mxu0 0.0
        %6284 = vmatprep.subr.mxu0 0.0
        %6285 = vmatpush1.msra.mxu0 0.0
        %6286 = vmatprep.subr.mxu0 0.0
        %6287 = vmatpush1.msra.mxu0 0.0
        %6288 = vmatprep.subr.mxu0 0.0
        %6289 = vmatpush1.msra.mxu0 0.0
        %6290 = vmatprep.subr.mxu0 0.0
        %6291 = vmatpush1.msra.mxu0 0.0
        %6292 = vmatprep.subr.mxu0 0.0
        %6293 = vmatpush1.msra.mxu0 0.0
        %6294 = vmatprep.subr.mxu0 0.0
        %6295 = vmatpush1.msra.mxu0 0.0
        %6296 = vmatprep.subr.mxu0 0.0
        %6297 = vmatpush1.msra.mxu0 0.0
        %6298 = vmatprep.subr.mxu0 0.0
        %6299 = vmatpush1.msra.mxu0 0.0
        %6300 = vmatprep.subr.mxu0 0.0
        %6301 = vmatpush1.msra.mxu0 0.0
        %6302 = vmatprep.subr.mxu0 0.0
        %6303 = vmatpush1.msra.mxu0 0.0
        %6304 = vmatprep.subr.mxu0 0.0
        %6305 = vmatpush1.msra.mxu0 0.0
        %6306 = vmatprep.subr.mxu0 0.0
        %6307 = vmatpush1.msra.mxu0 0.0
        %6308 = vmatprep.subr.mxu0 0.0
        %6309 = vmatpush1.msra.mxu0 0.0
        %6310 = vmatprep.subr.mxu0 0.0
        %6311 = vmatpush1.msra.mxu0 0.0
        %6312 = vmatprep.subr.mxu0 0.0
        %6313 = vmatpush1.msra.mxu0 0.0
        %6314 = vmatprep.subr.mxu0 0.0
        %6315 = vmatpush1.msra.mxu0 0.0
        %6316 = vmatprep.subr.mxu0 0.0
        %6317 = vmatpush1.msra.mxu0 0.0
        %6318 = vmatprep.subr.mxu0 0.0
        %6319 = vmatpush1.msra.mxu0 0.0
        %6320 = vmatprep.subr.mxu0 0.0
        %6321 = vmatpush1.msra.mxu0 0.0
        %6322 = vmatprep.subr.mxu0 0.0
        %6323 = vmatpush1.msra.mxu0 0.0
        %6324 = vmatprep.subr.mxu0 0.0
        %6325 = vmatpush1.msra.mxu0 0.0
        %6326 = vmatprep.subr.mxu0 0.0
        %6327 = vmatpush1.msra.mxu0 0.0
        %6328 = vmatprep.mubr.f32.mxu0 0.0
        %6329 = vmatmul.mubr.f32.gmra.mrb[0].mxu0 %v6262
        %v6330 = vpop.f32.mrb[0].mxu0
        %v6331 = vadd.f32 0.0, %v6330
        %v6332 = vpop.f32.mrb[0].mxu0
        %6333 = vdwg.mxu0
        %6334 = vrot.lane.b32.xlu0 %v964, 40
        %v6335 = vpop.permute.xlu0 %6334
        %v6338 = vsel %vm995, %v6101, 0
        %6340 = vmatprep.subr.mxu0 0.0
        %6341 = vmatpush1.msra.mxu0 %v6335
        %6342 = vmatprep.subr.mxu0 0.0
        %6343 = vmatpush1.msra.mxu0 0.0
        %6344 = vmatprep.subr.mxu0 0.0
        %6345 = vmatpush1.msra.mxu0 0.0
        %6346 = vmatprep.subr.mxu0 0.0
        %6347 = vmatpush1.msra.mxu0 0.0
        %6348 = vmatprep.subr.mxu0 0.0
        %6349 = vmatpush1.msra.mxu0 0.0
        %6350 = vmatprep.subr.mxu0 0.0
        %6351 = vmatpush1.msra.mxu0 0.0
        %6352 = vmatprep.subr.mxu0 0.0
        %6353 = vmatpush1.msra.mxu0 0.0
        %6354 = vmatprep.subr.mxu0 0.0
        %6355 = vmatpush1.msra.mxu0 0.0
        %6356 = vmatprep.subr.mxu0 0.0
        %6357 = vmatpush1.msra.mxu0 0.0
        %6358 = vmatprep.subr.mxu0 0.0
        %6359 = vmatpush1.msra.mxu0 0.0
        %6360 = vmatprep.subr.mxu0 0.0
        %6361 = vmatpush1.msra.mxu0 0.0
        %6362 = vmatprep.subr.mxu0 0.0
        %6363 = vmatpush1.msra.mxu0 0.0
        %6364 = vmatprep.subr.mxu0 0.0
        %6365 = vmatpush1.msra.mxu0 0.0
        %6366 = vmatprep.subr.mxu0 0.0
        %6367 = vmatpush1.msra.mxu0 0.0
        %6368 = vmatprep.subr.mxu0 0.0
        %6369 = vmatpush1.msra.mxu0 0.0
        %6370 = vmatprep.subr.mxu0 0.0
        %6371 = vmatpush1.msra.mxu0 0.0
        %6372 = vmatprep.subr.mxu0 0.0
        %6373 = vmatpush1.msra.mxu0 0.0
        %6374 = vmatprep.subr.mxu0 0.0
        %6375 = vmatpush1.msra.mxu0 0.0
        %6376 = vmatprep.subr.mxu0 0.0
        %6377 = vmatpush1.msra.mxu0 0.0
        %6378 = vmatprep.subr.mxu0 0.0
        %6379 = vmatpush1.msra.mxu0 0.0
        %6380 = vmatprep.subr.mxu0 0.0
        %6381 = vmatpush1.msra.mxu0 0.0
        %6382 = vmatprep.subr.mxu0 0.0
        %6383 = vmatpush1.msra.mxu0 0.0
        %6384 = vmatprep.subr.mxu0 0.0
        %6385 = vmatpush1.msra.mxu0 0.0
        %6386 = vmatprep.subr.mxu0 0.0
        %6387 = vmatpush1.msra.mxu0 0.0
        %6388 = vmatprep.subr.mxu0 0.0
        %6389 = vmatpush1.msra.mxu0 0.0
        %6390 = vmatprep.subr.mxu0 0.0
        %6391 = vmatpush1.msra.mxu0 0.0
        %6392 = vmatprep.subr.mxu0 0.0
        %6393 = vmatpush1.msra.mxu0 0.0
        %6394 = vmatprep.subr.mxu0 0.0
        %6395 = vmatpush1.msra.mxu0 0.0
        %6396 = vmatprep.subr.mxu0 0.0
        %6397 = vmatpush1.msra.mxu0 0.0
        %6398 = vmatprep.subr.mxu0 0.0
        %6399 = vmatpush1.msra.mxu0 0.0
        %6400 = vmatprep.subr.mxu0 0.0
        %6401 = vmatpush1.msra.mxu0 0.0
        %6402 = vmatprep.subr.mxu0 0.0
        %6403 = vmatpush1.msra.mxu0 0.0
        %6404 = vmatprep.mubr.f32.mxu0 0.0
        %6405 = vmatmul.mubr.f32.gmra.mrb[0].mxu0 %v6338
        %v6406 = vpop.f32.mrb[0].mxu0
        %v6407 = vadd.f32 0.0, %v6406
        %v6408 = vpop.f32.mrb[0].mxu0
        %6409 = vdwg.mxu0
        %6410 = vrot.lane.b32.xlu0 %v969, 40
        %v6411 = vpop.permute.xlu0 %6410
        %v6414 = vsel %vm995, %v6102, 0
        %6416 = vmatprep.subr.mxu0 0.0
        %6417 = vmatpush1.msra.mxu0 %v6411
        %6418 = vmatprep.subr.mxu0 0.0
        %6419 = vmatpush1.msra.mxu0 0.0
        %6420 = vmatprep.subr.mxu0 0.0
        %6421 = vmatpush1.msra.mxu0 0.0
        %6422 = vmatprep.subr.mxu0 0.0
        %6423 = vmatpush1.msra.mxu0 0.0
        %6424 = vmatprep.subr.mxu0 0.0
        %6425 = vmatpush1.msra.mxu0 0.0
        %6426 = vmatprep.subr.mxu0 0.0
        %6427 = vmatpush1.msra.mxu0 0.0
        %6428 = vmatprep.subr.mxu0 0.0
        %6429 = vmatpush1.msra.mxu0 0.0
        %6430 = vmatprep.subr.mxu0 0.0
        %6431 = vmatpush1.msra.mxu0 0.0
        %6432 = vmatprep.subr.mxu0 0.0
        %6433 = vmatpush1.msra.mxu0 0.0
        %6434 = vmatprep.subr.mxu0 0.0
        %6435 = vmatpush1.msra.mxu0 0.0
        %6436 = vmatprep.subr.mxu0 0.0
        %6437 = vmatpush1.msra.mxu0 0.0
        %6438 = vmatprep.subr.mxu0 0.0
        %6439 = vmatpush1.msra.mxu0 0.0
        %6440 = vmatprep.subr.mxu0 0.0
        %6441 = vmatpush1.msra.mxu0 0.0
        %6442 = vmatprep.subr.mxu0 0.0
        %6443 = vmatpush1.msra.mxu0 0.0
        %6444 = vmatprep.subr.mxu0 0.0
        %6445 = vmatpush1.msra.mxu0 0.0
        %6446 = vmatprep.subr.mxu0 0.0
        %6447 = vmatpush1.msra.mxu0 0.0
        %6448 = vmatprep.subr.mxu0 0.0
        %6449 = vmatpush1.msra.mxu0 0.0
        %6450 = vmatprep.subr.mxu0 0.0
        %6451 = vmatpush1.msra.mxu0 0.0
        %6452 = vmatprep.subr.mxu0 0.0
        %6453 = vmatpush1.msra.mxu0 0.0
        %6454 = vmatprep.subr.mxu0 0.0
        %6455 = vmatpush1.msra.mxu0 0.0
        %6456 = vmatprep.subr.mxu0 0.0
        %6457 = vmatpush1.msra.mxu0 0.0
        %6458 = vmatprep.subr.mxu0 0.0
        %6459 = vmatpush1.msra.mxu0 0.0
        %6460 = vmatprep.subr.mxu0 0.0
        %6461 = vmatpush1.msra.mxu0 0.0
        %6462 = vmatprep.subr.mxu0 0.0
        %6463 = vmatpush1.msra.mxu0 0.0
        %6464 = vmatprep.subr.mxu0 0.0
        %6465 = vmatpush1.msra.mxu0 0.0
        %6466 = vmatprep.subr.mxu0 0.0
        %6467 = vmatpush1.msra.mxu0 0.0
        %6468 = vmatprep.subr.mxu0 0.0
        %6469 = vmatpush1.msra.mxu0 0.0
        %6470 = vmatprep.subr.mxu0 0.0
        %6471 = vmatpush1.msra.mxu0 0.0
        %6472 = vmatprep.subr.mxu0 0.0
        %6473 = vmatpush1.msra.mxu0 0.0
        %6474 = vmatprep.subr.mxu0 0.0
        %6475 = vmatpush1.msra.mxu0 0.0
        %6476 = vmatprep.subr.mxu0 0.0
        %6477 = vmatpush1.msra.mxu0 0.0
        %6478 = vmatprep.subr.mxu0 0.0
        %6479 = vmatpush1.msra.mxu0 0.0
        %6480 = vmatprep.mubr.f32.mxu0 0.0
        %6481 = vmatmul.mubr.f32.gmra.mrb[0].mxu0 %v6414
        %v6482 = vpop.f32.mrb[0].mxu0
        %v6483 = vadd.f32 0.0, %v6482
        %v6484 = vpop.f32.mrb[0].mxu0
        %6485 = vdwg.mxu0
        %6486 = vrot.lane.b32.xlu0 %v974, 40
        %v6487 = vpop.permute.xlu0 %6486
        %v6490 = vsel %vm995, %v6103, 0
        %6492 = vmatprep.subr.mxu0 0.0
        %6493 = vmatpush1.msra.mxu0 %v6487
        %6494 = vmatprep.subr.mxu0 0.0
        %6495 = vmatpush1.msra.mxu0 0.0
        %6496 = vmatprep.subr.mxu0 0.0
        %6497 = vmatpush1.msra.mxu0 0.0
        %6498 = vmatprep.subr.mxu0 0.0
        %6499 = vmatpush1.msra.mxu0 0.0
        %6500 = vmatprep.subr.mxu0 0.0
        %6501 = vmatpush1.msra.mxu0 0.0
        %6502 = vmatprep.subr.mxu0 0.0
        %6503 = vmatpush1.msra.mxu0 0.0
        %6504 = vmatprep.subr.mxu0 0.0
        %6505 = vmatpush1.msra.mxu0 0.0
        %6506 = vmatprep.subr.mxu0 0.0
        %6507 = vmatpush1.msra.mxu0 0.0
        %6508 = vmatprep.subr.mxu0 0.0
        %6509 = vmatpush1.msra.mxu0 0.0
        %6510 = vmatprep.subr.mxu0 0.0
        %6511 = vmatpush1.msra.mxu0 0.0
        %6512 = vmatprep.subr.mxu0 0.0
        %6513 = vmatpush1.msra.mxu0 0.0
        %6514 = vmatprep.subr.mxu0 0.0
        %6515 = vmatpush1.msra.mxu0 0.0
        %6516 = vmatprep.subr.mxu0 0.0
        %6517 = vmatpush1.msra.mxu0 0.0
        %6518 = vmatprep.subr.mxu0 0.0
        %6519 = vmatpush1.msra.mxu0 0.0
        %6520 = vmatprep.subr.mxu0 0.0
        %6521 = vmatpush1.msra.mxu0 0.0
        %6522 = vmatprep.subr.mxu0 0.0
        %6523 = vmatpush1.msra.mxu0 0.0
        %6524 = vmatprep.subr.mxu0 0.0
        %6525 = vmatpush1.msra.mxu0 0.0
        %6526 = vmatprep.subr.mxu0 0.0
        %6527 = vmatpush1.msra.mxu0 0.0
        %6528 = vmatprep.subr.mxu0 0.0
        %6529 = vmatpush1.msra.mxu0 0.0
        %6530 = vmatprep.subr.mxu0 0.0
        %6531 = vmatpush1.msra.mxu0 0.0
        %6532 = vmatprep.subr.mxu0 0.0
        %6533 = vmatpush1.msra.mxu0 0.0
        %6534 = vmatprep.subr.mxu0 0.0
        %6535 = vmatpush1.msra.mxu0 0.0
        %6536 = vmatprep.subr.mxu0 0.0
        %6537 = vmatpush1.msra.mxu0 0.0
        %6538 = vmatprep.subr.mxu0 0.0
        %6539 = vmatpush1.msra.mxu0 0.0
        %6540 = vmatprep.subr.mxu0 0.0
        %6541 = vmatpush1.msra.mxu0 0.0
        %6542 = vmatprep.subr.mxu0 0.0
        %6543 = vmatpush1.msra.mxu0 0.0
        %6544 = vmatprep.subr.mxu0 0.0
        %6545 = vmatpush1.msra.mxu0 0.0
        %6546 = vmatprep.subr.mxu0 0.0
        %6547 = vmatpush1.msra.mxu0 0.0
        %6548 = vmatprep.subr.mxu0 0.0
        %6549 = vmatpush1.msra.mxu0 0.0
        %6550 = vmatprep.subr.mxu0 0.0
        %6551 = vmatpush1.msra.mxu0 0.0
        %6552 = vmatprep.subr.mxu0 0.0
        %6553 = vmatpush1.msra.mxu0 0.0
        %6554 = vmatprep.subr.mxu0 0.0
        %6555 = vmatpush1.msra.mxu0 0.0
        %6556 = vmatprep.mubr.f32.mxu0 0.0
        %6557 = vmatmul.mubr.f32.gmra.mrb[0].mxu0 %v6490
        %v6558 = vpop.f32.mrb[0].mxu0
        %v6559 = vadd.f32 0.0, %v6558
        %v6560 = vpop.f32.mrb[0].mxu0
        %6561 = vdwg.mxu0
        %6562 = vrot.lane.b32.xlu0 %v979, 40
        %v6563 = vpop.permute.xlu0 %6562
        %v6566 = vsel %vm995, %v6104, 0
        %6568 = vmatprep.subr.mxu0 0.0
        %6569 = vmatpush1.msra.mxu0 %v6563
        %6570 = vmatprep.subr.mxu0 0.0
        %6571 = vmatpush1.msra.mxu0 0.0
        %6572 = vmatprep.subr.mxu0 0.0
        %6573 = vmatpush1.msra.mxu0 0.0
        %6574 = vmatprep.subr.mxu0 0.0
        %6575 = vmatpush1.msra.mxu0 0.0
        %6576 = vmatprep.subr.mxu0 0.0
        %6577 = vmatpush1.msra.mxu0 0.0
        %6578 = vmatprep.subr.mxu0 0.0
        %6579 = vmatpush1.msra.mxu0 0.0
        %6580 = vmatprep.subr.mxu0 0.0
        %6581 = vmatpush1.msra.mxu0 0.0
        %6582 = vmatprep.subr.mxu0 0.0
        %6583 = vmatpush1.msra.mxu0 0.0
        %6584 = vmatprep.subr.mxu0 0.0
        %6585 = vmatpush1.msra.mxu0 0.0
        %6586 = vmatprep.subr.mxu0 0.0
        %6587 = vmatpush1.msra.mxu0 0.0
        %6588 = vmatprep.subr.mxu0 0.0
        %6589 = vmatpush1.msra.mxu0 0.0
        %6590 = vmatprep.subr.mxu0 0.0
        %6591 = vmatpush1.msra.mxu0 0.0
        %6592 = vmatprep.subr.mxu0 0.0
        %6593 = vmatpush1.msra.mxu0 0.0
        %6594 = vmatprep.subr.mxu0 0.0
        %6595 = vmatpush1.msra.mxu0 0.0
        %6596 = vmatprep.subr.mxu0 0.0
        %6597 = vmatpush1.msra.mxu0 0.0
        %6598 = vmatprep.subr.mxu0 0.0
        %6599 = vmatpush1.msra.mxu0 0.0
        %6600 = vmatprep.subr.mxu0 0.0
        %6601 = vmatpush1.msra.mxu0 0.0
        %6602 = vmatprep.subr.mxu0 0.0
        %6603 = vmatpush1.msra.mxu0 0.0
        %6604 = vmatprep.subr.mxu0 0.0
        %6605 = vmatpush1.msra.mxu0 0.0
        %6606 = vmatprep.subr.mxu0 0.0
        %6607 = vmatpush1.msra.mxu0 0.0
        %6608 = vmatprep.subr.mxu0 0.0
        %6609 = vmatpush1.msra.mxu0 0.0
        %6610 = vmatprep.subr.mxu0 0.0
        %6611 = vmatpush1.msra.mxu0 0.0
        %6612 = vmatprep.subr.mxu0 0.0
        %6613 = vmatpush1.msra.mxu0 0.0
        %6614 = vmatprep.subr.mxu0 0.0
        %6615 = vmatpush1.msra.mxu0 0.0
        %6616 = vmatprep.subr.mxu0 0.0
        %6617 = vmatpush1.msra.mxu0 0.0
        %6618 = vmatprep.subr.mxu0 0.0
        %6619 = vmatpush1.msra.mxu0 0.0
        %6620 = vmatprep.subr.mxu0 0.0
        %6621 = vmatpush1.msra.mxu0 0.0
        %6622 = vmatprep.subr.mxu0 0.0
        %6623 = vmatpush1.msra.mxu0 0.0
        %6624 = vmatprep.subr.mxu0 0.0
        %6625 = vmatpush1.msra.mxu0 0.0
        %6626 = vmatprep.subr.mxu0 0.0
        %6627 = vmatpush1.msra.mxu0 0.0
        %6628 = vmatprep.subr.mxu0 0.0
        %6629 = vmatpush1.msra.mxu0 0.0
        %6630 = vmatprep.subr.mxu0 0.0
        %6631 = vmatpush1.msra.mxu0 0.0
        %6632 = vmatprep.mubr.f32.mxu0 0.0
        %6633 = vmatmul.mubr.f32.gmra.mrb[0].mxu0 %v6566
        %v6634 = vpop.f32.mrb[0].mxu0
        %v6635 = vadd.f32 0.0, %v6634
        %v6636 = vpop.f32.mrb[0].mxu0
        %6637 = vdwg.mxu0
        %6638 = vrot.lane.b32.xlu0 %v984, 40
        %v6639 = vpop.permute.xlu0 %6638
        %v6642 = vsel %vm995, %v6105, 0
        %6644 = vmatprep.subr.mxu0 0.0
        %6645 = vmatpush1.msra.mxu0 %v6639
        %6646 = vmatprep.subr.mxu0 0.0
        %6647 = vmatpush1.msra.mxu0 0.0
        %6648 = vmatprep.subr.mxu0 0.0
        %6649 = vmatpush1.msra.mxu0 0.0
        %6650 = vmatprep.subr.mxu0 0.0
        %6651 = vmatpush1.msra.mxu0 0.0
        %6652 = vmatprep.subr.mxu0 0.0
        %6653 = vmatpush1.msra.mxu0 0.0
        %6654 = vmatprep.subr.mxu0 0.0
        %6655 = vmatpush1.msra.mxu0 0.0
        %6656 = vmatprep.subr.mxu0 0.0
        %6657 = vmatpush1.msra.mxu0 0.0
        %6658 = vmatprep.subr.mxu0 0.0
        %6659 = vmatpush1.msra.mxu0 0.0
        %6660 = vmatprep.subr.mxu0 0.0
        %6661 = vmatpush1.msra.mxu0 0.0
        %6662 = vmatprep.subr.mxu0 0.0
        %6663 = vmatpush1.msra.mxu0 0.0
        %6664 = vmatprep.subr.mxu0 0.0
        %6665 = vmatpush1.msra.mxu0 0.0
        %6666 = vmatprep.subr.mxu0 0.0
        %6667 = vmatpush1.msra.mxu0 0.0
        %6668 = vmatprep.subr.mxu0 0.0
        %6669 = vmatpush1.msra.mxu0 0.0
        %6670 = vmatprep.subr.mxu0 0.0
        %6671 = vmatpush1.msra.mxu0 0.0
        %6672 = vmatprep.subr.mxu0 0.0
        %6673 = vmatpush1.msra.mxu0 0.0
        %6674 = vmatprep.subr.mxu0 0.0
        %6675 = vmatpush1.msra.mxu0 0.0
        %6676 = vmatprep.subr.mxu0 0.0
        %6677 = vmatpush1.msra.mxu0 0.0
        %6678 = vmatprep.subr.mxu0 0.0
        %6679 = vmatpush1.msra.mxu0 0.0
        %6680 = vmatprep.subr.mxu0 0.0
        %6681 = vmatpush1.msra.mxu0 0.0
        %6682 = vmatprep.subr.mxu0 0.0
        %6683 = vmatpush1.msra.mxu0 0.0
        %6684 = vmatprep.subr.mxu0 0.0
        %6685 = vmatpush1.msra.mxu0 0.0
        %6686 = vmatprep.subr.mxu0 0.0
        %6687 = vmatpush1.msra.mxu0 0.0
        %6688 = vmatprep.subr.mxu0 0.0
        %6689 = vmatpush1.msra.mxu0 0.0
        %6690 = vmatprep.subr.mxu0 0.0
        %6691 = vmatpush1.msra.mxu0 0.0
        %6692 = vmatprep.subr.mxu0 0.0
        %6693 = vmatpush1.msra.mxu0 0.0
        %6694 = vmatprep.subr.mxu0 0.0
        %6695 = vmatpush1.msra.mxu0 0.0
        %6696 = vmatprep.subr.mxu0 0.0
        %6697 = vmatpush1.msra.mxu0 0.0
        %6698 = vmatprep.subr.mxu0 0.0
        %6699 = vmatpush1.msra.mxu0 0.0
        %6700 = vmatprep.subr.mxu0 0.0
        %6701 = vmatpush1.msra.mxu0 0.0
        %6702 = vmatprep.subr.mxu0 0.0
        %6703 = vmatpush1.msra.mxu0 0.0
        %6704 = vmatprep.subr.mxu0 0.0
        %6705 = vmatpush1.msra.mxu0 0.0
        %6706 = vmatprep.subr.mxu0 0.0
        %6707 = vmatpush1.msra.mxu0 0.0
        %6708 = vmatprep.mubr.f32.mxu0 0.0
        %6709 = vmatmul.mubr.f32.gmra.mrb[0].mxu0 %v6642
        %v6710 = vpop.f32.mrb[0].mxu0
        %v6711 = vadd.f32 0.0, %v6710
        %v6712 = vpop.f32.mrb[0].mxu0
        %6713 = vdwg.mxu0
        %v6715 = vsel %vm995, %v6179, 0
        %v6718 = vsel %vm995, %v6255, 0
        %v6721 = vsel %vm995, %v6331, 0
        %v6724 = vsel %vm995, %v6407, 0
        %v6727 = vsel %vm995, %v6483, 0
        %v6730 = vsel %vm995, %v6559, 0
        %v6733 = vsel %vm995, %v6635, 0
        %v6736 = vsel %vm995, %v6711, 0
        %6738 = vmatprep.subr.mxu0 0.0
        %6739 = vmatpush1.msra.mxu0 %v990
        %6740 = vmatprep.subr.mxu0 0.0
        %6741 = vmatpush1.msra.mxu0 0.0
        %6742 = vmatprep.subr.mxu0 0.0
        %6743 = vmatpush1.msra.mxu0 0.0
        %6744 = vmatprep.subr.mxu0 0.0
        %6745 = vmatpush1.msra.mxu0 0.0
        %6746 = vmatprep.subr.mxu0 0.0
        %6747 = vmatpush1.msra.mxu0 0.0
        %6748 = vmatprep.subr.mxu0 0.0
        %6749 = vmatpush1.msra.mxu0 0.0
        %6750 = vmatprep.subr.mxu0 0.0
        %6751 = vmatpush1.msra.mxu0 0.0
        %6752 = vmatprep.subr.mxu0 0.0
        %6753 = vmatpush1.msra.mxu0 0.0
        %6754 = vmatprep.subr.mxu0 0.0
        %6755 = vmatpush1.msra.mxu0 0.0
        %6756 = vmatprep.subr.mxu0 0.0
        %6757 = vmatpush1.msra.mxu0 0.0
        %6758 = vmatprep.subr.mxu0 0.0
        %6759 = vmatpush1.msra.mxu0 0.0
        %6760 = vmatprep.subr.mxu0 0.0
        %6761 = vmatpush1.msra.mxu0 0.0
        %6762 = vmatprep.subr.mxu0 0.0
        %6763 = vmatpush1.msra.mxu0 0.0
        %6764 = vmatprep.subr.mxu0 0.0
        %6765 = vmatpush1.msra.mxu0 0.0
        %6766 = vmatprep.subr.mxu0 0.0
        %6767 = vmatpush1.msra.mxu0 0.0
        %6768 = vmatprep.subr.mxu0 0.0
        %6769 = vmatpush1.msra.mxu0 0.0
        %6770 = vmatprep.subr.mxu0 0.0
        %6771 = vmatpush1.msra.mxu0 0.0
        %6772 = vmatprep.subr.mxu0 0.0
        %6773 = vmatpush1.msra.mxu0 0.0
        %6774 = vmatprep.subr.mxu0 0.0
        %6775 = vmatpush1.msra.mxu0 0.0
        %6776 = vmatprep.subr.mxu0 0.0
        %6777 = vmatpush1.msra.mxu0 0.0
        %6778 = vmatprep.subr.mxu0 0.0
        %6779 = vmatpush1.msra.mxu0 0.0
        %6780 = vmatprep.subr.mxu0 0.0
        %6781 = vmatpush1.msra.mxu0 0.0
        %6782 = vmatprep.subr.mxu0 0.0
        %6783 = vmatpush1.msra.mxu0 0.0
        %6784 = vmatprep.subr.mxu0 0.0
        %6785 = vmatpush1.msra.mxu0 0.0
        %6786 = vmatprep.subr.mxu0 0.0
        %6787 = vmatpush1.msra.mxu0 0.0
        %6788 = vmatprep.subr.mxu0 0.0
        %6789 = vmatpush1.msra.mxu0 0.0
        %6790 = vmatprep.subr.mxu0 0.0
        %6791 = vmatpush1.msra.mxu0 0.0
        %6792 = vmatprep.subr.mxu0 0.0
        %6793 = vmatpush1.msra.mxu0 0.0
        %6794 = vmatprep.subr.mxu0 0.0
        %6795 = vmatpush1.msra.mxu0 0.0
        %6796 = vmatprep.subr.mxu0 0.0
        %6797 = vmatpush1.msra.mxu0 0.0
        %6798 = vmatprep.subr.mxu0 0.0
        %6799 = vmatpush1.msra.mxu0 0.0
        %6800 = vmatprep.subr.mxu0 0.0
        %6801 = vmatpush1.msra.mxu0 0.0
        %6802 = vmatprep.mubr.f32.mxu0 0.0
        %6803 = vmatmul.mubr.f32.gmra.mrb[0].mxu0 %v6715
        %v6804 = vpop.f32.mrb[0].mxu0
        %v6805 = vadd.f32 0.0, %v6804
        %v6806 = vpop.f32.mrb[0].mxu0
        %6807 = vmatprep.mubr.f32.mxu0 0.0
        %6808 = vmatmul.mubr.f32.gmra.mrb[0].mxu0 %v6718
        %v6809 = vpop.f32.mrb[0].mxu0
        %v6810 = vadd.f32 0.0, %v6809
        %v6811 = vpop.f32.mrb[0].mxu0
        %6812 = vmatprep.mubr.f32.mxu0 0.0
        %6813 = vmatmul.mubr.f32.gmra.mrb[0].mxu0 %v6721
        %v6814 = vpop.f32.mrb[0].mxu0
        %v6815 = vadd.f32 0.0, %v6814
        %v6816 = vpop.f32.mrb[0].mxu0
        %6817 = vmatprep.mubr.f32.mxu0 0.0
        %6818 = vmatmul.mubr.f32.gmra.mrb[0].mxu0 %v6724
        %v6819 = vpop.f32.mrb[0].mxu0
        %v6820 = vadd.f32 0.0, %v6819
        %v6821 = vpop.f32.mrb[0].mxu0
        %6822 = vmatprep.mubr.f32.mxu0 0.0
        %6823 = vmatmul.mubr.f32.gmra.mrb[0].mxu0 %v6727
        %v6824 = vpop.f32.mrb[0].mxu0
        %v6825 = vadd.f32 0.0, %v6824
        %v6826 = vpop.f32.mrb[0].mxu0
        %6827 = vmatprep.mubr.f32.mxu0 0.0
        %6828 = vmatmul.mubr.f32.gmra.mrb[0].mxu0 %v6730
        %v6829 = vpop.f32.mrb[0].mxu0
        %v6830 = vadd.f32 0.0, %v6829
        %v6831 = vpop.f32.mrb[0].mxu0
        %6832 = vmatprep.mubr.f32.mxu0 0.0
        %6833 = vmatmul.mubr.f32.gmra.mrb[0].mxu0 %v6733
        %v6834 = vpop.f32.mrb[0].mxu0
        %v6835 = vadd.f32 0.0, %v6834
        %v6836 = vpop.f32.mrb[0].mxu0
        %6837 = vmatprep.mubr.f32.mxu0 0.0
        %6838 = vmatmul.mubr.f32.gmra.mrb[0].mxu0 %v6736
        %v6839 = vpop.f32.mrb[0].mxu0
        %v6840 = vadd.f32 0.0, %v6839
        %v6841 = vpop.f32.mrb[0].mxu0
        %6842 = vdwg.mxu0
        %v6843 = vadd.f32 %v5378, %v6805
        %v6844 = vadd.f32 %v5379, %v6810
        %v6845 = vadd.f32 %v5380, %v6815
        %v6846 = vadd.f32 %v5381, %v6820
        %v6847 = vadd.f32 %v5382, %v6825
        %v6848 = vadd.f32 %v5383, %v6830
        %v6849 = vadd.f32 %v5384, %v6835
        %v6850 = vadd.f32 %v5385, %v6840
        %v6851 = vadd.f32 %v703, %v6843
        %v6852 = vadd.f32 %v704, %v6844
        %v6853 = vadd.f32 %v705, %v6845
        %v6854 = vadd.f32 %v706, %v6846
        %v6855 = vadd.f32 %v707, %v6847
        %v6856 = vadd.f32 %v708, %v6848
        %v6857 = vadd.f32 %v709, %v6849
        %v6858 = vadd.f32 %v710, %v6850
        %v6859 = vld [vmem:[%s10] sm:$0x1]
        %v6860 = vld [vmem:[%s11] sm:$0x1]
        %v6861 = vsel %vm713, %v6851, 0.0
        %6862 = vadd.xlane.f32.xlu0 %v6861
        %v6863 = vpop.xlane.xlu0 %6862
        %v6864 = vsel %vm713, %v6852, 0.0
        %6865 = vadd.xlane.f32.xlu0 %v6864
        %v6866 = vpop.xlane.xlu0 %6865
        %v6867 = vsel %vm713, %v6853, 0.0
        %6868 = vadd.xlane.f32.xlu0 %v6867
        %v6869 = vpop.xlane.xlu0 %6868
        %v6870 = vsel %vm713, %v6854, 0.0
        %6871 = vadd.xlane.f32.xlu0 %v6870
        %v6872 = vpop.xlane.xlu0 %6871
        %v6873 = vsel %vm713, %v6855, 0.0
        %6874 = vadd.xlane.f32.xlu0 %v6873
        %v6875 = vpop.xlane.xlu0 %6874
        %v6876 = vsel %vm713, %v6856, 0.0
        %6877 = vadd.xlane.f32.xlu0 %v6876
        %v6878 = vpop.xlane.xlu0 %6877
        %v6879 = vsel %vm713, %v6857, 0.0
        %6880 = vadd.xlane.f32.xlu0 %v6879
        %v6881 = vpop.xlane.xlu0 %6880
        %v6882 = vsel %vm713, %v6858, 0.0
        %6883 = vadd.xlane.f32.xlu0 %v6882
        %v6884 = vpop.xlane.xlu0 %6883
        %v6885 = vmul.f32 %v6863, %v738
        %v6886 = vmul.f32 %v6866, %v738
        %v6887 = vmul.f32 %v6869, %v738
        %v6888 = vmul.f32 %v6872, %v738
        %v6889 = vmul.f32 %v6875, %v738
        %v6890 = vmul.f32 %v6878, %v738
        %v6891 = vmul.f32 %v6881, %v738
        %v6892 = vmul.f32 %v6884, %v738
        %v6893 = vsub.f32 %v6851, %v6885
        %v6894 = vsub.f32 %v6852, %v6886
        %v6895 = vsub.f32 %v6853, %v6887
        %v6896 = vsub.f32 %v6854, %v6888
        %v6897 = vsub.f32 %v6855, %v6889
        %v6898 = vsub.f32 %v6856, %v6890
        %v6899 = vsub.f32 %v6857, %v6891
        %v6900 = vsub.f32 %v6858, %v6892
        %v6901 = vmul.f32 %v6893, %v6893
        %v6902 = vmul.f32 %v6894, %v6894
        %v6903 = vmul.f32 %v6895, %v6895
        %v6904 = vmul.f32 %v6896, %v6896
        %v6905 = vmul.f32 %v6897, %v6897
        %v6906 = vmul.f32 %v6898, %v6898
        %v6907 = vmul.f32 %v6899, %v6899
        %v6908 = vmul.f32 %v6900, %v6900
        %v6909 = vsel %vm713, %v6901, 0.0
        %6910 = vadd.xlane.f32.xlu0 %v6909
        %v6911 = vpop.xlane.xlu0 %6910
        %v6912 = vsel %vm713, %v6902, 0.0
        %6913 = vadd.xlane.f32.xlu0 %v6912
        %v6914 = vpop.xlane.xlu0 %6913
        %v6915 = vsel %vm713, %v6903, 0.0
        %6916 = vadd.xlane.f32.xlu0 %v6915
        %v6917 = vpop.xlane.xlu0 %6916
        %v6918 = vsel %vm713, %v6904, 0.0
        %6919 = vadd.xlane.f32.xlu0 %v6918
        %v6920 = vpop.xlane.xlu0 %6919
        %v6921 = vsel %vm713, %v6905, 0.0
        %6922 = vadd.xlane.f32.xlu0 %v6921
        %v6923 = vpop.xlane.xlu0 %6922
        %v6924 = vsel %vm713, %v6906, 0.0
        %6925 = vadd.xlane.f32.xlu0 %v6924
        %v6926 = vpop.xlane.xlu0 %6925
        %v6927 = vsel %vm713, %v6907, 0.0
        %6928 = vadd.xlane.f32.xlu0 %v6927
        %v6929 = vpop.xlane.xlu0 %6928
        %v6930 = vsel %vm713, %v6908, 0.0
        %6931 = vadd.xlane.f32.xlu0 %v6930
        %v6932 = vpop.xlane.xlu0 %6931
        %v6933 = vmul.f32 %v6911, %v738
        %v6934 = vmul.f32 %v6914, %v738
        %v6935 = vmul.f32 %v6917, %v738
        %v6936 = vmul.f32 %v6920, %v738
        %v6937 = vmul.f32 %v6923, %v738
        %v6938 = vmul.f32 %v6926, %v738
        %v6939 = vmul.f32 %v6929, %v738
        %v6940 = vmul.f32 %v6932, %v738
        %v6941 = vadd.f32 %v6933, 1e-05
        %v6942 = vadd.f32 %v6934, 1e-05
        %v6943 = vadd.f32 %v6935, 1e-05
        %v6944 = vadd.f32 %v6936, 1e-05
        %v6945 = vadd.f32 %v6937, 1e-05
        %v6946 = vadd.f32 %v6938, 1e-05
        %v6947 = vadd.f32 %v6939, 1e-05
        %v6948 = vadd.f32 %v6940, 1e-05
        %v6949 = vrsqrt.pop %v6941
        %v6950 = vrsqrt.pop %v6942
        %v6951 = vrsqrt.pop %v6943
        %v6952 = vrsqrt.pop %v6944
        %v6953 = vrsqrt.pop %v6945
        %v6954 = vrsqrt.pop %v6946
        %v6955 = vrsqrt.pop %v6947
        %v6956 = vrsqrt.pop %v6948
        %v6957 = vmul.f32 %v6893, %v6949
        %v6958 = vmul.f32 %v6894, %v6950
        %v6959 = vmul.f32 %v6895, %v6951
        %v6960 = vmul.f32 %v6896, %v6952
        %v6961 = vmul.f32 %v6897, %v6953
        %v6962 = vmul.f32 %v6898, %v6954
        %v6963 = vmul.f32 %v6899, %v6955
        %v6964 = vmul.f32 %v6900, %v6956
        %v6966 = vlaneseq
        %v6967 = vshrl.u32 %v6966, 7
        %v6968 = vsub.s32 0, %v6967
        %v6969 = vrot.slane %v6859, %v6968
        %v6971 = vmul.f32 %v6957, %v6969
        %v6972 = vmul.f32 %v6958, %v6969
        %v6973 = vmul.f32 %v6959, %v6969
        %v6974 = vmul.f32 %v6960, %v6969
        %v6975 = vmul.f32 %v6961, %v6969
        %v6976 = vmul.f32 %v6962, %v6969
        %v6977 = vmul.f32 %v6963, %v6969
        %v6978 = vmul.f32 %v6964, %v6969
        %v6980 = vlaneseq
        %v6981 = vshrl.u32 %v6980, 7
        %v6982 = vsub.s32 0, %v6981
        %v6983 = vrot.slane %v6860, %v6982
        %v6985 = vadd.f32 %v6971, %v6983
        %v6986 = vadd.f32 %v6972, %v6983
        %v6987 = vadd.f32 %v6973, %v6983
        %v6988 = vadd.f32 %v6974, %v6983
        %v6989 = vadd.f32 %v6975, %v6983
        %v6990 = vadd.f32 %v6976, %v6983
        %v6991 = vadd.f32 %v6977, %v6983
        %v6992 = vadd.f32 %v6978, %v6983
        %v6993 = vld [vmem:[%s12] sm:$0xff]
        %v6994 = vld [vmem:[%s12 + $0x8] sm:$0xff]
        %v6995 = vld [vmem:[%s12 + $0x10] sm:$0xff]
        %v6996 = vld [vmem:[%s12 + $0x18] sm:$0xff]
        %v6997 = vld [vmem:[%s13] sm:$0x1]
        %v6999 = vlaneseq
        %v7000 = vshrl.u32 %v6999, 7
        %v7001 = vsub.s32 0, %v7000
        %v7002 = vrot.slane %v6997, %v7001
        %v7005 = vsel %vm713, %v6985, 0
        %v7008 = vsel %vm713, %v6986, 0
        %v7011 = vsel %vm713, %v6987, 0
        %v7014 = vsel %vm713, %v6988, 0
        %v7017 = vsel %vm713, %v6989, 0
        %v7020 = vsel %vm713, %v6990, 0
        %v7023 = vsel %vm713, %v6991, 0
        %v7026 = vsel %vm713, %v6992, 0
        %7028 = vmatprep.subr.mxu0 0.0
        %7029 = vmatpush1.msra.mxu0 %v6993
        %7030 = vmatprep.subr.mxu0 0.0
        %7031 = vmatpush1.msra.mxu0 %v6994
        %7032 = vmatprep.subr.mxu0 0.0
        %7033 = vmatpush1.msra.mxu0 %v6995
        %7034 = vmatprep.subr.mxu0 0.0
        %7035 = vmatpush1.msra.mxu0 %v6996
        %7036 = vmatprep.subr.mxu0 0.0
        %7037 = vmatpush1.msra.mxu0 0.0
        %7038 = vmatprep.subr.mxu0 0.0
        %7039 = vmatpush1.msra.mxu0 0.0
        %7040 = vmatprep.subr.mxu0 0.0
        %7041 = vmatpush1.msra.mxu0 0.0
        %7042 = vmatprep.subr.mxu0 0.0
        %7043 = vmatpush1.msra.mxu0 0.0
        %7044 = vmatprep.subr.mxu0 0.0
        %7045 = vmatpush1.msra.mxu0 0.0
        %7046 = vmatprep.subr.mxu0 0.0
        %7047 = vmatpush1.msra.mxu0 0.0
        %7048 = vmatprep.subr.mxu0 0.0
        %7049 = vmatpush1.msra.mxu0 0.0
        %7050 = vmatprep.subr.mxu0 0.0
        %7051 = vmatpush1.msra.mxu0 0.0
        %7052 = vmatprep.subr.mxu0 0.0
        %7053 = vmatpush1.msra.mxu0 0.0
        %7054 = vmatprep.subr.mxu0 0.0
        %7055 = vmatpush1.msra.mxu0 0.0
        %7056 = vmatprep.subr.mxu0 0.0
        %7057 = vmatpush1.msra.mxu0 0.0
        %7058 = vmatprep.subr.mxu0 0.0
        %7059 = vmatpush1.msra.mxu0 0.0
        %7060 = vmatprep.subr.mxu0 0.0
        %7061 = vmatpush1.msra.mxu0 0.0
        %7062 = vmatprep.subr.mxu0 0.0
        %7063 = vmatpush1.msra.mxu0 0.0
        %7064 = vmatprep.subr.mxu0 0.0
        %7065 = vmatpush1.msra.mxu0 0.0
        %7066 = vmatprep.subr.mxu0 0.0
        %7067 = vmatpush1.msra.mxu0 0.0
        %7068 = vmatprep.subr.mxu0 0.0
        %7069 = vmatpush1.msra.mxu0 0.0
        %7070 = vmatprep.subr.mxu0 0.0
        %7071 = vmatpush1.msra.mxu0 0.0
        %7072 = vmatprep.subr.mxu0 0.0
        %7073 = vmatpush1.msra.mxu0 0.0
        %7074 = vmatprep.subr.mxu0 0.0
        %7075 = vmatpush1.msra.mxu0 0.0
        %7076 = vmatprep.subr.mxu0 0.0
        %7077 = vmatpush1.msra.mxu0 0.0
        %7078 = vmatprep.subr.mxu0 0.0
        %7079 = vmatpush1.msra.mxu0 0.0
        %7080 = vmatprep.subr.mxu0 0.0
        %7081 = vmatpush1.msra.mxu0 0.0
        %7082 = vmatprep.subr.mxu0 0.0
        %7083 = vmatpush1.msra.mxu0 0.0
        %7084 = vmatprep.subr.mxu0 0.0
        %7085 = vmatpush1.msra.mxu0 0.0
        %7086 = vmatprep.subr.mxu0 0.0
        %7087 = vmatpush1.msra.mxu0 0.0
        %7088 = vmatprep.subr.mxu0 0.0
        %7089 = vmatpush1.msra.mxu0 0.0
        %7090 = vmatprep.subr.mxu0 0.0
        %7091 = vmatpush1.msra.mxu0 0.0
        %7092 = vmatprep.mubr.f32.mxu0 0.0
        %7093 = vmatmul.mubr.f32.gmra.mrb[0].mxu0 %v7005
        %v7094 = vpop.f32.mrb[0].mxu0
        %v7095 = vadd.f32 %v7002, %v7094
        %v7096 = vpop.f32.mrb[0].mxu0
        %7097 = vmatprep.mubr.f32.mxu0 0.0
        %7098 = vmatmul.mubr.f32.gmra.mrb[0].mxu0 %v7008
        %v7099 = vpop.f32.mrb[0].mxu0
        %v7100 = vadd.f32 %v7002, %v7099
        %v7101 = vpop.f32.mrb[0].mxu0
        %7102 = vmatprep.mubr.f32.mxu0 0.0
        %7103 = vmatmul.mubr.f32.gmra.mrb[0].mxu0 %v7011
        %v7104 = vpop.f32.mrb[0].mxu0
        %v7105 = vadd.f32 %v7002, %v7104
        %v7106 = vpop.f32.mrb[0].mxu0
        %7107 = vmatprep.mubr.f32.mxu0 0.0
        %7108 = vmatmul.mubr.f32.gmra.mrb[0].mxu0 %v7014
        %v7109 = vpop.f32.mrb[0].mxu0
        %v7110 = vadd.f32 %v7002, %v7109
        %v7111 = vpop.f32.mrb[0].mxu0
        %7112 = vmatprep.mubr.f32.mxu0 0.0
        %7113 = vmatmul.mubr.f32.gmra.mrb[0].mxu0 %v7017
        %v7114 = vpop.f32.mrb[0].mxu0
        %v7115 = vadd.f32 %v7002, %v7114
        %v7116 = vpop.f32.mrb[0].mxu0
        %7117 = vmatprep.mubr.f32.mxu0 0.0
        %7118 = vmatmul.mubr.f32.gmra.mrb[0].mxu0 %v7020
        %v7119 = vpop.f32.mrb[0].mxu0
        %v7120 = vadd.f32 %v7002, %v7119
        %v7121 = vpop.f32.mrb[0].mxu0
        %7122 = vmatprep.mubr.f32.mxu0 0.0
        %7123 = vmatmul.mubr.f32.gmra.mrb[0].mxu0 %v7023
        %v7124 = vpop.f32.mrb[0].mxu0
        %v7125 = vadd.f32 %v7002, %v7124
        %v7126 = vpop.f32.mrb[0].mxu0
        %7127 = vmatprep.mubr.f32.mxu0 0.0
        %7128 = vmatmul.mubr.f32.gmra.mrb[0].mxu0 %v7026
        %v7129 = vpop.f32.mrb[0].mxu0
        %v7130 = vadd.f32 %v7002, %v7129
        %v7131 = vpop.f32.mrb[0].mxu0
        %7132 = vdwg.mxu0
        %v7133 = vmul.f32 %v7095, %v7095
        %v7134 = vmul.f32 %v7100, %v7100
        %v7135 = vmul.f32 %v7105, %v7105
        %v7136 = vmul.f32 %v7110, %v7110
        %v7137 = vmul.f32 %v7115, %v7115
        %v7138 = vmul.f32 %v7120, %v7120
        %v7139 = vmul.f32 %v7125, %v7125
        %v7140 = vmul.f32 %v7130, %v7130
        %v7141 = vmul.f32 %v7095, %v7133
        %v7142 = vmul.f32 %v7100, %v7134
        %v7143 = vmul.f32 %v7105, %v7135
        %v7144 = vmul.f32 %v7110, %v7136
        %v7145 = vmul.f32 %v7115, %v7137
        %v7146 = vmul.f32 %v7120, %v7138
        %v7147 = vmul.f32 %v7125, %v7139
        %v7148 = vmul.f32 %v7130, %v7140
        %v7149 = vmul.f32 %v7141, 0.044715
        %v7150 = vmul.f32 %v7142, 0.044715
        %v7151 = vmul.f32 %v7143, 0.044715
        %v7152 = vmul.f32 %v7144, 0.044715
        %v7153 = vmul.f32 %v7145, 0.044715
        %v7154 = vmul.f32 %v7146, 0.044715
        %v7155 = vmul.f32 %v7147, 0.044715
        %v7156 = vmul.f32 %v7148, 0.044715
        %v7157 = vadd.f32 %v7095, %v7149
        %v7158 = vadd.f32 %v7100, %v7150
        %v7159 = vadd.f32 %v7105, %v7151
        %v7160 = vadd.f32 %v7110, %v7152
        %v7161 = vadd.f32 %v7115, %v7153
        %v7162 = vadd.f32 %v7120, %v7154
        %v7163 = vadd.f32 %v7125, %v7155
        %v7164 = vadd.f32 %v7130, %v7156
        %v7165 = vmul.f32 %v7157, 0.7978846
        %v7166 = vmul.f32 %v7158, 0.7978846
        %v7167 = vmul.f32 %v7159, 0.7978846
        %v7168 = vmul.f32 %v7160, 0.7978846
        %v7169 = vmul.f32 %v7161, 0.7978846
        %v7170 = vmul.f32 %v7162, 0.7978846
        %v7171 = vmul.f32 %v7163, 0.7978846
        %v7172 = vmul.f32 %v7164, 0.7978846
        %v7173 = vtanh.pop %v7165
        %v7174 = vtanh.pop %v7166
        %v7175 = vtanh.pop %v7167
        %v7176 = vtanh.pop %v7168
        %v7177 = vtanh.pop %v7169
        %v7178 = vtanh.pop %v7170
        %v7179 = vtanh.pop %v7171
        %v7180 = vtanh.pop %v7172
        %v7181 = vadd.f32 %v7173, 1.0
        %v7182 = vadd.f32 %v7174, 1.0
        %v7183 = vadd.f32 %v7175, 1.0
        %v7184 = vadd.f32 %v7176, 1.0
        %v7185 = vadd.f32 %v7177, 1.0
        %v7186 = vadd.f32 %v7178, 1.0
        %v7187 = vadd.f32 %v7179, 1.0
        %v7188 = vadd.f32 %v7180, 1.0
        %v7189 = vmul.f32 %v7181, 0.5
        %v7190 = vmul.f32 %v7182, 0.5
        %v7191 = vmul.f32 %v7183, 0.5
        %v7192 = vmul.f32 %v7184, 0.5
        %v7193 = vmul.f32 %v7185, 0.5
        %v7194 = vmul.f32 %v7186, 0.5
        %v7195 = vmul.f32 %v7187, 0.5
        %v7196 = vmul.f32 %v7188, 0.5
        %v7197 = vmul.f32 %v7095, %v7189
        %v7198 = vmul.f32 %v7100, %v7190
        %v7199 = vmul.f32 %v7105, %v7191
        %v7200 = vmul.f32 %v7110, %v7192
        %v7201 = vmul.f32 %v7115, %v7193
        %v7202 = vmul.f32 %v7120, %v7194
        %v7203 = vmul.f32 %v7125, %v7195
        %v7204 = vmul.f32 %v7130, %v7196
        %v7205 = vld [vmem:[%s14] sm:$0xff]
        %v7206 = vld [vmem:[%s14 + $0x8] sm:$0xff]
        %v7207 = vld [vmem:[%s14 + $0x10] sm:$0xff]
        %v7208 = vld [vmem:[%s14 + $0x18] sm:$0xff]
        %v7209 = vld [vmem:[%s14 + $0x20] sm:$0xff]
        %v7210 = vld [vmem:[%s14 + $0x28] sm:$0xff]
        %v7211 = vld [vmem:[%s14 + $0x30] sm:$0xff]
        %v7212 = vld [vmem:[%s14 + $0x38] sm:$0xff]
        %v7213 = vld [vmem:[%s15] sm:$0x1]
        %v7215 = vlaneseq
        %v7216 = vshrl.u32 %v7215, 7
        %v7217 = vsub.s32 0, %v7216
        %v7218 = vrot.slane %v7213, %v7217
        %vm7220 = vcmask 523264
        %v7222 = vsel %vm7220, %v7197, 0
        %v7225 = vsel %vm7220, %v7198, 0
        %v7228 = vsel %vm7220, %v7199, 0
        %v7231 = vsel %vm7220, %v7200, 0
        %v7234 = vsel %vm7220, %v7201, 0
        %v7237 = vsel %vm7220, %v7202, 0
        %v7240 = vsel %vm7220, %v7203, 0
        %v7243 = vsel %vm7220, %v7204, 0
        %7245 = vmatprep.subr.mxu0 0.0
        %7246 = vmatpush1.msra.mxu0 %v7205
        %7247 = vmatprep.subr.mxu0 0.0
        %7248 = vmatpush1.msra.mxu0 %v7206
        %7249 = vmatprep.subr.mxu0 0.0
        %7250 = vmatpush1.msra.mxu0 %v7207
        %7251 = vmatprep.subr.mxu0 0.0
        %7252 = vmatpush1.msra.mxu0 %v7208
        %7253 = vmatprep.subr.mxu0 0.0
        %7254 = vmatpush1.msra.mxu0 %v7209
        %7255 = vmatprep.subr.mxu0 0.0
        %7256 = vmatpush1.msra.mxu0 %v7210
        %7257 = vmatprep.subr.mxu0 0.0
        %7258 = vmatpush1.msra.mxu0 %v7211
        %7259 = vmatprep.subr.mxu0 0.0
        %7260 = vmatpush1.msra.mxu0 %v7212
        %7261 = vmatprep.subr.mxu0 0.0
        %7262 = vmatpush1.msra.mxu0 0.0
        %7263 = vmatprep.subr.mxu0 0.0
        %7264 = vmatpush1.msra.mxu0 0.0
        %7265 = vmatprep.subr.mxu0 0.0
        %7266 = vmatpush1.msra.mxu0 0.0
        %7267 = vmatprep.subr.mxu0 0.0
        %7268 = vmatpush1.msra.mxu0 0.0
        %7269 = vmatprep.subr.mxu0 0.0
        %7270 = vmatpush1.msra.mxu0 0.0
        %7271 = vmatprep.subr.mxu0 0.0
        %7272 = vmatpush1.msra.mxu0 0.0
        %7273 = vmatprep.subr.mxu0 0.0
        %7274 = vmatpush1.msra.mxu0 0.0
        %7275 = vmatprep.subr.mxu0 0.0
        %7276 = vmatpush1.msra.mxu0 0.0
        %7277 = vmatprep.subr.mxu0 0.0
        %7278 = vmatpush1.msra.mxu0 0.0
        %7279 = vmatprep.subr.mxu0 0.0
        %7280 = vmatpush1.msra.mxu0 0.0
        %7281 = vmatprep.subr.mxu0 0.0
        %7282 = vmatpush1.msra.mxu0 0.0
        %7283 = vmatprep.subr.mxu0 0.0
        %7284 = vmatpush1.msra.mxu0 0.0
        %7285 = vmatprep.subr.mxu0 0.0
        %7286 = vmatpush1.msra.mxu0 0.0
        %7287 = vmatprep.subr.mxu0 0.0
        %7288 = vmatpush1.msra.mxu0 0.0
        %7289 = vmatprep.subr.mxu0 0.0
        %7290 = vmatpush1.msra.mxu0 0.0
        %7291 = vmatprep.subr.mxu0 0.0
        %7292 = vmatpush1.msra.mxu0 0.0
        %7293 = vmatprep.subr.mxu0 0.0
        %7294 = vmatpush1.msra.mxu0 0.0
        %7295 = vmatprep.subr.mxu0 0.0
        %7296 = vmatpush1.msra.mxu0 0.0
        %7297 = vmatprep.subr.mxu0 0.0
        %7298 = vmatpush1.msra.mxu0 0.0
        %7299 = vmatprep.subr.mxu0 0.0
        %7300 = vmatpush1.msra.mxu0 0.0
        %7301 = vmatprep.subr.mxu0 0.0
        %7302 = vmatpush1.msra.mxu0 0.0
        %7303 = vmatprep.subr.mxu0 0.0
        %7304 = vmatpush1.msra.mxu0 0.0
        %7305 = vmatprep.subr.mxu0 0.0
        %7306 = vmatpush1.msra.mxu0 0.0
        %7307 = vmatprep.subr.mxu0 0.0
        %7308 = vmatpush1.msra.mxu0 0.0
        %7309 = vmatprep.mubr.f32.mxu0 0.0
        %7310 = vmatmul.mubr.f32.gmra.mrb[0].mxu0 %v7222
        %v7311 = vpop.f32.mrb[0].mxu0
        %v7312 = vadd.f32 %v7218, %v7311
        %v7313 = vpop.f32.mrb[0].mxu0
        %7314 = vmatprep.mubr.f32.mxu0 0.0
        %7315 = vmatmul.mubr.f32.gmra.mrb[0].mxu0 %v7225
        %v7316 = vpop.f32.mrb[0].mxu0
        %v7317 = vadd.f32 %v7218, %v7316
        %v7318 = vpop.f32.mrb[0].mxu0
        %7319 = vmatprep.mubr.f32.mxu0 0.0
        %7320 = vmatmul.mubr.f32.gmra.mrb[0].mxu0 %v7228
        %v7321 = vpop.f32.mrb[0].mxu0
        %v7322 = vadd.f32 %v7218, %v7321
        %v7323 = vpop.f32.mrb[0].mxu0
        %7324 = vmatprep.mubr.f32.mxu0 0.0
        %7325 = vmatmul.mubr.f32.gmra.mrb[0].mxu0 %v7231
        %v7326 = vpop.f32.mrb[0].mxu0
        %v7327 = vadd.f32 %v7218, %v7326
        %v7328 = vpop.f32.mrb[0].mxu0
        %7329 = vmatprep.mubr.f32.mxu0 0.0
        %7330 = vmatmul.mubr.f32.gmra.mrb[0].mxu0 %v7234
        %v7331 = vpop.f32.mrb[0].mxu0
        %v7332 = vadd.f32 %v7218, %v7331
        %v7333 = vpop.f32.mrb[0].mxu0
        %7334 = vmatprep.mubr.f32.mxu0 0.0
        %7335 = vmatmul.mubr.f32.gmra.mrb[0].mxu0 %v7237
        %v7336 = vpop.f32.mrb[0].mxu0
        %v7337 = vadd.f32 %v7218, %v7336
        %v7338 = vpop.f32.mrb[0].mxu0
        %7339 = vmatprep.mubr.f32.mxu0 0.0
        %7340 = vmatmul.mubr.f32.gmra.mrb[0].mxu0 %v7240
        %v7341 = vpop.f32.mrb[0].mxu0
        %v7342 = vadd.f32 %v7218, %v7341
        %v7343 = vpop.f32.mrb[0].mxu0
        %7344 = vmatprep.mubr.f32.mxu0 0.0
        %7345 = vmatmul.mubr.f32.gmra.mrb[0].mxu0 %v7243
        %v7346 = vpop.f32.mrb[0].mxu0
        %v7347 = vadd.f32 %v7218, %v7346
        %v7348 = vpop.f32.mrb[0].mxu0
        %7349 = vdwg.mxu0
        %v7350 = vadd.f32 %v6851, %v7312
        %v7351 = vadd.f32 %v6852, %v7317
        %v7352 = vadd.f32 %v6853, %v7322
        %v7353 = vadd.f32 %v6854, %v7327
        %v7354 = vadd.f32 %v6855, %v7332
        %v7355 = vadd.f32 %v6856, %v7337
        %v7356 = vadd.f32 %v6857, %v7342
        %v7357 = vadd.f32 %v6858, %v7347
        %v7358 = vadd.f32 %v7350, %v666
        %v7359 = vadd.f32 %v7351, %v670
        %v7360 = vadd.f32 %v7352, %v674
        %v7361 = vadd.f32 %v7353, %v678
        %v7362 = vadd.f32 %v7354, %v682
        %v7363 = vadd.f32 %v7355, %v686
        %v7364 = vadd.f32 %v7356, %v690
        %v7365 = vadd.f32 %v7357, %v694
        %v7366 = vld [vmem:[%s16] sm:$0x1]
        %v7368 = vlaneseq
        %v7369 = vshrl.u32 %v7368, 7
        %v7370 = vsub.s32 0, %v7369
        %v7371 = vrot.slane %v7366, %v7370
        %v7373 = vmul.f32 %v7358, %v7371
        %v7374 = vmul.f32 %v7359, %v7371
        %v7375 = vmul.f32 %v7360, %v7371
        %v7376 = vmul.f32 %v7361, %v7371
        %v7377 = vmul.f32 %v7362, %v7371
        %v7378 = vmul.f32 %v7363, %v7371
        %v7379 = vmul.f32 %v7364, %v7371
        %v7380 = vmul.f32 %v7365, %v7371
        %v7381 = vsel %vm713, %v7373, 0.0
        %7382 = vadd.xlane.f32.xlu0 %v7381
        %v7383 = vpop.xlane.xlu0 %7382
        %v7384 = vsel %vm713, %v7374, 0.0
        %7385 = vadd.xlane.f32.xlu0 %v7384
        %v7386 = vpop.xlane.xlu0 %7385
        %v7387 = vsel %vm713, %v7375, 0.0
        %7388 = vadd.xlane.f32.xlu0 %v7387
        %v7389 = vpop.xlane.xlu0 %7388
        %v7390 = vsel %vm713, %v7376, 0.0
        %7391 = vadd.xlane.f32.xlu0 %v7390
        %v7392 = vpop.xlane.xlu0 %7391
        %v7393 = vsel %vm713, %v7377, 0.0
        %7394 = vadd.xlane.f32.xlu0 %v7393
        %v7395 = vpop.xlane.xlu0 %7394
        %v7396 = vsel %vm713, %v7378, 0.0
        %7397 = vadd.xlane.f32.xlu0 %v7396
        %v7398 = vpop.xlane.xlu0 %7397
        %v7399 = vsel %vm713, %v7379, 0.0
        %7400 = vadd.xlane.f32.xlu0 %v7399
        %v7401 = vpop.xlane.xlu0 %7400
        %v7402 = vsel %vm713, %v7380, 0.0
        %7403 = vadd.xlane.f32.xlu0 %v7402
        %v7404 = vpop.xlane.xlu0 %7403
        %v7405 = vld [vmem:[#allocation2] sm:$0x1]
        %v7407 = vlaneseq
        %v7408 = vshrl.u32 %v7407, 7
        %v7409 = vsub.s32 0, %v7408
        %v7410 = vrot.slane %v7405, %v7409
        %7411 = vset.pattern.permute.xlu0 0
        %7412 = vperm.xlu0 %7411, %v7410
        %v7413 = vpop.permute.xlu0 %7412
        %v7415 = vadd.f32 %v7383, %v7413
        %v7416 = vadd.f32 %v7386, %v7413
        %v7417 = vadd.f32 %v7389, %v7413
        %v7418 = vadd.f32 %v7392, %v7413
        %v7419 = vadd.f32 %v7395, %v7413
        %v7420 = vadd.f32 %v7398, %v7413
        %v7421 = vadd.f32 %v7401, %v7413
        %v7422 = vadd.f32 %v7404, %v7413
        %v7431 = vlaneseq
        %v7432 = vand.u32 %v7431, 127
        %v7433 = vlaneseq
        %v7434 = vshrl.u32 %v7433, 7
        %v7435 = vsub.s32 %v7432, %v7434
        %v7436 = vrot.slane %v7415, %v7435
        %v7437 = vlaneseq
        %v7438 = vshrl.u32 %v7437, 7
        %v7439 = vsub.s32 %v7432, %v7438
        %v7440 = vrot.slane %v7416, %v7439
        %v7441 = vlaneseq
        %v7442 = vshrl.u32 %v7441, 7
        %v7443 = vsub.s32 %v7432, %v7442
        %v7444 = vrot.slane %v7417, %v7443
        %v7445 = vlaneseq
        %v7446 = vshrl.u32 %v7445, 7
        %v7447 = vsub.s32 %v7432, %v7446
        %v7448 = vrot.slane %v7418, %v7447
        %v7449 = vlaneseq
        %v7450 = vshrl.u32 %v7449, 7
        %v7451 = vsub.s32 %v7432, %v7450
        %v7452 = vrot.slane %v7419, %v7451
        %v7453 = vlaneseq
        %v7454 = vshrl.u32 %v7453, 7
        %v7455 = vsub.s32 %v7432, %v7454
        %v7456 = vrot.slane %v7420, %v7455
        %v7457 = vlaneseq
        %v7458 = vshrl.u32 %v7457, 7
        %v7459 = vsub.s32 %v7432, %v7458
        %v7460 = vrot.slane %v7421, %v7459
        %v7461 = vlaneseq
        %v7462 = vshrl.u32 %v7461, 7
        %v7463 = vsub.s32 %v7432, %v7462
        %v7464 = vrot.slane %v7422, %v7463
        %vm7465 = vcmask 1041409
        %v7466 = vsel %vm7465, %v7440, %v7436
        %vm7467 = vcmask 1042434
        %v7468 = vsel %vm7467, %v7444, %v7466
        %vm7469 = vcmask 1043459
        %v7470 = vsel %vm7469, %v7448, %v7468
        %vm7471 = vcmask 1044484
        %v7472 = vsel %vm7471, %v7452, %v7470
        %vm7473 = vcmask 1045509
        %v7474 = vsel %vm7473, %v7456, %v7472
        %vm7475 = vcmask 1046534
        %v7476 = vsel %vm7475, %v7460, %v7474
        %vm7477 = vcmask 1047559
        %v7478 = vsel %vm7477, %v7464, %v7476
        %7480 = vst.msk [vmem:[%s581] sm:$0xff] %vm995, %v7478
        %s7481 = sand.u32 %s430, 1
        %s7482 = scalar_lea.sflag [#allocation4], %s7481
        %s7483 = sand.u32 %s430, 1
        %s7484 = smul.addr %s7483, 8
        %s7485 = scalar_lea.vmem [#allocation3], %s7484
        // Predicated region
        $region93: #{_lambda_.3} parent=91 // pred_check
          %p7486 = pneg %p440
        $region94: #{_lambda_.3} parent=91 // pred_check_branch
          %7488 = sbr.rel (%p7486) target = $region96
        $region95: #{_lambda_.3} parent=91 // pred_region
          %s7490 = ssub.s32 128, 128
          %7491 = vsyncadd %s7482, %s7490
          %s7492 = smul.addr %s34, 128
          %s7493 = scalar_lea.hbm %s18, %s7492
          %s7495 = sshll.u32 %s7485, 4
          %s7496 = int_to_ptr.vmem [resolvable:$true] %s7495
          %7498 = dma.vmem_to_hbm [thread:$0]  %s7496, 128, %s7493, %s7482
        $region96: #{_lambda_.3} parent=91 // pred_fallthru
          _
      $region92: #{_lambda_.3} parent=5 // pred_fallthru
        _
      %p7499 = scmp.le.s32.totalorder 2, %s29
      // Predicated region
      $region97: #{_lambda_.3} parent=5 // pred_check
        %p7500 = pneg %p7499
      $region98: #{_lambda_.3} parent=5 // pred_check_branch
        %7502 = sbr.rel (%p7500) target = $region100
      $region99: #{_lambda_.3} parent=5 // pred_region
        %s7503 = ssub.s32 %s29, 2
        // Predicated region
        $region101: #{_lambda_.3} parent=99 // pred_check
          %p7504 = pneg %p446
        $region102: #{_lambda_.3} parent=99 // pred_check_branch
          %7506 = sbr.rel (%p7504) target = $region104
        $region103: #{_lambda_.3} parent=99 // pred_region
          %s7507 = sand.u32 %s431, 1
          %s7508 = scalar_lea.sflag [#allocation4], %s7507
          %s7509 = sand.u32 %s431, 1
          %s7510 = smul.addr %s7509, 8
          %s7511 = scalar_lea.vmem [#allocation3], %s7510
          %7512 = dma.done %s7508, 128
        $region104: #{_lambda_.3} parent=99 // pred_fallthru
          _
      $region100: #{_lambda_.3} parent=5 // pred_fallthru
        _
    $region6: #{_lambda_.3} parent=1 // loop_footer
      %s33 = sadd.s32 1, %s29
    $region7: #{_lambda_.3} parent=1 // loop_footer_branch
      %28 = sbr.rel target = $region3
    $region8: #{_lambda_.3} parent=1 // loop_exit
      _
    %7513 = vsyncpa [#allocation4], 1
    %s7514 = scalar_lea.sflag [#allocation4], 1
    %7515 = vsyncpa %s7514, 1

</llo_original>
